<compile_context>
chip_gen: v5e
topology: v5e:2x2
jax: 0.10.0
libtpu: 0.0.40
codegen_flags: <defaults>
</compile_context>

<pallas_src>
import functools
import math

import jax
import jax.numpy as jnp
from jax.experimental import pallas as pl
from jax.experimental.pallas import tpu as pltpu


_VMEM_LIMIT = 32 * 1024 * 1024     # explicit scoped-VMEM ceiling (safe on v5e..v7x)
_TILE_BUDGET = 4 * 1024 * 1024     # per-step double-buffered activation budget


# ----------------------------------------------------------------------------
# tiling helpers
# ----------------------------------------------------------------------------

def _pick_row_tile(M, cap=1024):
    """Row tile for the pw matmul: divides M when possible, keeps >=2 steps."""
    for t in (1024, 512, 256, 128, 64, 32, 16, 8):
        if t <= cap and t < M and M % t == 0:
            return t
    if M > 8:   # no friendly divisor: non-dividing tile, caller pads the tail
        return min(cap, max(8, pl.next_power_of_2((M + 1) // 2)))
    return M


def _pick_h_tile(Ho, per_row_bytes, halo=0, budget=_TILE_BUDGET):
    """Largest divisor of Ho whose double-buffered slab fits the VMEM budget."""
    for t in range(Ho, 0, -1):
        if Ho % t == 0 and (t + halo) * per_row_bytes * 2 <= budget:
            return t
    return 1


# ----------------------------------------------------------------------------
# pl.Element halo support: probed once (value-checked), with safe fallback
# ----------------------------------------------------------------------------

_ELEMENT_HALO_OK = None


def _element_halo_supported():
    """True iff overlapping element-indexed row windows lower & behave correctly."""
    global _ELEMENT_HALO_OK
    if _ELEMENT_HALO_OK is not None:
        return _ELEMENT_HALO_OK
    try:
        a = jnp.arange(1 * 6 * 18 * 64, dtype=jnp.float32).reshape(1, 6, 18, 64)

        def copy_kernel(x_ref, o_ref):
            o_ref[...] = x_ref[...]

        out = pl.pallas_call(
            copy_kernel,
            out_shape=jax.ShapeDtypeStruct((2, 4, 18, 64), jnp.float32),
            grid_spec=pltpu.PrefetchScalarGridSpec(
                num_scalar_prefetch=0, grid=(2,),
                in_specs=[pl.BlockSpec((1, pl.Element(4), 18, 64),
                                       lambda i: (0, i * 2, 0, 0))],
                out_specs=pl.BlockSpec((1, 4, 18, 64), lambda i: (i, 0, 0, 0))),
            compiler_params=pltpu.CompilerParams(
                dimension_semantics=("arbitrary",),
                vmem_limit_bytes=_VMEM_LIMIT),
        )(a)
        want = jnp.stack([a[0, 0:4], a[0, 2:6]], axis=0)
        _ELEMENT_HALO_OK = bool(jnp.all(out == want))
    except Exception:
        _ELEMENT_HALO_OK = False
    return _ELEMENT_HALO_OK


# ----------------------------------------------------------------------------
# fused concat + (folded BN) + 1x1 conv  ->  multi-piece MXU matmul (bf16 out)
# ----------------------------------------------------------------------------

def _pw_kernel(*refs, n_in):
    xs = refs[:n_in]
    ws = refs[n_in:2 * n_in]
    b_ref = refs[2 * n_in]
    o_ref = refs[2 * n_in + 1]
    acc = jnp.zeros(o_ref.shape, jnp.float32)
    for x_ref, w_ref in zip(xs, ws):       # operands already bf16
        acc = acc + jnp.dot(x_ref[...], w_ref[...],
                            preferred_element_type=jnp.float32)
    o_ref[...] = (acc + b_ref[...]).astype(o_ref.dtype)


def pw_matmul(pieces, weights, bias):
    """sum_i pieces[i] @ weights[i] + bias  (bf16 pieces/weights, bf16 output).

    The channel concat of the reference model is expressed as the per-piece
    accumulation so the concatenated activation never hits HBM.
    """
    n_in = len(pieces)
    M = pieces[0].shape[0]
    Cout = weights[0].shape[1]
    tm = _pick_row_tile(M)
    grid_m = pl.cdiv(M, tm)                 # >=2 steps whenever M allows it
    Mp = grid_m * tm
    if Mp != M:                             # rare: pad the tail, slice after
        pieces = [jnp.pad(p, ((0, Mp - M), (0, 0))) for p in pieces]
    in_specs = ([pl.BlockSpec((tm, p.shape[1]), lambda i: (i, 0)) for p in pieces]
                + [pl.BlockSpec(w.shape, lambda i: (0, 0)) for w in weights]
                + [pl.BlockSpec((1, Cout), lambda i: (0, 0))])
    out = pl.pallas_call(
        functools.partial(_pw_kernel, n_in=n_in),
        out_shape=jax.ShapeDtypeStruct((Mp, Cout), jnp.bfloat16),
        grid_spec=pltpu.PrefetchScalarGridSpec(
            num_scalar_prefetch=0, grid=(grid_m,),
            in_specs=in_specs,
            out_specs=pl.BlockSpec((tm, Cout), lambda i: (i, 0))),
        compiler_params=pltpu.CompilerParams(
            dimension_semantics=("parallel",),
            vmem_limit_bytes=_VMEM_LIMIT),
    )(*pieces, *weights, bias.reshape(1, Cout))
    return out[:M] if Mp != M else out


def pwconv(x, pw):
    """Plain PWConv (1x1 conv)."""
    N, H, W, Cin = x.shape
    Cout = pw["w"].shape[1]
    y = pw_matmul([x.reshape(N * H * W, Cin)],
                  [pw["w"].astype(jnp.bfloat16)],
                  pw["b"].astype(jnp.float32))
    return y.reshape(N, H, W, Cout)


def _channel_stats(x):
    """Per-channel batch mean / biased variance over (N, H, W) (train-mode BN)."""
    x = x.astype(jnp.float32)
    m = jnp.mean(x, axis=(0, 1, 2))
    v = jnp.mean(jnp.square(x), axis=(0, 1, 2)) - m * m
    return m, jnp.maximum(v, 0.0)


def bn_fold_pw(pieces, stats, splits, bn, pw, eps=1e-5):
    """cat(pieces) -> BatchNorm2d -> PWConv with BN folded into the pw weights."""
    g, beta = bn["g"], bn["b"]
    w, b = pw["w"], pw["b"]                       # f32 master params
    N, H, W, _ = pieces[0].shape
    M = N * H * W
    Cout = w.shape[1]
    offs = [0]
    for c in splits:
        offs.append(offs[-1] + c)
    flat, w_scaled = [], []
    b_eff = b.astype(jnp.float32)
    for i, x in enumerate(pieces):
        lo, hi = offs[i], offs[i + 1]
        mean, var = stats[i]
        s = g[lo:hi] * jax.lax.rsqrt(var + eps)   # per-channel scale
        t = beta[lo:hi] - mean * s                # per-channel shift
        wi = w[lo:hi]                             # (C_i, Cout)
        w_scaled.append((wi * s[:, None]).astype(jnp.bfloat16))
        b_eff = b_eff + t @ wi
        flat.append(x.reshape(M, splits[i]))      # bf16 pieces, no concat
    y = pw_matmul(flat, w_scaled, b_eff)
    return y.reshape(N, H, W, Cout)


# ----------------------------------------------------------------------------
# 3x3 depthwise conv + bias + ReLU, with fused BN batch-stat partial sums
# ----------------------------------------------------------------------------

def _dw_slab_kernel(x_ref, w_ref, b_ref, *out_refs, relu, want_stats):
    # x_ref: (1, tho+2, W+2, C) bf16 slab (halo rows included in the block)
    o_ref = out_refs[0]
    tho, W, C = o_ref.shape[1], o_ref.shape[2], o_ref.shape[3]
    x = x_ref[0].astype(jnp.float32)              # upcast once for VPU math
    w = w_ref[...]                                # (9, C) f32
    acc = jnp.zeros((tho, W, C), jnp.float32)
    for k in range(9):
        ky, kx = divmod(k, 3)
        acc = acc + x[ky:ky + tho, kx:kx + W, :] * w[k][None, None, :]
    y = acc + b_ref[...]
    if relu:
        y = jnp.maximum(y, 0.0)
    o_ref[0] = y.astype(o_ref.dtype)
    if want_stats:                                # fused BN batch statistics
        s_ref = out_refs[1]
        s = jnp.sum(y, axis=(0, 1), keepdims=True).reshape(1, C)
        ss = jnp.sum(y * y, axis=(0, 1), keepdims=True).reshape(1, C)
        s_ref[0, 0] = jnp.concatenate(
            [s, ss, jnp.zeros((6, C), jnp.float32)], axis=0)


def _dw_tap_kernel(x_ref, w_ref, b_ref, o_ref, *, relu):
    # stride-2 path: x_ref (1, 9, tho, Wo, C) bf16 of pre-extracted strided taps
    tho, Wo, C = o_ref.shape[1], o_ref.shape[2], o_ref.shape[3]
    w = w_ref[...]
    acc = jnp.zeros((tho, Wo, C), jnp.float32)
    for k in range(9):
        acc = acc + x_ref[0, k].astype(jnp.float32) * w[k][None, None, :]
    y = acc + b_ref[...]
    if relu:
        y = jnp.maximum(y, 0.0)
    o_ref[0] = y.astype(o_ref.dtype)


def dwconv3x3(x, p, stride=1, relu=True, want_stats=False):
    """Depthwise 3x3 conv, padding=1, stride in {1,2}; DWConv(+ReLU).

    want_stats=True additionally returns (mean, var) batch stats of the output
    (computed from fused per-tile partial sums, no extra HBM pass).
    """
    w = p["w"].astype(jnp.float32)                # (9, C)
    b = p["b"].astype(jnp.float32)                # (C,)
    N, H, W, C = x.shape
    Ho, Wo = (H - 1) // stride + 1, (W - 1) // stride + 1
    xp = jnp.pad(x.astype(jnp.bfloat16), ((0, 0), (1, 1), (1, 1), (0, 0)))
    cp = pltpu.CompilerParams(dimension_semantics=("parallel", "parallel"),
                              vmem_limit_bytes=_VMEM_LIMIT)

    if stride == 1:
        per_row = ((W + 2) * C + W * C) * 2
        tho = _pick_h_tile(Ho, per_row, halo=2)
        if Ho // tho > 1 and _element_halo_supported():
            n_ht = Ho // tho                      # overlapping halo row slabs
            x_spec = pl.BlockSpec((1, pl.Element(tho + 2), W + 2, C),
                                  lambda n, h: (n, h * tho, 0, 0))
        else:                                     # small image: full slab/batch
            tho, n_ht = Ho, 1
            x_spec = pl.BlockSpec((1, H + 2, W + 2, C),
                                  lambda n, h: (n, 0, 0, 0))
        out_shape = (jax.ShapeDtypeStruct((N, Ho, Wo, C), jnp.bfloat16),)
        out_specs = (pl.BlockSpec((1, tho, Wo, C), lambda n, h: (n, h, 0, 0)),)
        if want_stats:
            out_shape += (jax.ShapeDtypeStruct((N, n_ht, 8, C), jnp.float32),)
            out_specs += (pl.BlockSpec((1, 1, 8, C), lambda n, h: (n, h, 0, 0)),)
        res = pl.pallas_call(
            functools.partial(_dw_slab_kernel, relu=relu, want_stats=want_stats),
            out_shape=out_shape,
            grid_spec=pltpu.PrefetchScalarGridSpec(
                num_scalar_prefetch=0, grid=(N, n_ht),
                in_specs=[x_spec,
                          pl.BlockSpec((9, C), lambda n, h: (0, 0)),
                          pl.BlockSpec((1, 1, C), lambda n, h: (0, 0, 0))],
                out_specs=out_specs),
            compiler_params=cp,
        )(xp, w, b.reshape(1, 1, C))
    else:
        assert not want_stats
        # compute only the kept output positions: bf16 stride-aligned taps
        taps = [xp[:, ky::stride, kx::stride, :][:, :Ho, :Wo, :]
                for ky in range(3) for kx in range(3)]
        x_in = jnp.stack(taps, axis=1)            # (N, 9, Ho, Wo, C) bf16
        per_row = (9 * Wo * C + Wo * C) * 2
        tho = _pick_h_tile(Ho, per_row, halo=0)
        n_ht = Ho // tho
        res = pl.pallas_call(
            functools.partial(_dw_tap_kernel, relu=relu),
            out_shape=(jax.ShapeDtypeStruct((N, Ho, Wo, C), jnp.bfloat16),),
            grid_spec=pltpu.PrefetchScalarGridSpec(
                num_scalar_prefetch=0, grid=(N, n_ht),
                in_specs=[pl.BlockSpec((1, 9, tho, Wo, C),
                                       lambda n, h: (n, 0, h, 0, 0)),
                          pl.BlockSpec((9, C), lambda n, h: (0, 0)),
                          pl.BlockSpec((1, 1, C), lambda n, h: (0, 0, 0))],
                out_specs=(pl.BlockSpec((1, tho, Wo, C),
                                        lambda n, h: (n, h, 0, 0)),)),
            compiler_params=cp,
        )(x_in, w, b.reshape(1, 1, C))

    y = res[0]
    if not want_stats:
        return y
    st = res[1]
    cnt = float(N * Ho * Wo)
    s = jnp.sum(st[:, :, 0, :], axis=(0, 1))
    ss = jnp.sum(st[:, :, 1, :], axis=(0, 1))
    mean = s / cnt
    var = jnp.maximum(ss / cnt - mean * mean, 0.0)
    return y, (mean, var)


# ----------------------------------------------------------------------------
# dense 3x3 residual conv fused with the residual add: out = conv3x3(x) + add
# ----------------------------------------------------------------------------

def _resconv_slab_kernel(x_ref, w_ref, b_ref, add_ref, o_ref):
    # stride-1 path: taps are built in VMEM from the padded slab (no im2col)
    tho, W, Cout = o_ref.shape[1], o_ref.shape[2], o_ref.shape[3]
    Cin = x_ref.shape[3]
    x = x_ref[0]                                  # (tho+2, W+2, Cin) bf16
    acc = jnp.zeros((tho * W, Cout), jnp.float32)
    for k in range(9):
        ky, kx = divmod(k, 3)
        tap = x[ky:ky + tho, kx:kx + W, :].reshape(tho * W, Cin)
        acc = acc + jnp.dot(tap, w_ref[k], preferred_element_type=jnp.float32)
    y = acc.reshape(tho, W, Cout) + b_ref[...] + add_ref[0].astype(jnp.float32)
    o_ref[0] = y


def _resconv_tap_kernel(x_ref, w_ref, b_ref, add_ref, o_ref):
    # stride-2 path: pre-extracted strided taps, pure MXU dots
    P, Cout = o_ref.shape[1], o_ref.shape[2]
    acc = jnp.zeros((P, Cout), jnp.float32)
    for k in range(9):
        acc = acc + jnp.dot(x_ref[0, k], w_ref[k],
                            preferred_element_type=jnp.float32)
    o_ref[0] = acc + b_ref[...] + add_ref[0].astype(jnp.float32)


def residual_conv3x3(x, p, add, stride=1):
    """nn.Conv2d(dim, dim, 3, stride, padding=1) fused with `+ add` (f32 out)."""
    w = p["w"].astype(jnp.bfloat16)               # (9, Cin, Cout)
    b = p["b"].astype(jnp.float32)
    N, H, W, Cin = x.shape
    Cout = w.shape[-1]
    Ho, Wo = (H - 1) // stride + 1, (W - 1) // stride + 1
    xp = jnp.pad(x.astype(jnp.bfloat16), ((0, 0), (1, 1), (1, 1), (0, 0)))
    addb = add.astype(jnp.bfloat16)
    cp = pltpu.CompilerParams(dimension_semantics=("parallel", "parallel"),
                              vmem_limit_bytes=_VMEM_LIMIT)

    if stride == 1:
        per_row = (W + 2) * Cin * 2 + W * Cout * (2 + 4)
        tho = _pick_h_tile(Ho, per_row, halo=2)
        if Ho // tho > 1 and _element_halo_supported():
            n_ht = Ho // tho
            x_spec = pl.BlockSpec((1, pl.Element(tho + 2), W + 2, Cin),
                                  lambda n, h: (n, h * tho, 0, 0))
        else:
            tho, n_ht = Ho, 1
            x_spec = pl.BlockSpec((1, H + 2, W + 2, Cin),
                                  lambda n, h: (n, 0, 0, 0))
        return pl.pallas_call(
            _resconv_slab_kernel,
            out_shape=jax.ShapeDtypeStruct((N, Ho, Wo, Cout), jnp.float32),
            grid_spec=pltpu.PrefetchScalarGridSpec(
                num_scalar_prefetch=0, grid=(N, n_ht),
                in_specs=[x_spec,
                          pl.BlockSpec((9, Cin, Cout), lambda n, h: (0, 0, 0)),
                          pl.BlockSpec((1, Cout), lambda n, h: (0, 0)),
                          pl.BlockSpec((1, tho, Wo, Cout),
                                       lambda n, h: (n, h, 0, 0))],
                out_specs=pl.BlockSpec((1, tho, Wo, Cout),
                                       lambda n, h: (n, h, 0, 0))),
            compiler_params=cp,
        )(xp, w, b.reshape(1, Cout), addb)

    # stride == 2: bf16 strided taps, only kept output rows are built (M/4)
    taps = [xp[:, ky::stride, kx::stride, :][:, :Ho, :Wo, :].reshape(N, Ho * Wo, Cin)
            for ky in range(3) for kx in range(3)]
    x_in = jnp.stack(taps, axis=1)                # (N, 9, Ho*Wo, Cin) bf16
    per_row = 9 * Wo * Cin * 2 + Wo * Cout * (2 + 4)
    tho = _pick_h_tile(Ho, per_row, halo=0)
    tp = tho * Wo
    out = pl.pallas_call(
        _resconv_tap_kernel,
        out_shape=jax.ShapeDtypeStruct((N, Ho * Wo, Cout), jnp.float32),
        grid_spec=pltpu.PrefetchScalarGridSpec(
            num_scalar_prefetch=0, grid=(N, Ho // tho),
            in_specs=[pl.BlockSpec((1, 9, tp, Cin), lambda n, h: (n, 0, h, 0)),
                      pl.BlockSpec((9, Cin, Cout), lambda n, h: (0, 0, 0)),
                      pl.BlockSpec((1, Cout), lambda n, h: (0, 0)),
                      pl.BlockSpec((1, tp, Cout), lambda n, h: (n, h, 0))],
            out_specs=pl.BlockSpec((1, tp, Cout), lambda n, h: (n, h, 0))),
        compiler_params=cp,
    )(x_in, w, b.reshape(1, Cout), addb.reshape(N, Ho * Wo, Cout))
    return out.reshape(N, Ho, Wo, Cout)


# ----------------------------------------------------------------------------
# parameter init (PyTorch-style fan-in uniform; BN affine = identity)
# ----------------------------------------------------------------------------

class KeyGen:
    def __init__(self, seed):
        self._key = jax.random.PRNGKey(seed)

    def __call__(self):
        self._key, k = jax.random.split(self._key)
        return k


def _uniform(key, shape, fan_in):
    bound = 1.0 / math.sqrt(fan_in)
    return jax.random.uniform(key, shape, jnp.float32, -bound, bound)


def init_pw(kg, cin, cout):
    return {"w": _uniform(kg(), (cin, cout), cin),
            "b": _uniform(kg(), (cout,), cin)}


def init_dw(kg, c):
    return {"w": _uniform(kg(), (9, c), 9),
            "b": _uniform(kg(), (c,), 9)}


def init_conv3(kg, cin, cout):
    return {"w": _uniform(kg(), (9, cin, cout), 9 * cin),
            "b": _uniform(kg(), (cout,), 9 * cin)}


def init_bn(c):
    return {"g": jnp.ones((c,), jnp.float32), "b": jnp.zeros((c,), jnp.float32)}


def init_depsep(kg, dim):
    h = dim // 2
    return {
        "pw1": init_pw(kg, dim, h), "dw1": init_dw(kg, h),
        "norm1": init_bn(dim + h),
        "pw2": init_pw(kg, dim + h, h), "dw2": init_dw(kg, h),
        "norm2": init_bn(2 * dim),
        "pw3": init_pw(kg, 2 * dim, h), "dw3": init_dw(kg, h),
        "norm3": init_bn(2 * dim + h),
        "pw4": init_pw(kg, 2 * dim + h, dim), "dw4": init_dw(kg, dim),
        "res": init_conv3(kg, dim, dim),
    }


# ----------------------------------------------------------------------------
# DepSep forward (NCHW in / NCHW out, like the PyTorch module)
# ----------------------------------------------------------------------------

def depsep_forward(params, x_nchw, stride=1):
    # NCHW <-> NHWC boundary transposes kept to preserve the PyTorch interface.
    x32 = jnp.transpose(x_nchw, (0, 2, 3, 1))     # NCHW -> NHWC
    dim = x32.shape[-1]
    h = dim // 2
    inp = x32.astype(jnp.bfloat16)                # bf16 at every HBM boundary
    st_in = _channel_stats(x32)                   # one fused sum/sumsq pass

    x = pwconv(inp, params["pw1"])
    pw1, st1 = dwconv3x3(x, params["dw1"], stride=1, want_stats=True)

    x = bn_fold_pw([inp, pw1], [st_in, st1], [dim, h],
                   params["norm1"], params["pw2"])
    pw2, st2 = dwconv3x3(x, params["dw2"], stride=1, want_stats=True)

    x = bn_fold_pw([inp, pw1, pw2], [st_in, st1, st2], [dim, h, h],
                   params["norm2"], params["pw3"])
    pw3, st3 = dwconv3x3(x, params["dw3"], stride=1, want_stats=True)

    x = bn_fold_pw([inp, pw1, pw2, pw3], [st_in, st1, st2, st3],
                   [dim, h, h, h], params["norm3"], params["pw4"])
    x = dwconv3x3(x, params["dw4"], stride=stride, want_stats=False)

    out = residual_conv3x3(inp, params["res"], add=x, stride=stride)
    return jnp.transpose(out, (0, 3, 1, 2))       # NHWC -> NCHW


# ----------------------------------------------------------------------------
# pure-JAX f32 reference (for a tolerance check against the bf16 kernel path)
# ----------------------------------------------------------------------------

def depsep_reference(params, x_nchw, stride=1, eps=1e-5):
    hp = jax.lax.Precision.HIGHEST
    x = jnp.transpose(x_nchw, (0, 2, 3, 1))
    inp = x

    def pw(x, p):
        return jnp.einsum("nhwc,cd->nhwd", x, p["w"], precision=hp) + p["b"]

    def dw(x, p, s):
        C = x.shape[-1]
        w = p["w"].reshape(3, 3, C)[:, :, None, :]
        y = jax.lax.conv_general_dilated(
            x, w, (s, s), ((1, 1), (1, 1)),
            dimension_numbers=("NHWC", "HWIO", "NHWC"),
            feature_group_count=C, precision=hp)
        return jax.nn.relu(y + p["b"])

    def bn(x, p):
        m = jnp.mean(x, axis=(0, 1, 2))
        v = jnp.mean(jnp.square(x - m), axis=(0, 1, 2))
        return (x - m) * jax.lax.rsqrt(v + eps) * p["g"] + p["b"]

    def conv3(x, p, s):
        w = p["w"].reshape(3, 3, p["w"].shape[1], p["w"].shape[2])
        return jax.lax.conv_general_dilated(
            x, w, (s, s), ((1, 1), (1, 1)),
            dimension_numbers=("NHWC", "HWIO", "NHWC"), precision=hp) + p["b"]

    pw1 = dw(pw(inp, params["pw1"]), params["dw1"], 1)
    x = pw(bn(jnp.concatenate([inp, pw1], -1), params["norm1"]), params["pw2"])
    pw2 = dw(x, params["dw2"], 1)
    x = pw(bn(jnp.concatenate([inp, pw1, pw2], -1), params["norm2"]), params["pw3"])
    pw3 = dw(x, params["dw3"], 1)
    x = pw(bn(jnp.concatenate([inp, pw1, pw2, pw3], -1), params["norm3"]), params["pw4"])
    x = dw(x, params["dw4"], stride)
    out = x + conv3(inp, params["res"], stride)
    return jnp.transpose(out, (0, 3, 1, 2))


# ----------------------------------------------------------------------------
# main
# ----------------------------------------------------------------------------

if __name__ == "__main__":
    N, dim, H, W = 2, 64, 16, 16
    x = jax.random.normal(jax.random.PRNGKey(0), (N, dim, H, W), jnp.float32)

    _element_halo_supported()     # probe & cache the Element-halo feature once

    for stride, seed in ((2, 1), (1, 2)):
        params = init_depsep(KeyGen(seed), dim)
        fwd = jax.jit(functools.partial(depsep_forward, stride=stride))
        out = fwd(params, x)
        jax.block_until_ready(out)

        Ho = (H - 1) // stride + 1
        assert out.shape == (N, dim, Ho, Ho), out.shape
        assert bool(jnp.all(jnp.isfinite(out)))

        ref = depsep_reference(params, x, stride=stride)
        rms_ref = float(jnp.sqrt(jnp.mean(jnp.square(ref))))
        rms_err = float(jnp.sqrt(jnp.mean(jnp.square(out - ref))))
        assert rms_err <= 0.08 * rms_ref + 5e-3, (stride, rms_err, rms_ref)

    print("KERNEL_OK")
</pallas_src>

<mosaic_0001>
module attributes {stable_mosaic.version = 11 : i64} {
  func.func @_pw_kernel(%arg0: i32, %arg1: memref<256x64xbf16, #tpu.memory_space<vmem>>, %arg2: memref<64x32xbf16, #tpu.memory_space<vmem>>, %arg3: memref<1x32xf32, #tpu.memory_space<vmem>>, %arg4: memref<256x32xbf16, #tpu.memory_space<vmem>>) attributes {dimension_semantics = [#tpu.dimension_semantics<parallel>], iteration_bounds = array<i64: 2>, scalar_prefetch = 0 : i64, scratch_operands = 0 : i64, tpu.core_type = #tpu.core_type<tc>, window_params = [{transform_indices = @transform_0, window_bounds = array<i64: 256, 64>}, {pipeline_mode = #tpu.pipeline_mode<synchronous>, transform_indices = @transform_1, window_bounds = array<i64: 64, 32>}, {pipeline_mode = #tpu.pipeline_mode<synchronous>, transform_indices = @transform_2, window_bounds = array<i64: 1, 32>}, {transform_indices = @transform_3, window_bounds = array<i64: 256, 32>}]} {
    %cst = arith.constant 0.000000e+00 : f32
    %0 = vector.broadcast %cst : f32 to vector<256x32xf32>
    %c0 = arith.constant 0 : index
    %c0_0 = arith.constant 0 : index
    %1 = vector.load %arg1[%c0, %c0_0] : memref<256x64xbf16, #tpu.memory_space<vmem>>, vector<256x64xbf16>
    %c0_1 = arith.constant 0 : index
    %c0_2 = arith.constant 0 : index
    %2 = vector.load %arg2[%c0_1, %c0_2] : memref<64x32xbf16, #tpu.memory_space<vmem>>, vector<64x32xbf16>
    %cst_3 = arith.constant dense<0.000000e+00> : vector<256x32xf32>
    %3 = tpu.matmul %1, %2, %cst_3 {dimension_numbers = #tpu.dot_dimension_numbers<[1], [0], [0], [1], [0, 0, 1, 1], [], []>} : vector<256x64xbf16>, vector<64x32xbf16>, vector<256x32xf32> -> vector<256x32xf32>
    %4 = arith.addf %0, %3 : vector<256x32xf32>
    %c0_4 = arith.constant 0 : index
    %c0_5 = arith.constant 0 : index
    %5 = vector.load %arg3[%c0_4, %c0_5] : memref<1x32xf32, #tpu.memory_space<vmem>>, vector<1x32xf32>
    %6 = vector.broadcast %5 : vector<1x32xf32> to vector<256x32xf32>
    %7 = arith.addf %4, %6 : vector<256x32xf32>
    %8 = arith.truncf %7 : vector<256x32xf32> to vector<256x32xbf16>
    %c0_6 = arith.constant 0 : index
    %c0_7 = arith.constant 0 : index
    %9 = vector.load %arg4[%c0_6, %c0_7] : memref<256x32xbf16, #tpu.memory_space<vmem>>, vector<256x32xbf16>
    tpu.vector_store %arg4[%c0_6, %c0_7], %8 {strides = array<i32>} : memref<256x32xbf16, #tpu.memory_space<vmem>>, vector<256x32xbf16>,
    return
  }
  func.func @transform_0(%arg0: i32) -> (i32, i32) {
    %c0_i32 = arith.constant 0 : i32
    %c0_i32_0 = arith.constant 0 : i32
    return %arg0, %c0_i32 : i32, i32
  }
  func.func @transform_1(%arg0: i32) -> (i32, i32) {
    %c0_i32 = arith.constant 0 : i32
    %c0_i32_0 = arith.constant 0 : i32
    %c0_i32_1 = arith.constant 0 : i32
    return %c0_i32, %c0_i32_0 : i32, i32
  }
  func.func @transform_2(%arg0: i32) -> (i32, i32) {
    %c0_i32 = arith.constant 0 : i32
    %c0_i32_0 = arith.constant 0 : i32
    %c0_i32_1 = arith.constant 0 : i32
    return %c0_i32, %c0_i32_0 : i32, i32
  }
  func.func @transform_3(%arg0: i32) -> (i32, i32) {
    %c0_i32 = arith.constant 0 : i32
    %c0_i32_0 = arith.constant 0 : i32
    return %arg0, %c0_i32 : i32, i32
  }
}

module attributes {stable_mosaic.version = 11 : i64} {
  func.func @_dw_slab_kernel(%arg0: i32, %arg1: i32, %arg2: memref<1x18x18x32xbf16, #tpu.memory_space<vmem>>, %arg3: memref<9x32xf32, #tpu.memory_space<vmem>>, %arg4: memref<1x1x32xf32, #tpu.memory_space<vmem>>, %arg5: memref<1x16x16x32xbf16, #tpu.memory_space<vmem>>, %arg6: memref<1x1x8x32xf32, #tpu.memory_space<vmem>>) attributes {dimension_semantics = [#tpu.dimension_semantics<parallel>, #tpu.dimension_semantics<parallel>], iteration_bounds = array<i64: 2, 1>, scalar_prefetch = 0 : i64, scratch_operands = 0 : i64, tpu.core_type = #tpu.core_type<tc>, window_params = [{transform_indices = @transform_0, window_bounds = array<i64: 1, 18, 18, 32>}, {pipeline_mode = #tpu.pipeline_mode<synchronous>, transform_indices = @transform_1, window_bounds = array<i64: 9, 32>}, {pipeline_mode = #tpu.pipeline_mode<synchronous>, transform_indices = @transform_2, window_bounds = array<i64: 1, 1, 32>}, {transform_indices = @transform_3, window_bounds = array<i64: 1, 16, 16, 32>}, {transform_indices = @transform_4, window_bounds = array<i64: 1, 1, 8, 32>}]} {
    %c0 = arith.constant 0 : index
    %c0_0 = arith.constant 0 : index
    %c0_1 = arith.constant 0 : index
    %c0_2 = arith.constant 0 : index
    %0 = vector.load %arg2[%c0, %c0_0, %c0_1, %c0_2] : memref<1x18x18x32xbf16, #tpu.memory_space<vmem>>, vector<1x18x18x32xbf16>
    %1 = vector.shape_cast %0 : vector<1x18x18x32xbf16> to vector<18x18x32xbf16>
    %2 = arith.extf %1 : vector<18x18x32xbf16> to vector<18x18x32xf32>
    %c0_3 = arith.constant 0 : index
    %c0_4 = arith.constant 0 : index
    %3 = vector.load %arg3[%c0_3, %c0_4] : memref<9x32xf32, #tpu.memory_space<vmem>>, vector<9x32xf32>
    %cst = arith.constant 0.000000e+00 : f32
    %4 = vector.broadcast %cst : f32 to vector<16x16x32xf32>
    %5 = vector.extract_strided_slice %2 {offsets = [0, 0, 0], sizes = [16, 16, 32], strides = [1, 1, 1]} : vector<18x18x32xf32> to vector<16x16x32xf32>
    %6 = vector.extract_strided_slice %3 {offsets = [0, 0], sizes = [1, 32], strides = [1, 1]} : vector<9x32xf32> to vector<1x32xf32>
    %7 = vector.shape_cast %6 : vector<1x32xf32> to vector<32xf32>
    %8 = vector.shape_cast %7 : vector<32xf32> to vector<1x1x32xf32>
    %9 = vector.broadcast %8 : vector<1x1x32xf32> to vector<16x16x32xf32>
    %10 = arith.mulf %5, %9 : vector<16x16x32xf32>
    %11 = arith.addf %4, %10 : vector<16x16x32xf32>
    %12 = vector.extract_strided_slice %2 {offsets = [0, 1, 0], sizes = [16, 16, 32], strides = [1, 1, 1]} : vector<18x18x32xf32> to vector<16x16x32xf32>
    %13 = vector.extract_strided_slice %3 {offsets = [1, 0], sizes = [1, 32], strides = [1, 1]} : vector<9x32xf32> to vector<1x32xf32>
    %14 = vector.shape_cast %13 : vector<1x32xf32> to vector<32xf32>
    %15 = vector.shape_cast %14 : vector<32xf32> to vector<1x1x32xf32>
    %16 = vector.broadcast %15 : vector<1x1x32xf32> to vector<16x16x32xf32>
    %17 = arith.mulf %12, %16 : vector<16x16x32xf32>
    %18 = arith.addf %11, %17 : vector<16x16x32xf32>
    %19 = vector.extract_strided_slice %2 {offsets = [0, 2, 0], sizes = [16, 16, 32], strides = [1, 1, 1]} : vector<18x18x32xf32> to vector<16x16x32xf32>
    %20 = vector.extract_strided_slice %3 {offsets = [2, 0], sizes = [1, 32], strides = [1, 1]} : vector<9x32xf32> to vector<1x32xf32>
    %21 = vector.shape_cast %20 : vector<1x32xf32> to vector<32xf32>
    %22 = vector.shape_cast %21 : vector<32xf32> to vector<1x1x32xf32>
    %23 = vector.broadcast %22 : vector<1x1x32xf32> to vector<16x16x32xf32>
    %24 = arith.mulf %19, %23 : vector<16x16x32xf32>
    %25 = arith.addf %18, %24 : vector<16x16x32xf32>
    %26 = vector.extract_strided_slice %2 {offsets = [1, 0, 0], sizes = [16, 16, 32], strides = [1, 1, 1]} : vector<18x18x32xf32> to vector<16x16x32xf32>
    %27 = vector.extract_strided_slice %3 {offsets = [3, 0], sizes = [1, 32], strides = [1, 1]} : vector<9x32xf32> to vector<1x32xf32>
    %28 = vector.shape_cast %27 : vector<1x32xf32> to vector<32xf32>
    %29 = vector.shape_cast %28 : vector<32xf32> to vector<1x1x32xf32>
    %30 = vector.broadcast %29 : vector<1x1x32xf32> to vector<16x16x32xf32>
    %31 = arith.mulf %26, %30 : vector<16x16x32xf32>
    %32 = arith.addf %25, %31 : vector<16x16x32xf32>
    %33 = vector.extract_strided_slice %2 {offsets = [1, 1, 0], sizes = [16, 16, 32], strides = [1, 1, 1]} : vector<18x18x32xf32> to vector<16x16x32xf32>
    %34 = vector.extract_strided_slice %3 {offsets = [4, 0], sizes = [1, 32], strides = [1, 1]} : vector<9x32xf32> to vector<1x32xf32>
    %35 = vector.shape_cast %34 : vector<1x32xf32> to vector<32xf32>
    %36 = vector.shape_cast %35 : vector<32xf32> to vector<1x1x32xf32>
    %37 = vector.broadcast %36 : vector<1x1x32xf32> to vector<16x16x32xf32>
    %38 = arith.mulf %33, %37 : vector<16x16x32xf32>
    %39 = arith.addf %32, %38 : vector<16x16x32xf32>
    %40 = vector.extract_strided_slice %2 {offsets = [1, 2, 0], sizes = [16, 16, 32], strides = [1, 1, 1]} : vector<18x18x32xf32> to vector<16x16x32xf32>
    %41 = vector.extract_strided_slice %3 {offsets = [5, 0], sizes = [1, 32], strides = [1, 1]} : vector<9x32xf32> to vector<1x32xf32>
    %42 = vector.shape_cast %41 : vector<1x32xf32> to vector<32xf32>
    %43 = vector.shape_cast %42 : vector<32xf32> to vector<1x1x32xf32>
    %44 = vector.broadcast %43 : vector<1x1x32xf32> to vector<16x16x32xf32>
    %45 = arith.mulf %40, %44 : vector<16x16x32xf32>
    %46 = arith.addf %39, %45 : vector<16x16x32xf32>
    %47 = vector.extract_strided_slice %2 {offsets = [2, 0, 0], sizes = [16, 16, 32], strides = [1, 1, 1]} : vector<18x18x32xf32> to vector<16x16x32xf32>
    %48 = vector.extract_strided_slice %3 {offsets = [6, 0], sizes = [1, 32], strides = [1, 1]} : vector<9x32xf32> to vector<1x32xf32>
    %49 = vector.shape_cast %48 : vector<1x32xf32> to vector<32xf32>
    %50 = vector.shape_cast %49 : vector<32xf32> to vector<1x1x32xf32>
    %51 = vector.broadcast %50 : vector<1x1x32xf32> to vector<16x16x32xf32>
    %52 = arith.mulf %47, %51 : vector<16x16x32xf32>
    %53 = arith.addf %46, %52 : vector<16x16x32xf32>
    %54 = vector.extract_strided_slice %2 {offsets = [2, 1, 0], sizes = [16, 16, 32], strides = [1, 1, 1]} : vector<18x18x32xf32> to vector<16x16x32xf32>
    %55 = vector.extract_strided_slice %3 {offsets = [7, 0], sizes = [1, 32], strides = [1, 1]} : vector<9x32xf32> to vector<1x32xf32>
    %56 = vector.shape_cast %55 : vector<1x32xf32> to vector<32xf32>
    %57 = vector.shape_cast %56 : vector<32xf32> to vector<1x1x32xf32>
    %58 = vector.broadcast %57 : vector<1x1x32xf32> to vector<16x16x32xf32>
    %59 = arith.mulf %54, %58 : vector<16x16x32xf32>
    %60 = arith.addf %53, %59 : vector<16x16x32xf32>
    %61 = vector.extract_strided_slice %2 {offsets = [2, 2, 0], sizes = [16, 16, 32], strides = [1, 1, 1]} : vector<18x18x32xf32> to vector<16x16x32xf32>
    %62 = vector.extract_strided_slice %3 {offsets = [8, 0], sizes = [1, 32], strides = [1, 1]} : vector<9x32xf32> to vector<1x32xf32>
    %63 = vector.shape_cast %62 : vector<1x32xf32> to vector<32xf32>
    %64 = vector.shape_cast %63 : vector<32xf32> to vector<1x1x32xf32>
    %65 = vector.broadcast %64 : vector<1x1x32xf32> to vector<16x16x32xf32>
    %66 = arith.mulf %61, %65 : vector<16x16x32xf32>
    %67 = arith.addf %60, %66 : vector<16x16x32xf32>
    %c0_5 = arith.constant 0 : index
    %c0_6 = arith.constant 0 : index
    %c0_7 = arith.constant 0 : index
    %68 = vector.load %arg4[%c0_5, %c0_6, %c0_7] : memref<1x1x32xf32, #tpu.memory_space<vmem>>, vector<1x1x32xf32>
    %69 = vector.broadcast %68 : vector<1x1x32xf32> to vector<16x16x32xf32>
    %70 = arith.addf %67, %69 : vector<16x16x32xf32>
    %cst_8 = arith.constant 0.000000e+00 : f32
    %71 = vector.broadcast %cst_8 : f32 to vector<16x16x32xf32>
    %72 = arith.maximumf %70, %71 : vector<16x16x32xf32>
    %73 = arith.truncf %72 : vector<16x16x32xf32> to vector<16x16x32xbf16>
    %c0_9 = arith.constant 0 : index
    %c0_10 = arith.constant 0 : index
    %c0_11 = arith.constant 0 : index
    %c0_12 = arith.constant 0 : index
    %74 = vector.load %arg5[%c0_9, %c0_10, %c0_11, %c0_12] : memref<1x16x16x32xbf16, #tpu.memory_space<vmem>>, vector<1x16x16x32xbf16>
    %75 = vector.shape_cast %74 : vector<1x16x16x32xbf16> to vector<16x16x32xbf16>
    %76 = vector.shape_cast %73 : vector<16x16x32xbf16> to vector<1x16x16x32xbf16>
    tpu.vector_store %arg5[%c0_9, %c0_10, %c0_11, %c0_12], %76 {strides = array<i32>} : memref<1x16x16x32xbf16, #tpu.memory_space<vmem>>, vector<1x16x16x32xbf16>,
    %cst_13 = arith.constant dense<0.000000e+00> : vector<32xf32>
    %77 = vector.multi_reduction <add>, %72, %cst_13 [0, 1] : vector<16x16x32xf32> to vector<32xf32>
    %78 = vector.shape_cast %77 : vector<32xf32> to vector<1x1x32xf32>
    %79 = vector.shape_cast %78 : vector<1x1x32xf32> to vector<1x32xf32>
    %80 = arith.mulf %72, %72 : vector<16x16x32xf32>
    %cst_14 = arith.constant dense<0.000000e+00> : vector<32xf32>
    %81 = vector.multi_reduction <add>, %80, %cst_14 [0, 1] : vector<16x16x32xf32> to vector<32xf32>
    %82 = vector.shape_cast %81 : vector<32xf32> to vector<1x1x32xf32>
    %83 = vector.shape_cast %82 : vector<1x1x32xf32> to vector<1x32xf32>
    %cst_15 = arith.constant 0.000000e+00 : f32
    %84 = vector.broadcast %cst_15 : f32 to vector<6x32xf32>
    %85 = tpu.concatenate %79, %83, %84 in 0 : vector<1x32xf32>, vector<1x32xf32>, vector<6x32xf32> -> vector<8x32xf32>
    %c0_16 = arith.constant 0 : index
    %c0_17 = arith.constant 0 : index
    %c0_18 = arith.constant 0 : index
    %c0_19 = arith.constant 0 : index
    %86 = vector.load %arg6[%c0_16, %c0_17, %c0_18, %c0_19] : memref<1x1x8x32xf32, #tpu.memory_space<vmem>>, vector<1x1x8x32xf32>
    %87 = vector.shape_cast %86 : vector<1x1x8x32xf32> to vector<8x32xf32>
    %88 = vector.shape_cast %85 : vector<8x32xf32> to vector<1x1x8x32xf32>
    tpu.vector_store %arg6[%c0_16, %c0_17, %c0_18, %c0_19], %88 {strides = array<i32>} : memref<1x1x8x32xf32, #tpu.memory_space<vmem>>, vector<1x1x8x32xf32>,
    return
  }
  func.func @transform_0(%arg0: i32, %arg1: i32) -> (i32, i32, i32, i32) {
    %c0_i32 = arith.constant 0 : i32
    %c0_i32_0 = arith.constant 0 : i32
    %c0_i32_1 = arith.constant 0 : i32
    %c0_i32_2 = arith.constant 0 : i32
    return %arg0, %c0_i32, %c0_i32_0, %c0_i32_1 : i32, i32, i32, i32
  }
  func.func @transform_1(%arg0: i32, %arg1: i32) -> (i32, i32) {
    %c0_i32 = arith.constant 0 : i32
    %c0_i32_0 = arith.constant 0 : i32
    %c0_i32_1 = arith.constant 0 : i32
    return %c0_i32, %c0_i32_0 : i32, i32
  }
  func.func @transform_2(%arg0: i32, %arg1: i32) -> (i32, i32, i32) {
    %c0_i32 = arith.constant 0 : i32
    %c0_i32_0 = arith.constant 0 : i32
    %c0_i32_1 = arith.constant 0 : i32
    %c0_i32_2 = arith.constant 0 : i32
    return %c0_i32, %c0_i32_0, %c0_i32_1 : i32, i32, i32
  }
  func.func @transform_3(%arg0: i32, %arg1: i32) -> (i32, i32, i32, i32) {
    %c0_i32 = arith.constant 0 : i32
    %c0_i32_0 = arith.constant 0 : i32
    %c0_i32_1 = arith.constant 0 : i32
    return %arg0, %arg1, %c0_i32, %c0_i32_0 : i32, i32, i32, i32
  }
  func.func @transform_4(%arg0: i32, %arg1: i32) -> (i32, i32, i32, i32) {
    %c0_i32 = arith.constant 0 : i32
    %c0_i32_0 = arith.constant 0 : i32
    %c0_i32_1 = arith.constant 0 : i32
    return %arg0, %arg1, %c0_i32, %c0_i32_0 : i32, i32, i32, i32
  }
}

module attributes {stable_mosaic.version = 11 : i64} {
  func.func @_pw_kernel(%arg0: i32, %arg1: memref<256x64xbf16, #tpu.memory_space<vmem>>, %arg2: memref<256x32xbf16, #tpu.memory_space<vmem>>, %arg3: memref<64x32xbf16, #tpu.memory_space<vmem>>, %arg4: memref<32x32xbf16, #tpu.memory_space<vmem>>, %arg5: memref<1x32xf32, #tpu.memory_space<vmem>>, %arg6: memref<256x32xbf16, #tpu.memory_space<vmem>>) attributes {dimension_semantics = [#tpu.dimension_semantics<parallel>], iteration_bounds = array<i64: 2>, scalar_prefetch = 0 : i64, scratch_operands = 0 : i64, tpu.core_type = #tpu.core_type<tc>, window_params = [{transform_indices = @transform_0, window_bounds = array<i64: 256, 64>}, {transform_indices = @transform_1, window_bounds = array<i64: 256, 32>}, {pipeline_mode = #tpu.pipeline_mode<synchronous>, transform_indices = @transform_2, window_bounds = array<i64: 64, 32>}, {pipeline_mode = #tpu.pipeline_mode<synchronous>, transform_indices = @transform_3, window_bounds = array<i64: 32, 32>}, {pipeline_mode = #tpu.pipeline_mode<synchronous>, transform_indices = @transform_4, window_bounds = array<i64: 1, 32>}, {transform_indices = @transform_5, window_bounds = array<i64: 256, 32>}]} {
    %cst = arith.constant 0.000000e+00 : f32
    %0 = vector.broadcast %cst : f32 to vector<256x32xf32>
    %c0 = arith.constant 0 : index
    %c0_0 = arith.constant 0 : index
    %1 = vector.load %arg1[%c0, %c0_0] : memref<256x64xbf16, #tpu.memory_space<vmem>>, vector<256x64xbf16>
    %c0_1 = arith.constant 0 : index
    %c0_2 = arith.constant 0 : index
    %2 = vector.load %arg3[%c0_1, %c0_2] : memref<64x32xbf16, #tpu.memory_space<vmem>>, vector<64x32xbf16>
    %cst_3 = arith.constant dense<0.000000e+00> : vector<256x32xf32>
    %3 = tpu.matmul %1, %2, %cst_3 {dimension_numbers = #tpu.dot_dimension_numbers<[1], [0], [0], [1], [0, 0, 1, 1], [], []>} : vector<256x64xbf16>, vector<64x32xbf16>, vector<256x32xf32> -> vector<256x32xf32>
    %4 = arith.addf %0, %3 : vector<256x32xf32>
    %c0_4 = arith.constant 0 : index
    %c0_5 = arith.constant 0 : index
    %5 = vector.load %arg2[%c0_4, %c0_5] : memref<256x32xbf16, #tpu.memory_space<vmem>>, vector<256x32xbf16>
    %c0_6 = arith.constant 0 : index
    %c0_7 = arith.constant 0 : index
    %6 = vector.load %arg4[%c0_6, %c0_7] : memref<32x32xbf16, #tpu.memory_space<vmem>>, vector<32x32xbf16>
    %cst_8 = arith.constant dense<0.000000e+00> : vector<256x32xf32>
    %7 = tpu.matmul %5, %6, %cst_8 {dimension_numbers = #tpu.dot_dimension_numbers<[1], [0], [0], [1], [0, 0, 1, 1], [], []>} : vector<256x32xbf16>, vector<32x32xbf16>, vector<256x32xf32> -> vector<256x32xf32>
    %8 = arith.addf %4, %7 : vector<256x32xf32>
    %c0_9 = arith.constant 0 : index
    %c0_10 = arith.constant 0 : index
    %9 = vector.load %arg5[%c0_9, %c0_10] : memref<1x32xf32, #tpu.memory_space<vmem>>, vector<1x32xf32>
    %10 = vector.broadcast %9 : vector<1x32xf32> to vector<256x32xf32>
    %11 = arith.addf %8, %10 : vector<256x32xf32>
    %12 = arith.truncf %11 : vector<256x32xf32> to vector<256x32xbf16>
    %c0_11 = arith.constant 0 : index
    %c0_12 = arith.constant 0 : index
    %13 = vector.load %arg6[%c0_11, %c0_12] : memref<256x32xbf16, #tpu.memory_space<vmem>>, vector<256x32xbf16>
    tpu.vector_store %arg6[%c0_11, %c0_12], %12 {strides = array<i32>} : memref<256x32xbf16, #tpu.memory_space<vmem>>, vector<256x32xbf16>,
    return
  }
  func.func @transform_0(%arg0: i32) -> (i32, i32) {
    %c0_i32 = arith.constant 0 : i32
    %c0_i32_0 = arith.constant 0 : i32
    return %arg0, %c0_i32 : i32, i32
  }
  func.func @transform_1(%arg0: i32) -> (i32, i32) {
    %c0_i32 = arith.constant 0 : i32
    %c0_i32_0 = arith.constant 0 : i32
    return %arg0, %c0_i32 : i32, i32
  }
  func.func @transform_2(%arg0: i32) -> (i32, i32) {
    %c0_i32 = arith.constant 0 : i32
    %c0_i32_0 = arith.constant 0 : i32
    %c0_i32_1 = arith.constant 0 : i32
    return %c0_i32, %c0_i32_0 : i32, i32
  }
  func.func @transform_3(%arg0: i32) -> (i32, i32) {
    %c0_i32 = arith.constant 0 : i32
    %c0_i32_0 = arith.constant 0 : i32
    %c0_i32_1 = arith.constant 0 : i32
    return %c0_i32, %c0_i32_0 : i32, i32
  }
  func.func @transform_4(%arg0: i32) -> (i32, i32) {
    %c0_i32 = arith.constant 0 : i32
    %c0_i32_0 = arith.constant 0 : i32
    %c0_i32_1 = arith.constant 0 : i32
    return %c0_i32, %c0_i32_0 : i32, i32
  }
  func.func @transform_5(%arg0: i32) -> (i32, i32) {
    %c0_i32 = arith.constant 0 : i32
    %c0_i32_0 = arith.constant 0 : i32
    return %arg0, %c0_i32 : i32, i32
  }
}

module attributes {stable_mosaic.version = 11 : i64} {
  func.func @_pw_kernel(%arg0: i32, %arg1: memref<256x64xbf16, #tpu.memory_space<vmem>>, %arg2: memref<256x32xbf16, #tpu.memory_space<vmem>>, %arg3: memref<256x32xbf16, #tpu.memory_space<vmem>>, %arg4: memref<64x32xbf16, #tpu.memory_space<vmem>>, %arg5: memref<32x32xbf16, #tpu.memory_space<vmem>>, %arg6: memref<32x32xbf16, #tpu.memory_space<vmem>>, %arg7: memref<1x32xf32, #tpu.memory_space<vmem>>, %arg8: memref<256x32xbf16, #tpu.memory_space<vmem>>) attributes {dimension_semantics = [#tpu.dimension_semantics<parallel>], iteration_bounds = array<i64: 2>, scalar_prefetch = 0 : i64, scratch_operands = 0 : i64, tpu.core_type = #tpu.core_type<tc>, window_params = [{transform_indices = @transform_0, window_bounds = array<i64: 256, 64>}, {transform_indices = @transform_1, window_bounds = array<i64: 256, 32>}, {transform_indices = @transform_2, window_bounds = array<i64: 256, 32>}, {pipeline_mode = #tpu.pipeline_mode<synchronous>, transform_indices = @transform_3, window_bounds = array<i64: 64, 32>}, {pipeline_mode = #tpu.pipeline_mode<synchronous>, transform_indices = @transform_4, window_bounds = array<i64: 32, 32>}, {pipeline_mode = #tpu.pipeline_mode<synchronous>, transform_indices = @transform_5, window_bounds = array<i64: 32, 32>}, {pipeline_mode = #tpu.pipeline_mode<synchronous>, transform_indices = @transform_6, window_bounds = array<i64: 1, 32>}, {transform_indices = @transform_7, window_bounds = array<i64: 256, 32>}]} {
    %cst = arith.constant 0.000000e+00 : f32
    %0 = vector.broadcast %cst : f32 to vector<256x32xf32>
    %c0 = arith.constant 0 : index
    %c0_0 = arith.constant 0 : index
    %1 = vector.load %arg1[%c0, %c0_0] : memref<256x64xbf16, #tpu.memory_space<vmem>>, vector<256x64xbf16>
    %c0_1 = arith.constant 0 : index
    %c0_2 = arith.constant 0 : index
    %2 = vector.load %arg4[%c0_1, %c0_2] : memref<64x32xbf16, #tpu.memory_space<vmem>>, vector<64x32xbf16>
    %cst_3 = arith.constant dense<0.000000e+00> : vector<256x32xf32>
    %3 = tpu.matmul %1, %2, %cst_3 {dimension_numbers = #tpu.dot_dimension_numbers<[1], [0], [0], [1], [0, 0, 1, 1], [], []>} : vector<256x64xbf16>, vector<64x32xbf16>, vector<256x32xf32> -> vector<256x32xf32>
    %4 = arith.addf %0, %3 : vector<256x32xf32>
    %c0_4 = arith.constant 0 : index
    %c0_5 = arith.constant 0 : index
    %5 = vector.load %arg2[%c0_4, %c0_5] : memref<256x32xbf16, #tpu.memory_space<vmem>>, vector<256x32xbf16>
    %c0_6 = arith.constant 0 : index
    %c0_7 = arith.constant 0 : index
    %6 = vector.load %arg5[%c0_6, %c0_7] : memref<32x32xbf16, #tpu.memory_space<vmem>>, vector<32x32xbf16>
    %cst_8 = arith.constant dense<0.000000e+00> : vector<256x32xf32>
    %7 = tpu.matmul %5, %6, %cst_8 {dimension_numbers = #tpu.dot_dimension_numbers<[1], [0], [0], [1], [0, 0, 1, 1], [], []>} : vector<256x32xbf16>, vector<32x32xbf16>, vector<256x32xf32> -> vector<256x32xf32>
    %8 = arith.addf %4, %7 : vector<256x32xf32>
    %c0_9 = arith.constant 0 : index
    %c0_10 = arith.constant 0 : index
    %9 = vector.load %arg3[%c0_9, %c0_10] : memref<256x32xbf16, #tpu.memory_space<vmem>>, vector<256x32xbf16>
    %c0_11 = arith.constant 0 : index
    %c0_12 = arith.constant 0 : index
    %10 = vector.load %arg6[%c0_11, %c0_12] : memref<32x32xbf16, #tpu.memory_space<vmem>>, vector<32x32xbf16>
    %cst_13 = arith.constant dense<0.000000e+00> : vector<256x32xf32>
    %11 = tpu.matmul %9, %10, %cst_13 {dimension_numbers = #tpu.dot_dimension_numbers<[1], [0], [0], [1], [0, 0, 1, 1], [], []>} : vector<256x32xbf16>, vector<32x32xbf16>, vector<256x32xf32> -> vector<256x32xf32>
    %12 = arith.addf %8, %11 : vector<256x32xf32>
    %c0_14 = arith.constant 0 : index
    %c0_15 = arith.constant 0 : index
    %13 = vector.load %arg7[%c0_14, %c0_15] : memref<1x32xf32, #tpu.memory_space<vmem>>, vector<1x32xf32>
    %14 = vector.broadcast %13 : vector<1x32xf32> to vector<256x32xf32>
    %15 = arith.addf %12, %14 : vector<256x32xf32>
    %16 = arith.truncf %15 : vector<256x32xf32> to vector<256x32xbf16>
    %c0_16 = arith.constant 0 : index
    %c0_17 = arith.constant 0 : index
    %17 = vector.load %arg8[%c0_16, %c0_17] : memref<256x32xbf16, #tpu.memory_space<vmem>>, vector<256x32xbf16>
    tpu.vector_store %arg8[%c0_16, %c0_17], %16 {strides = array<i32>} : memref<256x32xbf16, #tpu.memory_space<vmem>>, vector<256x32xbf16>,
    return
  }
  func.func @transform_0(%arg0: i32) -> (i32, i32) {
    %c0_i32 = arith.constant 0 : i32
    %c0_i32_0 = arith.constant 0 : i32
    return %arg0, %c0_i32 : i32, i32
  }
  func.func @transform_1(%arg0: i32) -> (i32, i32) {
    %c0_i32 = arith.constant 0 : i32
    %c0_i32_0 = arith.constant 0 : i32
    return %arg0, %c0_i32 : i32, i32
  }
  func.func @transform_2(%arg0: i32) -> (i32, i32) {
    %c0_i32 = arith.constant 0 : i32
    %c0_i32_0 = arith.constant 0 : i32
    return %arg0, %c0_i32 : i32, i32
  }
  func.func @transform_3(%arg0: i32) -> (i32, i32) {
    %c0_i32 = arith.constant 0 : i32
    %c0_i32_0 = arith.constant 0 : i32
    %c0_i32_1 = arith.constant 0 : i32
    return %c0_i32, %c0_i32_0 : i32, i32
  }
  func.func @transform_4(%arg0: i32) -> (i32, i32) {
    %c0_i32 = arith.constant 0 : i32
    %c0_i32_0 = arith.constant 0 : i32
    %c0_i32_1 = arith.constant 0 : i32
    return %c0_i32, %c0_i32_0 : i32, i32
  }
  func.func @transform_5(%arg0: i32) -> (i32, i32) {
    %c0_i32 = arith.constant 0 : i32
    %c0_i32_0 = arith.constant 0 : i32
    %c0_i32_1 = arith.constant 0 : i32
    return %c0_i32, %c0_i32_0 : i32, i32
  }
  func.func @transform_6(%arg0: i32) -> (i32, i32) {
    %c0_i32 = arith.constant 0 : i32
    %c0_i32_0 = arith.constant 0 : i32
    %c0_i32_1 = arith.constant 0 : i32
    return %c0_i32, %c0_i32_0 : i32, i32
  }
  func.func @transform_7(%arg0: i32) -> (i32, i32) {
    %c0_i32 = arith.constant 0 : i32
    %c0_i32_0 = arith.constant 0 : i32
    return %arg0, %c0_i32 : i32, i32
  }
}

module attributes {stable_mosaic.version = 11 : i64} {
  func.func @_pw_kernel(%arg0: i32, %arg1: memref<256x64xbf16, #tpu.memory_space<vmem>>, %arg2: memref<256x32xbf16, #tpu.memory_space<vmem>>, %arg3: memref<256x32xbf16, #tpu.memory_space<vmem>>, %arg4: memref<256x32xbf16, #tpu.memory_space<vmem>>, %arg5: memref<64x64xbf16, #tpu.memory_space<vmem>>, %arg6: memref<32x64xbf16, #tpu.memory_space<vmem>>, %arg7: memref<32x64xbf16, #tpu.memory_space<vmem>>, %arg8: memref<32x64xbf16, #tpu.memory_space<vmem>>, %arg9: memref<1x64xf32, #tpu.memory_space<vmem>>, %arg10: memref<256x64xbf16, #tpu.memory_space<vmem>>) attributes {dimension_semantics = [#tpu.dimension_semantics<parallel>], iteration_bounds = array<i64: 2>, scalar_prefetch = 0 : i64, scratch_operands = 0 : i64, tpu.core_type = #tpu.core_type<tc>, window_params = [{transform_indices = @transform_0, window_bounds = array<i64: 256, 64>}, {transform_indices = @transform_1, window_bounds = array<i64: 256, 32>}, {transform_indices = @transform_2, window_bounds = array<i64: 256, 32>}, {transform_indices = @transform_3, window_bounds = array<i64: 256, 32>}, {pipeline_mode = #tpu.pipeline_mode<synchronous>, transform_indices = @transform_4, window_bounds = array<i64: 64, 64>}, {pipeline_mode = #tpu.pipeline_mode<synchronous>, transform_indices = @transform_5, window_bounds = array<i64: 32, 64>}, {pipeline_mode = #tpu.pipeline_mode<synchronous>, transform_indices = @transform_6, window_bounds = array<i64: 32, 64>}, {pipeline_mode = #tpu.pipeline_mode<synchronous>, transform_indices = @transform_7, window_bounds = array<i64: 32, 64>}, {pipeline_mode = #tpu.pipeline_mode<synchronous>, transform_indices = @transform_8, window_bounds = array<i64: 1, 64>}, {transform_indices = @transform_9, window_bounds = array<i64: 256, 64>}]} {
    %cst = arith.constant 0.000000e+00 : f32
    %0 = vector.broadcast %cst : f32 to vector<256x64xf32>
    %c0 = arith.constant 0 : index
    %c0_0 = arith.constant 0 : index
    %1 = vector.load %arg1[%c0, %c0_0] : memref<256x64xbf16, #tpu.memory_space<vmem>>, vector<256x64xbf16>
    %c0_1 = arith.constant 0 : index
    %c0_2 = arith.constant 0 : index
    %2 = vector.load %arg5[%c0_1, %c0_2] : memref<64x64xbf16, #tpu.memory_space<vmem>>, vector<64x64xbf16>
    %cst_3 = arith.constant dense<0.000000e+00> : vector<256x64xf32>
    %3 = tpu.matmul %1, %2, %cst_3 {dimension_numbers = #tpu.dot_dimension_numbers<[1], [0], [0], [1], [0, 0, 1, 1], [], []>} : vector<256x64xbf16>, vector<64x64xbf16>, vector<256x64xf32> -> vector<256x64xf32>
    %4 = arith.addf %0, %3 : vector<256x64xf32>
    %c0_4 = arith.constant 0 : index
    %c0_5 = arith.constant 0 : index
    %5 = vector.load %arg2[%c0_4, %c0_5] : memref<256x32xbf16, #tpu.memory_space<vmem>>, vector<256x32xbf16>
    %c0_6 = arith.constant 0 : index
    %c0_7 = arith.constant 0 : index
    %6 = vector.load %arg6[%c0_6, %c0_7] : memref<32x64xbf16, #tpu.memory_space<vmem>>, vector<32x64xbf16>
    %cst_8 = arith.constant dense<0.000000e+00> : vector<256x64xf32>
    %7 = tpu.matmul %5, %6, %cst_8 {dimension_numbers = #tpu.dot_dimension_numbers<[1], [0], [0], [1], [0, 0, 1, 1], [], []>} : vector<256x32xbf16>, vector<32x64xbf16>, vector<256x64xf32> -> vector<256x64xf32>
    %8 = arith.addf %4, %7 : vector<256x64xf32>
    %c0_9 = arith.constant 0 : index
    %c0_10 = arith.constant 0 : index
    %9 = vector.load %arg3[%c0_9, %c0_10] : memref<256x32xbf16, #tpu.memory_space<vmem>>, vector<256x32xbf16>
    %c0_11 = arith.constant 0 : index
    %c0_12 = arith.constant 0 : index
    %10 = vector.load %arg7[%c0_11, %c0_12] : memref<32x64xbf16, #tpu.memory_space<vmem>>, vector<32x64xbf16>
    %cst_13 = arith.constant dense<0.000000e+00> : vector<256x64xf32>
    %11 = tpu.matmul %9, %10, %cst_13 {dimension_numbers = #tpu.dot_dimension_numbers<[1], [0], [0], [1], [0, 0, 1, 1], [], []>} : vector<256x32xbf16>, vector<32x64xbf16>, vector<256x64xf32> -> vector<256x64xf32>
    %12 = arith.addf %8, %11 : vector<256x64xf32>
    %c0_14 = arith.constant 0 : index
    %c0_15 = arith.constant 0 : index
    %13 = vector.load %arg4[%c0_14, %c0_15] : memref<256x32xbf16, #tpu.memory_space<vmem>>, vector<256x32xbf16>
    %c0_16 = arith.constant 0 : index
    %c0_17 = arith.constant 0 : index
    %14 = vector.load %arg8[%c0_16, %c0_17] : memref<32x64xbf16, #tpu.memory_space<vmem>>, vector<32x64xbf16>
    %cst_18 = arith.constant dense<0.000000e+00> : vector<256x64xf32>
    %15 = tpu.matmul %13, %14, %cst_18 {dimension_numbers = #tpu.dot_dimension_numbers<[1], [0], [0], [1], [0, 0, 1, 1], [], []>} : vector<256x32xbf16>, vector<32x64xbf16>, vector<256x64xf32> -> vector<256x64xf32>
    %16 = arith.addf %12, %15 : vector<256x64xf32>
    %c0_19 = arith.constant 0 : index
    %c0_20 = arith.constant 0 : index
    %17 = vector.load %arg9[%c0_19, %c0_20] : memref<1x64xf32, #tpu.memory_space<vmem>>, vector<1x64xf32>
    %18 = vector.broadcast %17 : vector<1x64xf32> to vector<256x64xf32>
    %19 = arith.addf %16, %18 : vector<256x64xf32>
    %20 = arith.truncf %19 : vector<256x64xf32> to vector<256x64xbf16>
    %c0_21 = arith.constant 0 : index
    %c0_22 = arith.constant 0 : index
    %21 = vector.load %arg10[%c0_21, %c0_22] : memref<256x64xbf16, #tpu.memory_space<vmem>>, vector<256x64xbf16>
    tpu.vector_store %arg10[%c0_21, %c0_22], %20 {strides = array<i32>} : memref<256x64xbf16, #tpu.memory_space<vmem>>, vector<256x64xbf16>,
    return
  }
  func.func @transform_0(%arg0: i32) -> (i32, i32) {
    %c0_i32 = arith.constant 0 : i32
    %c0_i32_0 = arith.constant 0 : i32
    return %arg0, %c0_i32 : i32, i32
  }
  func.func @transform_1(%arg0: i32) -> (i32, i32) {
    %c0_i32 = arith.constant 0 : i32
    %c0_i32_0 = arith.constant 0 : i32
    return %arg0, %c0_i32 : i32, i32
  }
  func.func @transform_2(%arg0: i32) -> (i32, i32) {
    %c0_i32 = arith.constant 0 : i32
    %c0_i32_0 = arith.constant 0 : i32
    return %arg0, %c0_i32 : i32, i32
  }
  func.func @transform_3(%arg0: i32) -> (i32, i32) {
    %c0_i32 = arith.constant 0 : i32
    %c0_i32_0 = arith.constant 0 : i32
    return %arg0, %c0_i32 : i32, i32
  }
  func.func @transform_4(%arg0: i32) -> (i32, i32) {
    %c0_i32 = arith.constant 0 : i32
    %c0_i32_0 = arith.constant 0 : i32
    %c0_i32_1 = arith.constant 0 : i32
    return %c0_i32, %c0_i32_0 : i32, i32
  }
  func.func @transform_5(%arg0: i32) -> (i32, i32) {
    %c0_i32 = arith.constant 0 : i32
    %c0_i32_0 = arith.constant 0 : i32
    %c0_i32_1 = arith.constant 0 : i32
    return %c0_i32, %c0_i32_0 : i32, i32
  }
  func.func @transform_6(%arg0: i32) -> (i32, i32) {
    %c0_i32 = arith.constant 0 : i32
    %c0_i32_0 = arith.constant 0 : i32
    %c0_i32_1 = arith.constant 0 : i32
    return %c0_i32, %c0_i32_0 : i32, i32
  }
  func.func @transform_7(%arg0: i32) -> (i32, i32) {
    %c0_i32 = arith.constant 0 : i32
    %c0_i32_0 = arith.constant 0 : i32
    %c0_i32_1 = arith.constant 0 : i32
    return %c0_i32, %c0_i32_0 : i32, i32
  }
  func.func @transform_8(%arg0: i32) -> (i32, i32) {
    %c0_i32 = arith.constant 0 : i32
    %c0_i32_0 = arith.constant 0 : i32
    %c0_i32_1 = arith.constant 0 : i32
    return %c0_i32, %c0_i32_0 : i32, i32
  }
  func.func @transform_9(%arg0: i32) -> (i32, i32) {
    %c0_i32 = arith.constant 0 : i32
    %c0_i32_0 = arith.constant 0 : i32
    return %arg0, %c0_i32 : i32, i32
  }
}

module attributes {stable_mosaic.version = 11 : i64} {
  func.func @_dw_tap_kernel(%arg0: i32, %arg1: i32, %arg2: memref<1x9x8x8x64xbf16, #tpu.memory_space<vmem>>, %arg3: memref<9x64xf32, #tpu.memory_space<vmem>>, %arg4: memref<1x1x64xf32, #tpu.memory_space<vmem>>, %arg5: memref<1x8x8x64xbf16, #tpu.memory_space<vmem>>) attributes {dimension_semantics = [#tpu.dimension_semantics<parallel>, #tpu.dimension_semantics<parallel>], iteration_bounds = array<i64: 2, 1>, scalar_prefetch = 0 : i64, scratch_operands = 0 : i64, tpu.core_type = #tpu.core_type<tc>, window_params = [{transform_indices = @transform_0, window_bounds = array<i64: 1, 9, 8, 8, 64>}, {pipeline_mode = #tpu.pipeline_mode<synchronous>, transform_indices = @transform_1, window_bounds = array<i64: 9, 64>}, {pipeline_mode = #tpu.pipeline_mode<synchronous>, transform_indices = @transform_2, window_bounds = array<i64: 1, 1, 64>}, {transform_indices = @transform_3, window_bounds = array<i64: 1, 8, 8, 64>}]} {
    %c0 = arith.constant 0 : index
    %c0_0 = arith.constant 0 : index
    %0 = vector.load %arg3[%c0, %c0_0] : memref<9x64xf32, #tpu.memory_space<vmem>>, vector<9x64xf32>
    %cst = arith.constant 0.000000e+00 : f32
    %1 = vector.broadcast %cst : f32 to vector<8x8x64xf32>
    %c0_1 = arith.constant 0 : index
    %c0_2 = arith.constant 0 : index
    %c0_3 = arith.constant 0 : index
    %c0_4 = arith.constant 0 : index
    %c0_5 = arith.constant 0 : index
    %2 = vector.load %arg2[%c0_1, %c0_2, %c0_3, %c0_4, %c0_5] : memref<1x9x8x8x64xbf16, #tpu.memory_space<vmem>>, vector<1x1x8x8x64xbf16>
    %3 = vector.shape_cast %2 : vector<1x1x8x8x64xbf16> to vector<8x8x64xbf16>
    %4 = arith.extf %3 : vector<8x8x64xbf16> to vector<8x8x64xf32>
    %5 = vector.extract_strided_slice %0 {offsets = [0, 0], sizes = [1, 64], strides = [1, 1]} : vector<9x64xf32> to vector<1x64xf32>
    %6 = vector.shape_cast %5 : vector<1x64xf32> to vector<64xf32>
    %7 = vector.shape_cast %6 : vector<64xf32> to vector<1x1x64xf32>
    %8 = vector.broadcast %7 : vector<1x1x64xf32> to vector<8x8x64xf32>
    %9 = arith.mulf %4, %8 : vector<8x8x64xf32>
    %10 = arith.addf %1, %9 : vector<8x8x64xf32>
    %c0_6 = arith.constant 0 : index
    %c1 = arith.constant 1 : index
    %c0_7 = arith.constant 0 : index
    %c0_8 = arith.constant 0 : index
    %c0_9 = arith.constant 0 : index
    %11 = vector.load %arg2[%c0_6, %c1, %c0_7, %c0_8, %c0_9] : memref<1x9x8x8x64xbf16, #tpu.memory_space<vmem>>, vector<1x1x8x8x64xbf16>
    %12 = vector.shape_cast %11 : vector<1x1x8x8x64xbf16> to vector<8x8x64xbf16>
    %13 = arith.extf %12 : vector<8x8x64xbf16> to vector<8x8x64xf32>
    %14 = vector.extract_strided_slice %0 {offsets = [1, 0], sizes = [1, 64], strides = [1, 1]} : vector<9x64xf32> to vector<1x64xf32>
    %15 = vector.shape_cast %14 : vector<1x64xf32> to vector<64xf32>
    %16 = vector.shape_cast %15 : vector<64xf32> to vector<1x1x64xf32>
    %17 = vector.broadcast %16 : vector<1x1x64xf32> to vector<8x8x64xf32>
    %18 = arith.mulf %13, %17 : vector<8x8x64xf32>
    %19 = arith.addf %10, %18 : vector<8x8x64xf32>
    %c0_10 = arith.constant 0 : index
    %c2 = arith.constant 2 : index
    %c0_11 = arith.constant 0 : index
    %c0_12 = arith.constant 0 : index
    %c0_13 = arith.constant 0 : index
    %20 = vector.load %arg2[%c0_10, %c2, %c0_11, %c0_12, %c0_13] : memref<1x9x8x8x64xbf16, #tpu.memory_space<vmem>>, vector<1x1x8x8x64xbf16>
    %21 = vector.shape_cast %20 : vector<1x1x8x8x64xbf16> to vector<8x8x64xbf16>
    %22 = arith.extf %21 : vector<8x8x64xbf16> to vector<8x8x64xf32>
    %23 = vector.extract_strided_slice %0 {offsets = [2, 0], sizes = [1, 64], strides = [1, 1]} : vector<9x64xf32> to vector<1x64xf32>
    %24 = vector.shape_cast %23 : vector<1x64xf32> to vector<64xf32>
    %25 = vector.shape_cast %24 : vector<64xf32> to vector<1x1x64xf32>
    %26 = vector.broadcast %25 : vector<1x1x64xf32> to vector<8x8x64xf32>
    %27 = arith.mulf %22, %26 : vector<8x8x64xf32>
    %28 = arith.addf %19, %27 : vector<8x8x64xf32>
    %c0_14 = arith.constant 0 : index
    %c3 = arith.constant 3 : index
    %c0_15 = arith.constant 0 : index
    %c0_16 = arith.constant 0 : index
    %c0_17 = arith.constant 0 : index
    %29 = vector.load %arg2[%c0_14, %c3, %c0_15, %c0_16, %c0_17] : memref<1x9x8x8x64xbf16, #tpu.memory_space<vmem>>, vector<1x1x8x8x64xbf16>
    %30 = vector.shape_cast %29 : vector<1x1x8x8x64xbf16> to vector<8x8x64xbf16>
    %31 = arith.extf %30 : vector<8x8x64xbf16> to vector<8x8x64xf32>
    %32 = vector.extract_strided_slice %0 {offsets = [3, 0], sizes = [1, 64], strides = [1, 1]} : vector<9x64xf32> to vector<1x64xf32>
    %33 = vector.shape_cast %32 : vector<1x64xf32> to vector<64xf32>
    %34 = vector.shape_cast %33 : vector<64xf32> to vector<1x1x64xf32>
    %35 = vector.broadcast %34 : vector<1x1x64xf32> to vector<8x8x64xf32>
    %36 = arith.mulf %31, %35 : vector<8x8x64xf32>
    %37 = arith.addf %28, %36 : vector<8x8x64xf32>
    %c0_18 = arith.constant 0 : index
    %c4 = arith.constant 4 : index
    %c0_19 = arith.constant 0 : index
    %c0_20 = arith.constant 0 : index
    %c0_21 = arith.constant 0 : index
    %38 = vector.load %arg2[%c0_18, %c4, %c0_19, %c0_20, %c0_21] : memref<1x9x8x8x64xbf16, #tpu.memory_space<vmem>>, vector<1x1x8x8x64xbf16>
    %39 = vector.shape_cast %38 : vector<1x1x8x8x64xbf16> to vector<8x8x64xbf16>
    %40 = arith.extf %39 : vector<8x8x64xbf16> to vector<8x8x64xf32>
    %41 = vector.extract_strided_slice %0 {offsets = [4, 0], sizes = [1, 64], strides = [1, 1]} : vector<9x64xf32> to vector<1x64xf32>
    %42 = vector.shape_cast %41 : vector<1x64xf32> to vector<64xf32>
    %43 = vector.shape_cast %42 : vector<64xf32> to vector<1x1x64xf32>
    %44 = vector.broadcast %43 : vector<1x1x64xf32> to vector<8x8x64xf32>
    %45 = arith.mulf %40, %44 : vector<8x8x64xf32>
    %46 = arith.addf %37, %45 : vector<8x8x64xf32>
    %c0_22 = arith.constant 0 : index
    %c5 = arith.constant 5 : index
    %c0_23 = arith.constant 0 : index
    %c0_24 = arith.constant 0 : index
    %c0_25 = arith.constant 0 : index
    %47 = vector.load %arg2[%c0_22, %c5, %c0_23, %c0_24, %c0_25] : memref<1x9x8x8x64xbf16, #tpu.memory_space<vmem>>, vector<1x1x8x8x64xbf16>
    %48 = vector.shape_cast %47 : vector<1x1x8x8x64xbf16> to vector<8x8x64xbf16>
    %49 = arith.extf %48 : vector<8x8x64xbf16> to vector<8x8x64xf32>
    %50 = vector.extract_strided_slice %0 {offsets = [5, 0], sizes = [1, 64], strides = [1, 1]} : vector<9x64xf32> to vector<1x64xf32>
    %51 = vector.shape_cast %50 : vector<1x64xf32> to vector<64xf32>
    %52 = vector.shape_cast %51 : vector<64xf32> to vector<1x1x64xf32>
    %53 = vector.broadcast %52 : vector<1x1x64xf32> to vector<8x8x64xf32>
    %54 = arith.mulf %49, %53 : vector<8x8x64xf32>
    %55 = arith.addf %46, %54 : vector<8x8x64xf32>
    %c0_26 = arith.constant 0 : index
    %c6 = arith.constant 6 : index
    %c0_27 = arith.constant 0 : index
    %c0_28 = arith.constant 0 : index
    %c0_29 = arith.constant 0 : index
    %56 = vector.load %arg2[%c0_26, %c6, %c0_27, %c0_28, %c0_29] : memref<1x9x8x8x64xbf16, #tpu.memory_space<vmem>>, vector<1x1x8x8x64xbf16>
    %57 = vector.shape_cast %56 : vector<1x1x8x8x64xbf16> to vector<8x8x64xbf16>
    %58 = arith.extf %57 : vector<8x8x64xbf16> to vector<8x8x64xf32>
    %59 = vector.extract_strided_slice %0 {offsets = [6, 0], sizes = [1, 64], strides = [1, 1]} : vector<9x64xf32> to vector<1x64xf32>
    %60 = vector.shape_cast %59 : vector<1x64xf32> to vector<64xf32>
    %61 = vector.shape_cast %60 : vector<64xf32> to vector<1x1x64xf32>
    %62 = vector.broadcast %61 : vector<1x1x64xf32> to vector<8x8x64xf32>
    %63 = arith.mulf %58, %62 : vector<8x8x64xf32>
    %64 = arith.addf %55, %63 : vector<8x8x64xf32>
    %c0_30 = arith.constant 0 : index
    %c7 = arith.constant 7 : index
    %c0_31 = arith.constant 0 : index
    %c0_32 = arith.constant 0 : index
    %c0_33 = arith.constant 0 : index
    %65 = vector.load %arg2[%c0_30, %c7, %c0_31, %c0_32, %c0_33] : memref<1x9x8x8x64xbf16, #tpu.memory_space<vmem>>, vector<1x1x8x8x64xbf16>
    %66 = vector.shape_cast %65 : vector<1x1x8x8x64xbf16> to vector<8x8x64xbf16>
    %67 = arith.extf %66 : vector<8x8x64xbf16> to vector<8x8x64xf32>
    %68 = vector.extract_strided_slice %0 {offsets = [7, 0], sizes = [1, 64], strides = [1, 1]} : vector<9x64xf32> to vector<1x64xf32>
    %69 = vector.shape_cast %68 : vector<1x64xf32> to vector<64xf32>
    %70 = vector.shape_cast %69 : vector<64xf32> to vector<1x1x64xf32>
    %71 = vector.broadcast %70 : vector<1x1x64xf32> to vector<8x8x64xf32>
    %72 = arith.mulf %67, %71 : vector<8x8x64xf32>
    %73 = arith.addf %64, %72 : vector<8x8x64xf32>
    %c0_34 = arith.constant 0 : index
    %c8 = arith.constant 8 : index
    %c0_35 = arith.constant 0 : index
    %c0_36 = arith.constant 0 : index
    %c0_37 = arith.constant 0 : index
    %74 = vector.load %arg2[%c0_34, %c8, %c0_35, %c0_36, %c0_37] : memref<1x9x8x8x64xbf16, #tpu.memory_space<vmem>>, vector<1x1x8x8x64xbf16>
    %75 = vector.shape_cast %74 : vector<1x1x8x8x64xbf16> to vector<8x8x64xbf16>
    %76 = arith.extf %75 : vector<8x8x64xbf16> to vector<8x8x64xf32>
    %77 = vector.extract_strided_slice %0 {offsets = [8, 0], sizes = [1, 64], strides = [1, 1]} : vector<9x64xf32> to vector<1x64xf32>
    %78 = vector.shape_cast %77 : vector<1x64xf32> to vector<64xf32>
    %79 = vector.shape_cast %78 : vector<64xf32> to vector<1x1x64xf32>
    %80 = vector.broadcast %79 : vector<1x1x64xf32> to vector<8x8x64xf32>
    %81 = arith.mulf %76, %80 : vector<8x8x64xf32>
    %82 = arith.addf %73, %81 : vector<8x8x64xf32>
    %c0_38 = arith.constant 0 : index
    %c0_39 = arith.constant 0 : index
    %c0_40 = arith.constant 0 : index
    %83 = vector.load %arg4[%c0_38, %c0_39, %c0_40] : memref<1x1x64xf32, #tpu.memory_space<vmem>>, vector<1x1x64xf32>
    %84 = vector.broadcast %83 : vector<1x1x64xf32> to vector<8x8x64xf32>
    %85 = arith.addf %82, %84 : vector<8x8x64xf32>
    %cst_41 = arith.constant 0.000000e+00 : f32
    %86 = vector.broadcast %cst_41 : f32 to vector<8x8x64xf32>
    %87 = arith.maximumf %85, %86 : vector<8x8x64xf32>
    %88 = arith.truncf %87 : vector<8x8x64xf32> to vector<8x8x64xbf16>
    %c0_42 = arith.constant 0 : index
    %c0_43 = arith.constant 0 : index
    %c0_44 = arith.constant 0 : index
    %c0_45 = arith.constant 0 : index
    %89 = vector.load %arg5[%c0_42, %c0_43, %c0_44, %c0_45] : memref<1x8x8x64xbf16, #tpu.memory_space<vmem>>, vector<1x8x8x64xbf16>
    %90 = vector.shape_cast %89 : vector<1x8x8x64xbf16> to vector<8x8x64xbf16>
    %91 = vector.shape_cast %88 : vector<8x8x64xbf16> to vector<1x8x8x64xbf16>
    tpu.vector_store %arg5[%c0_42, %c0_43, %c0_44, %c0_45], %91 {strides = array<i32>} : memref<1x8x8x64xbf16, #tpu.memory_space<vmem>>, vector<1x8x8x64xbf16>,
    return
  }
  func.func @transform_0(%arg0: i32, %arg1: i32) -> (i32, i32, i32, i32, i32) {
    %c0_i32 = arith.constant 0 : i32
    %c0_i32_0 = arith.constant 0 : i32
    %c0_i32_1 = arith.constant 0 : i32
    %c0_i32_2 = arith.constant 0 : i32
    return %arg0, %c0_i32, %arg1, %c0_i32_0, %c0_i32_1 : i32, i32, i32, i32, i32
  }
  func.func @transform_1(%arg0: i32, %arg1: i32) -> (i32, i32) {
    %c0_i32 = arith.constant 0 : i32
    %c0_i32_0 = arith.constant 0 : i32
    %c0_i32_1 = arith.constant 0 : i32
    return %c0_i32, %c0_i32_0 : i32, i32
  }
  func.func @transform_2(%arg0: i32, %arg1: i32) -> (i32, i32, i32) {
    %c0_i32 = arith.constant 0 : i32
    %c0_i32_0 = arith.constant 0 : i32
    %c0_i32_1 = arith.constant 0 : i32
    %c0_i32_2 = arith.constant 0 : i32
    return %c0_i32, %c0_i32_0, %c0_i32_1 : i32, i32, i32
  }
  func.func @transform_3(%arg0: i32, %arg1: i32) -> (i32, i32, i32, i32) {
    %c0_i32 = arith.constant 0 : i32
    %c0_i32_0 = arith.constant 0 : i32
    %c0_i32_1 = arith.constant 0 : i32
    return %arg0, %arg1, %c0_i32, %c0_i32_0 : i32, i32, i32, i32
  }
}

module attributes {stable_mosaic.version = 11 : i64} {
  func.func @_resconv_tap_kernel(%arg0: i32, %arg1: i32, %arg2: memref<1x9x64x64xbf16, #tpu.memory_space<vmem>>, %arg3: memref<9x64x64xbf16, #tpu.memory_space<vmem>>, %arg4: memref<1x64xf32, #tpu.memory_space<vmem>>, %arg5: memref<1x64x64xbf16, #tpu.memory_space<vmem>>, %arg6: memref<1x64x64xf32, #tpu.memory_space<vmem>>) attributes {dimension_semantics = [#tpu.dimension_semantics<parallel>, #tpu.dimension_semantics<parallel>], iteration_bounds = array<i64: 2, 1>, scalar_prefetch = 0 : i64, scratch_operands = 0 : i64, tpu.core_type = #tpu.core_type<tc>, window_params = [{transform_indices = @transform_0, window_bounds = array<i64: 1, 9, 64, 64>}, {pipeline_mode = #tpu.pipeline_mode<synchronous>, transform_indices = @transform_1, window_bounds = array<i64: 9, 64, 64>}, {pipeline_mode = #tpu.pipeline_mode<synchronous>, transform_indices = @transform_2, window_bounds = array<i64: 1, 64>}, {transform_indices = @transform_3, window_bounds = array<i64: 1, 64, 64>}, {transform_indices = @transform_4, window_bounds = array<i64: 1, 64, 64>}]} {
    %cst = arith.constant 0.000000e+00 : f32
    %0 = vector.broadcast %cst : f32 to vector<64x64xf32>
    %c0 = arith.constant 0 : index
    %c0_0 = arith.constant 0 : index
    %c0_1 = arith.constant 0 : index
    %c0_2 = arith.constant 0 : index
    %1 = vector.load %arg2[%c0, %c0_0, %c0_1, %c0_2] : memref<1x9x64x64xbf16, #tpu.memory_space<vmem>>, vector<1x1x64x64xbf16>
    %2 = vector.shape_cast %1 : vector<1x1x64x64xbf16> to vector<64x64xbf16>
    %c0_3 = arith.constant 0 : index
    %c0_4 = arith.constant 0 : index
    %c0_5 = arith.constant 0 : index
    %3 = vector.load %arg3[%c0_3, %c0_4, %c0_5] : memref<9x64x64xbf16, #tpu.memory_space<vmem>>, vector<1x64x64xbf16>
    %4 = vector.shape_cast %3 : vector<1x64x64xbf16> to vector<64x64xbf16>
    %cst_6 = arith.constant dense<0.000000e+00> : vector<64x64xf32>
    %5 = tpu.matmul %2, %4, %cst_6 {dimension_numbers = #tpu.dot_dimension_numbers<[1], [0], [0], [1], [0, 0, 1, 1], [], []>} : vector<64x64xbf16>, vector<64x64xbf16>, vector<64x64xf32> -> vector<64x64xf32>
    %6 = arith.addf %0, %5 : vector<64x64xf32>
    %c0_7 = arith.constant 0 : index
    %c1 = arith.constant 1 : index
    %c0_8 = arith.constant 0 : index
    %c0_9 = arith.constant 0 : index
    %7 = vector.load %arg2[%c0_7, %c1, %c0_8, %c0_9] : memref<1x9x64x64xbf16, #tpu.memory_space<vmem>>, vector<1x1x64x64xbf16>
    %8 = vector.shape_cast %7 : vector<1x1x64x64xbf16> to vector<64x64xbf16>
    %c1_10 = arith.constant 1 : index
    %c0_11 = arith.constant 0 : index
    %c0_12 = arith.constant 0 : index
    %9 = vector.load %arg3[%c1_10, %c0_11, %c0_12] : memref<9x64x64xbf16, #tpu.memory_space<vmem>>, vector<1x64x64xbf16>
    %10 = vector.shape_cast %9 : vector<1x64x64xbf16> to vector<64x64xbf16>
    %cst_13 = arith.constant dense<0.000000e+00> : vector<64x64xf32>
    %11 = tpu.matmul %8, %10, %cst_13 {dimension_numbers = #tpu.dot_dimension_numbers<[1], [0], [0], [1], [0, 0, 1, 1], [], []>} : vector<64x64xbf16>, vector<64x64xbf16>, vector<64x64xf32> -> vector<64x64xf32>
    %12 = arith.addf %6, %11 : vector<64x64xf32>
    %c0_14 = arith.constant 0 : index
    %c2 = arith.constant 2 : index
    %c0_15 = arith.constant 0 : index
    %c0_16 = arith.constant 0 : index
    %13 = vector.load %arg2[%c0_14, %c2, %c0_15, %c0_16] : memref<1x9x64x64xbf16, #tpu.memory_space<vmem>>, vector<1x1x64x64xbf16>
    %14 = vector.shape_cast %13 : vector<1x1x64x64xbf16> to vector<64x64xbf16>
    %c2_17 = arith.constant 2 : index
    %c0_18 = arith.constant 0 : index
    %c0_19 = arith.constant 0 : index
    %15 = vector.load %arg3[%c2_17, %c0_18, %c0_19] : memref<9x64x64xbf16, #tpu.memory_space<vmem>>, vector<1x64x64xbf16>
    %16 = vector.shape_cast %15 : vector<1x64x64xbf16> to vector<64x64xbf16>
    %cst_20 = arith.constant dense<0.000000e+00> : vector<64x64xf32>
    %17 = tpu.matmul %14, %16, %cst_20 {dimension_numbers = #tpu.dot_dimension_numbers<[1], [0], [0], [1], [0, 0, 1, 1], [], []>} : vector<64x64xbf16>, vector<64x64xbf16>, vector<64x64xf32> -> vector<64x64xf32>
    %18 = arith.addf %12, %17 : vector<64x64xf32>
    %c0_21 = arith.constant 0 : index
    %c3 = arith.constant 3 : index
    %c0_22 = arith.constant 0 : index
    %c0_23 = arith.constant 0 : index
    %19 = vector.load %arg2[%c0_21, %c3, %c0_22, %c0_23] : memref<1x9x64x64xbf16, #tpu.memory_space<vmem>>, vector<1x1x64x64xbf16>
    %20 = vector.shape_cast %19 : vector<1x1x64x64xbf16> to vector<64x64xbf16>
    %c3_24 = arith.constant 3 : index
    %c0_25 = arith.constant 0 : index
    %c0_26 = arith.constant 0 : index
    %21 = vector.load %arg3[%c3_24, %c0_25, %c0_26] : memref<9x64x64xbf16, #tpu.memory_space<vmem>>, vector<1x64x64xbf16>
    %22 = vector.shape_cast %21 : vector<1x64x64xbf16> to vector<64x64xbf16>
    %cst_27 = arith.constant dense<0.000000e+00> : vector<64x64xf32>
    %23 = tpu.matmul %20, %22, %cst_27 {dimension_numbers = #tpu.dot_dimension_numbers<[1], [0], [0], [1], [0, 0, 1, 1], [], []>} : vector<64x64xbf16>, vector<64x64xbf16>, vector<64x64xf32> -> vector<64x64xf32>
    %24 = arith.addf %18, %23 : vector<64x64xf32>
    %c0_28 = arith.constant 0 : index
    %c4 = arith.constant 4 : index
    %c0_29 = arith.constant 0 : index
    %c0_30 = arith.constant 0 : index
    %25 = vector.load %arg2[%c0_28, %c4, %c0_29, %c0_30] : memref<1x9x64x64xbf16, #tpu.memory_space<vmem>>, vector<1x1x64x64xbf16>
    %26 = vector.shape_cast %25 : vector<1x1x64x64xbf16> to vector<64x64xbf16>
    %c4_31 = arith.constant 4 : index
    %c0_32 = arith.constant 0 : index
    %c0_33 = arith.constant 0 : index
    %27 = vector.load %arg3[%c4_31, %c0_32, %c0_33] : memref<9x64x64xbf16, #tpu.memory_space<vmem>>, vector<1x64x64xbf16>
    %28 = vector.shape_cast %27 : vector<1x64x64xbf16> to vector<64x64xbf16>
    %cst_34 = arith.constant dense<0.000000e+00> : vector<64x64xf32>
    %29 = tpu.matmul %26, %28, %cst_34 {dimension_numbers = #tpu.dot_dimension_numbers<[1], [0], [0], [1], [0, 0, 1, 1], [], []>} : vector<64x64xbf16>, vector<64x64xbf16>, vector<64x64xf32> -> vector<64x64xf32>
    %30 = arith.addf %24, %29 : vector<64x64xf32>
    %c0_35 = arith.constant 0 : index
    %c5 = arith.constant 5 : index
    %c0_36 = arith.constant 0 : index
    %c0_37 = arith.constant 0 : index
    %31 = vector.load %arg2[%c0_35, %c5, %c0_36, %c0_37] : memref<1x9x64x64xbf16, #tpu.memory_space<vmem>>, vector<1x1x64x64xbf16>
    %32 = vector.shape_cast %31 : vector<1x1x64x64xbf16> to vector<64x64xbf16>
    %c5_38 = arith.constant 5 : index
    %c0_39 = arith.constant 0 : index
    %c0_40 = arith.constant 0 : index
    %33 = vector.load %arg3[%c5_38, %c0_39, %c0_40] : memref<9x64x64xbf16, #tpu.memory_space<vmem>>, vector<1x64x64xbf16>
    %34 = vector.shape_cast %33 : vector<1x64x64xbf16> to vector<64x64xbf16>
    %cst_41 = arith.constant dense<0.000000e+00> : vector<64x64xf32>
    %35 = tpu.matmul %32, %34, %cst_41 {dimension_numbers = #tpu.dot_dimension_numbers<[1], [0], [0], [1], [0, 0, 1, 1], [], []>} : vector<64x64xbf16>, vector<64x64xbf16>, vector<64x64xf32> -> vector<64x64xf32>
    %36 = arith.addf %30, %35 : vector<64x64xf32>
    %c0_42 = arith.constant 0 : index
    %c6 = arith.constant 6 : index
    %c0_43 = arith.constant 0 : index
    %c0_44 = arith.constant 0 : index
    %37 = vector.load %arg2[%c0_42, %c6, %c0_43, %c0_44] : memref<1x9x64x64xbf16, #tpu.memory_space<vmem>>, vector<1x1x64x64xbf16>
    %38 = vector.shape_cast %37 : vector<1x1x64x64xbf16> to vector<64x64xbf16>
    %c6_45 = arith.constant 6 : index
    %c0_46 = arith.constant 0 : index
    %c0_47 = arith.constant 0 : index
    %39 = vector.load %arg3[%c6_45, %c0_46, %c0_47] : memref<9x64x64xbf16, #tpu.memory_space<vmem>>, vector<1x64x64xbf16>
    %40 = vector.shape_cast %39 : vector<1x64x64xbf16> to vector<64x64xbf16>
    %cst_48 = arith.constant dense<0.000000e+00> : vector<64x64xf32>
    %41 = tpu.matmul %38, %40, %cst_48 {dimension_numbers = #tpu.dot_dimension_numbers<[1], [0], [0], [1], [0, 0, 1, 1], [], []>} : vector<64x64xbf16>, vector<64x64xbf16>, vector<64x64xf32> -> vector<64x64xf32>
    %42 = arith.addf %36, %41 : vector<64x64xf32>
    %c0_49 = arith.constant 0 : index
    %c7 = arith.constant 7 : index
    %c0_50 = arith.constant 0 : index
    %c0_51 = arith.constant 0 : index
    %43 = vector.load %arg2[%c0_49, %c7, %c0_50, %c0_51] : memref<1x9x64x64xbf16, #tpu.memory_space<vmem>>, vector<1x1x64x64xbf16>
    %44 = vector.shape_cast %43 : vector<1x1x64x64xbf16> to vector<64x64xbf16>
    %c7_52 = arith.constant 7 : index
    %c0_53 = arith.constant 0 : index
    %c0_54 = arith.constant 0 : index
    %45 = vector.load %arg3[%c7_52, %c0_53, %c0_54] : memref<9x64x64xbf16, #tpu.memory_space<vmem>>, vector<1x64x64xbf16>
    %46 = vector.shape_cast %45 : vector<1x64x64xbf16> to vector<64x64xbf16>
    %cst_55 = arith.constant dense<0.000000e+00> : vector<64x64xf32>
    %47 = tpu.matmul %44, %46, %cst_55 {dimension_numbers = #tpu.dot_dimension_numbers<[1], [0], [0], [1], [0, 0, 1, 1], [], []>} : vector<64x64xbf16>, vector<64x64xbf16>, vector<64x64xf32> -> vector<64x64xf32>
    %48 = arith.addf %42, %47 : vector<64x64xf32>
    %c0_56 = arith.constant 0 : index
    %c8 = arith.constant 8 : index
    %c0_57 = arith.constant 0 : index
    %c0_58 = arith.constant 0 : index
    %49 = vector.load %arg2[%c0_56, %c8, %c0_57, %c0_58] : memref<1x9x64x64xbf16, #tpu.memory_space<vmem>>, vector<1x1x64x64xbf16>
    %50 = vector.shape_cast %49 : vector<1x1x64x64xbf16> to vector<64x64xbf16>
    %c8_59 = arith.constant 8 : index
    %c0_60 = arith.constant 0 : index
    %c0_61 = arith.constant 0 : index
    %51 = vector.load %arg3[%c8_59, %c0_60, %c0_61] : memref<9x64x64xbf16, #tpu.memory_space<vmem>>, vector<1x64x64xbf16>
    %52 = vector.shape_cast %51 : vector<1x64x64xbf16> to vector<64x64xbf16>
    %cst_62 = arith.constant dense<0.000000e+00> : vector<64x64xf32>
    %53 = tpu.matmul %50, %52, %cst_62 {dimension_numbers = #tpu.dot_dimension_numbers<[1], [0], [0], [1], [0, 0, 1, 1], [], []>} : vector<64x64xbf16>, vector<64x64xbf16>, vector<64x64xf32> -> vector<64x64xf32>
    %54 = arith.addf %48, %53 : vector<64x64xf32>
    %c0_63 = arith.constant 0 : index
    %c0_64 = arith.constant 0 : index
    %55 = vector.load %arg4[%c0_63, %c0_64] : memref<1x64xf32, #tpu.memory_space<vmem>>, vector<1x64xf32>
    %56 = vector.broadcast %55 : vector<1x64xf32> to vector<64x64xf32>
    %57 = arith.addf %54, %56 : vector<64x64xf32>
    %c0_65 = arith.constant 0 : index
    %c0_66 = arith.constant 0 : index
    %c0_67 = arith.constant 0 : index
    %58 = vector.load %arg5[%c0_65, %c0_66, %c0_67] : memref<1x64x64xbf16, #tpu.memory_space<vmem>>, vector<1x64x64xbf16>
    %59 = vector.shape_cast %58 : vector<1x64x64xbf16> to vector<64x64xbf16>
    %60 = arith.extf %59 : vector<64x64xbf16> to vector<64x64xf32>
    %61 = arith.addf %57, %60 : vector<64x64xf32>
    %c0_68 = arith.constant 0 : index
    %c0_69 = arith.constant 0 : index
    %c0_70 = arith.constant 0 : index
    %62 = vector.load %arg6[%c0_68, %c0_69, %c0_70] : memref<1x64x64xf32, #tpu.memory_space<vmem>>, vector<1x64x64xf32>
    %63 = vector.shape_cast %62 : vector<1x64x64xf32> to vector<64x64xf32>
    %64 = vector.shape_cast %61 : vector<64x64xf32> to vector<1x64x64xf32>
    tpu.vector_store %arg6[%c0_68, %c0_69, %c0_70], %64 {strides = array<i32>} : memref<1x64x64xf32, #tpu.memory_space<vmem>>, vector<1x64x64xf32>,
    return
  }
  func.func @transform_0(%arg0: i32, %arg1: i32) -> (i32, i32, i32, i32) {
    %c0_i32 = arith.constant 0 : i32
    %c0_i32_0 = arith.constant 0 : i32
    %c0_i32_1 = arith.constant 0 : i32
    return %arg0, %c0_i32, %arg1, %c0_i32_0 : i32, i32, i32, i32
  }
  func.func @transform_1(%arg0: i32, %arg1: i32) -> (i32, i32, i32) {
    %c0_i32 = arith.constant 0 : i32
    %c0_i32_0 = arith.constant 0 : i32
    %c0_i32_1 = arith.constant 0 : i32
    %c0_i32_2 = arith.constant 0 : i32
    return %c0_i32, %c0_i32_0, %c0_i32_1 : i32, i32, i32
  }
  func.func @transform_2(%arg0: i32, %arg1: i32) -> (i32, i32) {
    %c0_i32 = arith.constant 0 : i32
    %c0_i32_0 = arith.constant 0 : i32
    %c0_i32_1 = arith.constant 0 : i32
    return %c0_i32, %c0_i32_0 : i32, i32
  }
  func.func @transform_3(%arg0: i32, %arg1: i32) -> (i32, i32, i32) {
    %c0_i32 = arith.constant 0 : i32
    %c0_i32_0 = arith.constant 0 : i32
    return %arg0, %arg1, %c0_i32 : i32, i32, i32
  }
  func.func @transform_4(%arg0: i32, %arg1: i32) -> (i32, i32, i32) {
    %c0_i32 = arith.constant 0 : i32
    %c0_i32_0 = arith.constant 0 : i32
    return %arg0, %arg1, %c0_i32 : i32, i32, i32
  }
}

</mosaic_0001>

<llo_original>
// kernel: depsep_forward.9
$region0: #{depsep_forward.9}
  #allocation0 [shape = 'u32[]', space=smem, size = 0x4, offset = 0x4, fixed_abs, tag = 'smem constant byte address 0x4 - core index']
  #allocation1 [shape = 'u32[72,128]{1,0:T(1,128)}', space=vmem, size = 0x9000, scoped, tag = 'internal scratch']
  %s0 = inlined_call_operand.vmem [shape: bf16[512,64], index: 0, kind: input, shape index: {}]
  %s1 = inlined_call_operand.vmem [shape: bf16[64,32], index: 1, kind: input, shape index: {}]
  %s2 = inlined_call_operand.vmem [shape: f32[1,32], index: 2, kind: input, shape index: {}]
  %s3 = inlined_call_operand.vmem [shape: bf16[512,32], index: 3, kind: output, shape index: {}]
  %s4 = sld [smem:[#allocation0]]
  $region45: #{depsep_forward.9} parent=0
    _
  %s6 = ssub.s32 1, %s4
  %s7 = scalar_select 0, %s6, %s4
  loop: start=0, step=1, limit=4
  $region2: #{depsep_forward.9} parent=0 // loop_pre_header
    _
  $region3: #{depsep_forward.9} parent=0 // loop_header
    %s9 = sphi 0, %s13
    %p10 = scmp.ge.s32.totalorder %s9, 4
    %s19 = sphi 0, %s21
    %s22 = sphi 0, %s19
    %s23 = sphi 0, %s22
    %s39 = sphi 0, %s23
    %s43 = sphi 0, %s43
    %s45 = sphi 0, %s43
    %s46 = sphi 0, %s45
    %s60 = sphi 0, %s46
    %s64 = sphi 0, %s64
    %s66 = sphi 0, %s64
    %s67 = sphi 0, %s66
    %s81 = sphi 0, %s67
    %s87 = sphi 0, %s89
    %s90 = sphi 0, %s87
    %s91 = sphi 0, %s90
    %s107 = sphi 0, %s91
  $region4: #{depsep_forward.9} parent=0 // loop_header_branch
    %12 = sbr.rel (%p10) target = $region8
  $region5: #{depsep_forward.9} parent=0 // loop_body
    %s14 = ssub.s32 %s9, 1
    %s15 = ssub.s32 %s9, 2
    %s16 = sadd.s32 %s9, 1
    %s17 = ssub.s32 %s9, %s16
    %p18 = scmp.eq.s32.totalorder %s17, 0
    %s20 = sadd.s32 %s19, 1
    %s21 = scalar_select %p18, %s19, %s20
    %p24 = pneg %p18
    %p25 = scmp.eq.s32.totalorder %s9, 1
    %p26 = por %p24, %p25
    %p27 = scmp.ne.s32.totalorder %s19, %s22
    %p28 = scmp.eq.s32.totalorder %s9, 0
    %p29 = por %p27, %p28
    %p30 = scmp.ne.s32.totalorder %s19, %s22
    %p31 = scmp.eq.s32.totalorder %s14, 1
    %p32 = por %p30, %p31
    %p33 = scmp.ne.s32.totalorder %s22, %s23
    %p34 = scmp.eq.s32.totalorder %s14, 0
    %p35 = por %p33, %p34
    %p36 = scmp.ne.s32.totalorder %s22, %s23
    %p37 = scmp.eq.s32.totalorder %s15, 1
    %p38 = por %p36, %p37
    %p40 = scmp.ne.s32.totalorder %s23, %s39
    %p41 = scmp.eq.s32.totalorder %s15, 0
    %p42 = por %p40, %p41
    %s44 = sadd.s32 %s43, 1
    %p47 = scmp.eq.s32.totalorder %s9, 1
    %p48 = scmp.ne.s32.totalorder %s43, %s45
    %p49 = scmp.eq.s32.totalorder %s9, 0
    %p50 = por %p48, %p49
    %p51 = scmp.ne.s32.totalorder %s43, %s45
    %p52 = scmp.eq.s32.totalorder %s14, 1
    %p53 = por %p51, %p52
    %p54 = scmp.ne.s32.totalorder %s45, %s46
    %p55 = scmp.eq.s32.totalorder %s14, 0
    %p56 = por %p54, %p55
    %p57 = scmp.ne.s32.totalorder %s45, %s46
    %p58 = scmp.eq.s32.totalorder %s15, 1
    %p59 = por %p57, %p58
    %p61 = scmp.ne.s32.totalorder %s46, %s60
    %p62 = scmp.eq.s32.totalorder %s15, 0
    %p63 = por %p61, %p62
    %s65 = sadd.s32 %s64, 1
    %p68 = scmp.eq.s32.totalorder %s9, 1
    %p69 = scmp.ne.s32.totalorder %s64, %s66
    %p70 = scmp.eq.s32.totalorder %s9, 0
    %p71 = por %p69, %p70
    %p72 = scmp.ne.s32.totalorder %s64, %s66
    %p73 = scmp.eq.s32.totalorder %s14, 1
    %p74 = por %p72, %p73
    %p75 = scmp.ne.s32.totalorder %s66, %s67
    %p76 = scmp.eq.s32.totalorder %s14, 0
    %p77 = por %p75, %p76
    %p78 = scmp.ne.s32.totalorder %s66, %s67
    %p79 = scmp.eq.s32.totalorder %s15, 1
    %p80 = por %p78, %p79
    %p82 = scmp.ne.s32.totalorder %s67, %s81
    %p83 = scmp.eq.s32.totalorder %s15, 0
    %p84 = por %p82, %p83
    %s85 = ssub.s32 %s9, %s16
    %p86 = scmp.eq.s32.totalorder %s85, 0
    %s88 = sadd.s32 %s87, 1
    %s89 = scalar_select %p86, %s87, %s88
    %p92 = pneg %p86
    %p93 = scmp.eq.s32.totalorder %s9, 1
    %p94 = por %p92, %p93
    %p95 = scmp.ne.s32.totalorder %s87, %s90
    %p96 = scmp.eq.s32.totalorder %s9, 0
    %p97 = por %p95, %p96
    %p98 = scmp.ne.s32.totalorder %s87, %s90
    %p99 = scmp.eq.s32.totalorder %s14, 1
    %p100 = por %p98, %p99
    %p101 = scmp.ne.s32.totalorder %s90, %s91
    %p102 = scmp.eq.s32.totalorder %s14, 0
    %p103 = por %p101, %p102
    %p104 = scmp.ne.s32.totalorder %s90, %s91
    %p105 = scmp.eq.s32.totalorder %s15, 1
    %p106 = por %p104, %p105
    %p108 = scmp.ne.s32.totalorder %s91, %s107
    %p109 = scmp.eq.s32.totalorder %s15, 0
    %p110 = por %p108, %p109
    %p111 = scmp.le.s32.totalorder 1, %s9
    %p112 = scmp.lt.s32.totalorder %s9, 3
    %p113 = pnand %p111, %p112
    %p114 = pneg %p113
    // Predicated region
    $region9: #{depsep_forward.9} parent=5 // pred_check
      _
    $region10: #{depsep_forward.9} parent=5 // pred_check_branch
      %116 = sbr.rel (%p113) target = $region12
    $region11: #{depsep_forward.9} parent=5 // pred_region
      %s117 = ssub.s32 %s9, 1
      // Predicated region
      $region13: #{depsep_forward.9} parent=11 // pred_check
        %p118 = pneg %p56
      $region14: #{depsep_forward.9} parent=11 // pred_check_branch
        %120 = sbr.rel (%p118) target = $region16
      $region15: #{depsep_forward.9} parent=11 // pred_region
        _
      $region16: #{depsep_forward.9} parent=11 // pred_fallthru
        _
      // Predicated region
      $region17: #{depsep_forward.9} parent=11 // pred_check
        %p121 = pneg %p77
      $region18: #{depsep_forward.9} parent=11 // pred_check_branch
        %123 = sbr.rel (%p121) target = $region20
      $region19: #{depsep_forward.9} parent=11 // pred_region
        _
      $region20: #{depsep_forward.9} parent=11 // pred_fallthru
        _
    $region12: #{depsep_forward.9} parent=5 // pred_fallthru
      _
    %p124 = scmp.lt.s32.totalorder %s9, 2
    // Predicated region
    $region21: #{depsep_forward.9} parent=5 // pred_check
      %p125 = pneg %p124
    $region22: #{depsep_forward.9} parent=5 // pred_check_branch
      %127 = sbr.rel (%p125) target = $region24
    $region23: #{depsep_forward.9} parent=5 // pred_region
      // Predicated region
      $region25: #{depsep_forward.9} parent=23 // pred_check
        %p128 = pneg %p29
      $region26: #{depsep_forward.9} parent=23 // pred_check_branch
        %130 = sbr.rel (%p128) target = $region28
      $region27: #{depsep_forward.9} parent=23 // pred_region
        %s131 = smul.u32 32, %s9
        %p132 = scmp.lt.s32.totalorder %s131, 63
        %s133 = scalar_select %p132, %s131, 63
        %s134 = smul.addr %s133, 4
        %s135 = scalar_lea.vmem %s0, %s134
        %s136 = smul.u32 32, %s9
      $region28: #{depsep_forward.9} parent=23 // pred_fallthru
        _
    $region24: #{depsep_forward.9} parent=5 // pred_fallthru
      _
    %p137 = scmp.le.s32.totalorder 1, %s9
    %p138 = scmp.lt.s32.totalorder %s9, 3
    %p139 = pnand %p137, %p138
    %p140 = pneg %p139
    // Predicated region
    $region29: #{depsep_forward.9} parent=5 // pred_check
      _
    $region30: #{depsep_forward.9} parent=5 // pred_check_branch
      %142 = sbr.rel (%p139) target = $region32
    $region31: #{depsep_forward.9} parent=5 // pred_region
      %s143 = ssub.s32 %s9, 1
      %s144 = smul.u32 32, %s14
      %p145 = scmp.lt.s32.totalorder %s144, 63
      %s146 = scalar_select %p145, %s144, 63
      %s147 = smul.addr %s146, 4
      %s148 = scalar_lea.vmem %s0, %s147
      %p149 = pneg %p35
      %p150 = pneg %p32
      %p151 = pneg %p56
      %p152 = pneg %p53
      %p153 = pneg %p77
      %p154 = pneg %p74
      %p155 = pneg %p103
      %p156 = pneg %p100
      %s157 = smul.u32 32, %s14
      %p158 = scmp.lt.s32.totalorder %s157, 63
      %s159 = scalar_select %p158, %s157, 63
      %s160 = smul.addr %s159, 4
      %s161 = scalar_lea.vmem %s3, %s160
      %s162 = smul.u32 32, %s14
      %p163 = scmp.lt.s32.totalorder %s162, 63
      %s164 = scalar_select %p163, %s162, 63
      %s165 = smul.addr %s164, 4
      %s166 = scalar_lea.vmem %s0, %s165
      %s167 = smul.u32 32, %s14
      %s168 = smul.u32 32, %s14
      %p169 = scmp.lt.s32.totalorder %s168, 63
      %s170 = scalar_select %p169, %s168, 63
      %s171 = smul.addr %s170, 4
      %s172 = scalar_lea.vmem %s3, %s171
      %s173 = smul.u32 32, %s14
      %v175 = vld [vmem:[%s166] sm:$0xf]
      %v176 = vld [vmem:[%s166 + $0x4] sm:$0xf]
      %v177 = vld [vmem:[%s166 + $0x8] sm:$0xf]
      %v178 = vld [vmem:[%s166 + $0xc] sm:$0xf]
      %v179 = vld [vmem:[%s166 + $0x10] sm:$0xf]
      %v180 = vld [vmem:[%s166 + $0x14] sm:$0xf]
      %v181 = vld [vmem:[%s166 + $0x18] sm:$0xf]
      %v182 = vld [vmem:[%s166 + $0x1c] sm:$0xf]
      %v183 = vld [vmem:[%s166 + $0x20] sm:$0xf]
      %v184 = vld [vmem:[%s166 + $0x24] sm:$0xf]
      %v185 = vld [vmem:[%s166 + $0x28] sm:$0xf]
      %v186 = vld [vmem:[%s166 + $0x2c] sm:$0xf]
      %v187 = vld [vmem:[%s166 + $0x30] sm:$0xf]
      %v188 = vld [vmem:[%s166 + $0x34] sm:$0xf]
      %v189 = vld [vmem:[%s166 + $0x38] sm:$0xf]
      %v190 = vld [vmem:[%s166 + $0x3c] sm:$0xf]
      %v191 = vld [vmem:[%s166 + $0x40] sm:$0xf]
      %v192 = vld [vmem:[%s166 + $0x44] sm:$0xf]
      %v193 = vld [vmem:[%s166 + $0x48] sm:$0xf]
      %v194 = vld [vmem:[%s166 + $0x4c] sm:$0xf]
      %v195 = vld [vmem:[%s166 + $0x50] sm:$0xf]
      %v196 = vld [vmem:[%s166 + $0x54] sm:$0xf]
      %v197 = vld [vmem:[%s166 + $0x58] sm:$0xf]
      %v198 = vld [vmem:[%s166 + $0x5c] sm:$0xf]
      %v199 = vld [vmem:[%s166 + $0x60] sm:$0xf]
      %v200 = vld [vmem:[%s166 + $0x64] sm:$0xf]
      %v201 = vld [vmem:[%s166 + $0x68] sm:$0xf]
      %v202 = vld [vmem:[%s166 + $0x6c] sm:$0xf]
      %v203 = vld [vmem:[%s166 + $0x70] sm:$0xf]
      %v204 = vld [vmem:[%s166 + $0x74] sm:$0xf]
      %v205 = vld [vmem:[%s166 + $0x78] sm:$0xf]
      %v206 = vld [vmem:[%s166 + $0x7c] sm:$0xf]
      %v207 = vld [vmem:[%s1] sm:$0xf]
      %v208 = vld [vmem:[%s1 + $0x4] sm:$0xf]
      %v209 = vld [vmem:[%s1 + $0x8] sm:$0xf]
      %v210 = vld [vmem:[%s1 + $0xc] sm:$0xf]
      %v211 = vld [vmem:[%s1 + $0x10] sm:$0xf]
      %v212 = vld [vmem:[%s1 + $0x14] sm:$0xf]
      %v213 = vld [vmem:[%s1 + $0x18] sm:$0xf]
      %v214 = vld [vmem:[%s1 + $0x1c] sm:$0xf]
      %v215 = vld [vmem:[%s2] sm:$0x1]
      %v217 = vperm.slane %v215, 0
      %v251 = vunpack.c.l.b16 %v175
      %v252 = vunpack.c.l.b16 %v176
      %v253 = vunpack.c.l.b16 %v177
      %v254 = vunpack.c.l.b16 %v178
      %v255 = vunpack.c.l.b16 %v179
      %v256 = vunpack.c.l.b16 %v180
      %v257 = vunpack.c.l.b16 %v181
      %v258 = vunpack.c.l.b16 %v182
      %v259 = vunpack.c.l.b16 %v183
      %v260 = vunpack.c.l.b16 %v184
      %v261 = vunpack.c.l.b16 %v185
      %v262 = vunpack.c.l.b16 %v186
      %v263 = vunpack.c.l.b16 %v187
      %v264 = vunpack.c.l.b16 %v188
      %v265 = vunpack.c.l.b16 %v189
      %v266 = vunpack.c.l.b16 %v190
      %v267 = vunpack.c.l.b16 %v191
      %v268 = vunpack.c.l.b16 %v192
      %v269 = vunpack.c.l.b16 %v193
      %v270 = vunpack.c.l.b16 %v194
      %v271 = vunpack.c.l.b16 %v195
      %v272 = vunpack.c.l.b16 %v196
      %v273 = vunpack.c.l.b16 %v197
      %v274 = vunpack.c.l.b16 %v198
      %v275 = vunpack.c.l.b16 %v199
      %v276 = vunpack.c.l.b16 %v200
      %v277 = vunpack.c.l.b16 %v201
      %v278 = vunpack.c.l.b16 %v202
      %v279 = vunpack.c.l.b16 %v203
      %v280 = vunpack.c.l.b16 %v204
      %v281 = vunpack.c.l.b16 %v205
      %v282 = vunpack.c.l.b16 %v206
      %v283 = vpack.c.b16 %v252, %v251
      %v284 = vpack.c.b16 %v254, %v253
      %v285 = vpack.c.b16 %v256, %v255
      %v286 = vpack.c.b16 %v258, %v257
      %v287 = vpack.c.b16 %v260, %v259
      %v288 = vpack.c.b16 %v262, %v261
      %v289 = vpack.c.b16 %v264, %v263
      %v290 = vpack.c.b16 %v266, %v265
      %v291 = vpack.c.b16 %v268, %v267
      %v292 = vpack.c.b16 %v270, %v269
      %v293 = vpack.c.b16 %v272, %v271
      %v294 = vpack.c.b16 %v274, %v273
      %v295 = vpack.c.b16 %v276, %v275
      %v296 = vpack.c.b16 %v278, %v277
      %v297 = vpack.c.b16 %v280, %v279
      %v298 = vpack.c.b16 %v282, %v281
      %v307 = vunpack.c.l.b16 %v207
      %v308 = vunpack.c.l.b16 %v208
      %v309 = vunpack.c.l.b16 %v209
      %v310 = vunpack.c.l.b16 %v210
      %v311 = vunpack.c.l.b16 %v211
      %v312 = vunpack.c.l.b16 %v212
      %v313 = vunpack.c.l.b16 %v213
      %v314 = vunpack.c.l.b16 %v214
      %v315 = vpack.c.b16 %v308, %v307
      %v316 = vpack.c.b16 %v310, %v309
      %v317 = vpack.c.b16 %v312, %v311
      %v318 = vpack.c.b16 %v314, %v313
      %vm323 = vcmask 523264
      %v325 = vsel %vm323, %v283, 0
      %v328 = vsel %vm323, %v284, 0
      %v331 = vsel %vm323, %v285, 0
      %v334 = vsel %vm323, %v286, 0
      %v337 = vsel %vm323, %v287, 0
      %v340 = vsel %vm323, %v288, 0
      %v343 = vsel %vm323, %v289, 0
      %v346 = vsel %vm323, %v290, 0
      %v349 = vsel %vm323, %v291, 0
      %v352 = vsel %vm323, %v292, 0
      %v355 = vsel %vm323, %v293, 0
      %v358 = vsel %vm323, %v294, 0
      %v361 = vsel %vm323, %v295, 0
      %v364 = vsel %vm323, %v296, 0
      %v367 = vsel %vm323, %v297, 0
      %v370 = vsel %vm323, %v298, 0
      %372 = vmatpush.bf16.msra.mxu0 0
      %373 = vmatpush.bf16.msra.mxu0 0
      %374 = vmatpush.bf16.msra.mxu0 0
      %375 = vmatpush.bf16.msra.mxu0 0
      %376 = vmatpush.bf16.msra.mxu0 %v318
      %377 = vmatpush.bf16.msra.mxu0 %v317
      %378 = vmatpush.bf16.msra.mxu0 %v316
      %379 = vmatpush.bf16.msra.mxu0 %v315
      %380 = vmatmul.bf16.gmra.mxu0 %v325
      %v381 = vpop.f32.mrf.mxu0
      %v382 = vadd.f32 %v217, %v381
      %v383 = vpop.f32.mrf.mxu0
      %v384 = vadd.f32 %v217, %v383
      %385 = vmatmul.bf16.gmra.mxu0 %v328
      %v386 = vpop.f32.mrf.mxu0
      %v387 = vadd.f32 %v217, %v386
      %v388 = vpop.f32.mrf.mxu0
      %v389 = vadd.f32 %v217, %v388
      %390 = vmatmul.bf16.gmra.mxu0 %v331
      %v391 = vpop.f32.mrf.mxu0
      %v392 = vadd.f32 %v217, %v391
      %v393 = vpop.f32.mrf.mxu0
      %v394 = vadd.f32 %v217, %v393
      %395 = vmatmul.bf16.gmra.mxu0 %v334
      %v396 = vpop.f32.mrf.mxu0
      %v397 = vadd.f32 %v217, %v396
      %v398 = vpop.f32.mrf.mxu0
      %v399 = vadd.f32 %v217, %v398
      %400 = vmatmul.bf16.gmra.mxu0 %v337
      %v401 = vpop.f32.mrf.mxu0
      %v402 = vadd.f32 %v217, %v401
      %v403 = vpop.f32.mrf.mxu0
      %v404 = vadd.f32 %v217, %v403
      %405 = vmatmul.bf16.gmra.mxu0 %v340
      %v406 = vpop.f32.mrf.mxu0
      %v407 = vadd.f32 %v217, %v406
      %v408 = vpop.f32.mrf.mxu0
      %v409 = vadd.f32 %v217, %v408
      %410 = vmatmul.bf16.gmra.mxu0 %v343
      %v411 = vpop.f32.mrf.mxu0
      %v412 = vadd.f32 %v217, %v411
      %v413 = vpop.f32.mrf.mxu0
      %v414 = vadd.f32 %v217, %v413
      %415 = vmatmul.bf16.gmra.mxu0 %v346
      %v416 = vpop.f32.mrf.mxu0
      %v417 = vadd.f32 %v217, %v416
      %v418 = vpop.f32.mrf.mxu0
      %v419 = vadd.f32 %v217, %v418
      %420 = vmatmul.bf16.gmra.mxu0 %v349
      %v421 = vpop.f32.mrf.mxu0
      %v422 = vadd.f32 %v217, %v421
      %v423 = vpop.f32.mrf.mxu0
      %v424 = vadd.f32 %v217, %v423
      %425 = vmatmul.bf16.gmra.mxu0 %v352
      %v426 = vpop.f32.mrf.mxu0
      %v427 = vadd.f32 %v217, %v426
      %v428 = vpop.f32.mrf.mxu0
      %v429 = vadd.f32 %v217, %v428
      %430 = vmatmul.bf16.gmra.mxu0 %v355
      %v431 = vpop.f32.mrf.mxu0
      %v432 = vadd.f32 %v217, %v431
      %v433 = vpop.f32.mrf.mxu0
      %v434 = vadd.f32 %v217, %v433
      %435 = vmatmul.bf16.gmra.mxu0 %v358
      %v436 = vpop.f32.mrf.mxu0
      %v437 = vadd.f32 %v217, %v436
      %v438 = vpop.f32.mrf.mxu0
      %v439 = vadd.f32 %v217, %v438
      %440 = vmatmul.bf16.gmra.mxu0 %v361
      %v441 = vpop.f32.mrf.mxu0
      %v442 = vadd.f32 %v217, %v441
      %v443 = vpop.f32.mrf.mxu0
      %v444 = vadd.f32 %v217, %v443
      %445 = vmatmul.bf16.gmra.mxu0 %v364
      %v446 = vpop.f32.mrf.mxu0
      %v447 = vadd.f32 %v217, %v446
      %v448 = vpop.f32.mrf.mxu0
      %v449 = vadd.f32 %v217, %v448
      %450 = vmatmul.bf16.gmra.mxu0 %v367
      %v451 = vpop.f32.mrf.mxu0
      %v452 = vadd.f32 %v217, %v451
      %v453 = vpop.f32.mrf.mxu0
      %v454 = vadd.f32 %v217, %v453
      %455 = vmatmul.bf16.gmra.mxu0 %v370
      %v456 = vpop.f32.mrf.mxu0
      %v457 = vadd.f32 %v217, %v456
      %v458 = vpop.f32.mrf.mxu0
      %v459 = vadd.f32 %v217, %v458
      %460 = vdwg.mxu0
      %v461 = vpack.c.bf16 %v382, %v382
      %v462 = vpack.c.bf16 %v384, %v384
      %v463 = vpack.c.bf16 %v387, %v387
      %v464 = vpack.c.bf16 %v389, %v389
      %v465 = vpack.c.bf16 %v392, %v392
      %v466 = vpack.c.bf16 %v394, %v394
      %v467 = vpack.c.bf16 %v397, %v397
      %v468 = vpack.c.bf16 %v399, %v399
      %v469 = vpack.c.bf16 %v402, %v402
      %v470 = vpack.c.bf16 %v404, %v404
      %v471 = vpack.c.bf16 %v407, %v407
      %v472 = vpack.c.bf16 %v409, %v409
      %v473 = vpack.c.bf16 %v412, %v412
      %v474 = vpack.c.bf16 %v414, %v414
      %v475 = vpack.c.bf16 %v417, %v417
      %v476 = vpack.c.bf16 %v419, %v419
      %v477 = vpack.c.bf16 %v422, %v422
      %v478 = vpack.c.bf16 %v424, %v424
      %v479 = vpack.c.bf16 %v427, %v427
      %v480 = vpack.c.bf16 %v429, %v429
      %v481 = vpack.c.bf16 %v432, %v432
      %v482 = vpack.c.bf16 %v434, %v434
      %v483 = vpack.c.bf16 %v437, %v437
      %v484 = vpack.c.bf16 %v439, %v439
      %v485 = vpack.c.bf16 %v442, %v442
      %v486 = vpack.c.bf16 %v444, %v444
      %v487 = vpack.c.bf16 %v447, %v447
      %v488 = vpack.c.bf16 %v449, %v449
      %v489 = vpack.c.bf16 %v452, %v452
      %v490 = vpack.c.bf16 %v454, %v454
      %v491 = vpack.c.bf16 %v457, %v457
      %v492 = vpack.c.bf16 %v459, %v459
      %vm493 = vcmask 257024
      %494 = vst.msk [vmem:[%s172] sm:$0xf] %vm493, %v461
      %495 = vst.msk [vmem:[%s172 + $0x4] sm:$0xf] %vm493, %v462
      %496 = vst.msk [vmem:[%s172 + $0x8] sm:$0xf] %vm493, %v463
      %497 = vst.msk [vmem:[%s172 + $0xc] sm:$0xf] %vm493, %v464
      %498 = vst.msk [vmem:[%s172 + $0x10] sm:$0xf] %vm493, %v465
      %499 = vst.msk [vmem:[%s172 + $0x14] sm:$0xf] %vm493, %v466
      %500 = vst.msk [vmem:[%s172 + $0x18] sm:$0xf] %vm493, %v467
      %501 = vst.msk [vmem:[%s172 + $0x1c] sm:$0xf] %vm493, %v468
      %502 = vst.msk [vmem:[%s172 + $0x20] sm:$0xf] %vm493, %v469
      %503 = vst.msk [vmem:[%s172 + $0x24] sm:$0xf] %vm493, %v470
      %504 = vst.msk [vmem:[%s172 + $0x28] sm:$0xf] %vm493, %v471
      %505 = vst.msk [vmem:[%s172 + $0x2c] sm:$0xf] %vm493, %v472
      %506 = vst.msk [vmem:[%s172 + $0x30] sm:$0xf] %vm493, %v473
      %507 = vst.msk [vmem:[%s172 + $0x34] sm:$0xf] %vm493, %v474
      %508 = vst.msk [vmem:[%s172 + $0x38] sm:$0xf] %vm493, %v475
      %509 = vst.msk [vmem:[%s172 + $0x3c] sm:$0xf] %vm493, %v476
      %510 = vst.msk [vmem:[%s172 + $0x40] sm:$0xf] %vm493, %v477
      %511 = vst.msk [vmem:[%s172 + $0x44] sm:$0xf] %vm493, %v478
      %512 = vst.msk [vmem:[%s172 + $0x48] sm:$0xf] %vm493, %v479
      %513 = vst.msk [vmem:[%s172 + $0x4c] sm:$0xf] %vm493, %v480
      %514 = vst.msk [vmem:[%s172 + $0x50] sm:$0xf] %vm493, %v481
      %515 = vst.msk [vmem:[%s172 + $0x54] sm:$0xf] %vm493, %v482
      %516 = vst.msk [vmem:[%s172 + $0x58] sm:$0xf] %vm493, %v483
      %517 = vst.msk [vmem:[%s172 + $0x5c] sm:$0xf] %vm493, %v484
      %518 = vst.msk [vmem:[%s172 + $0x60] sm:$0xf] %vm493, %v485
      %519 = vst.msk [vmem:[%s172 + $0x64] sm:$0xf] %vm493, %v486
      %520 = vst.msk [vmem:[%s172 + $0x68] sm:$0xf] %vm493, %v487
      %521 = vst.msk [vmem:[%s172 + $0x6c] sm:$0xf] %vm493, %v488
      %522 = vst.msk [vmem:[%s172 + $0x70] sm:$0xf] %vm493, %v489
      %523 = vst.msk [vmem:[%s172 + $0x74] sm:$0xf] %vm493, %v490
      %524 = vst.msk [vmem:[%s172 + $0x78] sm:$0xf] %vm493, %v491
      %525 = vst.msk [vmem:[%s172 + $0x7c] sm:$0xf] %vm493, %v492
      %s526 = smul.u32 32, %s14
      %p527 = scmp.lt.s32.totalorder %s526, 63
      %s528 = scalar_select %p527, %s526, 63
      %s529 = smul.addr %s528, 4
      %s530 = scalar_lea.vmem %s3, %s529
      // Predicated region
      $region33: #{depsep_forward.9} parent=31 // pred_check
        %p531 = pneg %p100
      $region34: #{depsep_forward.9} parent=31 // pred_check_branch
        %533 = sbr.rel (%p531) target = $region36
      $region35: #{depsep_forward.9} parent=31 // pred_region
        %s534 = smul.u32 32, %s14
      $region36: #{depsep_forward.9} parent=31 // pred_fallthru
        _
    $region32: #{depsep_forward.9} parent=5 // pred_fallthru
      _
    %p535 = scmp.le.s32.totalorder 2, %s9
    // Predicated region
    $region37: #{depsep_forward.9} parent=5 // pred_check
      %p536 = pneg %p535
    $region38: #{depsep_forward.9} parent=5 // pred_check_branch
      %538 = sbr.rel (%p536) target = $region40
    $region39: #{depsep_forward.9} parent=5 // pred_region
      %s539 = ssub.s32 %s9, 2
      // Predicated region
      $region41: #{depsep_forward.9} parent=39 // pred_check
        %p540 = pneg %p106
      $region42: #{depsep_forward.9} parent=39 // pred_check_branch
        %542 = sbr.rel (%p540) target = $region44
      $region43: #{depsep_forward.9} parent=39 // pred_region
        %s543 = smul.u32 32, %s15
        %p544 = scmp.lt.s32.totalorder %s543, 63
        %s545 = scalar_select %p544, %s543, 63
        %s546 = smul.addr %s545, 4
        %s547 = scalar_lea.vmem %s3, %s546
      $region44: #{depsep_forward.9} parent=39 // pred_fallthru
        _
    $region40: #{depsep_forward.9} parent=5 // pred_fallthru
      _
  $region6: #{depsep_forward.9} parent=0 // loop_footer
    %s13 = sadd.s32 1, %s9
  $region7: #{depsep_forward.9} parent=0 // loop_footer_branch
    %8 = sbr.rel target = $region3
  $region8: #{depsep_forward.9} parent=0 // loop_exit
    _

// kernel: depsep_forward.10
$region0: #{depsep_forward.10}
  #allocation0 [shape = 'u32[]', space=smem, size = 0x4, offset = 0x4, fixed_abs, tag = 'smem constant byte address 0x4 - core index']
  #allocation1 [shape = 'u32[72,128]{1,0:T(1,128)}', space=vmem, size = 0x9000, scoped, tag = 'internal scratch']
  %s0 = inlined_call_operand.vmem [shape: bf16[2,18,18,32], index: 0, kind: input, shape index: {}]
  %s1 = inlined_call_operand.vmem [shape: f32[9,32], index: 1, kind: input, shape index: {}]
  %s2 = inlined_call_operand.vmem [shape: f32[1,1,32], index: 2, kind: input, shape index: {}]
  %s3 = inlined_call_operand.vmem [shape: bf16[2,16,16,32], index: 3, kind: output, shape index: {0}]
  %s4 = inlined_call_operand.vmem [shape: f32[2,1,8,32], index: 4, kind: output, shape index: {1}]
  %5 = xla_tuple %s3, %s4
  %s6 = sld [smem:[#allocation0]]
  $region53: #{depsep_forward.10} parent=0
    _
  %s8 = ssub.s32 1, %s6
  %s9 = scalar_select 0, %s8, %s6
  loop: start=0, step=1, limit=4
  $region2: #{depsep_forward.10} parent=0 // loop_pre_header
    _
  $region3: #{depsep_forward.10} parent=0 // loop_header
    %s11 = sphi 0, %s15
    %p12 = scmp.ge.s32.totalorder %s11, 4
    %s18 = sphi 0, %s30
    %s19 = sphi 0, %s26
    %s20 = sphi 0, %s18
    %s21 = sphi 0, %s19
    %s22 = sphi 0, %s20
    %s23 = sphi 0, %s21
    %s33 = sphi 0, %s35
    %s36 = sphi 0, %s33
    %s37 = sphi 0, %s36
    %s53 = sphi 0, %s37
    %s57 = sphi 0, %s57
    %s59 = sphi 0, %s57
    %s60 = sphi 0, %s59
    %s74 = sphi 0, %s60
    %s78 = sphi 0, %s78
    %s80 = sphi 0, %s78
    %s81 = sphi 0, %s80
    %s95 = sphi 0, %s81
    %s103 = sphi 0, %s105
    %s106 = sphi 0, %s103
    %s107 = sphi 0, %s106
    %s123 = sphi 0, %s107
    %s131 = sphi 0, %s133
    %s134 = sphi 0, %s131
    %s135 = sphi 0, %s134
    %s151 = sphi 0, %s135
  $region4: #{depsep_forward.10} parent=0 // loop_header_branch
    %14 = sbr.rel (%p12) target = $region8
  $region5: #{depsep_forward.10} parent=0 // loop_body
    %s16 = ssub.s32 %s11, 1
    %s17 = ssub.s32 %s11, 2
    %s24 = sadd.s32 1, %s19
    %p25 = scmp.ge.s32.totalorder %s24, 1
    %s26 = scalar_select %p25, 0, %s24
    %s27 = sadd.s32 1, %s18
    %s28 = scalar_select %p25, %s27, %s18
    %p29 = scmp.ge.s32.totalorder %s28, 2
    %s30 = scalar_select %p29, 0, %s28
    %s31 = ssub.s32 %s18, %s30
    %p32 = scmp.eq.s32.totalorder %s31, 0
    %s34 = sadd.s32 %s33, 1
    %s35 = scalar_select %p32, %s33, %s34
    %p38 = pneg %p32
    %p39 = scmp.eq.s32.totalorder %s11, 1
    %p40 = por %p38, %p39
    %p41 = scmp.ne.s32.totalorder %s33, %s36
    %p42 = scmp.eq.s32.totalorder %s11, 0
    %p43 = por %p41, %p42
    %p44 = scmp.ne.s32.totalorder %s33, %s36
    %p45 = scmp.eq.s32.totalorder %s16, 1
    %p46 = por %p44, %p45
    %p47 = scmp.ne.s32.totalorder %s36, %s37
    %p48 = scmp.eq.s32.totalorder %s16, 0
    %p49 = por %p47, %p48
    %p50 = scmp.ne.s32.totalorder %s36, %s37
    %p51 = scmp.eq.s32.totalorder %s17, 1
    %p52 = por %p50, %p51
    %p54 = scmp.ne.s32.totalorder %s37, %s53
    %p55 = scmp.eq.s32.totalorder %s17, 0
    %p56 = por %p54, %p55
    %s58 = sadd.s32 %s57, 1
    %p61 = scmp.eq.s32.totalorder %s11, 1
    %p62 = scmp.ne.s32.totalorder %s57, %s59
    %p63 = scmp.eq.s32.totalorder %s11, 0
    %p64 = por %p62, %p63
    %p65 = scmp.ne.s32.totalorder %s57, %s59
    %p66 = scmp.eq.s32.totalorder %s16, 1
    %p67 = por %p65, %p66
    %p68 = scmp.ne.s32.totalorder %s59, %s60
    %p69 = scmp.eq.s32.totalorder %s16, 0
    %p70 = por %p68, %p69
    %p71 = scmp.ne.s32.totalorder %s59, %s60
    %p72 = scmp.eq.s32.totalorder %s17, 1
    %p73 = por %p71, %p72
    %p75 = scmp.ne.s32.totalorder %s60, %s74
    %p76 = scmp.eq.s32.totalorder %s17, 0
    %p77 = por %p75, %p76
    %s79 = sadd.s32 %s78, 1
    %p82 = scmp.eq.s32.totalorder %s11, 1
    %p83 = scmp.ne.s32.totalorder %s78, %s80
    %p84 = scmp.eq.s32.totalorder %s11, 0
    %p85 = por %p83, %p84
    %p86 = scmp.ne.s32.totalorder %s78, %s80
    %p87 = scmp.eq.s32.totalorder %s16, 1
    %p88 = por %p86, %p87
    %p89 = scmp.ne.s32.totalorder %s80, %s81
    %p90 = scmp.eq.s32.totalorder %s16, 0
    %p91 = por %p89, %p90
    %p92 = scmp.ne.s32.totalorder %s80, %s81
    %p93 = scmp.eq.s32.totalorder %s17, 1
    %p94 = por %p92, %p93
    %p96 = scmp.ne.s32.totalorder %s81, %s95
    %p97 = scmp.eq.s32.totalorder %s17, 0
    %p98 = por %p96, %p97
    %s99 = ssub.s32 %s18, %s30
    %s100 = ssub.s32 %s19, %s26
    %s101 = sor.u32 %s99, %s100
    %p102 = scmp.eq.s32.totalorder %s101, 0
    %s104 = sadd.s32 %s103, 1
    %s105 = scalar_select %p102, %s103, %s104
    %p108 = pneg %p102
    %p109 = scmp.eq.s32.totalorder %s11, 1
    %p110 = por %p108, %p109
    %p111 = scmp.ne.s32.totalorder %s103, %s106
    %p112 = scmp.eq.s32.totalorder %s11, 0
    %p113 = por %p111, %p112
    %p114 = scmp.ne.s32.totalorder %s103, %s106
    %p115 = scmp.eq.s32.totalorder %s16, 1
    %p116 = por %p114, %p115
    %p117 = scmp.ne.s32.totalorder %s106, %s107
    %p118 = scmp.eq.s32.totalorder %s16, 0
    %p119 = por %p117, %p118
    %p120 = scmp.ne.s32.totalorder %s106, %s107
    %p121 = scmp.eq.s32.totalorder %s17, 1
    %p122 = por %p120, %p121
    %p124 = scmp.ne.s32.totalorder %s107, %s123
    %p125 = scmp.eq.s32.totalorder %s17, 0
    %p126 = por %p124, %p125
    %s127 = ssub.s32 %s18, %s30
    %s128 = ssub.s32 %s19, %s26
    %s129 = sor.u32 %s127, %s128
    %p130 = scmp.eq.s32.totalorder %s129, 0
    %s132 = sadd.s32 %s131, 1
    %s133 = scalar_select %p130, %s131, %s132
    %p136 = pneg %p130
    %p137 = scmp.eq.s32.totalorder %s11, 1
    %p138 = por %p136, %p137
    %p139 = scmp.ne.s32.totalorder %s131, %s134
    %p140 = scmp.eq.s32.totalorder %s11, 0
    %p141 = por %p139, %p140
    %p142 = scmp.ne.s32.totalorder %s131, %s134
    %p143 = scmp.eq.s32.totalorder %s16, 1
    %p144 = por %p142, %p143
    %p145 = scmp.ne.s32.totalorder %s134, %s135
    %p146 = scmp.eq.s32.totalorder %s16, 0
    %p147 = por %p145, %p146
    %p148 = scmp.ne.s32.totalorder %s134, %s135
    %p149 = scmp.eq.s32.totalorder %s17, 1
    %p150 = por %p148, %p149
    %p152 = scmp.ne.s32.totalorder %s135, %s151
    %p153 = scmp.eq.s32.totalorder %s17, 0
    %p154 = por %p152, %p153
    %p155 = scmp.le.s32.totalorder 1, %s11
    %p156 = scmp.lt.s32.totalorder %s11, 3
    %p157 = pnand %p155, %p156
    %p158 = pneg %p157
    // Predicated region
    $region9: #{depsep_forward.10} parent=5 // pred_check
      _
    $region10: #{depsep_forward.10} parent=5 // pred_check_branch
      %160 = sbr.rel (%p157) target = $region12
    $region11: #{depsep_forward.10} parent=5 // pred_region
      %s161 = ssub.s32 %s11, 1
      // Predicated region
      $region13: #{depsep_forward.10} parent=11 // pred_check
        %p162 = pneg %p70
      $region14: #{depsep_forward.10} parent=11 // pred_check_branch
        %164 = sbr.rel (%p162) target = $region16
      $region15: #{depsep_forward.10} parent=11 // pred_region
        _
      $region16: #{depsep_forward.10} parent=11 // pred_fallthru
        _
      // Predicated region
      $region17: #{depsep_forward.10} parent=11 // pred_check
        %p165 = pneg %p91
      $region18: #{depsep_forward.10} parent=11 // pred_check_branch
        %167 = sbr.rel (%p165) target = $region20
      $region19: #{depsep_forward.10} parent=11 // pred_region
        _
      $region20: #{depsep_forward.10} parent=11 // pred_fallthru
        _
    $region12: #{depsep_forward.10} parent=5 // pred_fallthru
      _
    %p168 = scmp.lt.s32.totalorder %s11, 2
    // Predicated region
    $region21: #{depsep_forward.10} parent=5 // pred_check
      %p169 = pneg %p168
    $region22: #{depsep_forward.10} parent=5 // pred_check_branch
      %171 = sbr.rel (%p169) target = $region24
    $region23: #{depsep_forward.10} parent=5 // pred_region
      // Predicated region
      $region25: #{depsep_forward.10} parent=23 // pred_check
        %p172 = pneg %p43
      $region26: #{depsep_forward.10} parent=23 // pred_check_branch
        %174 = sbr.rel (%p172) target = $region28
      $region27: #{depsep_forward.10} parent=23 // pred_region
        %p175 = scmp.lt.s32.totalorder %s18, 1
        %s176 = scalar_select %p175, %s18, 1
        %s177 = smul.addr %s176, 54
        %s178 = smul.addr %s177, 4
        %s179 = scalar_lea.vmem %s0, %s178
      $region28: #{depsep_forward.10} parent=23 // pred_fallthru
        _
    $region24: #{depsep_forward.10} parent=5 // pred_fallthru
      _
    %p180 = scmp.le.s32.totalorder 1, %s11
    %p181 = scmp.lt.s32.totalorder %s11, 3
    %p182 = pnand %p180, %p181
    %p183 = pneg %p182
    // Predicated region
    $region29: #{depsep_forward.10} parent=5 // pred_check
      _
    $region30: #{depsep_forward.10} parent=5 // pred_check_branch
      %185 = sbr.rel (%p182) target = $region32
    $region31: #{depsep_forward.10} parent=5 // pred_region
      %s186 = ssub.s32 %s11, 1
      %p187 = scmp.lt.s32.totalorder %s20, 1
      %s188 = scalar_select %p187, %s20, 1
      %s189 = smul.addr %s188, 54
      %s190 = smul.addr %s189, 4
      %s191 = scalar_lea.vmem %s0, %s190
      %p192 = pneg %p49
      %p193 = pneg %p46
      %p194 = pneg %p70
      %p195 = pneg %p67
      %p196 = pneg %p91
      %p197 = pneg %p88
      %p198 = pneg %p119
      %p199 = pneg %p116
      %s200 = smul.u32 16, %s21
      %p201 = scmp.lt.s32.totalorder %s20, 1
      %s202 = scalar_select %p201, %s20, 1
      %p203 = scmp.lt.s32.totalorder %s200, 15
      %s204 = scalar_select %p203, %s200, 15
      %s205 = smul.addr %s204, 2
      %s206 = smul.addr %s202, 32
      %s207 = sadd.s32 %s205, %s206
      %s208 = smul.addr %s207, 4
      %s209 = scalar_lea.vmem %s3, %s208
      %p210 = pneg %p147
      %p211 = pneg %p144
      %p212 = scmp.lt.s32.totalorder %s20, 1
      %s213 = scalar_select %p212, %s20, 1
      %p214 = scmp.lt.s32.totalorder %s21, 0
      %s215 = scalar_select %p214, %s21, 0
      %s216 = sadd.s32 %s215, %s213
      %s217 = smul.addr %s216, 8
      %s218 = scalar_lea.vmem %s4, %s217
      %p219 = scmp.lt.s32.totalorder %s20, 1
      %s220 = scalar_select %p219, %s20, 1
      %s221 = smul.addr %s220, 54
      %s222 = smul.addr %s221, 4
      %s223 = scalar_lea.vmem %s0, %s222
      %s224 = smul.u32 16, %s21
      %p225 = scmp.lt.s32.totalorder %s20, 1
      %s226 = scalar_select %p225, %s20, 1
      %p227 = scmp.lt.s32.totalorder %s224, 15
      %s228 = scalar_select %p227, %s224, 15
      %s229 = smul.addr %s228, 2
      %s230 = smul.addr %s226, 32
      %s231 = sadd.s32 %s229, %s230
      %s232 = smul.addr %s231, 4
      %s233 = scalar_lea.vmem %s3, %s232
      %s234 = smul.u32 16, %s21
      %p235 = scmp.lt.s32.totalorder %s20, 1
      %s236 = scalar_select %p235, %s20, 1
      %p237 = scmp.lt.s32.totalorder %s21, 0
      %s238 = scalar_select %p237, %s21, 0
      %s239 = sadd.s32 %s238, %s236
      %s240 = smul.addr %s239, 8
      %s241 = scalar_lea.vmem %s4, %s240
      %v242 = vld [vmem:[%s223] sm:$0xf]
      %v243 = vld [vmem:[%s223 + $0x4] sm:$0xf]
      %v244 = vld [vmem:[%s223 + $0x8] sm:$0x1]
      %v245 = vld [vmem:[%s223 + $0xc] sm:$0xf]
      %v246 = vld [vmem:[%s223 + $0x10] sm:$0xf]
      %v247 = vld [vmem:[%s223 + $0x14] sm:$0x1]
      %v248 = vld [vmem:[%s223 + $0x18] sm:$0xf]
      %v249 = vld [vmem:[%s223 + $0x1c] sm:$0xf]
      %v250 = vld [vmem:[%s223 + $0x20] sm:$0x1]
      %v251 = vld [vmem:[%s223 + $0x24] sm:$0xf]
      %v252 = vld [vmem:[%s223 + $0x28] sm:$0xf]
      %v253 = vld [vmem:[%s223 + $0x2c] sm:$0x1]
      %v254 = vld [vmem:[%s223 + $0x30] sm:$0xf]
      %v255 = vld [vmem:[%s223 + $0x34] sm:$0xf]
      %v256 = vld [vmem:[%s223 + $0x38] sm:$0x1]
      %v257 = vld [vmem:[%s223 + $0x3c] sm:$0xf]
      %v258 = vld [vmem:[%s223 + $0x40] sm:$0xf]
      %v259 = vld [vmem:[%s223 + $0x44] sm:$0x1]
      %v260 = vld [vmem:[%s223 + $0x48] sm:$0xf]
      %v261 = vld [vmem:[%s223 + $0x4c] sm:$0xf]
      %v262 = vld [vmem:[%s223 + $0x50] sm:$0x1]
      %v263 = vld [vmem:[%s223 + $0x54] sm:$0xf]
      %v264 = vld [vmem:[%s223 + $0x58] sm:$0xf]
      %v265 = vld [vmem:[%s223 + $0x5c] sm:$0x1]
      %v266 = vld [vmem:[%s223 + $0x60] sm:$0xf]
      %v267 = vld [vmem:[%s223 + $0x64] sm:$0xf]
      %v268 = vld [vmem:[%s223 + $0x68] sm:$0x1]
      %v269 = vld [vmem:[%s223 + $0x6c] sm:$0xf]
      %v270 = vld [vmem:[%s223 + $0x70] sm:$0xf]
      %v271 = vld [vmem:[%s223 + $0x74] sm:$0x1]
      %v272 = vld [vmem:[%s223 + $0x78] sm:$0xf]
      %v273 = vld [vmem:[%s223 + $0x7c] sm:$0xf]
      %v274 = vld [vmem:[%s223 + $0x80] sm:$0x1]
      %v275 = vld [vmem:[%s223 + $0x84] sm:$0xf]
      %v276 = vld [vmem:[%s223 + $0x88] sm:$0xf]
      %v277 = vld [vmem:[%s223 + $0x8c] sm:$0x1]
      %v278 = vld [vmem:[%s223 + $0x90] sm:$0xf]
      %v279 = vld [vmem:[%s223 + $0x94] sm:$0xf]
      %v280 = vld [vmem:[%s223 + $0x98] sm:$0x1]
      %v281 = vld [vmem:[%s223 + $0x9c] sm:$0xf]
      %v282 = vld [vmem:[%s223 + $0xa0] sm:$0xf]
      %v283 = vld [vmem:[%s223 + $0xa4] sm:$0x1]
      %v284 = vld [vmem:[%s223 + $0xa8] sm:$0xf]
      %v285 = vld [vmem:[%s223 + $0xac] sm:$0xf]
      %v286 = vld [vmem:[%s223 + $0xb0] sm:$0x1]
      %v287 = vld [vmem:[%s223 + $0xb4] sm:$0xf]
      %v288 = vld [vmem:[%s223 + $0xb8] sm:$0xf]
      %v289 = vld [vmem:[%s223 + $0xbc] sm:$0x1]
      %v290 = vld [vmem:[%s223 + $0xc0] sm:$0xf]
      %v291 = vld [vmem:[%s223 + $0xc4] sm:$0xf]
      %v292 = vld [vmem:[%s223 + $0xc8] sm:$0x1]
      %v293 = vld [vmem:[%s223 + $0xcc] sm:$0xf]
      %v294 = vld [vmem:[%s223 + $0xd0] sm:$0xf]
      %v295 = vld [vmem:[%s223 + $0xd4] sm:$0x1]
      %v296 = vunpack.c.l.bf16 %v242
      %v297 = vunpack.c.l.bf16 %v243
      %v298 = vunpack.c.l.bf16 %v244
      %v299 = vunpack.c.l.bf16 %v245
      %v300 = vunpack.c.l.bf16 %v246
      %v301 = vunpack.c.l.bf16 %v247
      %v302 = vunpack.c.l.bf16 %v248
      %v303 = vunpack.c.l.bf16 %v249
      %v304 = vunpack.c.l.bf16 %v250
      %v305 = vunpack.c.l.bf16 %v251
      %v306 = vunpack.c.l.bf16 %v252
      %v307 = vunpack.c.l.bf16 %v253
      %v308 = vunpack.c.l.bf16 %v254
      %v309 = vunpack.c.l.bf16 %v255
      %v310 = vunpack.c.l.bf16 %v256
      %v311 = vunpack.c.l.bf16 %v257
      %v312 = vunpack.c.l.bf16 %v258
      %v313 = vunpack.c.l.bf16 %v259
      %v314 = vunpack.c.l.bf16 %v260
      %v315 = vunpack.c.l.bf16 %v261
      %v316 = vunpack.c.l.bf16 %v262
      %v317 = vunpack.c.l.bf16 %v263
      %v318 = vunpack.c.l.bf16 %v264
      %v319 = vunpack.c.l.bf16 %v265
      %v320 = vunpack.c.l.bf16 %v266
      %v321 = vunpack.c.l.bf16 %v267
      %v322 = vunpack.c.l.bf16 %v268
      %v323 = vunpack.c.l.bf16 %v269
      %v324 = vunpack.c.l.bf16 %v270
      %v325 = vunpack.c.l.bf16 %v271
      %v326 = vunpack.c.l.bf16 %v272
      %v327 = vunpack.c.l.bf16 %v273
      %v328 = vunpack.c.l.bf16 %v274
      %v329 = vunpack.c.l.bf16 %v275
      %v330 = vunpack.c.l.bf16 %v276
      %v331 = vunpack.c.l.bf16 %v277
      %v332 = vunpack.c.l.bf16 %v278
      %v333 = vunpack.c.l.bf16 %v279
      %v334 = vunpack.c.l.bf16 %v280
      %v335 = vunpack.c.l.bf16 %v281
      %v336 = vunpack.c.l.bf16 %v282
      %v337 = vunpack.c.l.bf16 %v283
      %v338 = vunpack.c.l.bf16 %v284
      %v339 = vunpack.c.l.bf16 %v285
      %v340 = vunpack.c.l.bf16 %v286
      %v341 = vunpack.c.l.bf16 %v287
      %v342 = vunpack.c.l.bf16 %v288
      %v343 = vunpack.c.l.bf16 %v289
      %v344 = vunpack.c.l.bf16 %v290
      %v345 = vunpack.c.l.bf16 %v291
      %v346 = vunpack.c.l.bf16 %v292
      %v347 = vunpack.c.l.bf16 %v293
      %v348 = vunpack.c.l.bf16 %v294
      %v349 = vunpack.c.l.bf16 %v295
      %v350 = vld [vmem:[%s1] sm:$0xff]
      %v351 = vld [vmem:[%s1 + $0x8] sm:$0x1]
      %v352 = vperm.slane %v350, 0
      %v353 = vmul.f32 %v296, %v352
      %v354 = vmul.f32 %v297, %v352
      %v355 = vmul.f32 %v299, %v352
      %v356 = vmul.f32 %v300, %v352
      %v357 = vmul.f32 %v302, %v352
      %v358 = vmul.f32 %v303, %v352
      %v359 = vmul.f32 %v305, %v352
      %v360 = vmul.f32 %v306, %v352
      %v361 = vmul.f32 %v308, %v352
      %v362 = vmul.f32 %v309, %v352
      %v363 = vmul.f32 %v311, %v352
      %v364 = vmul.f32 %v312, %v352
      %v365 = vmul.f32 %v314, %v352
      %v366 = vmul.f32 %v315, %v352
      %v367 = vmul.f32 %v317, %v352
      %v368 = vmul.f32 %v318, %v352
      %v369 = vmul.f32 %v320, %v352
      %v370 = vmul.f32 %v321, %v352
      %v371 = vmul.f32 %v323, %v352
      %v372 = vmul.f32 %v324, %v352
      %v373 = vmul.f32 %v326, %v352
      %v374 = vmul.f32 %v327, %v352
      %v375 = vmul.f32 %v329, %v352
      %v376 = vmul.f32 %v330, %v352
      %v377 = vmul.f32 %v332, %v352
      %v378 = vmul.f32 %v333, %v352
      %v379 = vmul.f32 %v335, %v352
      %v380 = vmul.f32 %v336, %v352
      %v381 = vmul.f32 %v338, %v352
      %v382 = vmul.f32 %v339, %v352
      %v383 = vmul.f32 %v341, %v352
      %v384 = vmul.f32 %v342, %v352
      %v385 = vadd.f32 %v353, 0.0
      %v386 = vadd.f32 %v354, 0.0
      %v387 = vadd.f32 %v355, 0.0
      %v388 = vadd.f32 %v356, 0.0
      %v389 = vadd.f32 %v357, 0.0
      %v390 = vadd.f32 %v358, 0.0
      %v391 = vadd.f32 %v359, 0.0
      %v392 = vadd.f32 %v360, 0.0
      %v393 = vadd.f32 %v361, 0.0
      %v394 = vadd.f32 %v362, 0.0
      %v395 = vadd.f32 %v363, 0.0
      %v396 = vadd.f32 %v364, 0.0
      %v397 = vadd.f32 %v365, 0.0
      %v398 = vadd.f32 %v366, 0.0
      %v399 = vadd.f32 %v367, 0.0
      %v400 = vadd.f32 %v368, 0.0
      %v401 = vadd.f32 %v369, 0.0
      %v402 = vadd.f32 %v370, 0.0
      %v403 = vadd.f32 %v371, 0.0
      %v404 = vadd.f32 %v372, 0.0
      %v405 = vadd.f32 %v373, 0.0
      %v406 = vadd.f32 %v374, 0.0
      %v407 = vadd.f32 %v375, 0.0
      %v408 = vadd.f32 %v376, 0.0
      %v409 = vadd.f32 %v377, 0.0
      %v410 = vadd.f32 %v378, 0.0
      %v411 = vadd.f32 %v379, 0.0
      %v412 = vadd.f32 %v380, 0.0
      %v413 = vadd.f32 %v381, 0.0
      %v414 = vadd.f32 %v382, 0.0
      %v415 = vadd.f32 %v383, 0.0
      %v416 = vadd.f32 %v384, 0.0
      %v417 = vperm.slane %v350, 1
      %v418 = vmul.f32 %v296, %v417
      %v419 = vmul.f32 %v297, %v417
      %v420 = vmul.f32 %v298, %v417
      %v421 = vmul.f32 %v299, %v417
      %v422 = vmul.f32 %v300, %v417
      %v423 = vmul.f32 %v301, %v417
      %v424 = vmul.f32 %v302, %v417
      %v425 = vmul.f32 %v303, %v417
      %v426 = vmul.f32 %v304, %v417
      %v427 = vmul.f32 %v305, %v417
      %v428 = vmul.f32 %v306, %v417
      %v429 = vmul.f32 %v307, %v417
      %v430 = vmul.f32 %v308, %v417
      %v431 = vmul.f32 %v309, %v417
      %v432 = vmul.f32 %v310, %v417
      %v433 = vmul.f32 %v311, %v417
      %v434 = vmul.f32 %v312, %v417
      %v435 = vmul.f32 %v313, %v417
      %v436 = vmul.f32 %v314, %v417
      %v437 = vmul.f32 %v315, %v417
      %v438 = vmul.f32 %v316, %v417
      %v439 = vmul.f32 %v317, %v417
      %v440 = vmul.f32 %v318, %v417
      %v441 = vmul.f32 %v319, %v417
      %v442 = vmul.f32 %v320, %v417
      %v443 = vmul.f32 %v321, %v417
      %v444 = vmul.f32 %v322, %v417
      %v445 = vmul.f32 %v323, %v417
      %v446 = vmul.f32 %v324, %v417
      %v447 = vmul.f32 %v325, %v417
      %v448 = vmul.f32 %v326, %v417
      %v449 = vmul.f32 %v327, %v417
      %v450 = vmul.f32 %v328, %v417
      %v451 = vmul.f32 %v329, %v417
      %v452 = vmul.f32 %v330, %v417
      %v453 = vmul.f32 %v331, %v417
      %v454 = vmul.f32 %v332, %v417
      %v455 = vmul.f32 %v333, %v417
      %v456 = vmul.f32 %v334, %v417
      %v457 = vmul.f32 %v335, %v417
      %v458 = vmul.f32 %v336, %v417
      %v459 = vmul.f32 %v337, %v417
      %v460 = vmul.f32 %v338, %v417
      %v461 = vmul.f32 %v339, %v417
      %v462 = vmul.f32 %v340, %v417
      %v463 = vmul.f32 %v341, %v417
      %v464 = vmul.f32 %v342, %v417
      %v465 = vmul.f32 %v343, %v417
      %vm514 = vcmask 1046528
      %v515 = vrot.slane %v418, 1
      %v516 = vrot.slane %v419, 1
      %v517 = vsel %vm514, %v515, %v516
      %v518 = vrot.slane %v420, 1
      %v519 = vsel %vm514, %v516, %v518
      %v520 = vrot.slane %v421, 1
      %v521 = vrot.slane %v422, 1
      %v522 = vsel %vm514, %v520, %v521
      %v523 = vrot.slane %v423, 1
      %v524 = vsel %vm514, %v521, %v523
      %v525 = vrot.slane %v424, 1
      %v526 = vrot.slane %v425, 1
      %v527 = vsel %vm514, %v525, %v526
      %v528 = vrot.slane %v426, 1
      %v529 = vsel %vm514, %v526, %v528
      %v530 = vrot.slane %v427, 1
      %v531 = vrot.slane %v428, 1
      %v532 = vsel %vm514, %v530, %v531
      %v533 = vrot.slane %v429, 1
      %v534 = vsel %vm514, %v531, %v533
      %v535 = vrot.slane %v430, 1
      %v536 = vrot.slane %v431, 1
      %v537 = vsel %vm514, %v535, %v536
      %v538 = vrot.slane %v432, 1
      %v539 = vsel %vm514, %v536, %v538
      %v540 = vrot.slane %v433, 1
      %v541 = vrot.slane %v434, 1
      %v542 = vsel %vm514, %v540, %v541
      %v543 = vrot.slane %v435, 1
      %v544 = vsel %vm514, %v541, %v543
      %v545 = vrot.slane %v436, 1
      %v546 = vrot.slane %v437, 1
      %v547 = vsel %vm514, %v545, %v546
      %v548 = vrot.slane %v438, 1
      %v549 = vsel %vm514, %v546, %v548
      %v550 = vrot.slane %v439, 1
      %v551 = vrot.slane %v440, 1
      %v552 = vsel %vm514, %v550, %v551
      %v553 = vrot.slane %v441, 1
      %v554 = vsel %vm514, %v551, %v553
      %v555 = vrot.slane %v442, 1
      %v556 = vrot.slane %v443, 1
      %v557 = vsel %vm514, %v555, %v556
      %v558 = vrot.slane %v444, 1
      %v559 = vsel %vm514, %v556, %v558
      %v560 = vrot.slane %v445, 1
      %v561 = vrot.slane %v446, 1
      %v562 = vsel %vm514, %v560, %v561
      %v563 = vrot.slane %v447, 1
      %v564 = vsel %vm514, %v561, %v563
      %v565 = vrot.slane %v448, 1
      %v566 = vrot.slane %v449, 1
      %v567 = vsel %vm514, %v565, %v566
      %v568 = vrot.slane %v450, 1
      %v569 = vsel %vm514, %v566, %v568
      %v570 = vrot.slane %v451, 1
      %v571 = vrot.slane %v452, 1
      %v572 = vsel %vm514, %v570, %v571
      %v573 = vrot.slane %v453, 1
      %v574 = vsel %vm514, %v571, %v573
      %v575 = vrot.slane %v454, 1
      %v576 = vrot.slane %v455, 1
      %v577 = vsel %vm514, %v575, %v576
      %v578 = vrot.slane %v456, 1
      %v579 = vsel %vm514, %v576, %v578
      %v580 = vrot.slane %v457, 1
      %v581 = vrot.slane %v458, 1
      %v582 = vsel %vm514, %v580, %v581
      %v583 = vrot.slane %v459, 1
      %v584 = vsel %vm514, %v581, %v583
      %v585 = vrot.slane %v460, 1
      %v586 = vrot.slane %v461, 1
      %v587 = vsel %vm514, %v585, %v586
      %v588 = vrot.slane %v462, 1
      %v589 = vsel %vm514, %v586, %v588
      %v590 = vrot.slane %v463, 1
      %v591 = vrot.slane %v464, 1
      %v592 = vsel %vm514, %v590, %v591
      %v593 = vrot.slane %v465, 1
      %v594 = vsel %vm514, %v591, %v593
      %v627 = vadd.f32 %v385, %v517
      %v628 = vadd.f32 %v386, %v519
      %v629 = vadd.f32 %v387, %v522
      %v630 = vadd.f32 %v388, %v524
      %v631 = vadd.f32 %v389, %v527
      %v632 = vadd.f32 %v390, %v529
      %v633 = vadd.f32 %v391, %v532
      %v634 = vadd.f32 %v392, %v534
      %v635 = vadd.f32 %v393, %v537
      %v636 = vadd.f32 %v394, %v539
      %v637 = vadd.f32 %v395, %v542
      %v638 = vadd.f32 %v396, %v544
      %v639 = vadd.f32 %v397, %v547
      %v640 = vadd.f32 %v398, %v549
      %v641 = vadd.f32 %v399, %v552
      %v642 = vadd.f32 %v400, %v554
      %v643 = vadd.f32 %v401, %v557
      %v644 = vadd.f32 %v402, %v559
      %v645 = vadd.f32 %v403, %v562
      %v646 = vadd.f32 %v404, %v564
      %v647 = vadd.f32 %v405, %v567
      %v648 = vadd.f32 %v406, %v569
      %v649 = vadd.f32 %v407, %v572
      %v650 = vadd.f32 %v408, %v574
      %v651 = vadd.f32 %v409, %v577
      %v652 = vadd.f32 %v410, %v579
      %v653 = vadd.f32 %v411, %v582
      %v654 = vadd.f32 %v412, %v584
      %v655 = vadd.f32 %v413, %v587
      %v656 = vadd.f32 %v414, %v589
      %v657 = vadd.f32 %v415, %v592
      %v658 = vadd.f32 %v416, %v594
      %v659 = vperm.slane %v350, 2
      %v660 = vmul.f32 %v296, %v659
      %v661 = vmul.f32 %v297, %v659
      %v662 = vmul.f32 %v298, %v659
      %v663 = vmul.f32 %v299, %v659
      %v664 = vmul.f32 %v300, %v659
      %v665 = vmul.f32 %v301, %v659
      %v666 = vmul.f32 %v302, %v659
      %v667 = vmul.f32 %v303, %v659
      %v668 = vmul.f32 %v304, %v659
      %v669 = vmul.f32 %v305, %v659
      %v670 = vmul.f32 %v306, %v659
      %v671 = vmul.f32 %v307, %v659
      %v672 = vmul.f32 %v308, %v659
      %v673 = vmul.f32 %v309, %v659
      %v674 = vmul.f32 %v310, %v659
      %v675 = vmul.f32 %v311, %v659
      %v676 = vmul.f32 %v312, %v659
      %v677 = vmul.f32 %v313, %v659
      %v678 = vmul.f32 %v314, %v659
      %v679 = vmul.f32 %v315, %v659
      %v680 = vmul.f32 %v316, %v659
      %v681 = vmul.f32 %v317, %v659
      %v682 = vmul.f32 %v318, %v659
      %v683 = vmul.f32 %v319, %v659
      %v684 = vmul.f32 %v320, %v659
      %v685 = vmul.f32 %v321, %v659
      %v686 = vmul.f32 %v322, %v659
      %v687 = vmul.f32 %v323, %v659
      %v688 = vmul.f32 %v324, %v659
      %v689 = vmul.f32 %v325, %v659
      %v690 = vmul.f32 %v326, %v659
      %v691 = vmul.f32 %v327, %v659
      %v692 = vmul.f32 %v328, %v659
      %v693 = vmul.f32 %v329, %v659
      %v694 = vmul.f32 %v330, %v659
      %v695 = vmul.f32 %v331, %v659
      %v696 = vmul.f32 %v332, %v659
      %v697 = vmul.f32 %v333, %v659
      %v698 = vmul.f32 %v334, %v659
      %v699 = vmul.f32 %v335, %v659
      %v700 = vmul.f32 %v336, %v659
      %v701 = vmul.f32 %v337, %v659
      %v702 = vmul.f32 %v338, %v659
      %v703 = vmul.f32 %v339, %v659
      %v704 = vmul.f32 %v340, %v659
      %v705 = vmul.f32 %v341, %v659
      %v706 = vmul.f32 %v342, %v659
      %v707 = vmul.f32 %v343, %v659
      %vm756 = vcmask 1045504
      %v757 = vrot.slane %v660, 2
      %v758 = vrot.slane %v661, 2
      %v759 = vsel %vm756, %v757, %v758
      %v760 = vrot.slane %v662, 2
      %v761 = vsel %vm756, %v758, %v760
      %v762 = vrot.slane %v663, 2
      %v763 = vrot.slane %v664, 2
      %v764 = vsel %vm756, %v762, %v763
      %v765 = vrot.slane %v665, 2
      %v766 = vsel %vm756, %v763, %v765
      %v767 = vrot.slane %v666, 2
      %v768 = vrot.slane %v667, 2
      %v769 = vsel %vm756, %v767, %v768
      %v770 = vrot.slane %v668, 2
      %v771 = vsel %vm756, %v768, %v770
      %v772 = vrot.slane %v669, 2
      %v773 = vrot.slane %v670, 2
      %v774 = vsel %vm756, %v772, %v773
      %v775 = vrot.slane %v671, 2
      %v776 = vsel %vm756, %v773, %v775
      %v777 = vrot.slane %v672, 2
      %v778 = vrot.slane %v673, 2
      %v779 = vsel %vm756, %v777, %v778
      %v780 = vrot.slane %v674, 2
      %v781 = vsel %vm756, %v778, %v780
      %v782 = vrot.slane %v675, 2
      %v783 = vrot.slane %v676, 2
      %v784 = vsel %vm756, %v782, %v783
      %v785 = vrot.slane %v677, 2
      %v786 = vsel %vm756, %v783, %v785
      %v787 = vrot.slane %v678, 2
      %v788 = vrot.slane %v679, 2
      %v789 = vsel %vm756, %v787, %v788
      %v790 = vrot.slane %v680, 2
      %v791 = vsel %vm756, %v788, %v790
      %v792 = vrot.slane %v681, 2
      %v793 = vrot.slane %v682, 2
      %v794 = vsel %vm756, %v792, %v793
      %v795 = vrot.slane %v683, 2
      %v796 = vsel %vm756, %v793, %v795
      %v797 = vrot.slane %v684, 2
      %v798 = vrot.slane %v685, 2
      %v799 = vsel %vm756, %v797, %v798
      %v800 = vrot.slane %v686, 2
      %v801 = vsel %vm756, %v798, %v800
      %v802 = vrot.slane %v687, 2
      %v803 = vrot.slane %v688, 2
      %v804 = vsel %vm756, %v802, %v803
      %v805 = vrot.slane %v689, 2
      %v806 = vsel %vm756, %v803, %v805
      %v807 = vrot.slane %v690, 2
      %v808 = vrot.slane %v691, 2
      %v809 = vsel %vm756, %v807, %v808
      %v810 = vrot.slane %v692, 2
      %v811 = vsel %vm756, %v808, %v810
      %v812 = vrot.slane %v693, 2
      %v813 = vrot.slane %v694, 2
      %v814 = vsel %vm756, %v812, %v813
      %v815 = vrot.slane %v695, 2
      %v816 = vsel %vm756, %v813, %v815
      %v817 = vrot.slane %v696, 2
      %v818 = vrot.slane %v697, 2
      %v819 = vsel %vm756, %v817, %v818
      %v820 = vrot.slane %v698, 2
      %v821 = vsel %vm756, %v818, %v820
      %v822 = vrot.slane %v699, 2
      %v823 = vrot.slane %v700, 2
      %v824 = vsel %vm756, %v822, %v823
      %v825 = vrot.slane %v701, 2
      %v826 = vsel %vm756, %v823, %v825
      %v827 = vrot.slane %v702, 2
      %v828 = vrot.slane %v703, 2
      %v829 = vsel %vm756, %v827, %v828
      %v830 = vrot.slane %v704, 2
      %v831 = vsel %vm756, %v828, %v830
      %v832 = vrot.slane %v705, 2
      %v833 = vrot.slane %v706, 2
      %v834 = vsel %vm756, %v832, %v833
      %v835 = vrot.slane %v707, 2
      %v836 = vsel %vm756, %v833, %v835
      %v869 = vadd.f32 %v627, %v759
      %v870 = vadd.f32 %v628, %v761
      %v871 = vadd.f32 %v629, %v764
      %v872 = vadd.f32 %v630, %v766
      %v873 = vadd.f32 %v631, %v769
      %v874 = vadd.f32 %v632, %v771
      %v875 = vadd.f32 %v633, %v774
      %v876 = vadd.f32 %v634, %v776
      %v877 = vadd.f32 %v635, %v779
      %v878 = vadd.f32 %v636, %v781
      %v879 = vadd.f32 %v637, %v784
      %v880 = vadd.f32 %v638, %v786
      %v881 = vadd.f32 %v639, %v789
      %v882 = vadd.f32 %v640, %v791
      %v883 = vadd.f32 %v641, %v794
      %v884 = vadd.f32 %v642, %v796
      %v885 = vadd.f32 %v643, %v799
      %v886 = vadd.f32 %v644, %v801
      %v887 = vadd.f32 %v645, %v804
      %v888 = vadd.f32 %v646, %v806
      %v889 = vadd.f32 %v647, %v809
      %v890 = vadd.f32 %v648, %v811
      %v891 = vadd.f32 %v649, %v814
      %v892 = vadd.f32 %v650, %v816
      %v893 = vadd.f32 %v651, %v819
      %v894 = vadd.f32 %v652, %v821
      %v895 = vadd.f32 %v653, %v824
      %v896 = vadd.f32 %v654, %v826
      %v897 = vadd.f32 %v655, %v829
      %v898 = vadd.f32 %v656, %v831
      %v899 = vadd.f32 %v657, %v834
      %v900 = vadd.f32 %v658, %v836
      %v901 = vperm.slane %v350, 3
      %v902 = vmul.f32 %v299, %v901
      %v903 = vmul.f32 %v300, %v901
      %v904 = vmul.f32 %v302, %v901
      %v905 = vmul.f32 %v303, %v901
      %v906 = vmul.f32 %v305, %v901
      %v907 = vmul.f32 %v306, %v901
      %v908 = vmul.f32 %v308, %v901
      %v909 = vmul.f32 %v309, %v901
      %v910 = vmul.f32 %v311, %v901
      %v911 = vmul.f32 %v312, %v901
      %v912 = vmul.f32 %v314, %v901
      %v913 = vmul.f32 %v315, %v901
      %v914 = vmul.f32 %v317, %v901
      %v915 = vmul.f32 %v318, %v901
      %v916 = vmul.f32 %v320, %v901
      %v917 = vmul.f32 %v321, %v901
      %v918 = vmul.f32 %v323, %v901
      %v919 = vmul.f32 %v324, %v901
      %v920 = vmul.f32 %v326, %v901
      %v921 = vmul.f32 %v327, %v901
      %v922 = vmul.f32 %v329, %v901
      %v923 = vmul.f32 %v330, %v901
      %v924 = vmul.f32 %v332, %v901
      %v925 = vmul.f32 %v333, %v901
      %v926 = vmul.f32 %v335, %v901
      %v927 = vmul.f32 %v336, %v901
      %v928 = vmul.f32 %v338, %v901
      %v929 = vmul.f32 %v339, %v901
      %v930 = vmul.f32 %v341, %v901
      %v931 = vmul.f32 %v342, %v901
      %v932 = vmul.f32 %v344, %v901
      %v933 = vmul.f32 %v345, %v901
      %v934 = vadd.f32 %v869, %v902
      %v935 = vadd.f32 %v870, %v903
      %v936 = vadd.f32 %v871, %v904
      %v937 = vadd.f32 %v872, %v905
      %v938 = vadd.f32 %v873, %v906
      %v939 = vadd.f32 %v874, %v907
      %v940 = vadd.f32 %v875, %v908
      %v941 = vadd.f32 %v876, %v909
      %v942 = vadd.f32 %v877, %v910
      %v943 = vadd.f32 %v878, %v911
      %v944 = vadd.f32 %v879, %v912
      %v945 = vadd.f32 %v880, %v913
      %v946 = vadd.f32 %v881, %v914
      %v947 = vadd.f32 %v882, %v915
      %v948 = vadd.f32 %v883, %v916
      %v949 = vadd.f32 %v884, %v917
      %v950 = vadd.f32 %v885, %v918
      %v951 = vadd.f32 %v886, %v919
      %v952 = vadd.f32 %v887, %v920
      %v953 = vadd.f32 %v888, %v921
      %v954 = vadd.f32 %v889, %v922
      %v955 = vadd.f32 %v890, %v923
      %v956 = vadd.f32 %v891, %v924
      %v957 = vadd.f32 %v892, %v925
      %v958 = vadd.f32 %v893, %v926
      %v959 = vadd.f32 %v894, %v927
      %v960 = vadd.f32 %v895, %v928
      %v961 = vadd.f32 %v896, %v929
      %v962 = vadd.f32 %v897, %v930
      %v963 = vadd.f32 %v898, %v931
      %v964 = vadd.f32 %v899, %v932
      %v965 = vadd.f32 %v900, %v933
      %v966 = vperm.slane %v350, 4
      %v967 = vmul.f32 %v299, %v966
      %v968 = vmul.f32 %v300, %v966
      %v969 = vmul.f32 %v301, %v966
      %v970 = vmul.f32 %v302, %v966
      %v971 = vmul.f32 %v303, %v966
      %v972 = vmul.f32 %v304, %v966
      %v973 = vmul.f32 %v305, %v966
      %v974 = vmul.f32 %v306, %v966
      %v975 = vmul.f32 %v307, %v966
      %v976 = vmul.f32 %v308, %v966
      %v977 = vmul.f32 %v309, %v966
      %v978 = vmul.f32 %v310, %v966
      %v979 = vmul.f32 %v311, %v966
      %v980 = vmul.f32 %v312, %v966
      %v981 = vmul.f32 %v313, %v966
      %v982 = vmul.f32 %v314, %v966
      %v983 = vmul.f32 %v315, %v966
      %v984 = vmul.f32 %v316, %v966
      %v985 = vmul.f32 %v317, %v966
      %v986 = vmul.f32 %v318, %v966
      %v987 = vmul.f32 %v319, %v966
      %v988 = vmul.f32 %v320, %v966
      %v989 = vmul.f32 %v321, %v966
      %v990 = vmul.f32 %v322, %v966
      %v991 = vmul.f32 %v323, %v966
      %v992 = vmul.f32 %v324, %v966
      %v993 = vmul.f32 %v325, %v966
      %v994 = vmul.f32 %v326, %v966
      %v995 = vmul.f32 %v327, %v966
      %v996 = vmul.f32 %v328, %v966
      %v997 = vmul.f32 %v329, %v966
      %v998 = vmul.f32 %v330, %v966
      %v999 = vmul.f32 %v331, %v966
      %v1000 = vmul.f32 %v332, %v966
      %v1001 = vmul.f32 %v333, %v966
      %v1002 = vmul.f32 %v334, %v966
      %v1003 = vmul.f32 %v335, %v966
      %v1004 = vmul.f32 %v336, %v966
      %v1005 = vmul.f32 %v337, %v966
      %v1006 = vmul.f32 %v338, %v966
      %v1007 = vmul.f32 %v339, %v966
      %v1008 = vmul.f32 %v340, %v966
      %v1009 = vmul.f32 %v341, %v966
      %v1010 = vmul.f32 %v342, %v966
      %v1011 = vmul.f32 %v343, %v966
      %v1012 = vmul.f32 %v344, %v966
      %v1013 = vmul.f32 %v345, %v966
      %v1014 = vmul.f32 %v346, %v966
      %v1063 = vrot.slane %v967, 1
      %v1064 = vrot.slane %v968, 1
      %v1065 = vsel %vm514, %v1063, %v1064
      %v1066 = vrot.slane %v969, 1
      %v1067 = vsel %vm514, %v1064, %v1066
      %v1068 = vrot.slane %v970, 1
      %v1069 = vrot.slane %v971, 1
      %v1070 = vsel %vm514, %v1068, %v1069
      %v1071 = vrot.slane %v972, 1
      %v1072 = vsel %vm514, %v1069, %v1071
      %v1073 = vrot.slane %v973, 1
      %v1074 = vrot.slane %v974, 1
      %v1075 = vsel %vm514, %v1073, %v1074
      %v1076 = vrot.slane %v975, 1
      %v1077 = vsel %vm514, %v1074, %v1076
      %v1078 = vrot.slane %v976, 1
      %v1079 = vrot.slane %v977, 1
      %v1080 = vsel %vm514, %v1078, %v1079
      %v1081 = vrot.slane %v978, 1
      %v1082 = vsel %vm514, %v1079, %v1081
      %v1083 = vrot.slane %v979, 1
      %v1084 = vrot.slane %v980, 1
      %v1085 = vsel %vm514, %v1083, %v1084
      %v1086 = vrot.slane %v981, 1
      %v1087 = vsel %vm514, %v1084, %v1086
      %v1088 = vrot.slane %v982, 1
      %v1089 = vrot.slane %v983, 1
      %v1090 = vsel %vm514, %v1088, %v1089
      %v1091 = vrot.slane %v984, 1
      %v1092 = vsel %vm514, %v1089, %v1091
      %v1093 = vrot.slane %v985, 1
      %v1094 = vrot.slane %v986, 1
      %v1095 = vsel %vm514, %v1093, %v1094
      %v1096 = vrot.slane %v987, 1
      %v1097 = vsel %vm514, %v1094, %v1096
      %v1098 = vrot.slane %v988, 1
      %v1099 = vrot.slane %v989, 1
      %v1100 = vsel %vm514, %v1098, %v1099
      %v1101 = vrot.slane %v990, 1
      %v1102 = vsel %vm514, %v1099, %v1101
      %v1103 = vrot.slane %v991, 1
      %v1104 = vrot.slane %v992, 1
      %v1105 = vsel %vm514, %v1103, %v1104
      %v1106 = vrot.slane %v993, 1
      %v1107 = vsel %vm514, %v1104, %v1106
      %v1108 = vrot.slane %v994, 1
      %v1109 = vrot.slane %v995, 1
      %v1110 = vsel %vm514, %v1108, %v1109
      %v1111 = vrot.slane %v996, 1
      %v1112 = vsel %vm514, %v1109, %v1111
      %v1113 = vrot.slane %v997, 1
      %v1114 = vrot.slane %v998, 1
      %v1115 = vsel %vm514, %v1113, %v1114
      %v1116 = vrot.slane %v999, 1
      %v1117 = vsel %vm514, %v1114, %v1116
      %v1118 = vrot.slane %v1000, 1
      %v1119 = vrot.slane %v1001, 1
      %v1120 = vsel %vm514, %v1118, %v1119
      %v1121 = vrot.slane %v1002, 1
      %v1122 = vsel %vm514, %v1119, %v1121
      %v1123 = vrot.slane %v1003, 1
      %v1124 = vrot.slane %v1004, 1
      %v1125 = vsel %vm514, %v1123, %v1124
      %v1126 = vrot.slane %v1005, 1
      %v1127 = vsel %vm514, %v1124, %v1126
      %v1128 = vrot.slane %v1006, 1
      %v1129 = vrot.slane %v1007, 1
      %v1130 = vsel %vm514, %v1128, %v1129
      %v1131 = vrot.slane %v1008, 1
      %v1132 = vsel %vm514, %v1129, %v1131
      %v1133 = vrot.slane %v1009, 1
      %v1134 = vrot.slane %v1010, 1
      %v1135 = vsel %vm514, %v1133, %v1134
      %v1136 = vrot.slane %v1011, 1
      %v1137 = vsel %vm514, %v1134, %v1136
      %v1138 = vrot.slane %v1012, 1
      %v1139 = vrot.slane %v1013, 1
      %v1140 = vsel %vm514, %v1138, %v1139
      %v1141 = vrot.slane %v1014, 1
      %v1142 = vsel %vm514, %v1139, %v1141
      %v1175 = vadd.f32 %v934, %v1065
      %v1176 = vadd.f32 %v935, %v1067
      %v1177 = vadd.f32 %v936, %v1070
      %v1178 = vadd.f32 %v937, %v1072
      %v1179 = vadd.f32 %v938, %v1075
      %v1180 = vadd.f32 %v939, %v1077
      %v1181 = vadd.f32 %v940, %v1080
      %v1182 = vadd.f32 %v941, %v1082
      %v1183 = vadd.f32 %v942, %v1085
      %v1184 = vadd.f32 %v943, %v1087
      %v1185 = vadd.f32 %v944, %v1090
      %v1186 = vadd.f32 %v945, %v1092
      %v1187 = vadd.f32 %v946, %v1095
      %v1188 = vadd.f32 %v947, %v1097
      %v1189 = vadd.f32 %v948, %v1100
      %v1190 = vadd.f32 %v949, %v1102
      %v1191 = vadd.f32 %v950, %v1105
      %v1192 = vadd.f32 %v951, %v1107
      %v1193 = vadd.f32 %v952, %v1110
      %v1194 = vadd.f32 %v953, %v1112
      %v1195 = vadd.f32 %v954, %v1115
      %v1196 = vadd.f32 %v955, %v1117
      %v1197 = vadd.f32 %v956, %v1120
      %v1198 = vadd.f32 %v957, %v1122
      %v1199 = vadd.f32 %v958, %v1125
      %v1200 = vadd.f32 %v959, %v1127
      %v1201 = vadd.f32 %v960, %v1130
      %v1202 = vadd.f32 %v961, %v1132
      %v1203 = vadd.f32 %v962, %v1135
      %v1204 = vadd.f32 %v963, %v1137
      %v1205 = vadd.f32 %v964, %v1140
      %v1206 = vadd.f32 %v965, %v1142
      %v1207 = vperm.slane %v350, 5
      %v1208 = vmul.f32 %v299, %v1207
      %v1209 = vmul.f32 %v300, %v1207
      %v1210 = vmul.f32 %v301, %v1207
      %v1211 = vmul.f32 %v302, %v1207
      %v1212 = vmul.f32 %v303, %v1207
      %v1213 = vmul.f32 %v304, %v1207
      %v1214 = vmul.f32 %v305, %v1207
      %v1215 = vmul.f32 %v306, %v1207
      %v1216 = vmul.f32 %v307, %v1207
      %v1217 = vmul.f32 %v308, %v1207
      %v1218 = vmul.f32 %v309, %v1207
      %v1219 = vmul.f32 %v310, %v1207
      %v1220 = vmul.f32 %v311, %v1207
      %v1221 = vmul.f32 %v312, %v1207
      %v1222 = vmul.f32 %v313, %v1207
      %v1223 = vmul.f32 %v314, %v1207
      %v1224 = vmul.f32 %v315, %v1207
      %v1225 = vmul.f32 %v316, %v1207
      %v1226 = vmul.f32 %v317, %v1207
      %v1227 = vmul.f32 %v318, %v1207
      %v1228 = vmul.f32 %v319, %v1207
      %v1229 = vmul.f32 %v320, %v1207
      %v1230 = vmul.f32 %v321, %v1207
      %v1231 = vmul.f32 %v322, %v1207
      %v1232 = vmul.f32 %v323, %v1207
      %v1233 = vmul.f32 %v324, %v1207
      %v1234 = vmul.f32 %v325, %v1207
      %v1235 = vmul.f32 %v326, %v1207
      %v1236 = vmul.f32 %v327, %v1207
      %v1237 = vmul.f32 %v328, %v1207
      %v1238 = vmul.f32 %v329, %v1207
      %v1239 = vmul.f32 %v330, %v1207
      %v1240 = vmul.f32 %v331, %v1207
      %v1241 = vmul.f32 %v332, %v1207
      %v1242 = vmul.f32 %v333, %v1207
      %v1243 = vmul.f32 %v334, %v1207
      %v1244 = vmul.f32 %v335, %v1207
      %v1245 = vmul.f32 %v336, %v1207
      %v1246 = vmul.f32 %v337, %v1207
      %v1247 = vmul.f32 %v338, %v1207
      %v1248 = vmul.f32 %v339, %v1207
      %v1249 = vmul.f32 %v340, %v1207
      %v1250 = vmul.f32 %v341, %v1207
      %v1251 = vmul.f32 %v342, %v1207
      %v1252 = vmul.f32 %v343, %v1207
      %v1253 = vmul.f32 %v344, %v1207
      %v1254 = vmul.f32 %v345, %v1207
      %v1255 = vmul.f32 %v346, %v1207
      %v1304 = vrot.slane %v1208, 2
      %v1305 = vrot.slane %v1209, 2
      %v1306 = vsel %vm756, %v1304, %v1305
      %v1307 = vrot.slane %v1210, 2
      %v1308 = vsel %vm756, %v1305, %v1307
      %v1309 = vrot.slane %v1211, 2
      %v1310 = vrot.slane %v1212, 2
      %v1311 = vsel %vm756, %v1309, %v1310
      %v1312 = vrot.slane %v1213, 2
      %v1313 = vsel %vm756, %v1310, %v1312
      %v1314 = vrot.slane %v1214, 2
      %v1315 = vrot.slane %v1215, 2
      %v1316 = vsel %vm756, %v1314, %v1315
      %v1317 = vrot.slane %v1216, 2
      %v1318 = vsel %vm756, %v1315, %v1317
      %v1319 = vrot.slane %v1217, 2
      %v1320 = vrot.slane %v1218, 2
      %v1321 = vsel %vm756, %v1319, %v1320
      %v1322 = vrot.slane %v1219, 2
      %v1323 = vsel %vm756, %v1320, %v1322
      %v1324 = vrot.slane %v1220, 2
      %v1325 = vrot.slane %v1221, 2
      %v1326 = vsel %vm756, %v1324, %v1325
      %v1327 = vrot.slane %v1222, 2
      %v1328 = vsel %vm756, %v1325, %v1327
      %v1329 = vrot.slane %v1223, 2
      %v1330 = vrot.slane %v1224, 2
      %v1331 = vsel %vm756, %v1329, %v1330
      %v1332 = vrot.slane %v1225, 2
      %v1333 = vsel %vm756, %v1330, %v1332
      %v1334 = vrot.slane %v1226, 2
      %v1335 = vrot.slane %v1227, 2
      %v1336 = vsel %vm756, %v1334, %v1335
      %v1337 = vrot.slane %v1228, 2
      %v1338 = vsel %vm756, %v1335, %v1337
      %v1339 = vrot.slane %v1229, 2
      %v1340 = vrot.slane %v1230, 2
      %v1341 = vsel %vm756, %v1339, %v1340
      %v1342 = vrot.slane %v1231, 2
      %v1343 = vsel %vm756, %v1340, %v1342
      %v1344 = vrot.slane %v1232, 2
      %v1345 = vrot.slane %v1233, 2
      %v1346 = vsel %vm756, %v1344, %v1345
      %v1347 = vrot.slane %v1234, 2
      %v1348 = vsel %vm756, %v1345, %v1347
      %v1349 = vrot.slane %v1235, 2
      %v1350 = vrot.slane %v1236, 2
      %v1351 = vsel %vm756, %v1349, %v1350
      %v1352 = vrot.slane %v1237, 2
      %v1353 = vsel %vm756, %v1350, %v1352
      %v1354 = vrot.slane %v1238, 2
      %v1355 = vrot.slane %v1239, 2
      %v1356 = vsel %vm756, %v1354, %v1355
      %v1357 = vrot.slane %v1240, 2
      %v1358 = vsel %vm756, %v1355, %v1357
      %v1359 = vrot.slane %v1241, 2
      %v1360 = vrot.slane %v1242, 2
      %v1361 = vsel %vm756, %v1359, %v1360
      %v1362 = vrot.slane %v1243, 2
      %v1363 = vsel %vm756, %v1360, %v1362
      %v1364 = vrot.slane %v1244, 2
      %v1365 = vrot.slane %v1245, 2
      %v1366 = vsel %vm756, %v1364, %v1365
      %v1367 = vrot.slane %v1246, 2
      %v1368 = vsel %vm756, %v1365, %v1367
      %v1369 = vrot.slane %v1247, 2
      %v1370 = vrot.slane %v1248, 2
      %v1371 = vsel %vm756, %v1369, %v1370
      %v1372 = vrot.slane %v1249, 2
      %v1373 = vsel %vm756, %v1370, %v1372
      %v1374 = vrot.slane %v1250, 2
      %v1375 = vrot.slane %v1251, 2
      %v1376 = vsel %vm756, %v1374, %v1375
      %v1377 = vrot.slane %v1252, 2
      %v1378 = vsel %vm756, %v1375, %v1377
      %v1379 = vrot.slane %v1253, 2
      %v1380 = vrot.slane %v1254, 2
      %v1381 = vsel %vm756, %v1379, %v1380
      %v1382 = vrot.slane %v1255, 2
      %v1383 = vsel %vm756, %v1380, %v1382
      %v1416 = vadd.f32 %v1175, %v1306
      %v1417 = vadd.f32 %v1176, %v1308
      %v1418 = vadd.f32 %v1177, %v1311
      %v1419 = vadd.f32 %v1178, %v1313
      %v1420 = vadd.f32 %v1179, %v1316
      %v1421 = vadd.f32 %v1180, %v1318
      %v1422 = vadd.f32 %v1181, %v1321
      %v1423 = vadd.f32 %v1182, %v1323
      %v1424 = vadd.f32 %v1183, %v1326
      %v1425 = vadd.f32 %v1184, %v1328
      %v1426 = vadd.f32 %v1185, %v1331
      %v1427 = vadd.f32 %v1186, %v1333
      %v1428 = vadd.f32 %v1187, %v1336
      %v1429 = vadd.f32 %v1188, %v1338
      %v1430 = vadd.f32 %v1189, %v1341
      %v1431 = vadd.f32 %v1190, %v1343
      %v1432 = vadd.f32 %v1191, %v1346
      %v1433 = vadd.f32 %v1192, %v1348
      %v1434 = vadd.f32 %v1193, %v1351
      %v1435 = vadd.f32 %v1194, %v1353
      %v1436 = vadd.f32 %v1195, %v1356
      %v1437 = vadd.f32 %v1196, %v1358
      %v1438 = vadd.f32 %v1197, %v1361
      %v1439 = vadd.f32 %v1198, %v1363
      %v1440 = vadd.f32 %v1199, %v1366
      %v1441 = vadd.f32 %v1200, %v1368
      %v1442 = vadd.f32 %v1201, %v1371
      %v1443 = vadd.f32 %v1202, %v1373
      %v1444 = vadd.f32 %v1203, %v1376
      %v1445 = vadd.f32 %v1204, %v1378
      %v1446 = vadd.f32 %v1205, %v1381
      %v1447 = vadd.f32 %v1206, %v1383
      %v1448 = vperm.slane %v350, 6
      %v1449 = vmul.f32 %v302, %v1448
      %v1450 = vmul.f32 %v303, %v1448
      %v1451 = vmul.f32 %v305, %v1448
      %v1452 = vmul.f32 %v306, %v1448
      %v1453 = vmul.f32 %v308, %v1448
      %v1454 = vmul.f32 %v309, %v1448
      %v1455 = vmul.f32 %v311, %v1448
      %v1456 = vmul.f32 %v312, %v1448
      %v1457 = vmul.f32 %v314, %v1448
      %v1458 = vmul.f32 %v315, %v1448
      %v1459 = vmul.f32 %v317, %v1448
      %v1460 = vmul.f32 %v318, %v1448
      %v1461 = vmul.f32 %v320, %v1448
      %v1462 = vmul.f32 %v321, %v1448
      %v1463 = vmul.f32 %v323, %v1448
      %v1464 = vmul.f32 %v324, %v1448
      %v1465 = vmul.f32 %v326, %v1448
      %v1466 = vmul.f32 %v327, %v1448
      %v1467 = vmul.f32 %v329, %v1448
      %v1468 = vmul.f32 %v330, %v1448
      %v1469 = vmul.f32 %v332, %v1448
      %v1470 = vmul.f32 %v333, %v1448
      %v1471 = vmul.f32 %v335, %v1448
      %v1472 = vmul.f32 %v336, %v1448
      %v1473 = vmul.f32 %v338, %v1448
      %v1474 = vmul.f32 %v339, %v1448
      %v1475 = vmul.f32 %v341, %v1448
      %v1476 = vmul.f32 %v342, %v1448
      %v1477 = vmul.f32 %v344, %v1448
      %v1478 = vmul.f32 %v345, %v1448
      %v1479 = vmul.f32 %v347, %v1448
      %v1480 = vmul.f32 %v348, %v1448
      %v1481 = vadd.f32 %v1416, %v1449
      %v1482 = vadd.f32 %v1417, %v1450
      %v1483 = vadd.f32 %v1418, %v1451
      %v1484 = vadd.f32 %v1419, %v1452
      %v1485 = vadd.f32 %v1420, %v1453
      %v1486 = vadd.f32 %v1421, %v1454
      %v1487 = vadd.f32 %v1422, %v1455
      %v1488 = vadd.f32 %v1423, %v1456
      %v1489 = vadd.f32 %v1424, %v1457
      %v1490 = vadd.f32 %v1425, %v1458
      %v1491 = vadd.f32 %v1426, %v1459
      %v1492 = vadd.f32 %v1427, %v1460
      %v1493 = vadd.f32 %v1428, %v1461
      %v1494 = vadd.f32 %v1429, %v1462
      %v1495 = vadd.f32 %v1430, %v1463
      %v1496 = vadd.f32 %v1431, %v1464
      %v1497 = vadd.f32 %v1432, %v1465
      %v1498 = vadd.f32 %v1433, %v1466
      %v1499 = vadd.f32 %v1434, %v1467
      %v1500 = vadd.f32 %v1435, %v1468
      %v1501 = vadd.f32 %v1436, %v1469
      %v1502 = vadd.f32 %v1437, %v1470
      %v1503 = vadd.f32 %v1438, %v1471
      %v1504 = vadd.f32 %v1439, %v1472
      %v1505 = vadd.f32 %v1440, %v1473
      %v1506 = vadd.f32 %v1441, %v1474
      %v1507 = vadd.f32 %v1442, %v1475
      %v1508 = vadd.f32 %v1443, %v1476
      %v1509 = vadd.f32 %v1444, %v1477
      %v1510 = vadd.f32 %v1445, %v1478
      %v1511 = vadd.f32 %v1446, %v1479
      %v1512 = vadd.f32 %v1447, %v1480
      %v1513 = vperm.slane %v350, 7
      %v1514 = vmul.f32 %v302, %v1513
      %v1515 = vmul.f32 %v303, %v1513
      %v1516 = vmul.f32 %v304, %v1513
      %v1517 = vmul.f32 %v305, %v1513
      %v1518 = vmul.f32 %v306, %v1513
      %v1519 = vmul.f32 %v307, %v1513
      %v1520 = vmul.f32 %v308, %v1513
      %v1521 = vmul.f32 %v309, %v1513
      %v1522 = vmul.f32 %v310, %v1513
      %v1523 = vmul.f32 %v311, %v1513
      %v1524 = vmul.f32 %v312, %v1513
      %v1525 = vmul.f32 %v313, %v1513
      %v1526 = vmul.f32 %v314, %v1513
      %v1527 = vmul.f32 %v315, %v1513
      %v1528 = vmul.f32 %v316, %v1513
      %v1529 = vmul.f32 %v317, %v1513
      %v1530 = vmul.f32 %v318, %v1513
      %v1531 = vmul.f32 %v319, %v1513
      %v1532 = vmul.f32 %v320, %v1513
      %v1533 = vmul.f32 %v321, %v1513
      %v1534 = vmul.f32 %v322, %v1513
      %v1535 = vmul.f32 %v323, %v1513
      %v1536 = vmul.f32 %v324, %v1513
      %v1537 = vmul.f32 %v325, %v1513
      %v1538 = vmul.f32 %v326, %v1513
      %v1539 = vmul.f32 %v327, %v1513
      %v1540 = vmul.f32 %v328, %v1513
      %v1541 = vmul.f32 %v329, %v1513
      %v1542 = vmul.f32 %v330, %v1513
      %v1543 = vmul.f32 %v331, %v1513
      %v1544 = vmul.f32 %v332, %v1513
      %v1545 = vmul.f32 %v333, %v1513
      %v1546 = vmul.f32 %v334, %v1513
      %v1547 = vmul.f32 %v335, %v1513
      %v1548 = vmul.f32 %v336, %v1513
      %v1549 = vmul.f32 %v337, %v1513
      %v1550 = vmul.f32 %v338, %v1513
      %v1551 = vmul.f32 %v339, %v1513
      %v1552 = vmul.f32 %v340, %v1513
      %v1553 = vmul.f32 %v341, %v1513
      %v1554 = vmul.f32 %v342, %v1513
      %v1555 = vmul.f32 %v343, %v1513
      %v1556 = vmul.f32 %v344, %v1513
      %v1557 = vmul.f32 %v345, %v1513
      %v1558 = vmul.f32 %v346, %v1513
      %v1559 = vmul.f32 %v347, %v1513
      %v1560 = vmul.f32 %v348, %v1513
      %v1561 = vmul.f32 %v349, %v1513
      %v1610 = vrot.slane %v1514, 1
      %v1611 = vrot.slane %v1515, 1
      %v1612 = vsel %vm514, %v1610, %v1611
      %v1613 = vrot.slane %v1516, 1
      %v1614 = vsel %vm514, %v1611, %v1613
      %v1615 = vrot.slane %v1517, 1
      %v1616 = vrot.slane %v1518, 1
      %v1617 = vsel %vm514, %v1615, %v1616
      %v1618 = vrot.slane %v1519, 1
      %v1619 = vsel %vm514, %v1616, %v1618
      %v1620 = vrot.slane %v1520, 1
      %v1621 = vrot.slane %v1521, 1
      %v1622 = vsel %vm514, %v1620, %v1621
      %v1623 = vrot.slane %v1522, 1
      %v1624 = vsel %vm514, %v1621, %v1623
      %v1625 = vrot.slane %v1523, 1
      %v1626 = vrot.slane %v1524, 1
      %v1627 = vsel %vm514, %v1625, %v1626
      %v1628 = vrot.slane %v1525, 1
      %v1629 = vsel %vm514, %v1626, %v1628
      %v1630 = vrot.slane %v1526, 1
      %v1631 = vrot.slane %v1527, 1
      %v1632 = vsel %vm514, %v1630, %v1631
      %v1633 = vrot.slane %v1528, 1
      %v1634 = vsel %vm514, %v1631, %v1633
      %v1635 = vrot.slane %v1529, 1
      %v1636 = vrot.slane %v1530, 1
      %v1637 = vsel %vm514, %v1635, %v1636
      %v1638 = vrot.slane %v1531, 1
      %v1639 = vsel %vm514, %v1636, %v1638
      %v1640 = vrot.slane %v1532, 1
      %v1641 = vrot.slane %v1533, 1
      %v1642 = vsel %vm514, %v1640, %v1641
      %v1643 = vrot.slane %v1534, 1
      %v1644 = vsel %vm514, %v1641, %v1643
      %v1645 = vrot.slane %v1535, 1
      %v1646 = vrot.slane %v1536, 1
      %v1647 = vsel %vm514, %v1645, %v1646
      %v1648 = vrot.slane %v1537, 1
      %v1649 = vsel %vm514, %v1646, %v1648
      %v1650 = vrot.slane %v1538, 1
      %v1651 = vrot.slane %v1539, 1
      %v1652 = vsel %vm514, %v1650, %v1651
      %v1653 = vrot.slane %v1540, 1
      %v1654 = vsel %vm514, %v1651, %v1653
      %v1655 = vrot.slane %v1541, 1
      %v1656 = vrot.slane %v1542, 1
      %v1657 = vsel %vm514, %v1655, %v1656
      %v1658 = vrot.slane %v1543, 1
      %v1659 = vsel %vm514, %v1656, %v1658
      %v1660 = vrot.slane %v1544, 1
      %v1661 = vrot.slane %v1545, 1
      %v1662 = vsel %vm514, %v1660, %v1661
      %v1663 = vrot.slane %v1546, 1
      %v1664 = vsel %vm514, %v1661, %v1663
      %v1665 = vrot.slane %v1547, 1
      %v1666 = vrot.slane %v1548, 1
      %v1667 = vsel %vm514, %v1665, %v1666
      %v1668 = vrot.slane %v1549, 1
      %v1669 = vsel %vm514, %v1666, %v1668
      %v1670 = vrot.slane %v1550, 1
      %v1671 = vrot.slane %v1551, 1
      %v1672 = vsel %vm514, %v1670, %v1671
      %v1673 = vrot.slane %v1552, 1
      %v1674 = vsel %vm514, %v1671, %v1673
      %v1675 = vrot.slane %v1553, 1
      %v1676 = vrot.slane %v1554, 1
      %v1677 = vsel %vm514, %v1675, %v1676
      %v1678 = vrot.slane %v1555, 1
      %v1679 = vsel %vm514, %v1676, %v1678
      %v1680 = vrot.slane %v1556, 1
      %v1681 = vrot.slane %v1557, 1
      %v1682 = vsel %vm514, %v1680, %v1681
      %v1683 = vrot.slane %v1558, 1
      %v1684 = vsel %vm514, %v1681, %v1683
      %v1685 = vrot.slane %v1559, 1
      %v1686 = vrot.slane %v1560, 1
      %v1687 = vsel %vm514, %v1685, %v1686
      %v1688 = vrot.slane %v1561, 1
      %v1689 = vsel %vm514, %v1686, %v1688
      %v1722 = vadd.f32 %v1481, %v1612
      %v1723 = vadd.f32 %v1482, %v1614
      %v1724 = vadd.f32 %v1483, %v1617
      %v1725 = vadd.f32 %v1484, %v1619
      %v1726 = vadd.f32 %v1485, %v1622
      %v1727 = vadd.f32 %v1486, %v1624
      %v1728 = vadd.f32 %v1487, %v1627
      %v1729 = vadd.f32 %v1488, %v1629
      %v1730 = vadd.f32 %v1489, %v1632
      %v1731 = vadd.f32 %v1490, %v1634
      %v1732 = vadd.f32 %v1491, %v1637
      %v1733 = vadd.f32 %v1492, %v1639
      %v1734 = vadd.f32 %v1493, %v1642
      %v1735 = vadd.f32 %v1494, %v1644
      %v1736 = vadd.f32 %v1495, %v1647
      %v1737 = vadd.f32 %v1496, %v1649
      %v1738 = vadd.f32 %v1497, %v1652
      %v1739 = vadd.f32 %v1498, %v1654
      %v1740 = vadd.f32 %v1499, %v1657
      %v1741 = vadd.f32 %v1500, %v1659
      %v1742 = vadd.f32 %v1501, %v1662
      %v1743 = vadd.f32 %v1502, %v1664
      %v1744 = vadd.f32 %v1503, %v1667
      %v1745 = vadd.f32 %v1504, %v1669
      %v1746 = vadd.f32 %v1505, %v1672
      %v1747 = vadd.f32 %v1506, %v1674
      %v1748 = vadd.f32 %v1507, %v1677
      %v1749 = vadd.f32 %v1508, %v1679
      %v1750 = vadd.f32 %v1509, %v1682
      %v1751 = vadd.f32 %v1510, %v1684
      %v1752 = vadd.f32 %v1511, %v1687
      %v1753 = vadd.f32 %v1512, %v1689
      %v1754 = vperm.slane %v351, 0
      %v1755 = vmul.f32 %v302, %v1754
      %v1756 = vmul.f32 %v303, %v1754
      %v1757 = vmul.f32 %v304, %v1754
      %v1758 = vmul.f32 %v305, %v1754
      %v1759 = vmul.f32 %v306, %v1754
      %v1760 = vmul.f32 %v307, %v1754
      %v1761 = vmul.f32 %v308, %v1754
      %v1762 = vmul.f32 %v309, %v1754
      %v1763 = vmul.f32 %v310, %v1754
      %v1764 = vmul.f32 %v311, %v1754
      %v1765 = vmul.f32 %v312, %v1754
      %v1766 = vmul.f32 %v313, %v1754
      %v1767 = vmul.f32 %v314, %v1754
      %v1768 = vmul.f32 %v315, %v1754
      %v1769 = vmul.f32 %v316, %v1754
      %v1770 = vmul.f32 %v317, %v1754
      %v1771 = vmul.f32 %v318, %v1754
      %v1772 = vmul.f32 %v319, %v1754
      %v1773 = vmul.f32 %v320, %v1754
      %v1774 = vmul.f32 %v321, %v1754
      %v1775 = vmul.f32 %v322, %v1754
      %v1776 = vmul.f32 %v323, %v1754
      %v1777 = vmul.f32 %v324, %v1754
      %v1778 = vmul.f32 %v325, %v1754
      %v1779 = vmul.f32 %v326, %v1754
      %v1780 = vmul.f32 %v327, %v1754
      %v1781 = vmul.f32 %v328, %v1754
      %v1782 = vmul.f32 %v329, %v1754
      %v1783 = vmul.f32 %v330, %v1754
      %v1784 = vmul.f32 %v331, %v1754
      %v1785 = vmul.f32 %v332, %v1754
      %v1786 = vmul.f32 %v333, %v1754
      %v1787 = vmul.f32 %v334, %v1754
      %v1788 = vmul.f32 %v335, %v1754
      %v1789 = vmul.f32 %v336, %v1754
      %v1790 = vmul.f32 %v337, %v1754
      %v1791 = vmul.f32 %v338, %v1754
      %v1792 = vmul.f32 %v339, %v1754
      %v1793 = vmul.f32 %v340, %v1754
      %v1794 = vmul.f32 %v341, %v1754
      %v1795 = vmul.f32 %v342, %v1754
      %v1796 = vmul.f32 %v343, %v1754
      %v1797 = vmul.f32 %v344, %v1754
      %v1798 = vmul.f32 %v345, %v1754
      %v1799 = vmul.f32 %v346, %v1754
      %v1800 = vmul.f32 %v347, %v1754
      %v1801 = vmul.f32 %v348, %v1754
      %v1802 = vmul.f32 %v349, %v1754
      %v1851 = vrot.slane %v1755, 2
      %v1852 = vrot.slane %v1756, 2
      %v1853 = vsel %vm756, %v1851, %v1852
      %v1854 = vrot.slane %v1757, 2
      %v1855 = vsel %vm756, %v1852, %v1854
      %v1856 = vrot.slane %v1758, 2
      %v1857 = vrot.slane %v1759, 2
      %v1858 = vsel %vm756, %v1856, %v1857
      %v1859 = vrot.slane %v1760, 2
      %v1860 = vsel %vm756, %v1857, %v1859
      %v1861 = vrot.slane %v1761, 2
      %v1862 = vrot.slane %v1762, 2
      %v1863 = vsel %vm756, %v1861, %v1862
      %v1864 = vrot.slane %v1763, 2
      %v1865 = vsel %vm756, %v1862, %v1864
      %v1866 = vrot.slane %v1764, 2
      %v1867 = vrot.slane %v1765, 2
      %v1868 = vsel %vm756, %v1866, %v1867
      %v1869 = vrot.slane %v1766, 2
      %v1870 = vsel %vm756, %v1867, %v1869
      %v1871 = vrot.slane %v1767, 2
      %v1872 = vrot.slane %v1768, 2
      %v1873 = vsel %vm756, %v1871, %v1872
      %v1874 = vrot.slane %v1769, 2
      %v1875 = vsel %vm756, %v1872, %v1874
      %v1876 = vrot.slane %v1770, 2
      %v1877 = vrot.slane %v1771, 2
      %v1878 = vsel %vm756, %v1876, %v1877
      %v1879 = vrot.slane %v1772, 2
      %v1880 = vsel %vm756, %v1877, %v1879
      %v1881 = vrot.slane %v1773, 2
      %v1882 = vrot.slane %v1774, 2
      %v1883 = vsel %vm756, %v1881, %v1882
      %v1884 = vrot.slane %v1775, 2
      %v1885 = vsel %vm756, %v1882, %v1884
      %v1886 = vrot.slane %v1776, 2
      %v1887 = vrot.slane %v1777, 2
      %v1888 = vsel %vm756, %v1886, %v1887
      %v1889 = vrot.slane %v1778, 2
      %v1890 = vsel %vm756, %v1887, %v1889
      %v1891 = vrot.slane %v1779, 2
      %v1892 = vrot.slane %v1780, 2
      %v1893 = vsel %vm756, %v1891, %v1892
      %v1894 = vrot.slane %v1781, 2
      %v1895 = vsel %vm756, %v1892, %v1894
      %v1896 = vrot.slane %v1782, 2
      %v1897 = vrot.slane %v1783, 2
      %v1898 = vsel %vm756, %v1896, %v1897
      %v1899 = vrot.slane %v1784, 2
      %v1900 = vsel %vm756, %v1897, %v1899
      %v1901 = vrot.slane %v1785, 2
      %v1902 = vrot.slane %v1786, 2
      %v1903 = vsel %vm756, %v1901, %v1902
      %v1904 = vrot.slane %v1787, 2
      %v1905 = vsel %vm756, %v1902, %v1904
      %v1906 = vrot.slane %v1788, 2
      %v1907 = vrot.slane %v1789, 2
      %v1908 = vsel %vm756, %v1906, %v1907
      %v1909 = vrot.slane %v1790, 2
      %v1910 = vsel %vm756, %v1907, %v1909
      %v1911 = vrot.slane %v1791, 2
      %v1912 = vrot.slane %v1792, 2
      %v1913 = vsel %vm756, %v1911, %v1912
      %v1914 = vrot.slane %v1793, 2
      %v1915 = vsel %vm756, %v1912, %v1914
      %v1916 = vrot.slane %v1794, 2
      %v1917 = vrot.slane %v1795, 2
      %v1918 = vsel %vm756, %v1916, %v1917
      %v1919 = vrot.slane %v1796, 2
      %v1920 = vsel %vm756, %v1917, %v1919
      %v1921 = vrot.slane %v1797, 2
      %v1922 = vrot.slane %v1798, 2
      %v1923 = vsel %vm756, %v1921, %v1922
      %v1924 = vrot.slane %v1799, 2
      %v1925 = vsel %vm756, %v1922, %v1924
      %v1926 = vrot.slane %v1800, 2
      %v1927 = vrot.slane %v1801, 2
      %v1928 = vsel %vm756, %v1926, %v1927
      %v1929 = vrot.slane %v1802, 2
      %v1930 = vsel %vm756, %v1927, %v1929
      %v1963 = vadd.f32 %v1722, %v1853
      %v1964 = vadd.f32 %v1723, %v1855
      %v1965 = vadd.f32 %v1724, %v1858
      %v1966 = vadd.f32 %v1725, %v1860
      %v1967 = vadd.f32 %v1726, %v1863
      %v1968 = vadd.f32 %v1727, %v1865
      %v1969 = vadd.f32 %v1728, %v1868
      %v1970 = vadd.f32 %v1729, %v1870
      %v1971 = vadd.f32 %v1730, %v1873
      %v1972 = vadd.f32 %v1731, %v1875
      %v1973 = vadd.f32 %v1732, %v1878
      %v1974 = vadd.f32 %v1733, %v1880
      %v1975 = vadd.f32 %v1734, %v1883
      %v1976 = vadd.f32 %v1735, %v1885
      %v1977 = vadd.f32 %v1736, %v1888
      %v1978 = vadd.f32 %v1737, %v1890
      %v1979 = vadd.f32 %v1738, %v1893
      %v1980 = vadd.f32 %v1739, %v1895
      %v1981 = vadd.f32 %v1740, %v1898
      %v1982 = vadd.f32 %v1741, %v1900
      %v1983 = vadd.f32 %v1742, %v1903
      %v1984 = vadd.f32 %v1743, %v1905
      %v1985 = vadd.f32 %v1744, %v1908
      %v1986 = vadd.f32 %v1745, %v1910
      %v1987 = vadd.f32 %v1746, %v1913
      %v1988 = vadd.f32 %v1747, %v1915
      %v1989 = vadd.f32 %v1748, %v1918
      %v1990 = vadd.f32 %v1749, %v1920
      %v1991 = vadd.f32 %v1750, %v1923
      %v1992 = vadd.f32 %v1751, %v1925
      %v1993 = vadd.f32 %v1752, %v1928
      %v1994 = vadd.f32 %v1753, %v1930
      %v1995 = vld [vmem:[%s2] sm:$0x1]
      %v1997 = vperm.slane %v1995, 0
      %v1999 = vadd.f32 %v1963, %v1997
      %v2000 = vadd.f32 %v1964, %v1997
      %v2001 = vadd.f32 %v1965, %v1997
      %v2002 = vadd.f32 %v1966, %v1997
      %v2003 = vadd.f32 %v1967, %v1997
      %v2004 = vadd.f32 %v1968, %v1997
      %v2005 = vadd.f32 %v1969, %v1997
      %v2006 = vadd.f32 %v1970, %v1997
      %v2007 = vadd.f32 %v1971, %v1997
      %v2008 = vadd.f32 %v1972, %v1997
      %v2009 = vadd.f32 %v1973, %v1997
      %v2010 = vadd.f32 %v1974, %v1997
      %v2011 = vadd.f32 %v1975, %v1997
      %v2012 = vadd.f32 %v1976, %v1997
      %v2013 = vadd.f32 %v1977, %v1997
      %v2014 = vadd.f32 %v1978, %v1997
      %v2015 = vadd.f32 %v1979, %v1997
      %v2016 = vadd.f32 %v1980, %v1997
      %v2017 = vadd.f32 %v1981, %v1997
      %v2018 = vadd.f32 %v1982, %v1997
      %v2019 = vadd.f32 %v1983, %v1997
      %v2020 = vadd.f32 %v1984, %v1997
      %v2021 = vadd.f32 %v1985, %v1997
      %v2022 = vadd.f32 %v1986, %v1997
      %v2023 = vadd.f32 %v1987, %v1997
      %v2024 = vadd.f32 %v1988, %v1997
      %v2025 = vadd.f32 %v1989, %v1997
      %v2026 = vadd.f32 %v1990, %v1997
      %v2027 = vadd.f32 %v1991, %v1997
      %v2028 = vadd.f32 %v1992, %v1997
      %v2029 = vadd.f32 %v1993, %v1997
      %v2030 = vadd.f32 %v1994, %v1997
      %v2031 = vmax.f32 %v1999, 0.0
      %v2032 = vmax.f32 %v2000, 0.0
      %v2033 = vmax.f32 %v2001, 0.0
      %v2034 = vmax.f32 %v2002, 0.0
      %v2035 = vmax.f32 %v2003, 0.0
      %v2036 = vmax.f32 %v2004, 0.0
      %v2037 = vmax.f32 %v2005, 0.0
      %v2038 = vmax.f32 %v2006, 0.0
      %v2039 = vmax.f32 %v2007, 0.0
      %v2040 = vmax.f32 %v2008, 0.0
      %v2041 = vmax.f32 %v2009, 0.0
      %v2042 = vmax.f32 %v2010, 0.0
      %v2043 = vmax.f32 %v2011, 0.0
      %v2044 = vmax.f32 %v2012, 0.0
      %v2045 = vmax.f32 %v2013, 0.0
      %v2046 = vmax.f32 %v2014, 0.0
      %v2047 = vmax.f32 %v2015, 0.0
      %v2048 = vmax.f32 %v2016, 0.0
      %v2049 = vmax.f32 %v2017, 0.0
      %v2050 = vmax.f32 %v2018, 0.0
      %v2051 = vmax.f32 %v2019, 0.0
      %v2052 = vmax.f32 %v2020, 0.0
      %v2053 = vmax.f32 %v2021, 0.0
      %v2054 = vmax.f32 %v2022, 0.0
      %v2055 = vmax.f32 %v2023, 0.0
      %v2056 = vmax.f32 %v2024, 0.0
      %v2057 = vmax.f32 %v2025, 0.0
      %v2058 = vmax.f32 %v2026, 0.0
      %v2059 = vmax.f32 %v2027, 0.0
      %v2060 = vmax.f32 %v2028, 0.0
      %v2061 = vmax.f32 %v2029, 0.0
      %v2062 = vmax.f32 %v2030, 0.0
      %v2063 = vpack.c.bf16 %v2031, %v2031
      %v2064 = vpack.c.bf16 %v2032, %v2032
      %v2065 = vpack.c.bf16 %v2033, %v2033
      %v2066 = vpack.c.bf16 %v2034, %v2034
      %v2067 = vpack.c.bf16 %v2035, %v2035
      %v2068 = vpack.c.bf16 %v2036, %v2036
      %v2069 = vpack.c.bf16 %v2037, %v2037
      %v2070 = vpack.c.bf16 %v2038, %v2038
      %v2071 = vpack.c.bf16 %v2039, %v2039
      %v2072 = vpack.c.bf16 %v2040, %v2040
      %v2073 = vpack.c.bf16 %v2041, %v2041
      %v2074 = vpack.c.bf16 %v2042, %v2042
      %v2075 = vpack.c.bf16 %v2043, %v2043
      %v2076 = vpack.c.bf16 %v2044, %v2044
      %v2077 = vpack.c.bf16 %v2045, %v2045
      %v2078 = vpack.c.bf16 %v2046, %v2046
      %v2079 = vpack.c.bf16 %v2047, %v2047
      %v2080 = vpack.c.bf16 %v2048, %v2048
      %v2081 = vpack.c.bf16 %v2049, %v2049
      %v2082 = vpack.c.bf16 %v2050, %v2050
      %v2083 = vpack.c.bf16 %v2051, %v2051
      %v2084 = vpack.c.bf16 %v2052, %v2052
      %v2085 = vpack.c.bf16 %v2053, %v2053
      %v2086 = vpack.c.bf16 %v2054, %v2054
      %v2087 = vpack.c.bf16 %v2055, %v2055
      %v2088 = vpack.c.bf16 %v2056, %v2056
      %v2089 = vpack.c.bf16 %v2057, %v2057
      %v2090 = vpack.c.bf16 %v2058, %v2058
      %v2091 = vpack.c.bf16 %v2059, %v2059
      %v2092 = vpack.c.bf16 %v2060, %v2060
      %v2093 = vpack.c.bf16 %v2061, %v2061
      %v2094 = vpack.c.bf16 %v2062, %v2062
      %vm2095 = vcmask 257024
      %2096 = vst.msk [vmem:[%s233] sm:$0xf] %vm2095, %v2063
      %2097 = vst.msk [vmem:[%s233 + $0x4] sm:$0xf] %vm2095, %v2064
      %2098 = vst.msk [vmem:[%s233 + $0x8] sm:$0xf] %vm2095, %v2065
      %2099 = vst.msk [vmem:[%s233 + $0xc] sm:$0xf] %vm2095, %v2066
      %2100 = vst.msk [vmem:[%s233 + $0x10] sm:$0xf] %vm2095, %v2067
      %2101 = vst.msk [vmem:[%s233 + $0x14] sm:$0xf] %vm2095, %v2068
      %2102 = vst.msk [vmem:[%s233 + $0x18] sm:$0xf] %vm2095, %v2069
      %2103 = vst.msk [vmem:[%s233 + $0x1c] sm:$0xf] %vm2095, %v2070
      %2104 = vst.msk [vmem:[%s233 + $0x20] sm:$0xf] %vm2095, %v2071
      %2105 = vst.msk [vmem:[%s233 + $0x24] sm:$0xf] %vm2095, %v2072
      %2106 = vst.msk [vmem:[%s233 + $0x28] sm:$0xf] %vm2095, %v2073
      %2107 = vst.msk [vmem:[%s233 + $0x2c] sm:$0xf] %vm2095, %v2074
      %2108 = vst.msk [vmem:[%s233 + $0x30] sm:$0xf] %vm2095, %v2075
      %2109 = vst.msk [vmem:[%s233 + $0x34] sm:$0xf] %vm2095, %v2076
      %2110 = vst.msk [vmem:[%s233 + $0x38] sm:$0xf] %vm2095, %v2077
      %2111 = vst.msk [vmem:[%s233 + $0x3c] sm:$0xf] %vm2095, %v2078
      %2112 = vst.msk [vmem:[%s233 + $0x40] sm:$0xf] %vm2095, %v2079
      %2113 = vst.msk [vmem:[%s233 + $0x44] sm:$0xf] %vm2095, %v2080
      %2114 = vst.msk [vmem:[%s233 + $0x48] sm:$0xf] %vm2095, %v2081
      %2115 = vst.msk [vmem:[%s233 + $0x4c] sm:$0xf] %vm2095, %v2082
      %2116 = vst.msk [vmem:[%s233 + $0x50] sm:$0xf] %vm2095, %v2083
      %2117 = vst.msk [vmem:[%s233 + $0x54] sm:$0xf] %vm2095, %v2084
      %2118 = vst.msk [vmem:[%s233 + $0x58] sm:$0xf] %vm2095, %v2085
      %2119 = vst.msk [vmem:[%s233 + $0x5c] sm:$0xf] %vm2095, %v2086
      %2120 = vst.msk [vmem:[%s233 + $0x60] sm:$0xf] %vm2095, %v2087
      %2121 = vst.msk [vmem:[%s233 + $0x64] sm:$0xf] %vm2095, %v2088
      %2122 = vst.msk [vmem:[%s233 + $0x68] sm:$0xf] %vm2095, %v2089
      %2123 = vst.msk [vmem:[%s233 + $0x6c] sm:$0xf] %vm2095, %v2090
      %2124 = vst.msk [vmem:[%s233 + $0x70] sm:$0xf] %vm2095, %v2091
      %2125 = vst.msk [vmem:[%s233 + $0x74] sm:$0xf] %vm2095, %v2092
      %2126 = vst.msk [vmem:[%s233 + $0x78] sm:$0xf] %vm2095, %v2093
      %2127 = vst.msk [vmem:[%s233 + $0x7c] sm:$0xf] %vm2095, %v2094
      %vm2128 = vcmask 261120
      %v2129 = vsel %vm2128, %v2031, 0.0
      %v2130 = vsel %vm2128, %v2032, 0.0
      %v2131 = vadd.f32 %v2129, %v2130
      %v2132 = vsel %vm2128, %v2033, 0.0
      %v2133 = vadd.f32 %v2131, %v2132
      %v2134 = vsel %vm2128, %v2034, 0.0
      %v2135 = vadd.f32 %v2133, %v2134
      %v2136 = vsel %vm2128, %v2035, 0.0
      %v2137 = vadd.f32 %v2135, %v2136
      %v2138 = vsel %vm2128, %v2036, 0.0
      %v2139 = vadd.f32 %v2137, %v2138
      %v2140 = vsel %vm2128, %v2037, 0.0
      %v2141 = vadd.f32 %v2139, %v2140
      %v2142 = vsel %vm2128, %v2038, 0.0
      %v2143 = vadd.f32 %v2141, %v2142
      %v2144 = vsel %vm2128, %v2039, 0.0
      %v2145 = vadd.f32 %v2143, %v2144
      %v2146 = vsel %vm2128, %v2040, 0.0
      %v2147 = vadd.f32 %v2145, %v2146
      %v2148 = vsel %vm2128, %v2041, 0.0
      %v2149 = vadd.f32 %v2147, %v2148
      %v2150 = vsel %vm2128, %v2042, 0.0
      %v2151 = vadd.f32 %v2149, %v2150
      %v2152 = vsel %vm2128, %v2043, 0.0
      %v2153 = vadd.f32 %v2151, %v2152
      %v2154 = vsel %vm2128, %v2044, 0.0
      %v2155 = vadd.f32 %v2153, %v2154
      %v2156 = vsel %vm2128, %v2045, 0.0
      %v2157 = vadd.f32 %v2155, %v2156
      %v2158 = vsel %vm2128, %v2046, 0.0
      %v2159 = vadd.f32 %v2157, %v2158
      %v2160 = vsel %vm2128, %v2047, 0.0
      %v2161 = vadd.f32 %v2159, %v2160
      %v2162 = vsel %vm2128, %v2048, 0.0
      %v2163 = vadd.f32 %v2161, %v2162
      %v2164 = vsel %vm2128, %v2049, 0.0
      %v2165 = vadd.f32 %v2163, %v2164
      %v2166 = vsel %vm2128, %v2050, 0.0
      %v2167 = vadd.f32 %v2165, %v2166
      %v2168 = vsel %vm2128, %v2051, 0.0
      %v2169 = vadd.f32 %v2167, %v2168
      %v2170 = vsel %vm2128, %v2052, 0.0
      %v2171 = vadd.f32 %v2169, %v2170
      %v2172 = vsel %vm2128, %v2053, 0.0
      %v2173 = vadd.f32 %v2171, %v2172
      %v2174 = vsel %vm2128, %v2054, 0.0
      %v2175 = vadd.f32 %v2173, %v2174
      %v2176 = vsel %vm2128, %v2055, 0.0
      %v2177 = vadd.f32 %v2175, %v2176
      %v2178 = vsel %vm2128, %v2056, 0.0
      %v2179 = vadd.f32 %v2177, %v2178
      %v2180 = vsel %vm2128, %v2057, 0.0
      %v2181 = vadd.f32 %v2179, %v2180
      %v2182 = vsel %vm2128, %v2058, 0.0
      %v2183 = vadd.f32 %v2181, %v2182
      %v2184 = vsel %vm2128, %v2059, 0.0
      %v2185 = vadd.f32 %v2183, %v2184
      %v2186 = vsel %vm2128, %v2060, 0.0
      %v2187 = vadd.f32 %v2185, %v2186
      %v2188 = vsel %vm2128, %v2061, 0.0
      %v2189 = vadd.f32 %v2187, %v2188
      %v2190 = vsel %vm2128, %v2062, 0.0
      %v2191 = vadd.f32 %v2189, %v2190
      %v2192 = vrot.slane %v2191, 4
      %v2193 = vadd.f32 %v2191, %v2192
      %v2194 = vrot.slane %v2193, 2
      %v2195 = vadd.f32 %v2193, %v2194
      %v2196 = vrot.slane %v2195, 1
      %v2197 = vadd.f32 %v2195, %v2196
      %v2198 = vmul.f32 %v2031, %v2031
      %v2199 = vmul.f32 %v2032, %v2032
      %v2200 = vmul.f32 %v2033, %v2033
      %v2201 = vmul.f32 %v2034, %v2034
      %v2202 = vmul.f32 %v2035, %v2035
      %v2203 = vmul.f32 %v2036, %v2036
      %v2204 = vmul.f32 %v2037, %v2037
      %v2205 = vmul.f32 %v2038, %v2038
      %v2206 = vmul.f32 %v2039, %v2039
      %v2207 = vmul.f32 %v2040, %v2040
      %v2208 = vmul.f32 %v2041, %v2041
      %v2209 = vmul.f32 %v2042, %v2042
      %v2210 = vmul.f32 %v2043, %v2043
      %v2211 = vmul.f32 %v2044, %v2044
      %v2212 = vmul.f32 %v2045, %v2045
      %v2213 = vmul.f32 %v2046, %v2046
      %v2214 = vmul.f32 %v2047, %v2047
      %v2215 = vmul.f32 %v2048, %v2048
      %v2216 = vmul.f32 %v2049, %v2049
      %v2217 = vmul.f32 %v2050, %v2050
      %v2218 = vmul.f32 %v2051, %v2051
      %v2219 = vmul.f32 %v2052, %v2052
      %v2220 = vmul.f32 %v2053, %v2053
      %v2221 = vmul.f32 %v2054, %v2054
      %v2222 = vmul.f32 %v2055, %v2055
      %v2223 = vmul.f32 %v2056, %v2056
      %v2224 = vmul.f32 %v2057, %v2057
      %v2225 = vmul.f32 %v2058, %v2058
      %v2226 = vmul.f32 %v2059, %v2059
      %v2227 = vmul.f32 %v2060, %v2060
      %v2228 = vmul.f32 %v2061, %v2061
      %v2229 = vmul.f32 %v2062, %v2062
      %v2230 = vsel %vm2128, %v2198, 0.0
      %v2231 = vsel %vm2128, %v2199, 0.0
      %v2232 = vadd.f32 %v2230, %v2231
      %v2233 = vsel %vm2128, %v2200, 0.0
      %v2234 = vadd.f32 %v2232, %v2233
      %v2235 = vsel %vm2128, %v2201, 0.0
      %v2236 = vadd.f32 %v2234, %v2235
      %v2237 = vsel %vm2128, %v2202, 0.0
      %v2238 = vadd.f32 %v2236, %v2237
      %v2239 = vsel %vm2128, %v2203, 0.0
      %v2240 = vadd.f32 %v2238, %v2239
      %v2241 = vsel %vm2128, %v2204, 0.0
      %v2242 = vadd.f32 %v2240, %v2241
      %v2243 = vsel %vm2128, %v2205, 0.0
      %v2244 = vadd.f32 %v2242, %v2243
      %v2245 = vsel %vm2128, %v2206, 0.0
      %v2246 = vadd.f32 %v2244, %v2245
      %v2247 = vsel %vm2128, %v2207, 0.0
      %v2248 = vadd.f32 %v2246, %v2247
      %v2249 = vsel %vm2128, %v2208, 0.0
      %v2250 = vadd.f32 %v2248, %v2249
      %v2251 = vsel %vm2128, %v2209, 0.0
      %v2252 = vadd.f32 %v2250, %v2251
      %v2253 = vsel %vm2128, %v2210, 0.0
      %v2254 = vadd.f32 %v2252, %v2253
      %v2255 = vsel %vm2128, %v2211, 0.0
      %v2256 = vadd.f32 %v2254, %v2255
      %v2257 = vsel %vm2128, %v2212, 0.0
      %v2258 = vadd.f32 %v2256, %v2257
      %v2259 = vsel %vm2128, %v2213, 0.0
      %v2260 = vadd.f32 %v2258, %v2259
      %v2261 = vsel %vm2128, %v2214, 0.0
      %v2262 = vadd.f32 %v2260, %v2261
      %v2263 = vsel %vm2128, %v2215, 0.0
      %v2264 = vadd.f32 %v2262, %v2263
      %v2265 = vsel %vm2128, %v2216, 0.0
      %v2266 = vadd.f32 %v2264, %v2265
      %v2267 = vsel %vm2128, %v2217, 0.0
      %v2268 = vadd.f32 %v2266, %v2267
      %v2269 = vsel %vm2128, %v2218, 0.0
      %v2270 = vadd.f32 %v2268, %v2269
      %v2271 = vsel %vm2128, %v2219, 0.0
      %v2272 = vadd.f32 %v2270, %v2271
      %v2273 = vsel %vm2128, %v2220, 0.0
      %v2274 = vadd.f32 %v2272, %v2273
      %v2275 = vsel %vm2128, %v2221, 0.0
      %v2276 = vadd.f32 %v2274, %v2275
      %v2277 = vsel %vm2128, %v2222, 0.0
      %v2278 = vadd.f32 %v2276, %v2277
      %v2279 = vsel %vm2128, %v2223, 0.0
      %v2280 = vadd.f32 %v2278, %v2279
      %v2281 = vsel %vm2128, %v2224, 0.0
      %v2282 = vadd.f32 %v2280, %v2281
      %v2283 = vsel %vm2128, %v2225, 0.0
      %v2284 = vadd.f32 %v2282, %v2283
      %v2285 = vsel %vm2128, %v2226, 0.0
      %v2286 = vadd.f32 %v2284, %v2285
      %v2287 = vsel %vm2128, %v2227, 0.0
      %v2288 = vadd.f32 %v2286, %v2287
      %v2289 = vsel %vm2128, %v2228, 0.0
      %v2290 = vadd.f32 %v2288, %v2289
      %v2291 = vsel %vm2128, %v2229, 0.0
      %v2292 = vadd.f32 %v2290, %v2291
      %v2293 = vrot.slane %v2292, 4
      %v2294 = vadd.f32 %v2292, %v2293
      %v2295 = vrot.slane %v2294, 2
      %v2296 = vadd.f32 %v2294, %v2295
      %v2297 = vrot.slane %v2296, 1
      %v2298 = vadd.f32 %v2296, %v2297
      %vm2299 = vcmask 1040384
      %v2300 = vsel %vm2299, %v2197, %v2298
      %vm2301 = vcmask 1041408
      %v2302 = vsel %vm2301, %v2300, 0.0
      %2303 = vst.msk [vmem:[%s241] sm:$0xff] %vm2128, %v2302
      %s2304 = smul.u32 16, %s21
      %p2305 = scmp.lt.s32.totalorder %s20, 1
      %s2306 = scalar_select %p2305, %s20, 1
      %p2307 = scmp.lt.s32.totalorder %s2304, 15
      %s2308 = scalar_select %p2307, %s2304, 15
      %s2309 = smul.addr %s2308, 2
      %s2310 = smul.addr %s2306, 32
      %s2311 = sadd.s32 %s2309, %s2310
      %s2312 = smul.addr %s2311, 4
      %s2313 = scalar_lea.vmem %s3, %s2312
      %p2314 = scmp.lt.s32.totalorder %s20, 1
      %s2315 = scalar_select %p2314, %s20, 1
      %p2316 = scmp.lt.s32.totalorder %s21, 0
      %s2317 = scalar_select %p2316, %s21, 0
      %s2318 = sadd.s32 %s2317, %s2315
      %s2319 = smul.addr %s2318, 8
      %s2320 = scalar_lea.vmem %s4, %s2319
      // Predicated region
      $region33: #{depsep_forward.10} parent=31 // pred_check
        %p2321 = pneg %p116
      $region34: #{depsep_forward.10} parent=31 // pred_check_branch
        %2323 = sbr.rel (%p2321) target = $region36
      $region35: #{depsep_forward.10} parent=31 // pred_region
        %s2324 = smul.u32 16, %s21
      $region36: #{depsep_forward.10} parent=31 // pred_fallthru
        _
      // Predicated region
      $region37: #{depsep_forward.10} parent=31 // pred_check
        %p2325 = pneg %p144
      $region38: #{depsep_forward.10} parent=31 // pred_check_branch
        %2327 = sbr.rel (%p2325) target = $region40
      $region39: #{depsep_forward.10} parent=31 // pred_region
        _
      $region40: #{depsep_forward.10} parent=31 // pred_fallthru
        _
    $region32: #{depsep_forward.10} parent=5 // pred_fallthru
      _
    %p2328 = scmp.le.s32.totalorder 2, %s11
    // Predicated region
    $region41: #{depsep_forward.10} parent=5 // pred_check
      %p2329 = pneg %p2328
    $region42: #{depsep_forward.10} parent=5 // pred_check_branch
      %2331 = sbr.rel (%p2329) target = $region44
    $region43: #{depsep_forward.10} parent=5 // pred_region
      %s2332 = ssub.s32 %s11, 2
      // Predicated region
      $region45: #{depsep_forward.10} parent=43 // pred_check
        %p2333 = pneg %p122
      $region46: #{depsep_forward.10} parent=43 // pred_check_branch
        %2335 = sbr.rel (%p2333) target = $region48
      $region47: #{depsep_forward.10} parent=43 // pred_region
        %s2336 = smul.u32 16, %s23
        %p2337 = scmp.lt.s32.totalorder %s22, 1
        %s2338 = scalar_select %p2337, %s22, 1
        %p2339 = scmp.lt.s32.totalorder %s2336, 15
        %s2340 = scalar_select %p2339, %s2336, 15
        %s2341 = smul.addr %s2340, 2
        %s2342 = smul.addr %s2338, 32
        %s2343 = sadd.s32 %s2341, %s2342
        %s2344 = smul.addr %s2343, 4
        %s2345 = scalar_lea.vmem %s3, %s2344
      $region48: #{depsep_forward.10} parent=43 // pred_fallthru
        _
      // Predicated region
      $region49: #{depsep_forward.10} parent=43 // pred_check
        %p2346 = pneg %p150
      $region50: #{depsep_forward.10} parent=43 // pred_check_branch
        %2348 = sbr.rel (%p2346) target = $region52
      $region51: #{depsep_forward.10} parent=43 // pred_region
        %p2349 = scmp.lt.s32.totalorder %s22, 1
        %s2350 = scalar_select %p2349, %s22, 1
        %p2351 = scmp.lt.s32.totalorder %s23, 0
        %s2352 = scalar_select %p2351, %s23, 0
        %s2353 = sadd.s32 %s2352, %s2350
        %s2354 = smul.addr %s2353, 8
        %s2355 = scalar_lea.vmem %s4, %s2354
      $region52: #{depsep_forward.10} parent=43 // pred_fallthru
        _
    $region44: #{depsep_forward.10} parent=5 // pred_fallthru
      _
  $region6: #{depsep_forward.10} parent=0 // loop_footer
    %s15 = sadd.s32 1, %s11
  $region7: #{depsep_forward.10} parent=0 // loop_footer_branch
    %10 = sbr.rel target = $region3
  $region8: #{depsep_forward.10} parent=0 // loop_exit
    _

// kernel: depsep_forward.11
$region0: #{depsep_forward.11}
  #allocation0 [shape = 'u32[]', space=smem, size = 0x4, offset = 0x4, fixed_abs, tag = 'smem constant byte address 0x4 - core index']
  #allocation1 [shape = 'u32[72,128]{1,0:T(1,128)}', space=vmem, size = 0x9000, scoped, tag = 'internal scratch']
  %s0 = inlined_call_operand.vmem [shape: bf16[512,64], index: 0, kind: input, shape index: {}]
  %s1 = inlined_call_operand.vmem [shape: bf16[512,32], index: 1, kind: input, shape index: {}]
  %s2 = inlined_call_operand.vmem [shape: bf16[64,32], index: 2, kind: input, shape index: {}]
  %s3 = inlined_call_operand.vmem [shape: bf16[32,32], index: 3, kind: input, shape index: {}]
  %s4 = inlined_call_operand.vmem [shape: f32[1,32], index: 4, kind: input, shape index: {}]
  %s5 = inlined_call_operand.vmem [shape: bf16[512,32], index: 5, kind: output, shape index: {}]
  %s6 = sld [smem:[#allocation0]]
  $region53: #{depsep_forward.11} parent=0
    _
  %s8 = ssub.s32 1, %s6
  %s9 = scalar_select 0, %s8, %s6
  loop: start=0, step=1, limit=4
  $region2: #{depsep_forward.11} parent=0 // loop_pre_header
    _
  $region3: #{depsep_forward.11} parent=0 // loop_header
    %s11 = sphi 0, %s15
    %p12 = scmp.ge.s32.totalorder %s11, 4
    %s21 = sphi 0, %s23
    %s24 = sphi 0, %s21
    %s25 = sphi 0, %s24
    %s41 = sphi 0, %s25
    %s47 = sphi 0, %s49
    %s50 = sphi 0, %s47
    %s51 = sphi 0, %s50
    %s67 = sphi 0, %s51
    %s71 = sphi 0, %s71
    %s73 = sphi 0, %s71
    %s74 = sphi 0, %s73
    %s88 = sphi 0, %s74
    %s92 = sphi 0, %s92
    %s94 = sphi 0, %s92
    %s95 = sphi 0, %s94
    %s109 = sphi 0, %s95
    %s113 = sphi 0, %s113
    %s115 = sphi 0, %s113
    %s116 = sphi 0, %s115
    %s130 = sphi 0, %s116
    %s136 = sphi 0, %s138
    %s139 = sphi 0, %s136
    %s140 = sphi 0, %s139
    %s156 = sphi 0, %s140
  $region4: #{depsep_forward.11} parent=0 // loop_header_branch
    %14 = sbr.rel (%p12) target = $region8
  $region5: #{depsep_forward.11} parent=0 // loop_body
    %s16 = ssub.s32 %s11, 1
    %s17 = ssub.s32 %s11, 2
    %s18 = sadd.s32 %s11, 1
    %s19 = ssub.s32 %s11, %s18
    %p20 = scmp.eq.s32.totalorder %s19, 0
    %s22 = sadd.s32 %s21, 1
    %s23 = scalar_select %p20, %s21, %s22
    %p26 = pneg %p20
    %p27 = scmp.eq.s32.totalorder %s11, 1
    %p28 = por %p26, %p27
    %p29 = scmp.ne.s32.totalorder %s21, %s24
    %p30 = scmp.eq.s32.totalorder %s11, 0
    %p31 = por %p29, %p30
    %p32 = scmp.ne.s32.totalorder %s21, %s24
    %p33 = scmp.eq.s32.totalorder %s16, 1
    %p34 = por %p32, %p33
    %p35 = scmp.ne.s32.totalorder %s24, %s25
    %p36 = scmp.eq.s32.totalorder %s16, 0
    %p37 = por %p35, %p36
    %p38 = scmp.ne.s32.totalorder %s24, %s25
    %p39 = scmp.eq.s32.totalorder %s17, 1
    %p40 = por %p38, %p39
    %p42 = scmp.ne.s32.totalorder %s25, %s41
    %p43 = scmp.eq.s32.totalorder %s17, 0
    %p44 = por %p42, %p43
    %s45 = ssub.s32 %s11, %s18
    %p46 = scmp.eq.s32.totalorder %s45, 0
    %s48 = sadd.s32 %s47, 1
    %s49 = scalar_select %p46, %s47, %s48
    %p52 = pneg %p46
    %p53 = scmp.eq.s32.totalorder %s11, 1
    %p54 = por %p52, %p53
    %p55 = scmp.ne.s32.totalorder %s47, %s50
    %p56 = scmp.eq.s32.totalorder %s11, 0
    %p57 = por %p55, %p56
    %p58 = scmp.ne.s32.totalorder %s47, %s50
    %p59 = scmp.eq.s32.totalorder %s16, 1
    %p60 = por %p58, %p59
    %p61 = scmp.ne.s32.totalorder %s50, %s51
    %p62 = scmp.eq.s32.totalorder %s16, 0
    %p63 = por %p61, %p62
    %p64 = scmp.ne.s32.totalorder %s50, %s51
    %p65 = scmp.eq.s32.totalorder %s17, 1
    %p66 = por %p64, %p65
    %p68 = scmp.ne.s32.totalorder %s51, %s67
    %p69 = scmp.eq.s32.totalorder %s17, 0
    %p70 = por %p68, %p69
    %s72 = sadd.s32 %s71, 1
    %p75 = scmp.eq.s32.totalorder %s11, 1
    %p76 = scmp.ne.s32.totalorder %s71, %s73
    %p77 = scmp.eq.s32.totalorder %s11, 0
    %p78 = por %p76, %p77
    %p79 = scmp.ne.s32.totalorder %s71, %s73
    %p80 = scmp.eq.s32.totalorder %s16, 1
    %p81 = por %p79, %p80
    %p82 = scmp.ne.s32.totalorder %s73, %s74
    %p83 = scmp.eq.s32.totalorder %s16, 0
    %p84 = por %p82, %p83
    %p85 = scmp.ne.s32.totalorder %s73, %s74
    %p86 = scmp.eq.s32.totalorder %s17, 1
    %p87 = por %p85, %p86
    %p89 = scmp.ne.s32.totalorder %s74, %s88
    %p90 = scmp.eq.s32.totalorder %s17, 0
    %p91 = por %p89, %p90
    %s93 = sadd.s32 %s92, 1
    %p96 = scmp.eq.s32.totalorder %s11, 1
    %p97 = scmp.ne.s32.totalorder %s92, %s94
    %p98 = scmp.eq.s32.totalorder %s11, 0
    %p99 = por %p97, %p98
    %p100 = scmp.ne.s32.totalorder %s92, %s94
    %p101 = scmp.eq.s32.totalorder %s16, 1
    %p102 = por %p100, %p101
    %p103 = scmp.ne.s32.totalorder %s94, %s95
    %p104 = scmp.eq.s32.totalorder %s16, 0
    %p105 = por %p103, %p104
    %p106 = scmp.ne.s32.totalorder %s94, %s95
    %p107 = scmp.eq.s32.totalorder %s17, 1
    %p108 = por %p106, %p107
    %p110 = scmp.ne.s32.totalorder %s95, %s109
    %p111 = scmp.eq.s32.totalorder %s17, 0
    %p112 = por %p110, %p111
    %s114 = sadd.s32 %s113, 1
    %p117 = scmp.eq.s32.totalorder %s11, 1
    %p118 = scmp.ne.s32.totalorder %s113, %s115
    %p119 = scmp.eq.s32.totalorder %s11, 0
    %p120 = por %p118, %p119
    %p121 = scmp.ne.s32.totalorder %s113, %s115
    %p122 = scmp.eq.s32.totalorder %s16, 1
    %p123 = por %p121, %p122
    %p124 = scmp.ne.s32.totalorder %s115, %s116
    %p125 = scmp.eq.s32.totalorder %s16, 0
    %p126 = por %p124, %p125
    %p127 = scmp.ne.s32.totalorder %s115, %s116
    %p128 = scmp.eq.s32.totalorder %s17, 1
    %p129 = por %p127, %p128
    %p131 = scmp.ne.s32.totalorder %s116, %s130
    %p132 = scmp.eq.s32.totalorder %s17, 0
    %p133 = por %p131, %p132
    %s134 = ssub.s32 %s11, %s18
    %p135 = scmp.eq.s32.totalorder %s134, 0
    %s137 = sadd.s32 %s136, 1
    %s138 = scalar_select %p135, %s136, %s137
    %p141 = pneg %p135
    %p142 = scmp.eq.s32.totalorder %s11, 1
    %p143 = por %p141, %p142
    %p144 = scmp.ne.s32.totalorder %s136, %s139
    %p145 = scmp.eq.s32.totalorder %s11, 0
    %p146 = por %p144, %p145
    %p147 = scmp.ne.s32.totalorder %s136, %s139
    %p148 = scmp.eq.s32.totalorder %s16, 1
    %p149 = por %p147, %p148
    %p150 = scmp.ne.s32.totalorder %s139, %s140
    %p151 = scmp.eq.s32.totalorder %s16, 0
    %p152 = por %p150, %p151
    %p153 = scmp.ne.s32.totalorder %s139, %s140
    %p154 = scmp.eq.s32.totalorder %s17, 1
    %p155 = por %p153, %p154
    %p157 = scmp.ne.s32.totalorder %s140, %s156
    %p158 = scmp.eq.s32.totalorder %s17, 0
    %p159 = por %p157, %p158
    %p160 = scmp.le.s32.totalorder 1, %s11
    %p161 = scmp.lt.s32.totalorder %s11, 3
    %p162 = pnand %p160, %p161
    %p163 = pneg %p162
    // Predicated region
    $region9: #{depsep_forward.11} parent=5 // pred_check
      _
    $region10: #{depsep_forward.11} parent=5 // pred_check_branch
      %165 = sbr.rel (%p162) target = $region12
    $region11: #{depsep_forward.11} parent=5 // pred_region
      %s166 = ssub.s32 %s11, 1
      // Predicated region
      $region13: #{depsep_forward.11} parent=11 // pred_check
        %p167 = pneg %p84
      $region14: #{depsep_forward.11} parent=11 // pred_check_branch
        %169 = sbr.rel (%p167) target = $region16
      $region15: #{depsep_forward.11} parent=11 // pred_region
        _
      $region16: #{depsep_forward.11} parent=11 // pred_fallthru
        _
      // Predicated region
      $region17: #{depsep_forward.11} parent=11 // pred_check
        %p170 = pneg %p105
      $region18: #{depsep_forward.11} parent=11 // pred_check_branch
        %172 = sbr.rel (%p170) target = $region20
      $region19: #{depsep_forward.11} parent=11 // pred_region
        _
      $region20: #{depsep_forward.11} parent=11 // pred_fallthru
        _
      // Predicated region
      $region21: #{depsep_forward.11} parent=11 // pred_check
        %p173 = pneg %p126
      $region22: #{depsep_forward.11} parent=11 // pred_check_branch
        %175 = sbr.rel (%p173) target = $region24
      $region23: #{depsep_forward.11} parent=11 // pred_region
        _
      $region24: #{depsep_forward.11} parent=11 // pred_fallthru
        _
    $region12: #{depsep_forward.11} parent=5 // pred_fallthru
      _
    %p176 = scmp.lt.s32.totalorder %s11, 2
    // Predicated region
    $region25: #{depsep_forward.11} parent=5 // pred_check
      %p177 = pneg %p176
    $region26: #{depsep_forward.11} parent=5 // pred_check_branch
      %179 = sbr.rel (%p177) target = $region28
    $region27: #{depsep_forward.11} parent=5 // pred_region
      // Predicated region
      $region29: #{depsep_forward.11} parent=27 // pred_check
        %p180 = pneg %p31
      $region30: #{depsep_forward.11} parent=27 // pred_check_branch
        %182 = sbr.rel (%p180) target = $region32
      $region31: #{depsep_forward.11} parent=27 // pred_region
        %s183 = smul.u32 32, %s11
        %p184 = scmp.lt.s32.totalorder %s183, 63
        %s185 = scalar_select %p184, %s183, 63
        %s186 = smul.addr %s185, 4
        %s187 = scalar_lea.vmem %s0, %s186
        %s188 = smul.u32 32, %s11
      $region32: #{depsep_forward.11} parent=27 // pred_fallthru
        _
      // Predicated region
      $region33: #{depsep_forward.11} parent=27 // pred_check
        %p189 = pneg %p57
      $region34: #{depsep_forward.11} parent=27 // pred_check_branch
        %191 = sbr.rel (%p189) target = $region36
      $region35: #{depsep_forward.11} parent=27 // pred_region
        %s192 = smul.u32 32, %s11
        %p193 = scmp.lt.s32.totalorder %s192, 63
        %s194 = scalar_select %p193, %s192, 63
        %s195 = smul.addr %s194, 4
        %s196 = scalar_lea.vmem %s1, %s195
        %s197 = smul.u32 32, %s11
      $region36: #{depsep_forward.11} parent=27 // pred_fallthru
        _
    $region28: #{depsep_forward.11} parent=5 // pred_fallthru
      _
    %p198 = scmp.le.s32.totalorder 1, %s11
    %p199 = scmp.lt.s32.totalorder %s11, 3
    %p200 = pnand %p198, %p199
    %p201 = pneg %p200
    // Predicated region
    $region37: #{depsep_forward.11} parent=5 // pred_check
      _
    $region38: #{depsep_forward.11} parent=5 // pred_check_branch
      %203 = sbr.rel (%p200) target = $region40
    $region39: #{depsep_forward.11} parent=5 // pred_region
      %s204 = ssub.s32 %s11, 1
      %s205 = smul.u32 32, %s16
      %p206 = scmp.lt.s32.totalorder %s205, 63
      %s207 = scalar_select %p206, %s205, 63
      %s208 = smul.addr %s207, 4
      %s209 = scalar_lea.vmem %s0, %s208
      %p210 = pneg %p37
      %p211 = pneg %p34
      %s212 = smul.u32 32, %s16
      %p213 = scmp.lt.s32.totalorder %s212, 63
      %s214 = scalar_select %p213, %s212, 63
      %s215 = smul.addr %s214, 4
      %s216 = scalar_lea.vmem %s1, %s215
      %p217 = pneg %p63
      %p218 = pneg %p60
      %p219 = pneg %p84
      %p220 = pneg %p81
      %p221 = pneg %p105
      %p222 = pneg %p102
      %p223 = pneg %p126
      %p224 = pneg %p123
      %p225 = pneg %p152
      %p226 = pneg %p149
      %s227 = smul.u32 32, %s16
      %p228 = scmp.lt.s32.totalorder %s227, 63
      %s229 = scalar_select %p228, %s227, 63
      %s230 = smul.addr %s229, 4
      %s231 = scalar_lea.vmem %s5, %s230
      %s232 = smul.u32 32, %s16
      %p233 = scmp.lt.s32.totalorder %s232, 63
      %s234 = scalar_select %p233, %s232, 63
      %s235 = smul.addr %s234, 4
      %s236 = scalar_lea.vmem %s0, %s235
      %s237 = smul.u32 32, %s16
      %s238 = smul.u32 32, %s16
      %p239 = scmp.lt.s32.totalorder %s238, 63
      %s240 = scalar_select %p239, %s238, 63
      %s241 = smul.addr %s240, 4
      %s242 = scalar_lea.vmem %s1, %s241
      %s243 = smul.u32 32, %s16
      %s244 = smul.u32 32, %s16
      %p245 = scmp.lt.s32.totalorder %s244, 63
      %s246 = scalar_select %p245, %s244, 63
      %s247 = smul.addr %s246, 4
      %s248 = scalar_lea.vmem %s5, %s247
      %s249 = smul.u32 32, %s16
      %v251 = vld [vmem:[%s236] sm:$0xf]
      %v252 = vld [vmem:[%s236 + $0x4] sm:$0xf]
      %v253 = vld [vmem:[%s236 + $0x8] sm:$0xf]
      %v254 = vld [vmem:[%s236 + $0xc] sm:$0xf]
      %v255 = vld [vmem:[%s236 + $0x10] sm:$0xf]
      %v256 = vld [vmem:[%s236 + $0x14] sm:$0xf]
      %v257 = vld [vmem:[%s236 + $0x18] sm:$0xf]
      %v258 = vld [vmem:[%s236 + $0x1c] sm:$0xf]
      %v259 = vld [vmem:[%s236 + $0x20] sm:$0xf]
      %v260 = vld [vmem:[%s236 + $0x24] sm:$0xf]
      %v261 = vld [vmem:[%s236 + $0x28] sm:$0xf]
      %v262 = vld [vmem:[%s236 + $0x2c] sm:$0xf]
      %v263 = vld [vmem:[%s236 + $0x30] sm:$0xf]
      %v264 = vld [vmem:[%s236 + $0x34] sm:$0xf]
      %v265 = vld [vmem:[%s236 + $0x38] sm:$0xf]
      %v266 = vld [vmem:[%s236 + $0x3c] sm:$0xf]
      %v267 = vld [vmem:[%s236 + $0x40] sm:$0xf]
      %v268 = vld [vmem:[%s236 + $0x44] sm:$0xf]
      %v269 = vld [vmem:[%s236 + $0x48] sm:$0xf]
      %v270 = vld [vmem:[%s236 + $0x4c] sm:$0xf]
      %v271 = vld [vmem:[%s236 + $0x50] sm:$0xf]
      %v272 = vld [vmem:[%s236 + $0x54] sm:$0xf]
      %v273 = vld [vmem:[%s236 + $0x58] sm:$0xf]
      %v274 = vld [vmem:[%s236 + $0x5c] sm:$0xf]
      %v275 = vld [vmem:[%s236 + $0x60] sm:$0xf]
      %v276 = vld [vmem:[%s236 + $0x64] sm:$0xf]
      %v277 = vld [vmem:[%s236 + $0x68] sm:$0xf]
      %v278 = vld [vmem:[%s236 + $0x6c] sm:$0xf]
      %v279 = vld [vmem:[%s236 + $0x70] sm:$0xf]
      %v280 = vld [vmem:[%s236 + $0x74] sm:$0xf]
      %v281 = vld [vmem:[%s236 + $0x78] sm:$0xf]
      %v282 = vld [vmem:[%s236 + $0x7c] sm:$0xf]
      %v283 = vld [vmem:[%s2] sm:$0xf]
      %v284 = vld [vmem:[%s2 + $0x4] sm:$0xf]
      %v285 = vld [vmem:[%s2 + $0x8] sm:$0xf]
      %v286 = vld [vmem:[%s2 + $0xc] sm:$0xf]
      %v287 = vld [vmem:[%s2 + $0x10] sm:$0xf]
      %v288 = vld [vmem:[%s2 + $0x14] sm:$0xf]
      %v289 = vld [vmem:[%s2 + $0x18] sm:$0xf]
      %v290 = vld [vmem:[%s2 + $0x1c] sm:$0xf]
      %v291 = vld [vmem:[%s242] sm:$0xf]
      %v292 = vld [vmem:[%s242 + $0x4] sm:$0xf]
      %v293 = vld [vmem:[%s242 + $0x8] sm:$0xf]
      %v294 = vld [vmem:[%s242 + $0xc] sm:$0xf]
      %v295 = vld [vmem:[%s242 + $0x10] sm:$0xf]
      %v296 = vld [vmem:[%s242 + $0x14] sm:$0xf]
      %v297 = vld [vmem:[%s242 + $0x18] sm:$0xf]
      %v298 = vld [vmem:[%s242 + $0x1c] sm:$0xf]
      %v299 = vld [vmem:[%s242 + $0x20] sm:$0xf]
      %v300 = vld [vmem:[%s242 + $0x24] sm:$0xf]
      %v301 = vld [vmem:[%s242 + $0x28] sm:$0xf]
      %v302 = vld [vmem:[%s242 + $0x2c] sm:$0xf]
      %v303 = vld [vmem:[%s242 + $0x30] sm:$0xf]
      %v304 = vld [vmem:[%s242 + $0x34] sm:$0xf]
      %v305 = vld [vmem:[%s242 + $0x38] sm:$0xf]
      %v306 = vld [vmem:[%s242 + $0x3c] sm:$0xf]
      %v307 = vld [vmem:[%s242 + $0x40] sm:$0xf]
      %v308 = vld [vmem:[%s242 + $0x44] sm:$0xf]
      %v309 = vld [vmem:[%s242 + $0x48] sm:$0xf]
      %v310 = vld [vmem:[%s242 + $0x4c] sm:$0xf]
      %v311 = vld [vmem:[%s242 + $0x50] sm:$0xf]
      %v312 = vld [vmem:[%s242 + $0x54] sm:$0xf]
      %v313 = vld [vmem:[%s242 + $0x58] sm:$0xf]
      %v314 = vld [vmem:[%s242 + $0x5c] sm:$0xf]
      %v315 = vld [vmem:[%s242 + $0x60] sm:$0xf]
      %v316 = vld [vmem:[%s242 + $0x64] sm:$0xf]
      %v317 = vld [vmem:[%s242 + $0x68] sm:$0xf]
      %v318 = vld [vmem:[%s242 + $0x6c] sm:$0xf]
      %v319 = vld [vmem:[%s242 + $0x70] sm:$0xf]
      %v320 = vld [vmem:[%s242 + $0x74] sm:$0xf]
      %v321 = vld [vmem:[%s242 + $0x78] sm:$0xf]
      %v322 = vld [vmem:[%s242 + $0x7c] sm:$0xf]
      %v323 = vld [vmem:[%s3] sm:$0xf]
      %v324 = vld [vmem:[%s3 + $0x4] sm:$0xf]
      %v325 = vld [vmem:[%s3 + $0x8] sm:$0xf]
      %v326 = vld [vmem:[%s3 + $0xc] sm:$0xf]
      %v359 = vunpack.c.l.b16 %v291
      %v360 = vunpack.c.l.b16 %v292
      %v361 = vunpack.c.l.b16 %v293
      %v362 = vunpack.c.l.b16 %v294
      %v363 = vunpack.c.l.b16 %v295
      %v364 = vunpack.c.l.b16 %v296
      %v365 = vunpack.c.l.b16 %v297
      %v366 = vunpack.c.l.b16 %v298
      %v367 = vunpack.c.l.b16 %v299
      %v368 = vunpack.c.l.b16 %v300
      %v369 = vunpack.c.l.b16 %v301
      %v370 = vunpack.c.l.b16 %v302
      %v371 = vunpack.c.l.b16 %v303
      %v372 = vunpack.c.l.b16 %v304
      %v373 = vunpack.c.l.b16 %v305
      %v374 = vunpack.c.l.b16 %v306
      %v375 = vunpack.c.l.b16 %v307
      %v376 = vunpack.c.l.b16 %v308
      %v377 = vunpack.c.l.b16 %v309
      %v378 = vunpack.c.l.b16 %v310
      %v379 = vunpack.c.l.b16 %v311
      %v380 = vunpack.c.l.b16 %v312
      %v381 = vunpack.c.l.b16 %v313
      %v382 = vunpack.c.l.b16 %v314
      %v383 = vunpack.c.l.b16 %v315
      %v384 = vunpack.c.l.b16 %v316
      %v385 = vunpack.c.l.b16 %v317
      %v386 = vunpack.c.l.b16 %v318
      %v387 = vunpack.c.l.b16 %v319
      %v388 = vunpack.c.l.b16 %v320
      %v389 = vunpack.c.l.b16 %v321
      %v390 = vunpack.c.l.b16 %v322
      %v391 = vpack.c.b16 %v360, %v359
      %v392 = vpack.c.b16 %v362, %v361
      %v393 = vpack.c.b16 %v364, %v363
      %v394 = vpack.c.b16 %v366, %v365
      %v395 = vpack.c.b16 %v368, %v367
      %v396 = vpack.c.b16 %v370, %v369
      %v397 = vpack.c.b16 %v372, %v371
      %v398 = vpack.c.b16 %v374, %v373
      %v399 = vpack.c.b16 %v376, %v375
      %v400 = vpack.c.b16 %v378, %v377
      %v401 = vpack.c.b16 %v380, %v379
      %v402 = vpack.c.b16 %v382, %v381
      %v403 = vpack.c.b16 %v384, %v383
      %v404 = vpack.c.b16 %v386, %v385
      %v405 = vpack.c.b16 %v388, %v387
      %v406 = vpack.c.b16 %v390, %v389
      %v411 = vunpack.c.l.b16 %v323
      %v412 = vunpack.c.l.b16 %v324
      %v413 = vunpack.c.l.b16 %v325
      %v414 = vunpack.c.l.b16 %v326
      %v415 = vpack.c.b16 %v412, %v411
      %v416 = vpack.c.b16 %v414, %v413
      %vm419 = vcmask 261120
      %v421 = vsel %vm419, %v391, 0
      %v424 = vsel %vm419, %v392, 0
      %v427 = vsel %vm419, %v393, 0
      %v430 = vsel %vm419, %v394, 0
      %v433 = vsel %vm419, %v395, 0
      %v436 = vsel %vm419, %v396, 0
      %v439 = vsel %vm419, %v397, 0
      %v442 = vsel %vm419, %v398, 0
      %v445 = vsel %vm419, %v399, 0
      %v448 = vsel %vm419, %v400, 0
      %v451 = vsel %vm419, %v401, 0
      %v454 = vsel %vm419, %v402, 0
      %v457 = vsel %vm419, %v403, 0
      %v460 = vsel %vm419, %v404, 0
      %v463 = vsel %vm419, %v405, 0
      %v466 = vsel %vm419, %v406, 0
      %468 = vmatpush.bf16.msra.mxu0 0
      %469 = vmatpush.bf16.msra.mxu0 0
      %470 = vmatpush.bf16.msra.mxu0 0
      %471 = vmatpush.bf16.msra.mxu0 0
      %472 = vmatpush.bf16.msra.mxu0 0
      %473 = vmatpush.bf16.msra.mxu0 0
      %474 = vmatpush.bf16.msra.mxu0 %v416
      %475 = vmatpush.bf16.msra.mxu0 %v415
      %476 = vmatmul.bf16.gmra.mxu0 %v421
      %v477 = vpop.f32.mrf.mxu0
      %v478 = vadd.f32 0.0, %v477
      %v479 = vpop.f32.mrf.mxu0
      %v480 = vadd.f32 0.0, %v479
      %481 = vmatmul.bf16.gmra.mxu0 %v424
      %v482 = vpop.f32.mrf.mxu0
      %v483 = vadd.f32 0.0, %v482
      %v484 = vpop.f32.mrf.mxu0
      %v485 = vadd.f32 0.0, %v484
      %486 = vmatmul.bf16.gmra.mxu0 %v427
      %v487 = vpop.f32.mrf.mxu0
      %v488 = vadd.f32 0.0, %v487
      %v489 = vpop.f32.mrf.mxu0
      %v490 = vadd.f32 0.0, %v489
      %491 = vmatmul.bf16.gmra.mxu0 %v430
      %v492 = vpop.f32.mrf.mxu0
      %v493 = vadd.f32 0.0, %v492
      %v494 = vpop.f32.mrf.mxu0
      %v495 = vadd.f32 0.0, %v494
      %496 = vmatmul.bf16.gmra.mxu0 %v433
      %v497 = vpop.f32.mrf.mxu0
      %v498 = vadd.f32 0.0, %v497
      %v499 = vpop.f32.mrf.mxu0
      %v500 = vadd.f32 0.0, %v499
      %501 = vmatmul.bf16.gmra.mxu0 %v436
      %v502 = vpop.f32.mrf.mxu0
      %v503 = vadd.f32 0.0, %v502
      %v504 = vpop.f32.mrf.mxu0
      %v505 = vadd.f32 0.0, %v504
      %506 = vmatmul.bf16.gmra.mxu0 %v439
      %v507 = vpop.f32.mrf.mxu0
      %v508 = vadd.f32 0.0, %v507
      %v509 = vpop.f32.mrf.mxu0
      %v510 = vadd.f32 0.0, %v509
      %511 = vmatmul.bf16.gmra.mxu0 %v442
      %v512 = vpop.f32.mrf.mxu0
      %v513 = vadd.f32 0.0, %v512
      %v514 = vpop.f32.mrf.mxu0
      %v515 = vadd.f32 0.0, %v514
      %516 = vmatmul.bf16.gmra.mxu0 %v445
      %v517 = vpop.f32.mrf.mxu0
      %v518 = vadd.f32 0.0, %v517
      %v519 = vpop.f32.mrf.mxu0
      %v520 = vadd.f32 0.0, %v519
      %521 = vmatmul.bf16.gmra.mxu0 %v448
      %v522 = vpop.f32.mrf.mxu0
      %v523 = vadd.f32 0.0, %v522
      %v524 = vpop.f32.mrf.mxu0
      %v525 = vadd.f32 0.0, %v524
      %526 = vmatmul.bf16.gmra.mxu0 %v451
      %v527 = vpop.f32.mrf.mxu0
      %v528 = vadd.f32 0.0, %v527
      %v529 = vpop.f32.mrf.mxu0
      %v530 = vadd.f32 0.0, %v529
      %531 = vmatmul.bf16.gmra.mxu0 %v454
      %v532 = vpop.f32.mrf.mxu0
      %v533 = vadd.f32 0.0, %v532
      %v534 = vpop.f32.mrf.mxu0
      %v535 = vadd.f32 0.0, %v534
      %536 = vmatmul.bf16.gmra.mxu0 %v457
      %v537 = vpop.f32.mrf.mxu0
      %v538 = vadd.f32 0.0, %v537
      %v539 = vpop.f32.mrf.mxu0
      %v540 = vadd.f32 0.0, %v539
      %541 = vmatmul.bf16.gmra.mxu0 %v460
      %v542 = vpop.f32.mrf.mxu0
      %v543 = vadd.f32 0.0, %v542
      %v544 = vpop.f32.mrf.mxu0
      %v545 = vadd.f32 0.0, %v544
      %546 = vmatmul.bf16.gmra.mxu0 %v463
      %v547 = vpop.f32.mrf.mxu0
      %v548 = vadd.f32 0.0, %v547
      %v549 = vpop.f32.mrf.mxu0
      %v550 = vadd.f32 0.0, %v549
      %551 = vmatmul.bf16.gmra.mxu0 %v466
      %v552 = vpop.f32.mrf.mxu0
      %v553 = vadd.f32 0.0, %v552
      %v554 = vpop.f32.mrf.mxu0
      %v555 = vadd.f32 0.0, %v554
      %556 = vdwg.mxu0
      %v589 = vunpack.c.l.b16 %v251
      %v590 = vunpack.c.l.b16 %v252
      %v591 = vunpack.c.l.b16 %v253
      %v592 = vunpack.c.l.b16 %v254
      %v593 = vunpack.c.l.b16 %v255
      %v594 = vunpack.c.l.b16 %v256
      %v595 = vunpack.c.l.b16 %v257
      %v596 = vunpack.c.l.b16 %v258
      %v597 = vunpack.c.l.b16 %v259
      %v598 = vunpack.c.l.b16 %v260
      %v599 = vunpack.c.l.b16 %v261
      %v600 = vunpack.c.l.b16 %v262
      %v601 = vunpack.c.l.b16 %v263
      %v602 = vunpack.c.l.b16 %v264
      %v603 = vunpack.c.l.b16 %v265
      %v604 = vunpack.c.l.b16 %v266
      %v605 = vunpack.c.l.b16 %v267
      %v606 = vunpack.c.l.b16 %v268
      %v607 = vunpack.c.l.b16 %v269
      %v608 = vunpack.c.l.b16 %v270
      %v609 = vunpack.c.l.b16 %v271
      %v610 = vunpack.c.l.b16 %v272
      %v611 = vunpack.c.l.b16 %v273
      %v612 = vunpack.c.l.b16 %v274
      %v613 = vunpack.c.l.b16 %v275
      %v614 = vunpack.c.l.b16 %v276
      %v615 = vunpack.c.l.b16 %v277
      %v616 = vunpack.c.l.b16 %v278
      %v617 = vunpack.c.l.b16 %v279
      %v618 = vunpack.c.l.b16 %v280
      %v619 = vunpack.c.l.b16 %v281
      %v620 = vunpack.c.l.b16 %v282
      %v621 = vpack.c.b16 %v590, %v589
      %v622 = vpack.c.b16 %v592, %v591
      %v623 = vpack.c.b16 %v594, %v593
      %v624 = vpack.c.b16 %v596, %v595
      %v625 = vpack.c.b16 %v598, %v597
      %v626 = vpack.c.b16 %v600, %v599
      %v627 = vpack.c.b16 %v602, %v601
      %v628 = vpack.c.b16 %v604, %v603
      %v629 = vpack.c.b16 %v606, %v605
      %v630 = vpack.c.b16 %v608, %v607
      %v631 = vpack.c.b16 %v610, %v609
      %v632 = vpack.c.b16 %v612, %v611
      %v633 = vpack.c.b16 %v614, %v613
      %v634 = vpack.c.b16 %v616, %v615
      %v635 = vpack.c.b16 %v618, %v617
      %v636 = vpack.c.b16 %v620, %v619
      %v645 = vunpack.c.l.b16 %v283
      %v646 = vunpack.c.l.b16 %v284
      %v647 = vunpack.c.l.b16 %v285
      %v648 = vunpack.c.l.b16 %v286
      %v649 = vunpack.c.l.b16 %v287
      %v650 = vunpack.c.l.b16 %v288
      %v651 = vunpack.c.l.b16 %v289
      %v652 = vunpack.c.l.b16 %v290
      %v653 = vpack.c.b16 %v646, %v645
      %v654 = vpack.c.b16 %v648, %v647
      %v655 = vpack.c.b16 %v650, %v649
      %v656 = vpack.c.b16 %v652, %v651
      %vm661 = vcmask 523264
      %v663 = vsel %vm661, %v621, 0
      %v666 = vsel %vm661, %v622, 0
      %v669 = vsel %vm661, %v623, 0
      %v672 = vsel %vm661, %v624, 0
      %v675 = vsel %vm661, %v625, 0
      %v678 = vsel %vm661, %v626, 0
      %v681 = vsel %vm661, %v627, 0
      %v684 = vsel %vm661, %v628, 0
      %v687 = vsel %vm661, %v629, 0
      %v690 = vsel %vm661, %v630, 0
      %v693 = vsel %vm661, %v631, 0
      %v696 = vsel %vm661, %v632, 0
      %v699 = vsel %vm661, %v633, 0
      %v702 = vsel %vm661, %v634, 0
      %v705 = vsel %vm661, %v635, 0
      %v708 = vsel %vm661, %v636, 0
      %710 = vmatpush.bf16.msra.mxu0 0
      %711 = vmatpush.bf16.msra.mxu0 0
      %712 = vmatpush.bf16.msra.mxu0 0
      %713 = vmatpush.bf16.msra.mxu0 0
      %714 = vmatpush.bf16.msra.mxu0 %v656
      %715 = vmatpush.bf16.msra.mxu0 %v655
      %716 = vmatpush.bf16.msra.mxu0 %v654
      %717 = vmatpush.bf16.msra.mxu0 %v653
      %718 = vmatmul.bf16.gmra.mxu0 %v663
      %v719 = vpop.f32.mrf.mxu0
      %v720 = vadd.f32 %v478, %v719
      %v721 = vpop.f32.mrf.mxu0
      %v722 = vadd.f32 %v480, %v721
      %723 = vmatmul.bf16.gmra.mxu0 %v666
      %v724 = vpop.f32.mrf.mxu0
      %v725 = vadd.f32 %v483, %v724
      %v726 = vpop.f32.mrf.mxu0
      %v727 = vadd.f32 %v485, %v726
      %728 = vmatmul.bf16.gmra.mxu0 %v669
      %v729 = vpop.f32.mrf.mxu0
      %v730 = vadd.f32 %v488, %v729
      %v731 = vpop.f32.mrf.mxu0
      %v732 = vadd.f32 %v490, %v731
      %733 = vmatmul.bf16.gmra.mxu0 %v672
      %v734 = vpop.f32.mrf.mxu0
      %v735 = vadd.f32 %v493, %v734
      %v736 = vpop.f32.mrf.mxu0
      %v737 = vadd.f32 %v495, %v736
      %738 = vmatmul.bf16.gmra.mxu0 %v675
      %v739 = vpop.f32.mrf.mxu0
      %v740 = vadd.f32 %v498, %v739
      %v741 = vpop.f32.mrf.mxu0
      %v742 = vadd.f32 %v500, %v741
      %743 = vmatmul.bf16.gmra.mxu0 %v678
      %v744 = vpop.f32.mrf.mxu0
      %v745 = vadd.f32 %v503, %v744
      %v746 = vpop.f32.mrf.mxu0
      %v747 = vadd.f32 %v505, %v746
      %748 = vmatmul.bf16.gmra.mxu0 %v681
      %v749 = vpop.f32.mrf.mxu0
      %v750 = vadd.f32 %v508, %v749
      %v751 = vpop.f32.mrf.mxu0
      %v752 = vadd.f32 %v510, %v751
      %753 = vmatmul.bf16.gmra.mxu0 %v684
      %v754 = vpop.f32.mrf.mxu0
      %v755 = vadd.f32 %v513, %v754
      %v756 = vpop.f32.mrf.mxu0
      %v757 = vadd.f32 %v515, %v756
      %758 = vmatmul.bf16.gmra.mxu0 %v687
      %v759 = vpop.f32.mrf.mxu0
      %v760 = vadd.f32 %v518, %v759
      %v761 = vpop.f32.mrf.mxu0
      %v762 = vadd.f32 %v520, %v761
      %763 = vmatmul.bf16.gmra.mxu0 %v690
      %v764 = vpop.f32.mrf.mxu0
      %v765 = vadd.f32 %v523, %v764
      %v766 = vpop.f32.mrf.mxu0
      %v767 = vadd.f32 %v525, %v766
      %768 = vmatmul.bf16.gmra.mxu0 %v693
      %v769 = vpop.f32.mrf.mxu0
      %v770 = vadd.f32 %v528, %v769
      %v771 = vpop.f32.mrf.mxu0
      %v772 = vadd.f32 %v530, %v771
      %773 = vmatmul.bf16.gmra.mxu0 %v696
      %v774 = vpop.f32.mrf.mxu0
      %v775 = vadd.f32 %v533, %v774
      %v776 = vpop.f32.mrf.mxu0
      %v777 = vadd.f32 %v535, %v776
      %778 = vmatmul.bf16.gmra.mxu0 %v699
      %v779 = vpop.f32.mrf.mxu0
      %v780 = vadd.f32 %v538, %v779
      %v781 = vpop.f32.mrf.mxu0
      %v782 = vadd.f32 %v540, %v781
      %783 = vmatmul.bf16.gmra.mxu0 %v702
      %v784 = vpop.f32.mrf.mxu0
      %v785 = vadd.f32 %v543, %v784
      %v786 = vpop.f32.mrf.mxu0
      %v787 = vadd.f32 %v545, %v786
      %788 = vmatmul.bf16.gmra.mxu0 %v705
      %v789 = vpop.f32.mrf.mxu0
      %v790 = vadd.f32 %v548, %v789
      %v791 = vpop.f32.mrf.mxu0
      %v792 = vadd.f32 %v550, %v791
      %793 = vmatmul.bf16.gmra.mxu0 %v708
      %v794 = vpop.f32.mrf.mxu0
      %v795 = vadd.f32 %v553, %v794
      %v796 = vpop.f32.mrf.mxu0
      %v797 = vadd.f32 %v555, %v796
      %798 = vdwg.mxu0
      %v799 = vld [vmem:[%s4] sm:$0x1]
      %v801 = vperm.slane %v799, 0
      %v803 = vadd.f32 %v720, %v801
      %v804 = vadd.f32 %v722, %v801
      %v805 = vadd.f32 %v725, %v801
      %v806 = vadd.f32 %v727, %v801
      %v807 = vadd.f32 %v730, %v801
      %v808 = vadd.f32 %v732, %v801
      %v809 = vadd.f32 %v735, %v801
      %v810 = vadd.f32 %v737, %v801
      %v811 = vadd.f32 %v740, %v801
      %v812 = vadd.f32 %v742, %v801
      %v813 = vadd.f32 %v745, %v801
      %v814 = vadd.f32 %v747, %v801
      %v815 = vadd.f32 %v750, %v801
      %v816 = vadd.f32 %v752, %v801
      %v817 = vadd.f32 %v755, %v801
      %v818 = vadd.f32 %v757, %v801
      %v819 = vadd.f32 %v760, %v801
      %v820 = vadd.f32 %v762, %v801
      %v821 = vadd.f32 %v765, %v801
      %v822 = vadd.f32 %v767, %v801
      %v823 = vadd.f32 %v770, %v801
      %v824 = vadd.f32 %v772, %v801
      %v825 = vadd.f32 %v775, %v801
      %v826 = vadd.f32 %v777, %v801
      %v827 = vadd.f32 %v780, %v801
      %v828 = vadd.f32 %v782, %v801
      %v829 = vadd.f32 %v785, %v801
      %v830 = vadd.f32 %v787, %v801
      %v831 = vadd.f32 %v790, %v801
      %v832 = vadd.f32 %v792, %v801
      %v833 = vadd.f32 %v795, %v801
      %v834 = vadd.f32 %v797, %v801
      %v835 = vpack.c.bf16 %v803, %v803
      %v836 = vpack.c.bf16 %v804, %v804
      %v837 = vpack.c.bf16 %v805, %v805
      %v838 = vpack.c.bf16 %v806, %v806
      %v839 = vpack.c.bf16 %v807, %v807
      %v840 = vpack.c.bf16 %v808, %v808
      %v841 = vpack.c.bf16 %v809, %v809
      %v842 = vpack.c.bf16 %v810, %v810
      %v843 = vpack.c.bf16 %v811, %v811
      %v844 = vpack.c.bf16 %v812, %v812
      %v845 = vpack.c.bf16 %v813, %v813
      %v846 = vpack.c.bf16 %v814, %v814
      %v847 = vpack.c.bf16 %v815, %v815
      %v848 = vpack.c.bf16 %v816, %v816
      %v849 = vpack.c.bf16 %v817, %v817
      %v850 = vpack.c.bf16 %v818, %v818
      %v851 = vpack.c.bf16 %v819, %v819
      %v852 = vpack.c.bf16 %v820, %v820
      %v853 = vpack.c.bf16 %v821, %v821
      %v854 = vpack.c.bf16 %v822, %v822
      %v855 = vpack.c.bf16 %v823, %v823
      %v856 = vpack.c.bf16 %v824, %v824
      %v857 = vpack.c.bf16 %v825, %v825
      %v858 = vpack.c.bf16 %v826, %v826
      %v859 = vpack.c.bf16 %v827, %v827
      %v860 = vpack.c.bf16 %v828, %v828
      %v861 = vpack.c.bf16 %v829, %v829
      %v862 = vpack.c.bf16 %v830, %v830
      %v863 = vpack.c.bf16 %v831, %v831
      %v864 = vpack.c.bf16 %v832, %v832
      %v865 = vpack.c.bf16 %v833, %v833
      %v866 = vpack.c.bf16 %v834, %v834
      %vm867 = vcmask 257024
      %868 = vst.msk [vmem:[%s248] sm:$0xf] %vm867, %v835
      %869 = vst.msk [vmem:[%s248 + $0x4] sm:$0xf] %vm867, %v836
      %870 = vst.msk [vmem:[%s248 + $0x8] sm:$0xf] %vm867, %v837
      %871 = vst.msk [vmem:[%s248 + $0xc] sm:$0xf] %vm867, %v838
      %872 = vst.msk [vmem:[%s248 + $0x10] sm:$0xf] %vm867, %v839
      %873 = vst.msk [vmem:[%s248 + $0x14] sm:$0xf] %vm867, %v840
      %874 = vst.msk [vmem:[%s248 + $0x18] sm:$0xf] %vm867, %v841
      %875 = vst.msk [vmem:[%s248 + $0x1c] sm:$0xf] %vm867, %v842
      %876 = vst.msk [vmem:[%s248 + $0x20] sm:$0xf] %vm867, %v843
      %877 = vst.msk [vmem:[%s248 + $0x24] sm:$0xf] %vm867, %v844
      %878 = vst.msk [vmem:[%s248 + $0x28] sm:$0xf] %vm867, %v845
      %879 = vst.msk [vmem:[%s248 + $0x2c] sm:$0xf] %vm867, %v846
      %880 = vst.msk [vmem:[%s248 + $0x30] sm:$0xf] %vm867, %v847
      %881 = vst.msk [vmem:[%s248 + $0x34] sm:$0xf] %vm867, %v848
      %882 = vst.msk [vmem:[%s248 + $0x38] sm:$0xf] %vm867, %v849
      %883 = vst.msk [vmem:[%s248 + $0x3c] sm:$0xf] %vm867, %v850
      %884 = vst.msk [vmem:[%s248 + $0x40] sm:$0xf] %vm867, %v851
      %885 = vst.msk [vmem:[%s248 + $0x44] sm:$0xf] %vm867, %v852
      %886 = vst.msk [vmem:[%s248 + $0x48] sm:$0xf] %vm867, %v853
      %887 = vst.msk [vmem:[%s248 + $0x4c] sm:$0xf] %vm867, %v854
      %888 = vst.msk [vmem:[%s248 + $0x50] sm:$0xf] %vm867, %v855
      %889 = vst.msk [vmem:[%s248 + $0x54] sm:$0xf] %vm867, %v856
      %890 = vst.msk [vmem:[%s248 + $0x58] sm:$0xf] %vm867, %v857
      %891 = vst.msk [vmem:[%s248 + $0x5c] sm:$0xf] %vm867, %v858
      %892 = vst.msk [vmem:[%s248 + $0x60] sm:$0xf] %vm867, %v859
      %893 = vst.msk [vmem:[%s248 + $0x64] sm:$0xf] %vm867, %v860
      %894 = vst.msk [vmem:[%s248 + $0x68] sm:$0xf] %vm867, %v861
      %895 = vst.msk [vmem:[%s248 + $0x6c] sm:$0xf] %vm867, %v862
      %896 = vst.msk [vmem:[%s248 + $0x70] sm:$0xf] %vm867, %v863
      %897 = vst.msk [vmem:[%s248 + $0x74] sm:$0xf] %vm867, %v864
      %898 = vst.msk [vmem:[%s248 + $0x78] sm:$0xf] %vm867, %v865
      %899 = vst.msk [vmem:[%s248 + $0x7c] sm:$0xf] %vm867, %v866
      %s900 = smul.u32 32, %s16
      %p901 = scmp.lt.s32.totalorder %s900, 63
      %s902 = scalar_select %p901, %s900, 63
      %s903 = smul.addr %s902, 4
      %s904 = scalar_lea.vmem %s5, %s903
      // Predicated region
      $region41: #{depsep_forward.11} parent=39 // pred_check
        %p905 = pneg %p149
      $region42: #{depsep_forward.11} parent=39 // pred_check_branch
        %907 = sbr.rel (%p905) target = $region44
      $region43: #{depsep_forward.11} parent=39 // pred_region
        %s908 = smul.u32 32, %s16
      $region44: #{depsep_forward.11} parent=39 // pred_fallthru
        _
    $region40: #{depsep_forward.11} parent=5 // pred_fallthru
      _
    %p909 = scmp.le.s32.totalorder 2, %s11
    // Predicated region
    $region45: #{depsep_forward.11} parent=5 // pred_check
      %p910 = pneg %p909
    $region46: #{depsep_forward.11} parent=5 // pred_check_branch
      %912 = sbr.rel (%p910) target = $region48
    $region47: #{depsep_forward.11} parent=5 // pred_region
      %s913 = ssub.s32 %s11, 2
      // Predicated region
      $region49: #{depsep_forward.11} parent=47 // pred_check
        %p914 = pneg %p155
      $region50: #{depsep_forward.11} parent=47 // pred_check_branch
        %916 = sbr.rel (%p914) target = $region52
      $region51: #{depsep_forward.11} parent=47 // pred_region
        %s917 = smul.u32 32, %s17
        %p918 = scmp.lt.s32.totalorder %s917, 63
        %s919 = scalar_select %p918, %s917, 63
        %s920 = smul.addr %s919, 4
        %s921 = scalar_lea.vmem %s5, %s920
      $region52: #{depsep_forward.11} parent=47 // pred_fallthru
        _
    $region48: #{depsep_forward.11} parent=5 // pred_fallthru
      _
  $region6: #{depsep_forward.11} parent=0 // loop_footer
    %s15 = sadd.s32 1, %s11
  $region7: #{depsep_forward.11} parent=0 // loop_footer_branch
    %10 = sbr.rel target = $region3
  $region8: #{depsep_forward.11} parent=0 // loop_exit
    _

// kernel: depsep_forward.13
$region0: #{depsep_forward.13}
  #allocation0 [shape = 'u32[]', space=smem, size = 0x4, offset = 0x4, fixed_abs, tag = 'smem constant byte address 0x4 - core index']
  #allocation1 [shape = 'u32[72,128]{1,0:T(1,128)}', space=vmem, size = 0x9000, scoped, tag = 'internal scratch']
  %s0 = inlined_call_operand.vmem [shape: bf16[512,64], index: 0, kind: input, shape index: {}]
  %s1 = inlined_call_operand.vmem [shape: bf16[512,32], index: 1, kind: input, shape index: {}]
  %s2 = inlined_call_operand.vmem [shape: bf16[512,32], index: 2, kind: input, shape index: {}]
  %s3 = inlined_call_operand.vmem [shape: bf16[64,32], index: 3, kind: input, shape index: {}]
  %s4 = inlined_call_operand.vmem [shape: bf16[32,32], index: 4, kind: input, shape index: {}]
  %s5 = inlined_call_operand.vmem [shape: bf16[32,32], index: 5, kind: input, shape index: {}]
  %s6 = inlined_call_operand.vmem [shape: f32[1,32], index: 6, kind: input, shape index: {}]
  %s7 = inlined_call_operand.vmem [shape: bf16[512,32], index: 7, kind: output, shape index: {}]
  %s8 = sld [smem:[#allocation0]]
  $region61: #{depsep_forward.13} parent=0
    _
  %s10 = ssub.s32 1, %s8
  %s11 = scalar_select 0, %s10, %s8
  loop: start=0, step=1, limit=4
  $region2: #{depsep_forward.13} parent=0 // loop_pre_header
    _
  $region3: #{depsep_forward.13} parent=0 // loop_header
    %s13 = sphi 0, %s17
    %p14 = scmp.ge.s32.totalorder %s13, 4
    %s23 = sphi 0, %s25
    %s26 = sphi 0, %s23
    %s27 = sphi 0, %s26
    %s43 = sphi 0, %s27
    %s49 = sphi 0, %s51
    %s52 = sphi 0, %s49
    %s53 = sphi 0, %s52
    %s69 = sphi 0, %s53
    %s75 = sphi 0, %s77
    %s78 = sphi 0, %s75
    %s79 = sphi 0, %s78
    %s95 = sphi 0, %s79
    %s99 = sphi 0, %s99
    %s101 = sphi 0, %s99
    %s102 = sphi 0, %s101
    %s116 = sphi 0, %s102
    %s120 = sphi 0, %s120
    %s122 = sphi 0, %s120
    %s123 = sphi 0, %s122
    %s137 = sphi 0, %s123
    %s141 = sphi 0, %s141
    %s143 = sphi 0, %s141
    %s144 = sphi 0, %s143
    %s158 = sphi 0, %s144
    %s162 = sphi 0, %s162
    %s164 = sphi 0, %s162
    %s165 = sphi 0, %s164
    %s179 = sphi 0, %s165
    %s185 = sphi 0, %s187
    %s188 = sphi 0, %s185
    %s189 = sphi 0, %s188
    %s205 = sphi 0, %s189
  $region4: #{depsep_forward.13} parent=0 // loop_header_branch
    %16 = sbr.rel (%p14) target = $region8
  $region5: #{depsep_forward.13} parent=0 // loop_body
    %s18 = ssub.s32 %s13, 1
    %s19 = ssub.s32 %s13, 2
    %s20 = sadd.s32 %s13, 1
    %s21 = ssub.s32 %s13, %s20
    %p22 = scmp.eq.s32.totalorder %s21, 0
    %s24 = sadd.s32 %s23, 1
    %s25 = scalar_select %p22, %s23, %s24
    %p28 = pneg %p22
    %p29 = scmp.eq.s32.totalorder %s13, 1
    %p30 = por %p28, %p29
    %p31 = scmp.ne.s32.totalorder %s23, %s26
    %p32 = scmp.eq.s32.totalorder %s13, 0
    %p33 = por %p31, %p32
    %p34 = scmp.ne.s32.totalorder %s23, %s26
    %p35 = scmp.eq.s32.totalorder %s18, 1
    %p36 = por %p34, %p35
    %p37 = scmp.ne.s32.totalorder %s26, %s27
    %p38 = scmp.eq.s32.totalorder %s18, 0
    %p39 = por %p37, %p38
    %p40 = scmp.ne.s32.totalorder %s26, %s27
    %p41 = scmp.eq.s32.totalorder %s19, 1
    %p42 = por %p40, %p41
    %p44 = scmp.ne.s32.totalorder %s27, %s43
    %p45 = scmp.eq.s32.totalorder %s19, 0
    %p46 = por %p44, %p45
    %s47 = ssub.s32 %s13, %s20
    %p48 = scmp.eq.s32.totalorder %s47, 0
    %s50 = sadd.s32 %s49, 1
    %s51 = scalar_select %p48, %s49, %s50
    %p54 = pneg %p48
    %p55 = scmp.eq.s32.totalorder %s13, 1
    %p56 = por %p54, %p55
    %p57 = scmp.ne.s32.totalorder %s49, %s52
    %p58 = scmp.eq.s32.totalorder %s13, 0
    %p59 = por %p57, %p58
    %p60 = scmp.ne.s32.totalorder %s49, %s52
    %p61 = scmp.eq.s32.totalorder %s18, 1
    %p62 = por %p60, %p61
    %p63 = scmp.ne.s32.totalorder %s52, %s53
    %p64 = scmp.eq.s32.totalorder %s18, 0
    %p65 = por %p63, %p64
    %p66 = scmp.ne.s32.totalorder %s52, %s53
    %p67 = scmp.eq.s32.totalorder %s19, 1
    %p68 = por %p66, %p67
    %p70 = scmp.ne.s32.totalorder %s53, %s69
    %p71 = scmp.eq.s32.totalorder %s19, 0
    %p72 = por %p70, %p71
    %s73 = ssub.s32 %s13, %s20
    %p74 = scmp.eq.s32.totalorder %s73, 0
    %s76 = sadd.s32 %s75, 1
    %s77 = scalar_select %p74, %s75, %s76
    %p80 = pneg %p74
    %p81 = scmp.eq.s32.totalorder %s13, 1
    %p82 = por %p80, %p81
    %p83 = scmp.ne.s32.totalorder %s75, %s78
    %p84 = scmp.eq.s32.totalorder %s13, 0
    %p85 = por %p83, %p84
    %p86 = scmp.ne.s32.totalorder %s75, %s78
    %p87 = scmp.eq.s32.totalorder %s18, 1
    %p88 = por %p86, %p87
    %p89 = scmp.ne.s32.totalorder %s78, %s79
    %p90 = scmp.eq.s32.totalorder %s18, 0
    %p91 = por %p89, %p90
    %p92 = scmp.ne.s32.totalorder %s78, %s79
    %p93 = scmp.eq.s32.totalorder %s19, 1
    %p94 = por %p92, %p93
    %p96 = scmp.ne.s32.totalorder %s79, %s95
    %p97 = scmp.eq.s32.totalorder %s19, 0
    %p98 = por %p96, %p97
    %s100 = sadd.s32 %s99, 1
    %p103 = scmp.eq.s32.totalorder %s13, 1
    %p104 = scmp.ne.s32.totalorder %s99, %s101
    %p105 = scmp.eq.s32.totalorder %s13, 0
    %p106 = por %p104, %p105
    %p107 = scmp.ne.s32.totalorder %s99, %s101
    %p108 = scmp.eq.s32.totalorder %s18, 1
    %p109 = por %p107, %p108
    %p110 = scmp.ne.s32.totalorder %s101, %s102
    %p111 = scmp.eq.s32.totalorder %s18, 0
    %p112 = por %p110, %p111
    %p113 = scmp.ne.s32.totalorder %s101, %s102
    %p114 = scmp.eq.s32.totalorder %s19, 1
    %p115 = por %p113, %p114
    %p117 = scmp.ne.s32.totalorder %s102, %s116
    %p118 = scmp.eq.s32.totalorder %s19, 0
    %p119 = por %p117, %p118
    %s121 = sadd.s32 %s120, 1
    %p124 = scmp.eq.s32.totalorder %s13, 1
    %p125 = scmp.ne.s32.totalorder %s120, %s122
    %p126 = scmp.eq.s32.totalorder %s13, 0
    %p127 = por %p125, %p126
    %p128 = scmp.ne.s32.totalorder %s120, %s122
    %p129 = scmp.eq.s32.totalorder %s18, 1
    %p130 = por %p128, %p129
    %p131 = scmp.ne.s32.totalorder %s122, %s123
    %p132 = scmp.eq.s32.totalorder %s18, 0
    %p133 = por %p131, %p132
    %p134 = scmp.ne.s32.totalorder %s122, %s123
    %p135 = scmp.eq.s32.totalorder %s19, 1
    %p136 = por %p134, %p135
    %p138 = scmp.ne.s32.totalorder %s123, %s137
    %p139 = scmp.eq.s32.totalorder %s19, 0
    %p140 = por %p138, %p139
    %s142 = sadd.s32 %s141, 1
    %p145 = scmp.eq.s32.totalorder %s13, 1
    %p146 = scmp.ne.s32.totalorder %s141, %s143
    %p147 = scmp.eq.s32.totalorder %s13, 0
    %p148 = por %p146, %p147
    %p149 = scmp.ne.s32.totalorder %s141, %s143
    %p150 = scmp.eq.s32.totalorder %s18, 1
    %p151 = por %p149, %p150
    %p152 = scmp.ne.s32.totalorder %s143, %s144
    %p153 = scmp.eq.s32.totalorder %s18, 0
    %p154 = por %p152, %p153
    %p155 = scmp.ne.s32.totalorder %s143, %s144
    %p156 = scmp.eq.s32.totalorder %s19, 1
    %p157 = por %p155, %p156
    %p159 = scmp.ne.s32.totalorder %s144, %s158
    %p160 = scmp.eq.s32.totalorder %s19, 0
    %p161 = por %p159, %p160
    %s163 = sadd.s32 %s162, 1
    %p166 = scmp.eq.s32.totalorder %s13, 1
    %p167 = scmp.ne.s32.totalorder %s162, %s164
    %p168 = scmp.eq.s32.totalorder %s13, 0
    %p169 = por %p167, %p168
    %p170 = scmp.ne.s32.totalorder %s162, %s164
    %p171 = scmp.eq.s32.totalorder %s18, 1
    %p172 = por %p170, %p171
    %p173 = scmp.ne.s32.totalorder %s164, %s165
    %p174 = scmp.eq.s32.totalorder %s18, 0
    %p175 = por %p173, %p174
    %p176 = scmp.ne.s32.totalorder %s164, %s165
    %p177 = scmp.eq.s32.totalorder %s19, 1
    %p178 = por %p176, %p177
    %p180 = scmp.ne.s32.totalorder %s165, %s179
    %p181 = scmp.eq.s32.totalorder %s19, 0
    %p182 = por %p180, %p181
    %s183 = ssub.s32 %s13, %s20
    %p184 = scmp.eq.s32.totalorder %s183, 0
    %s186 = sadd.s32 %s185, 1
    %s187 = scalar_select %p184, %s185, %s186
    %p190 = pneg %p184
    %p191 = scmp.eq.s32.totalorder %s13, 1
    %p192 = por %p190, %p191
    %p193 = scmp.ne.s32.totalorder %s185, %s188
    %p194 = scmp.eq.s32.totalorder %s13, 0
    %p195 = por %p193, %p194
    %p196 = scmp.ne.s32.totalorder %s185, %s188
    %p197 = scmp.eq.s32.totalorder %s18, 1
    %p198 = por %p196, %p197
    %p199 = scmp.ne.s32.totalorder %s188, %s189
    %p200 = scmp.eq.s32.totalorder %s18, 0
    %p201 = por %p199, %p200
    %p202 = scmp.ne.s32.totalorder %s188, %s189
    %p203 = scmp.eq.s32.totalorder %s19, 1
    %p204 = por %p202, %p203
    %p206 = scmp.ne.s32.totalorder %s189, %s205
    %p207 = scmp.eq.s32.totalorder %s19, 0
    %p208 = por %p206, %p207
    %p209 = scmp.le.s32.totalorder 1, %s13
    %p210 = scmp.lt.s32.totalorder %s13, 3
    %p211 = pnand %p209, %p210
    %p212 = pneg %p211
    // Predicated region
    $region9: #{depsep_forward.13} parent=5 // pred_check
      _
    $region10: #{depsep_forward.13} parent=5 // pred_check_branch
      %214 = sbr.rel (%p211) target = $region12
    $region11: #{depsep_forward.13} parent=5 // pred_region
      %s215 = ssub.s32 %s13, 1
      // Predicated region
      $region13: #{depsep_forward.13} parent=11 // pred_check
        %p216 = pneg %p112
      $region14: #{depsep_forward.13} parent=11 // pred_check_branch
        %218 = sbr.rel (%p216) target = $region16
      $region15: #{depsep_forward.13} parent=11 // pred_region
        _
      $region16: #{depsep_forward.13} parent=11 // pred_fallthru
        _
      // Predicated region
      $region17: #{depsep_forward.13} parent=11 // pred_check
        %p219 = pneg %p133
      $region18: #{depsep_forward.13} parent=11 // pred_check_branch
        %221 = sbr.rel (%p219) target = $region20
      $region19: #{depsep_forward.13} parent=11 // pred_region
        _
      $region20: #{depsep_forward.13} parent=11 // pred_fallthru
        _
      // Predicated region
      $region21: #{depsep_forward.13} parent=11 // pred_check
        %p222 = pneg %p154
      $region22: #{depsep_forward.13} parent=11 // pred_check_branch
        %224 = sbr.rel (%p222) target = $region24
      $region23: #{depsep_forward.13} parent=11 // pred_region
        _
      $region24: #{depsep_forward.13} parent=11 // pred_fallthru
        _
      // Predicated region
      $region25: #{depsep_forward.13} parent=11 // pred_check
        %p225 = pneg %p175
      $region26: #{depsep_forward.13} parent=11 // pred_check_branch
        %227 = sbr.rel (%p225) target = $region28
      $region27: #{depsep_forward.13} parent=11 // pred_region
        _
      $region28: #{depsep_forward.13} parent=11 // pred_fallthru
        _
    $region12: #{depsep_forward.13} parent=5 // pred_fallthru
      _
    %p228 = scmp.lt.s32.totalorder %s13, 2
    // Predicated region
    $region29: #{depsep_forward.13} parent=5 // pred_check
      %p229 = pneg %p228
    $region30: #{depsep_forward.13} parent=5 // pred_check_branch
      %231 = sbr.rel (%p229) target = $region32
    $region31: #{depsep_forward.13} parent=5 // pred_region
      // Predicated region
      $region33: #{depsep_forward.13} parent=31 // pred_check
        %p232 = pneg %p33
      $region34: #{depsep_forward.13} parent=31 // pred_check_branch
        %234 = sbr.rel (%p232) target = $region36
      $region35: #{depsep_forward.13} parent=31 // pred_region
        %s235 = smul.u32 32, %s13
        %p236 = scmp.lt.s32.totalorder %s235, 63
        %s237 = scalar_select %p236, %s235, 63
        %s238 = smul.addr %s237, 4
        %s239 = scalar_lea.vmem %s0, %s238
        %s240 = smul.u32 32, %s13
      $region36: #{depsep_forward.13} parent=31 // pred_fallthru
        _
      // Predicated region
      $region37: #{depsep_forward.13} parent=31 // pred_check
        %p241 = pneg %p59
      $region38: #{depsep_forward.13} parent=31 // pred_check_branch
        %243 = sbr.rel (%p241) target = $region40
      $region39: #{depsep_forward.13} parent=31 // pred_region
        %s244 = smul.u32 32, %s13
        %p245 = scmp.lt.s32.totalorder %s244, 63
        %s246 = scalar_select %p245, %s244, 63
        %s247 = smul.addr %s246, 4
        %s248 = scalar_lea.vmem %s1, %s247
        %s249 = smul.u32 32, %s13
      $region40: #{depsep_forward.13} parent=31 // pred_fallthru
        _
      // Predicated region
      $region41: #{depsep_forward.13} parent=31 // pred_check
        %p250 = pneg %p85
      $region42: #{depsep_forward.13} parent=31 // pred_check_branch
        %252 = sbr.rel (%p250) target = $region44
      $region43: #{depsep_forward.13} parent=31 // pred_region
        %s253 = smul.u32 32, %s13
        %p254 = scmp.lt.s32.totalorder %s253, 63
        %s255 = scalar_select %p254, %s253, 63
        %s256 = smul.addr %s255, 4
        %s257 = scalar_lea.vmem %s2, %s256
        %s258 = smul.u32 32, %s13
      $region44: #{depsep_forward.13} parent=31 // pred_fallthru
        _
    $region32: #{depsep_forward.13} parent=5 // pred_fallthru
      _
    %p259 = scmp.le.s32.totalorder 1, %s13
    %p260 = scmp.lt.s32.totalorder %s13, 3
    %p261 = pnand %p259, %p260
    %p262 = pneg %p261
    // Predicated region
    $region45: #{depsep_forward.13} parent=5 // pred_check
      _
    $region46: #{depsep_forward.13} parent=5 // pred_check_branch
      %264 = sbr.rel (%p261) target = $region48
    $region47: #{depsep_forward.13} parent=5 // pred_region
      %s265 = ssub.s32 %s13, 1
      %s266 = smul.u32 32, %s18
      %p267 = scmp.lt.s32.totalorder %s266, 63
      %s268 = scalar_select %p267, %s266, 63
      %s269 = smul.addr %s268, 4
      %s270 = scalar_lea.vmem %s0, %s269
      %p271 = pneg %p39
      %p272 = pneg %p36
      %s273 = smul.u32 32, %s18
      %p274 = scmp.lt.s32.totalorder %s273, 63
      %s275 = scalar_select %p274, %s273, 63
      %s276 = smul.addr %s275, 4
      %s277 = scalar_lea.vmem %s1, %s276
      %p278 = pneg %p65
      %p279 = pneg %p62
      %s280 = smul.u32 32, %s18
      %p281 = scmp.lt.s32.totalorder %s280, 63
      %s282 = scalar_select %p281, %s280, 63
      %s283 = smul.addr %s282, 4
      %s284 = scalar_lea.vmem %s2, %s283
      %p285 = pneg %p91
      %p286 = pneg %p88
      %p287 = pneg %p112
      %p288 = pneg %p109
      %p289 = pneg %p133
      %p290 = pneg %p130
      %p291 = pneg %p154
      %p292 = pneg %p151
      %p293 = pneg %p175
      %p294 = pneg %p172
      %p295 = pneg %p201
      %p296 = pneg %p198
      %s297 = smul.u32 32, %s18
      %p298 = scmp.lt.s32.totalorder %s297, 63
      %s299 = scalar_select %p298, %s297, 63
      %s300 = smul.addr %s299, 4
      %s301 = scalar_lea.vmem %s7, %s300
      %s302 = smul.u32 32, %s18
      %p303 = scmp.lt.s32.totalorder %s302, 63
      %s304 = scalar_select %p303, %s302, 63
      %s305 = smul.addr %s304, 4
      %s306 = scalar_lea.vmem %s0, %s305
      %s307 = smul.u32 32, %s18
      %s308 = smul.u32 32, %s18
      %p309 = scmp.lt.s32.totalorder %s308, 63
      %s310 = scalar_select %p309, %s308, 63
      %s311 = smul.addr %s310, 4
      %s312 = scalar_lea.vmem %s1, %s311
      %s313 = smul.u32 32, %s18
      %s314 = smul.u32 32, %s18
      %p315 = scmp.lt.s32.totalorder %s314, 63
      %s316 = scalar_select %p315, %s314, 63
      %s317 = smul.addr %s316, 4
      %s318 = scalar_lea.vmem %s2, %s317
      %s319 = smul.u32 32, %s18
      %s320 = smul.u32 32, %s18
      %p321 = scmp.lt.s32.totalorder %s320, 63
      %s322 = scalar_select %p321, %s320, 63
      %s323 = smul.addr %s322, 4
      %s324 = scalar_lea.vmem %s7, %s323
      %s325 = smul.u32 32, %s18
      %v327 = vld [vmem:[%s306] sm:$0xf]
      %v328 = vld [vmem:[%s306 + $0x4] sm:$0xf]
      %v329 = vld [vmem:[%s306 + $0x8] sm:$0xf]
      %v330 = vld [vmem:[%s306 + $0xc] sm:$0xf]
      %v331 = vld [vmem:[%s306 + $0x10] sm:$0xf]
      %v332 = vld [vmem:[%s306 + $0x14] sm:$0xf]
      %v333 = vld [vmem:[%s306 + $0x18] sm:$0xf]
      %v334 = vld [vmem:[%s306 + $0x1c] sm:$0xf]
      %v335 = vld [vmem:[%s306 + $0x20] sm:$0xf]
      %v336 = vld [vmem:[%s306 + $0x24] sm:$0xf]
      %v337 = vld [vmem:[%s306 + $0x28] sm:$0xf]
      %v338 = vld [vmem:[%s306 + $0x2c] sm:$0xf]
      %v339 = vld [vmem:[%s306 + $0x30] sm:$0xf]
      %v340 = vld [vmem:[%s306 + $0x34] sm:$0xf]
      %v341 = vld [vmem:[%s306 + $0x38] sm:$0xf]
      %v342 = vld [vmem:[%s306 + $0x3c] sm:$0xf]
      %v343 = vld [vmem:[%s306 + $0x40] sm:$0xf]
      %v344 = vld [vmem:[%s306 + $0x44] sm:$0xf]
      %v345 = vld [vmem:[%s306 + $0x48] sm:$0xf]
      %v346 = vld [vmem:[%s306 + $0x4c] sm:$0xf]
      %v347 = vld [vmem:[%s306 + $0x50] sm:$0xf]
      %v348 = vld [vmem:[%s306 + $0x54] sm:$0xf]
      %v349 = vld [vmem:[%s306 + $0x58] sm:$0xf]
      %v350 = vld [vmem:[%s306 + $0x5c] sm:$0xf]
      %v351 = vld [vmem:[%s306 + $0x60] sm:$0xf]
      %v352 = vld [vmem:[%s306 + $0x64] sm:$0xf]
      %v353 = vld [vmem:[%s306 + $0x68] sm:$0xf]
      %v354 = vld [vmem:[%s306 + $0x6c] sm:$0xf]
      %v355 = vld [vmem:[%s306 + $0x70] sm:$0xf]
      %v356 = vld [vmem:[%s306 + $0x74] sm:$0xf]
      %v357 = vld [vmem:[%s306 + $0x78] sm:$0xf]
      %v358 = vld [vmem:[%s306 + $0x7c] sm:$0xf]
      %v359 = vld [vmem:[%s3] sm:$0xf]
      %v360 = vld [vmem:[%s3 + $0x4] sm:$0xf]
      %v361 = vld [vmem:[%s3 + $0x8] sm:$0xf]
      %v362 = vld [vmem:[%s3 + $0xc] sm:$0xf]
      %v363 = vld [vmem:[%s3 + $0x10] sm:$0xf]
      %v364 = vld [vmem:[%s3 + $0x14] sm:$0xf]
      %v365 = vld [vmem:[%s3 + $0x18] sm:$0xf]
      %v366 = vld [vmem:[%s3 + $0x1c] sm:$0xf]
      %v367 = vld [vmem:[%s312] sm:$0xf]
      %v368 = vld [vmem:[%s312 + $0x4] sm:$0xf]
      %v369 = vld [vmem:[%s312 + $0x8] sm:$0xf]
      %v370 = vld [vmem:[%s312 + $0xc] sm:$0xf]
      %v371 = vld [vmem:[%s312 + $0x10] sm:$0xf]
      %v372 = vld [vmem:[%s312 + $0x14] sm:$0xf]
      %v373 = vld [vmem:[%s312 + $0x18] sm:$0xf]
      %v374 = vld [vmem:[%s312 + $0x1c] sm:$0xf]
      %v375 = vld [vmem:[%s312 + $0x20] sm:$0xf]
      %v376 = vld [vmem:[%s312 + $0x24] sm:$0xf]
      %v377 = vld [vmem:[%s312 + $0x28] sm:$0xf]
      %v378 = vld [vmem:[%s312 + $0x2c] sm:$0xf]
      %v379 = vld [vmem:[%s312 + $0x30] sm:$0xf]
      %v380 = vld [vmem:[%s312 + $0x34] sm:$0xf]
      %v381 = vld [vmem:[%s312 + $0x38] sm:$0xf]
      %v382 = vld [vmem:[%s312 + $0x3c] sm:$0xf]
      %v383 = vld [vmem:[%s312 + $0x40] sm:$0xf]
      %v384 = vld [vmem:[%s312 + $0x44] sm:$0xf]
      %v385 = vld [vmem:[%s312 + $0x48] sm:$0xf]
      %v386 = vld [vmem:[%s312 + $0x4c] sm:$0xf]
      %v387 = vld [vmem:[%s312 + $0x50] sm:$0xf]
      %v388 = vld [vmem:[%s312 + $0x54] sm:$0xf]
      %v389 = vld [vmem:[%s312 + $0x58] sm:$0xf]
      %v390 = vld [vmem:[%s312 + $0x5c] sm:$0xf]
      %v391 = vld [vmem:[%s312 + $0x60] sm:$0xf]
      %v392 = vld [vmem:[%s312 + $0x64] sm:$0xf]
      %v393 = vld [vmem:[%s312 + $0x68] sm:$0xf]
      %v394 = vld [vmem:[%s312 + $0x6c] sm:$0xf]
      %v395 = vld [vmem:[%s312 + $0x70] sm:$0xf]
      %v396 = vld [vmem:[%s312 + $0x74] sm:$0xf]
      %v397 = vld [vmem:[%s312 + $0x78] sm:$0xf]
      %v398 = vld [vmem:[%s312 + $0x7c] sm:$0xf]
      %v399 = vld [vmem:[%s4] sm:$0xf]
      %v400 = vld [vmem:[%s4 + $0x4] sm:$0xf]
      %v401 = vld [vmem:[%s4 + $0x8] sm:$0xf]
      %v402 = vld [vmem:[%s4 + $0xc] sm:$0xf]
      %v435 = vunpack.c.l.b16 %v367
      %v436 = vunpack.c.l.b16 %v368
      %v437 = vunpack.c.l.b16 %v369
      %v438 = vunpack.c.l.b16 %v370
      %v439 = vunpack.c.l.b16 %v371
      %v440 = vunpack.c.l.b16 %v372
      %v441 = vunpack.c.l.b16 %v373
      %v442 = vunpack.c.l.b16 %v374
      %v443 = vunpack.c.l.b16 %v375
      %v444 = vunpack.c.l.b16 %v376
      %v445 = vunpack.c.l.b16 %v377
      %v446 = vunpack.c.l.b16 %v378
      %v447 = vunpack.c.l.b16 %v379
      %v448 = vunpack.c.l.b16 %v380
      %v449 = vunpack.c.l.b16 %v381
      %v450 = vunpack.c.l.b16 %v382
      %v451 = vunpack.c.l.b16 %v383
      %v452 = vunpack.c.l.b16 %v384
      %v453 = vunpack.c.l.b16 %v385
      %v454 = vunpack.c.l.b16 %v386
      %v455 = vunpack.c.l.b16 %v387
      %v456 = vunpack.c.l.b16 %v388
      %v457 = vunpack.c.l.b16 %v389
      %v458 = vunpack.c.l.b16 %v390
      %v459 = vunpack.c.l.b16 %v391
      %v460 = vunpack.c.l.b16 %v392
      %v461 = vunpack.c.l.b16 %v393
      %v462 = vunpack.c.l.b16 %v394
      %v463 = vunpack.c.l.b16 %v395
      %v464 = vunpack.c.l.b16 %v396
      %v465 = vunpack.c.l.b16 %v397
      %v466 = vunpack.c.l.b16 %v398
      %v467 = vpack.c.b16 %v436, %v435
      %v468 = vpack.c.b16 %v438, %v437
      %v469 = vpack.c.b16 %v440, %v439
      %v470 = vpack.c.b16 %v442, %v441
      %v471 = vpack.c.b16 %v444, %v443
      %v472 = vpack.c.b16 %v446, %v445
      %v473 = vpack.c.b16 %v448, %v447
      %v474 = vpack.c.b16 %v450, %v449
      %v475 = vpack.c.b16 %v452, %v451
      %v476 = vpack.c.b16 %v454, %v453
      %v477 = vpack.c.b16 %v456, %v455
      %v478 = vpack.c.b16 %v458, %v457
      %v479 = vpack.c.b16 %v460, %v459
      %v480 = vpack.c.b16 %v462, %v461
      %v481 = vpack.c.b16 %v464, %v463
      %v482 = vpack.c.b16 %v466, %v465
      %v487 = vunpack.c.l.b16 %v399
      %v488 = vunpack.c.l.b16 %v400
      %v489 = vunpack.c.l.b16 %v401
      %v490 = vunpack.c.l.b16 %v402
      %v491 = vpack.c.b16 %v488, %v487
      %v492 = vpack.c.b16 %v490, %v489
      %vm495 = vcmask 261120
      %v497 = vsel %vm495, %v467, 0
      %v500 = vsel %vm495, %v468, 0
      %v503 = vsel %vm495, %v469, 0
      %v506 = vsel %vm495, %v470, 0
      %v509 = vsel %vm495, %v471, 0
      %v512 = vsel %vm495, %v472, 0
      %v515 = vsel %vm495, %v473, 0
      %v518 = vsel %vm495, %v474, 0
      %v521 = vsel %vm495, %v475, 0
      %v524 = vsel %vm495, %v476, 0
      %v527 = vsel %vm495, %v477, 0
      %v530 = vsel %vm495, %v478, 0
      %v533 = vsel %vm495, %v479, 0
      %v536 = vsel %vm495, %v480, 0
      %v539 = vsel %vm495, %v481, 0
      %v542 = vsel %vm495, %v482, 0
      %544 = vmatpush.bf16.msra.mxu0 0
      %545 = vmatpush.bf16.msra.mxu0 0
      %546 = vmatpush.bf16.msra.mxu0 0
      %547 = vmatpush.bf16.msra.mxu0 0
      %548 = vmatpush.bf16.msra.mxu0 0
      %549 = vmatpush.bf16.msra.mxu0 0
      %550 = vmatpush.bf16.msra.mxu0 %v492
      %551 = vmatpush.bf16.msra.mxu0 %v491
      %552 = vmatmul.bf16.gmra.mxu0 %v497
      %v553 = vpop.f32.mrf.mxu0
      %v554 = vadd.f32 0.0, %v553
      %v555 = vpop.f32.mrf.mxu0
      %v556 = vadd.f32 0.0, %v555
      %557 = vmatmul.bf16.gmra.mxu0 %v500
      %v558 = vpop.f32.mrf.mxu0
      %v559 = vadd.f32 0.0, %v558
      %v560 = vpop.f32.mrf.mxu0
      %v561 = vadd.f32 0.0, %v560
      %562 = vmatmul.bf16.gmra.mxu0 %v503
      %v563 = vpop.f32.mrf.mxu0
      %v564 = vadd.f32 0.0, %v563
      %v565 = vpop.f32.mrf.mxu0
      %v566 = vadd.f32 0.0, %v565
      %567 = vmatmul.bf16.gmra.mxu0 %v506
      %v568 = vpop.f32.mrf.mxu0
      %v569 = vadd.f32 0.0, %v568
      %v570 = vpop.f32.mrf.mxu0
      %v571 = vadd.f32 0.0, %v570
      %572 = vmatmul.bf16.gmra.mxu0 %v509
      %v573 = vpop.f32.mrf.mxu0
      %v574 = vadd.f32 0.0, %v573
      %v575 = vpop.f32.mrf.mxu0
      %v576 = vadd.f32 0.0, %v575
      %577 = vmatmul.bf16.gmra.mxu0 %v512
      %v578 = vpop.f32.mrf.mxu0
      %v579 = vadd.f32 0.0, %v578
      %v580 = vpop.f32.mrf.mxu0
      %v581 = vadd.f32 0.0, %v580
      %582 = vmatmul.bf16.gmra.mxu0 %v515
      %v583 = vpop.f32.mrf.mxu0
      %v584 = vadd.f32 0.0, %v583
      %v585 = vpop.f32.mrf.mxu0
      %v586 = vadd.f32 0.0, %v585
      %587 = vmatmul.bf16.gmra.mxu0 %v518
      %v588 = vpop.f32.mrf.mxu0
      %v589 = vadd.f32 0.0, %v588
      %v590 = vpop.f32.mrf.mxu0
      %v591 = vadd.f32 0.0, %v590
      %592 = vmatmul.bf16.gmra.mxu0 %v521
      %v593 = vpop.f32.mrf.mxu0
      %v594 = vadd.f32 0.0, %v593
      %v595 = vpop.f32.mrf.mxu0
      %v596 = vadd.f32 0.0, %v595
      %597 = vmatmul.bf16.gmra.mxu0 %v524
      %v598 = vpop.f32.mrf.mxu0
      %v599 = vadd.f32 0.0, %v598
      %v600 = vpop.f32.mrf.mxu0
      %v601 = vadd.f32 0.0, %v600
      %602 = vmatmul.bf16.gmra.mxu0 %v527
      %v603 = vpop.f32.mrf.mxu0
      %v604 = vadd.f32 0.0, %v603
      %v605 = vpop.f32.mrf.mxu0
      %v606 = vadd.f32 0.0, %v605
      %607 = vmatmul.bf16.gmra.mxu0 %v530
      %v608 = vpop.f32.mrf.mxu0
      %v609 = vadd.f32 0.0, %v608
      %v610 = vpop.f32.mrf.mxu0
      %v611 = vadd.f32 0.0, %v610
      %612 = vmatmul.bf16.gmra.mxu0 %v533
      %v613 = vpop.f32.mrf.mxu0
      %v614 = vadd.f32 0.0, %v613
      %v615 = vpop.f32.mrf.mxu0
      %v616 = vadd.f32 0.0, %v615
      %617 = vmatmul.bf16.gmra.mxu0 %v536
      %v618 = vpop.f32.mrf.mxu0
      %v619 = vadd.f32 0.0, %v618
      %v620 = vpop.f32.mrf.mxu0
      %v621 = vadd.f32 0.0, %v620
      %622 = vmatmul.bf16.gmra.mxu0 %v539
      %v623 = vpop.f32.mrf.mxu0
      %v624 = vadd.f32 0.0, %v623
      %v625 = vpop.f32.mrf.mxu0
      %v626 = vadd.f32 0.0, %v625
      %627 = vmatmul.bf16.gmra.mxu0 %v542
      %v628 = vpop.f32.mrf.mxu0
      %v629 = vadd.f32 0.0, %v628
      %v630 = vpop.f32.mrf.mxu0
      %v631 = vadd.f32 0.0, %v630
      %632 = vdwg.mxu0
      %v665 = vunpack.c.l.b16 %v327
      %v666 = vunpack.c.l.b16 %v328
      %v667 = vunpack.c.l.b16 %v329
      %v668 = vunpack.c.l.b16 %v330
      %v669 = vunpack.c.l.b16 %v331
      %v670 = vunpack.c.l.b16 %v332
      %v671 = vunpack.c.l.b16 %v333
      %v672 = vunpack.c.l.b16 %v334
      %v673 = vunpack.c.l.b16 %v335
      %v674 = vunpack.c.l.b16 %v336
      %v675 = vunpack.c.l.b16 %v337
      %v676 = vunpack.c.l.b16 %v338
      %v677 = vunpack.c.l.b16 %v339
      %v678 = vunpack.c.l.b16 %v340
      %v679 = vunpack.c.l.b16 %v341
      %v680 = vunpack.c.l.b16 %v342
      %v681 = vunpack.c.l.b16 %v343
      %v682 = vunpack.c.l.b16 %v344
      %v683 = vunpack.c.l.b16 %v345
      %v684 = vunpack.c.l.b16 %v346
      %v685 = vunpack.c.l.b16 %v347
      %v686 = vunpack.c.l.b16 %v348
      %v687 = vunpack.c.l.b16 %v349
      %v688 = vunpack.c.l.b16 %v350
      %v689 = vunpack.c.l.b16 %v351
      %v690 = vunpack.c.l.b16 %v352
      %v691 = vunpack.c.l.b16 %v353
      %v692 = vunpack.c.l.b16 %v354
      %v693 = vunpack.c.l.b16 %v355
      %v694 = vunpack.c.l.b16 %v356
      %v695 = vunpack.c.l.b16 %v357
      %v696 = vunpack.c.l.b16 %v358
      %v697 = vpack.c.b16 %v666, %v665
      %v698 = vpack.c.b16 %v668, %v667
      %v699 = vpack.c.b16 %v670, %v669
      %v700 = vpack.c.b16 %v672, %v671
      %v701 = vpack.c.b16 %v674, %v673
      %v702 = vpack.c.b16 %v676, %v675
      %v703 = vpack.c.b16 %v678, %v677
      %v704 = vpack.c.b16 %v680, %v679
      %v705 = vpack.c.b16 %v682, %v681
      %v706 = vpack.c.b16 %v684, %v683
      %v707 = vpack.c.b16 %v686, %v685
      %v708 = vpack.c.b16 %v688, %v687
      %v709 = vpack.c.b16 %v690, %v689
      %v710 = vpack.c.b16 %v692, %v691
      %v711 = vpack.c.b16 %v694, %v693
      %v712 = vpack.c.b16 %v696, %v695
      %v721 = vunpack.c.l.b16 %v359
      %v722 = vunpack.c.l.b16 %v360
      %v723 = vunpack.c.l.b16 %v361
      %v724 = vunpack.c.l.b16 %v362
      %v725 = vunpack.c.l.b16 %v363
      %v726 = vunpack.c.l.b16 %v364
      %v727 = vunpack.c.l.b16 %v365
      %v728 = vunpack.c.l.b16 %v366
      %v729 = vpack.c.b16 %v722, %v721
      %v730 = vpack.c.b16 %v724, %v723
      %v731 = vpack.c.b16 %v726, %v725
      %v732 = vpack.c.b16 %v728, %v727
      %vm737 = vcmask 523264
      %v739 = vsel %vm737, %v697, 0
      %v742 = vsel %vm737, %v698, 0
      %v745 = vsel %vm737, %v699, 0
      %v748 = vsel %vm737, %v700, 0
      %v751 = vsel %vm737, %v701, 0
      %v754 = vsel %vm737, %v702, 0
      %v757 = vsel %vm737, %v703, 0
      %v760 = vsel %vm737, %v704, 0
      %v763 = vsel %vm737, %v705, 0
      %v766 = vsel %vm737, %v706, 0
      %v769 = vsel %vm737, %v707, 0
      %v772 = vsel %vm737, %v708, 0
      %v775 = vsel %vm737, %v709, 0
      %v778 = vsel %vm737, %v710, 0
      %v781 = vsel %vm737, %v711, 0
      %v784 = vsel %vm737, %v712, 0
      %786 = vmatpush.bf16.msra.mxu0 0
      %787 = vmatpush.bf16.msra.mxu0 0
      %788 = vmatpush.bf16.msra.mxu0 0
      %789 = vmatpush.bf16.msra.mxu0 0
      %790 = vmatpush.bf16.msra.mxu0 %v732
      %791 = vmatpush.bf16.msra.mxu0 %v731
      %792 = vmatpush.bf16.msra.mxu0 %v730
      %793 = vmatpush.bf16.msra.mxu0 %v729
      %794 = vmatmul.bf16.gmra.mxu0 %v739
      %v795 = vpop.f32.mrf.mxu0
      %v796 = vadd.f32 %v554, %v795
      %v797 = vpop.f32.mrf.mxu0
      %v798 = vadd.f32 %v556, %v797
      %799 = vmatmul.bf16.gmra.mxu0 %v742
      %v800 = vpop.f32.mrf.mxu0
      %v801 = vadd.f32 %v559, %v800
      %v802 = vpop.f32.mrf.mxu0
      %v803 = vadd.f32 %v561, %v802
      %804 = vmatmul.bf16.gmra.mxu0 %v745
      %v805 = vpop.f32.mrf.mxu0
      %v806 = vadd.f32 %v564, %v805
      %v807 = vpop.f32.mrf.mxu0
      %v808 = vadd.f32 %v566, %v807
      %809 = vmatmul.bf16.gmra.mxu0 %v748
      %v810 = vpop.f32.mrf.mxu0
      %v811 = vadd.f32 %v569, %v810
      %v812 = vpop.f32.mrf.mxu0
      %v813 = vadd.f32 %v571, %v812
      %814 = vmatmul.bf16.gmra.mxu0 %v751
      %v815 = vpop.f32.mrf.mxu0
      %v816 = vadd.f32 %v574, %v815
      %v817 = vpop.f32.mrf.mxu0
      %v818 = vadd.f32 %v576, %v817
      %819 = vmatmul.bf16.gmra.mxu0 %v754
      %v820 = vpop.f32.mrf.mxu0
      %v821 = vadd.f32 %v579, %v820
      %v822 = vpop.f32.mrf.mxu0
      %v823 = vadd.f32 %v581, %v822
      %824 = vmatmul.bf16.gmra.mxu0 %v757
      %v825 = vpop.f32.mrf.mxu0
      %v826 = vadd.f32 %v584, %v825
      %v827 = vpop.f32.mrf.mxu0
      %v828 = vadd.f32 %v586, %v827
      %829 = vmatmul.bf16.gmra.mxu0 %v760
      %v830 = vpop.f32.mrf.mxu0
      %v831 = vadd.f32 %v589, %v830
      %v832 = vpop.f32.mrf.mxu0
      %v833 = vadd.f32 %v591, %v832
      %834 = vmatmul.bf16.gmra.mxu0 %v763
      %v835 = vpop.f32.mrf.mxu0
      %v836 = vadd.f32 %v594, %v835
      %v837 = vpop.f32.mrf.mxu0
      %v838 = vadd.f32 %v596, %v837
      %839 = vmatmul.bf16.gmra.mxu0 %v766
      %v840 = vpop.f32.mrf.mxu0
      %v841 = vadd.f32 %v599, %v840
      %v842 = vpop.f32.mrf.mxu0
      %v843 = vadd.f32 %v601, %v842
      %844 = vmatmul.bf16.gmra.mxu0 %v769
      %v845 = vpop.f32.mrf.mxu0
      %v846 = vadd.f32 %v604, %v845
      %v847 = vpop.f32.mrf.mxu0
      %v848 = vadd.f32 %v606, %v847
      %849 = vmatmul.bf16.gmra.mxu0 %v772
      %v850 = vpop.f32.mrf.mxu0
      %v851 = vadd.f32 %v609, %v850
      %v852 = vpop.f32.mrf.mxu0
      %v853 = vadd.f32 %v611, %v852
      %854 = vmatmul.bf16.gmra.mxu0 %v775
      %v855 = vpop.f32.mrf.mxu0
      %v856 = vadd.f32 %v614, %v855
      %v857 = vpop.f32.mrf.mxu0
      %v858 = vadd.f32 %v616, %v857
      %859 = vmatmul.bf16.gmra.mxu0 %v778
      %v860 = vpop.f32.mrf.mxu0
      %v861 = vadd.f32 %v619, %v860
      %v862 = vpop.f32.mrf.mxu0
      %v863 = vadd.f32 %v621, %v862
      %864 = vmatmul.bf16.gmra.mxu0 %v781
      %v865 = vpop.f32.mrf.mxu0
      %v866 = vadd.f32 %v624, %v865
      %v867 = vpop.f32.mrf.mxu0
      %v868 = vadd.f32 %v626, %v867
      %869 = vmatmul.bf16.gmra.mxu0 %v784
      %v870 = vpop.f32.mrf.mxu0
      %v871 = vadd.f32 %v629, %v870
      %v872 = vpop.f32.mrf.mxu0
      %v873 = vadd.f32 %v631, %v872
      %874 = vdwg.mxu0
      %v875 = vld [vmem:[%s318] sm:$0xf]
      %v876 = vld [vmem:[%s318 + $0x4] sm:$0xf]
      %v877 = vld [vmem:[%s318 + $0x8] sm:$0xf]
      %v878 = vld [vmem:[%s318 + $0xc] sm:$0xf]
      %v879 = vld [vmem:[%s318 + $0x10] sm:$0xf]
      %v880 = vld [vmem:[%s318 + $0x14] sm:$0xf]
      %v881 = vld [vmem:[%s318 + $0x18] sm:$0xf]
      %v882 = vld [vmem:[%s318 + $0x1c] sm:$0xf]
      %v883 = vld [vmem:[%s318 + $0x20] sm:$0xf]
      %v884 = vld [vmem:[%s318 + $0x24] sm:$0xf]
      %v885 = vld [vmem:[%s318 + $0x28] sm:$0xf]
      %v886 = vld [vmem:[%s318 + $0x2c] sm:$0xf]
      %v887 = vld [vmem:[%s318 + $0x30] sm:$0xf]
      %v888 = vld [vmem:[%s318 + $0x34] sm:$0xf]
      %v889 = vld [vmem:[%s318 + $0x38] sm:$0xf]
      %v890 = vld [vmem:[%s318 + $0x3c] sm:$0xf]
      %v891 = vld [vmem:[%s318 + $0x40] sm:$0xf]
      %v892 = vld [vmem:[%s318 + $0x44] sm:$0xf]
      %v893 = vld [vmem:[%s318 + $0x48] sm:$0xf]
      %v894 = vld [vmem:[%s318 + $0x4c] sm:$0xf]
      %v895 = vld [vmem:[%s318 + $0x50] sm:$0xf]
      %v896 = vld [vmem:[%s318 + $0x54] sm:$0xf]
      %v897 = vld [vmem:[%s318 + $0x58] sm:$0xf]
      %v898 = vld [vmem:[%s318 + $0x5c] sm:$0xf]
      %v899 = vld [vmem:[%s318 + $0x60] sm:$0xf]
      %v900 = vld [vmem:[%s318 + $0x64] sm:$0xf]
      %v901 = vld [vmem:[%s318 + $0x68] sm:$0xf]
      %v902 = vld [vmem:[%s318 + $0x6c] sm:$0xf]
      %v903 = vld [vmem:[%s318 + $0x70] sm:$0xf]
      %v904 = vld [vmem:[%s318 + $0x74] sm:$0xf]
      %v905 = vld [vmem:[%s318 + $0x78] sm:$0xf]
      %v906 = vld [vmem:[%s318 + $0x7c] sm:$0xf]
      %v907 = vld [vmem:[%s5] sm:$0xf]
      %v908 = vld [vmem:[%s5 + $0x4] sm:$0xf]
      %v909 = vld [vmem:[%s5 + $0x8] sm:$0xf]
      %v910 = vld [vmem:[%s5 + $0xc] sm:$0xf]
      %v943 = vunpack.c.l.b16 %v875
      %v944 = vunpack.c.l.b16 %v876
      %v945 = vunpack.c.l.b16 %v877
      %v946 = vunpack.c.l.b16 %v878
      %v947 = vunpack.c.l.b16 %v879
      %v948 = vunpack.c.l.b16 %v880
      %v949 = vunpack.c.l.b16 %v881
      %v950 = vunpack.c.l.b16 %v882
      %v951 = vunpack.c.l.b16 %v883
      %v952 = vunpack.c.l.b16 %v884
      %v953 = vunpack.c.l.b16 %v885
      %v954 = vunpack.c.l.b16 %v886
      %v955 = vunpack.c.l.b16 %v887
      %v956 = vunpack.c.l.b16 %v888
      %v957 = vunpack.c.l.b16 %v889
      %v958 = vunpack.c.l.b16 %v890
      %v959 = vunpack.c.l.b16 %v891
      %v960 = vunpack.c.l.b16 %v892
      %v961 = vunpack.c.l.b16 %v893
      %v962 = vunpack.c.l.b16 %v894
      %v963 = vunpack.c.l.b16 %v895
      %v964 = vunpack.c.l.b16 %v896
      %v965 = vunpack.c.l.b16 %v897
      %v966 = vunpack.c.l.b16 %v898
      %v967 = vunpack.c.l.b16 %v899
      %v968 = vunpack.c.l.b16 %v900
      %v969 = vunpack.c.l.b16 %v901
      %v970 = vunpack.c.l.b16 %v902
      %v971 = vunpack.c.l.b16 %v903
      %v972 = vunpack.c.l.b16 %v904
      %v973 = vunpack.c.l.b16 %v905
      %v974 = vunpack.c.l.b16 %v906
      %v975 = vpack.c.b16 %v944, %v943
      %v976 = vpack.c.b16 %v946, %v945
      %v977 = vpack.c.b16 %v948, %v947
      %v978 = vpack.c.b16 %v950, %v949
      %v979 = vpack.c.b16 %v952, %v951
      %v980 = vpack.c.b16 %v954, %v953
      %v981 = vpack.c.b16 %v956, %v955
      %v982 = vpack.c.b16 %v958, %v957
      %v983 = vpack.c.b16 %v960, %v959
      %v984 = vpack.c.b16 %v962, %v961
      %v985 = vpack.c.b16 %v964, %v963
      %v986 = vpack.c.b16 %v966, %v965
      %v987 = vpack.c.b16 %v968, %v967
      %v988 = vpack.c.b16 %v970, %v969
      %v989 = vpack.c.b16 %v972, %v971
      %v990 = vpack.c.b16 %v974, %v973
      %v995 = vunpack.c.l.b16 %v907
      %v996 = vunpack.c.l.b16 %v908
      %v997 = vunpack.c.l.b16 %v909
      %v998 = vunpack.c.l.b16 %v910
      %v999 = vpack.c.b16 %v996, %v995
      %v1000 = vpack.c.b16 %v998, %v997
      %v1004 = vsel %vm495, %v975, 0
      %v1007 = vsel %vm495, %v976, 0
      %v1010 = vsel %vm495, %v977, 0
      %v1013 = vsel %vm495, %v978, 0
      %v1016 = vsel %vm495, %v979, 0
      %v1019 = vsel %vm495, %v980, 0
      %v1022 = vsel %vm495, %v981, 0
      %v1025 = vsel %vm495, %v982, 0
      %v1028 = vsel %vm495, %v983, 0
      %v1031 = vsel %vm495, %v984, 0
      %v1034 = vsel %vm495, %v985, 0
      %v1037 = vsel %vm495, %v986, 0
      %v1040 = vsel %vm495, %v987, 0
      %v1043 = vsel %vm495, %v988, 0
      %v1046 = vsel %vm495, %v989, 0
      %v1049 = vsel %vm495, %v990, 0
      %1051 = vmatpush.bf16.msra.mxu0 0
      %1052 = vmatpush.bf16.msra.mxu0 0
      %1053 = vmatpush.bf16.msra.mxu0 0
      %1054 = vmatpush.bf16.msra.mxu0 0
      %1055 = vmatpush.bf16.msra.mxu0 0
      %1056 = vmatpush.bf16.msra.mxu0 0
      %1057 = vmatpush.bf16.msra.mxu0 %v1000
      %1058 = vmatpush.bf16.msra.mxu0 %v999
      %1059 = vmatmul.bf16.gmra.mxu0 %v1004
      %v1060 = vpop.f32.mrf.mxu0
      %v1061 = vadd.f32 0.0, %v1060
      %v1062 = vpop.f32.mrf.mxu0
      %v1063 = vadd.f32 0.0, %v1062
      %1064 = vmatmul.bf16.gmra.mxu0 %v1007
      %v1065 = vpop.f32.mrf.mxu0
      %v1066 = vadd.f32 0.0, %v1065
      %v1067 = vpop.f32.mrf.mxu0
      %v1068 = vadd.f32 0.0, %v1067
      %1069 = vmatmul.bf16.gmra.mxu0 %v1010
      %v1070 = vpop.f32.mrf.mxu0
      %v1071 = vadd.f32 0.0, %v1070
      %v1072 = vpop.f32.mrf.mxu0
      %v1073 = vadd.f32 0.0, %v1072
      %1074 = vmatmul.bf16.gmra.mxu0 %v1013
      %v1075 = vpop.f32.mrf.mxu0
      %v1076 = vadd.f32 0.0, %v1075
      %v1077 = vpop.f32.mrf.mxu0
      %v1078 = vadd.f32 0.0, %v1077
      %1079 = vmatmul.bf16.gmra.mxu0 %v1016
      %v1080 = vpop.f32.mrf.mxu0
      %v1081 = vadd.f32 0.0, %v1080
      %v1082 = vpop.f32.mrf.mxu0
      %v1083 = vadd.f32 0.0, %v1082
      %1084 = vmatmul.bf16.gmra.mxu0 %v1019
      %v1085 = vpop.f32.mrf.mxu0
      %v1086 = vadd.f32 0.0, %v1085
      %v1087 = vpop.f32.mrf.mxu0
      %v1088 = vadd.f32 0.0, %v1087
      %1089 = vmatmul.bf16.gmra.mxu0 %v1022
      %v1090 = vpop.f32.mrf.mxu0
      %v1091 = vadd.f32 0.0, %v1090
      %v1092 = vpop.f32.mrf.mxu0
      %v1093 = vadd.f32 0.0, %v1092
      %1094 = vmatmul.bf16.gmra.mxu0 %v1025
      %v1095 = vpop.f32.mrf.mxu0
      %v1096 = vadd.f32 0.0, %v1095
      %v1097 = vpop.f32.mrf.mxu0
      %v1098 = vadd.f32 0.0, %v1097
      %1099 = vmatmul.bf16.gmra.mxu0 %v1028
      %v1100 = vpop.f32.mrf.mxu0
      %v1101 = vadd.f32 0.0, %v1100
      %v1102 = vpop.f32.mrf.mxu0
      %v1103 = vadd.f32 0.0, %v1102
      %1104 = vmatmul.bf16.gmra.mxu0 %v1031
      %v1105 = vpop.f32.mrf.mxu0
      %v1106 = vadd.f32 0.0, %v1105
      %v1107 = vpop.f32.mrf.mxu0
      %v1108 = vadd.f32 0.0, %v1107
      %1109 = vmatmul.bf16.gmra.mxu0 %v1034
      %v1110 = vpop.f32.mrf.mxu0
      %v1111 = vadd.f32 0.0, %v1110
      %v1112 = vpop.f32.mrf.mxu0
      %v1113 = vadd.f32 0.0, %v1112
      %1114 = vmatmul.bf16.gmra.mxu0 %v1037
      %v1115 = vpop.f32.mrf.mxu0
      %v1116 = vadd.f32 0.0, %v1115
      %v1117 = vpop.f32.mrf.mxu0
      %v1118 = vadd.f32 0.0, %v1117
      %1119 = vmatmul.bf16.gmra.mxu0 %v1040
      %v1120 = vpop.f32.mrf.mxu0
      %v1121 = vadd.f32 0.0, %v1120
      %v1122 = vpop.f32.mrf.mxu0
      %v1123 = vadd.f32 0.0, %v1122
      %1124 = vmatmul.bf16.gmra.mxu0 %v1043
      %v1125 = vpop.f32.mrf.mxu0
      %v1126 = vadd.f32 0.0, %v1125
      %v1127 = vpop.f32.mrf.mxu0
      %v1128 = vadd.f32 0.0, %v1127
      %1129 = vmatmul.bf16.gmra.mxu0 %v1046
      %v1130 = vpop.f32.mrf.mxu0
      %v1131 = vadd.f32 0.0, %v1130
      %v1132 = vpop.f32.mrf.mxu0
      %v1133 = vadd.f32 0.0, %v1132
      %1134 = vmatmul.bf16.gmra.mxu0 %v1049
      %v1135 = vpop.f32.mrf.mxu0
      %v1136 = vadd.f32 0.0, %v1135
      %v1137 = vpop.f32.mrf.mxu0
      %v1138 = vadd.f32 0.0, %v1137
      %1139 = vdwg.mxu0
      %v1140 = vadd.f32 %v796, %v1061
      %v1141 = vadd.f32 %v798, %v1063
      %v1142 = vadd.f32 %v801, %v1066
      %v1143 = vadd.f32 %v803, %v1068
      %v1144 = vadd.f32 %v806, %v1071
      %v1145 = vadd.f32 %v808, %v1073
      %v1146 = vadd.f32 %v811, %v1076
      %v1147 = vadd.f32 %v813, %v1078
      %v1148 = vadd.f32 %v816, %v1081
      %v1149 = vadd.f32 %v818, %v1083
      %v1150 = vadd.f32 %v821, %v1086
      %v1151 = vadd.f32 %v823, %v1088
      %v1152 = vadd.f32 %v826, %v1091
      %v1153 = vadd.f32 %v828, %v1093
      %v1154 = vadd.f32 %v831, %v1096
      %v1155 = vadd.f32 %v833, %v1098
      %v1156 = vadd.f32 %v836, %v1101
      %v1157 = vadd.f32 %v838, %v1103
      %v1158 = vadd.f32 %v841, %v1106
      %v1159 = vadd.f32 %v843, %v1108
      %v1160 = vadd.f32 %v846, %v1111
      %v1161 = vadd.f32 %v848, %v1113
      %v1162 = vadd.f32 %v851, %v1116
      %v1163 = vadd.f32 %v853, %v1118
      %v1164 = vadd.f32 %v856, %v1121
      %v1165 = vadd.f32 %v858, %v1123
      %v1166 = vadd.f32 %v861, %v1126
      %v1167 = vadd.f32 %v863, %v1128
      %v1168 = vadd.f32 %v866, %v1131
      %v1169 = vadd.f32 %v868, %v1133
      %v1170 = vadd.f32 %v871, %v1136
      %v1171 = vadd.f32 %v873, %v1138
      %v1172 = vld [vmem:[%s6] sm:$0x1]
      %v1174 = vperm.slane %v1172, 0
      %v1176 = vadd.f32 %v1140, %v1174
      %v1177 = vadd.f32 %v1141, %v1174
      %v1178 = vadd.f32 %v1142, %v1174
      %v1179 = vadd.f32 %v1143, %v1174
      %v1180 = vadd.f32 %v1144, %v1174
      %v1181 = vadd.f32 %v1145, %v1174
      %v1182 = vadd.f32 %v1146, %v1174
      %v1183 = vadd.f32 %v1147, %v1174
      %v1184 = vadd.f32 %v1148, %v1174
      %v1185 = vadd.f32 %v1149, %v1174
      %v1186 = vadd.f32 %v1150, %v1174
      %v1187 = vadd.f32 %v1151, %v1174
      %v1188 = vadd.f32 %v1152, %v1174
      %v1189 = vadd.f32 %v1153, %v1174
      %v1190 = vadd.f32 %v1154, %v1174
      %v1191 = vadd.f32 %v1155, %v1174
      %v1192 = vadd.f32 %v1156, %v1174
      %v1193 = vadd.f32 %v1157, %v1174
      %v1194 = vadd.f32 %v1158, %v1174
      %v1195 = vadd.f32 %v1159, %v1174
      %v1196 = vadd.f32 %v1160, %v1174
      %v1197 = vadd.f32 %v1161, %v1174
      %v1198 = vadd.f32 %v1162, %v1174
      %v1199 = vadd.f32 %v1163, %v1174
      %v1200 = vadd.f32 %v1164, %v1174
      %v1201 = vadd.f32 %v1165, %v1174
      %v1202 = vadd.f32 %v1166, %v1174
      %v1203 = vadd.f32 %v1167, %v1174
      %v1204 = vadd.f32 %v1168, %v1174
      %v1205 = vadd.f32 %v1169, %v1174
      %v1206 = vadd.f32 %v1170, %v1174
      %v1207 = vadd.f32 %v1171, %v1174
      %v1208 = vpack.c.bf16 %v1176, %v1176
      %v1209 = vpack.c.bf16 %v1177, %v1177
      %v1210 = vpack.c.bf16 %v1178, %v1178
      %v1211 = vpack.c.bf16 %v1179, %v1179
      %v1212 = vpack.c.bf16 %v1180, %v1180
      %v1213 = vpack.c.bf16 %v1181, %v1181
      %v1214 = vpack.c.bf16 %v1182, %v1182
      %v1215 = vpack.c.bf16 %v1183, %v1183
      %v1216 = vpack.c.bf16 %v1184, %v1184
      %v1217 = vpack.c.bf16 %v1185, %v1185
      %v1218 = vpack.c.bf16 %v1186, %v1186
      %v1219 = vpack.c.bf16 %v1187, %v1187
      %v1220 = vpack.c.bf16 %v1188, %v1188
      %v1221 = vpack.c.bf16 %v1189, %v1189
      %v1222 = vpack.c.bf16 %v1190, %v1190
      %v1223 = vpack.c.bf16 %v1191, %v1191
      %v1224 = vpack.c.bf16 %v1192, %v1192
      %v1225 = vpack.c.bf16 %v1193, %v1193
      %v1226 = vpack.c.bf16 %v1194, %v1194
      %v1227 = vpack.c.bf16 %v1195, %v1195
      %v1228 = vpack.c.bf16 %v1196, %v1196
      %v1229 = vpack.c.bf16 %v1197, %v1197
      %v1230 = vpack.c.bf16 %v1198, %v1198
      %v1231 = vpack.c.bf16 %v1199, %v1199
      %v1232 = vpack.c.bf16 %v1200, %v1200
      %v1233 = vpack.c.bf16 %v1201, %v1201
      %v1234 = vpack.c.bf16 %v1202, %v1202
      %v1235 = vpack.c.bf16 %v1203, %v1203
      %v1236 = vpack.c.bf16 %v1204, %v1204
      %v1237 = vpack.c.bf16 %v1205, %v1205
      %v1238 = vpack.c.bf16 %v1206, %v1206
      %v1239 = vpack.c.bf16 %v1207, %v1207
      %vm1240 = vcmask 257024
      %1241 = vst.msk [vmem:[%s324] sm:$0xf] %vm1240, %v1208
      %1242 = vst.msk [vmem:[%s324 + $0x4] sm:$0xf] %vm1240, %v1209
      %1243 = vst.msk [vmem:[%s324 + $0x8] sm:$0xf] %vm1240, %v1210
      %1244 = vst.msk [vmem:[%s324 + $0xc] sm:$0xf] %vm1240, %v1211
      %1245 = vst.msk [vmem:[%s324 + $0x10] sm:$0xf] %vm1240, %v1212
      %1246 = vst.msk [vmem:[%s324 + $0x14] sm:$0xf] %vm1240, %v1213
      %1247 = vst.msk [vmem:[%s324 + $0x18] sm:$0xf] %vm1240, %v1214
      %1248 = vst.msk [vmem:[%s324 + $0x1c] sm:$0xf] %vm1240, %v1215
      %1249 = vst.msk [vmem:[%s324 + $0x20] sm:$0xf] %vm1240, %v1216
      %1250 = vst.msk [vmem:[%s324 + $0x24] sm:$0xf] %vm1240, %v1217
      %1251 = vst.msk [vmem:[%s324 + $0x28] sm:$0xf] %vm1240, %v1218
      %1252 = vst.msk [vmem:[%s324 + $0x2c] sm:$0xf] %vm1240, %v1219
      %1253 = vst.msk [vmem:[%s324 + $0x30] sm:$0xf] %vm1240, %v1220
      %1254 = vst.msk [vmem:[%s324 + $0x34] sm:$0xf] %vm1240, %v1221
      %1255 = vst.msk [vmem:[%s324 + $0x38] sm:$0xf] %vm1240, %v1222
      %1256 = vst.msk [vmem:[%s324 + $0x3c] sm:$0xf] %vm1240, %v1223
      %1257 = vst.msk [vmem:[%s324 + $0x40] sm:$0xf] %vm1240, %v1224
      %1258 = vst.msk [vmem:[%s324 + $0x44] sm:$0xf] %vm1240, %v1225
      %1259 = vst.msk [vmem:[%s324 + $0x48] sm:$0xf] %vm1240, %v1226
      %1260 = vst.msk [vmem:[%s324 + $0x4c] sm:$0xf] %vm1240, %v1227
      %1261 = vst.msk [vmem:[%s324 + $0x50] sm:$0xf] %vm1240, %v1228
      %1262 = vst.msk [vmem:[%s324 + $0x54] sm:$0xf] %vm1240, %v1229
      %1263 = vst.msk [vmem:[%s324 + $0x58] sm:$0xf] %vm1240, %v1230
      %1264 = vst.msk [vmem:[%s324 + $0x5c] sm:$0xf] %vm1240, %v1231
      %1265 = vst.msk [vmem:[%s324 + $0x60] sm:$0xf] %vm1240, %v1232
      %1266 = vst.msk [vmem:[%s324 + $0x64] sm:$0xf] %vm1240, %v1233
      %1267 = vst.msk [vmem:[%s324 + $0x68] sm:$0xf] %vm1240, %v1234
      %1268 = vst.msk [vmem:[%s324 + $0x6c] sm:$0xf] %vm1240, %v1235
      %1269 = vst.msk [vmem:[%s324 + $0x70] sm:$0xf] %vm1240, %v1236
      %1270 = vst.msk [vmem:[%s324 + $0x74] sm:$0xf] %vm1240, %v1237
      %1271 = vst.msk [vmem:[%s324 + $0x78] sm:$0xf] %vm1240, %v1238
      %1272 = vst.msk [vmem:[%s324 + $0x7c] sm:$0xf] %vm1240, %v1239
      %s1273 = smul.u32 32, %s18
      %p1274 = scmp.lt.s32.totalorder %s1273, 63
      %s1275 = scalar_select %p1274, %s1273, 63
      %s1276 = smul.addr %s1275, 4
      %s1277 = scalar_lea.vmem %s7, %s1276
      // Predicated region
      $region49: #{depsep_forward.13} parent=47 // pred_check
        %p1278 = pneg %p198
      $region50: #{depsep_forward.13} parent=47 // pred_check_branch
        %1280 = sbr.rel (%p1278) target = $region52
      $region51: #{depsep_forward.13} parent=47 // pred_region
        %s1281 = smul.u32 32, %s18
      $region52: #{depsep_forward.13} parent=47 // pred_fallthru
        _
    $region48: #{depsep_forward.13} parent=5 // pred_fallthru
      _
    %p1282 = scmp.le.s32.totalorder 2, %s13
    // Predicated region
    $region53: #{depsep_forward.13} parent=5 // pred_check
      %p1283 = pneg %p1282
    $region54: #{depsep_forward.13} parent=5 // pred_check_branch
      %1285 = sbr.rel (%p1283) target = $region56
    $region55: #{depsep_forward.13} parent=5 // pred_region
      %s1286 = ssub.s32 %s13, 2
      // Predicated region
      $region57: #{depsep_forward.13} parent=55 // pred_check
        %p1287 = pneg %p204
      $region58: #{depsep_forward.13} parent=55 // pred_check_branch
        %1289 = sbr.rel (%p1287) target = $region60
      $region59: #{depsep_forward.13} parent=55 // pred_region
        %s1290 = smul.u32 32, %s19
        %p1291 = scmp.lt.s32.totalorder %s1290, 63
        %s1292 = scalar_select %p1291, %s1290, 63
        %s1293 = smul.addr %s1292, 4
        %s1294 = scalar_lea.vmem %s7, %s1293
      $region60: #{depsep_forward.13} parent=55 // pred_fallthru
        _
    $region56: #{depsep_forward.13} parent=5 // pred_fallthru
      _
  $region6: #{depsep_forward.13} parent=0 // loop_footer
    %s17 = sadd.s32 1, %s13
  $region7: #{depsep_forward.13} parent=0 // loop_footer_branch
    %12 = sbr.rel target = $region3
  $region8: #{depsep_forward.13} parent=0 // loop_exit
    _

// kernel: depsep_forward.15
$region0: #{depsep_forward.15}
  #allocation0 [shape = 'u32[]', space=smem, size = 0x4, offset = 0x4, fixed_abs, tag = 'smem constant byte address 0x4 - core index']
  #allocation1 [shape = 'u32[72,128]{1,0:T(1,128)}', space=vmem, size = 0x9000, scoped, tag = 'internal scratch']
  %s0 = inlined_call_operand.vmem [shape: bf16[512,64], index: 0, kind: input, shape index: {}]
  %s1 = inlined_call_operand.vmem [shape: bf16[512,32], index: 1, kind: input, shape index: {}]
  %s2 = inlined_call_operand.vmem [shape: bf16[512,32], index: 2, kind: input, shape index: {}]
  %s3 = inlined_call_operand.vmem [shape: bf16[512,32], index: 3, kind: input, shape index: {}]
  %s4 = inlined_call_operand.vmem [shape: bf16[64,64], index: 4, kind: input, shape index: {}]
  %s5 = inlined_call_operand.vmem [shape: bf16[32,64], index: 5, kind: input, shape index: {}]
  %s6 = inlined_call_operand.vmem [shape: bf16[32,64], index: 6, kind: input, shape index: {}]
  %s7 = inlined_call_operand.vmem [shape: bf16[32,64], index: 7, kind: input, shape index: {}]
  %s8 = inlined_call_operand.vmem [shape: f32[1,64], index: 8, kind: input, shape index: {}]
  %s9 = inlined_call_operand.vmem [shape: bf16[512,64], index: 9, kind: output, shape index: {}]
  %s10 = sld [smem:[#allocation0]]
  $region69: #{depsep_forward.15} parent=0
    _
  %s12 = ssub.s32 1, %s10
  %s13 = scalar_select 0, %s12, %s10
  loop: start=0, step=1, limit=4
  $region2: #{depsep_forward.15} parent=0 // loop_pre_header
    _
  $region3: #{depsep_forward.15} parent=0 // loop_header
    %s15 = sphi 0, %s19
    %p16 = scmp.ge.s32.totalorder %s15, 4
    %s25 = sphi 0, %s27
    %s28 = sphi 0, %s25
    %s29 = sphi 0, %s28
    %s45 = sphi 0, %s29
    %s51 = sphi 0, %s53
    %s54 = sphi 0, %s51
    %s55 = sphi 0, %s54
    %s71 = sphi 0, %s55
    %s77 = sphi 0, %s79
    %s80 = sphi 0, %s77
    %s81 = sphi 0, %s80
    %s97 = sphi 0, %s81
    %s103 = sphi 0, %s105
    %s106 = sphi 0, %s103
    %s107 = sphi 0, %s106
    %s123 = sphi 0, %s107
    %s127 = sphi 0, %s127
    %s129 = sphi 0, %s127
    %s130 = sphi 0, %s129
    %s144 = sphi 0, %s130
    %s148 = sphi 0, %s148
    %s150 = sphi 0, %s148
    %s151 = sphi 0, %s150
    %s165 = sphi 0, %s151
    %s169 = sphi 0, %s169
    %s171 = sphi 0, %s169
    %s172 = sphi 0, %s171
    %s186 = sphi 0, %s172
    %s190 = sphi 0, %s190
    %s192 = sphi 0, %s190
    %s193 = sphi 0, %s192
    %s207 = sphi 0, %s193
    %s211 = sphi 0, %s211
    %s213 = sphi 0, %s211
    %s214 = sphi 0, %s213
    %s228 = sphi 0, %s214
    %s234 = sphi 0, %s236
    %s237 = sphi 0, %s234
    %s238 = sphi 0, %s237
    %s254 = sphi 0, %s238
  $region4: #{depsep_forward.15} parent=0 // loop_header_branch
    %18 = sbr.rel (%p16) target = $region8
  $region5: #{depsep_forward.15} parent=0 // loop_body
    %s20 = ssub.s32 %s15, 1
    %s21 = ssub.s32 %s15, 2
    %s22 = sadd.s32 %s15, 1
    %s23 = ssub.s32 %s15, %s22
    %p24 = scmp.eq.s32.totalorder %s23, 0
    %s26 = sadd.s32 %s25, 1
    %s27 = scalar_select %p24, %s25, %s26
    %p30 = pneg %p24
    %p31 = scmp.eq.s32.totalorder %s15, 1
    %p32 = por %p30, %p31
    %p33 = scmp.ne.s32.totalorder %s25, %s28
    %p34 = scmp.eq.s32.totalorder %s15, 0
    %p35 = por %p33, %p34
    %p36 = scmp.ne.s32.totalorder %s25, %s28
    %p37 = scmp.eq.s32.totalorder %s20, 1
    %p38 = por %p36, %p37
    %p39 = scmp.ne.s32.totalorder %s28, %s29
    %p40 = scmp.eq.s32.totalorder %s20, 0
    %p41 = por %p39, %p40
    %p42 = scmp.ne.s32.totalorder %s28, %s29
    %p43 = scmp.eq.s32.totalorder %s21, 1
    %p44 = por %p42, %p43
    %p46 = scmp.ne.s32.totalorder %s29, %s45
    %p47 = scmp.eq.s32.totalorder %s21, 0
    %p48 = por %p46, %p47
    %s49 = ssub.s32 %s15, %s22
    %p50 = scmp.eq.s32.totalorder %s49, 0
    %s52 = sadd.s32 %s51, 1
    %s53 = scalar_select %p50, %s51, %s52
    %p56 = pneg %p50
    %p57 = scmp.eq.s32.totalorder %s15, 1
    %p58 = por %p56, %p57
    %p59 = scmp.ne.s32.totalorder %s51, %s54
    %p60 = scmp.eq.s32.totalorder %s15, 0
    %p61 = por %p59, %p60
    %p62 = scmp.ne.s32.totalorder %s51, %s54
    %p63 = scmp.eq.s32.totalorder %s20, 1
    %p64 = por %p62, %p63
    %p65 = scmp.ne.s32.totalorder %s54, %s55
    %p66 = scmp.eq.s32.totalorder %s20, 0
    %p67 = por %p65, %p66
    %p68 = scmp.ne.s32.totalorder %s54, %s55
    %p69 = scmp.eq.s32.totalorder %s21, 1
    %p70 = por %p68, %p69
    %p72 = scmp.ne.s32.totalorder %s55, %s71
    %p73 = scmp.eq.s32.totalorder %s21, 0
    %p74 = por %p72, %p73
    %s75 = ssub.s32 %s15, %s22
    %p76 = scmp.eq.s32.totalorder %s75, 0
    %s78 = sadd.s32 %s77, 1
    %s79 = scalar_select %p76, %s77, %s78
    %p82 = pneg %p76
    %p83 = scmp.eq.s32.totalorder %s15, 1
    %p84 = por %p82, %p83
    %p85 = scmp.ne.s32.totalorder %s77, %s80
    %p86 = scmp.eq.s32.totalorder %s15, 0
    %p87 = por %p85, %p86
    %p88 = scmp.ne.s32.totalorder %s77, %s80
    %p89 = scmp.eq.s32.totalorder %s20, 1
    %p90 = por %p88, %p89
    %p91 = scmp.ne.s32.totalorder %s80, %s81
    %p92 = scmp.eq.s32.totalorder %s20, 0
    %p93 = por %p91, %p92
    %p94 = scmp.ne.s32.totalorder %s80, %s81
    %p95 = scmp.eq.s32.totalorder %s21, 1
    %p96 = por %p94, %p95
    %p98 = scmp.ne.s32.totalorder %s81, %s97
    %p99 = scmp.eq.s32.totalorder %s21, 0
    %p100 = por %p98, %p99
    %s101 = ssub.s32 %s15, %s22
    %p102 = scmp.eq.s32.totalorder %s101, 0
    %s104 = sadd.s32 %s103, 1
    %s105 = scalar_select %p102, %s103, %s104
    %p108 = pneg %p102
    %p109 = scmp.eq.s32.totalorder %s15, 1
    %p110 = por %p108, %p109
    %p111 = scmp.ne.s32.totalorder %s103, %s106
    %p112 = scmp.eq.s32.totalorder %s15, 0
    %p113 = por %p111, %p112
    %p114 = scmp.ne.s32.totalorder %s103, %s106
    %p115 = scmp.eq.s32.totalorder %s20, 1
    %p116 = por %p114, %p115
    %p117 = scmp.ne.s32.totalorder %s106, %s107
    %p118 = scmp.eq.s32.totalorder %s20, 0
    %p119 = por %p117, %p118
    %p120 = scmp.ne.s32.totalorder %s106, %s107
    %p121 = scmp.eq.s32.totalorder %s21, 1
    %p122 = por %p120, %p121
    %p124 = scmp.ne.s32.totalorder %s107, %s123
    %p125 = scmp.eq.s32.totalorder %s21, 0
    %p126 = por %p124, %p125
    %s128 = sadd.s32 %s127, 1
    %p131 = scmp.eq.s32.totalorder %s15, 1
    %p132 = scmp.ne.s32.totalorder %s127, %s129
    %p133 = scmp.eq.s32.totalorder %s15, 0
    %p134 = por %p132, %p133
    %p135 = scmp.ne.s32.totalorder %s127, %s129
    %p136 = scmp.eq.s32.totalorder %s20, 1
    %p137 = por %p135, %p136
    %p138 = scmp.ne.s32.totalorder %s129, %s130
    %p139 = scmp.eq.s32.totalorder %s20, 0
    %p140 = por %p138, %p139
    %p141 = scmp.ne.s32.totalorder %s129, %s130
    %p142 = scmp.eq.s32.totalorder %s21, 1
    %p143 = por %p141, %p142
    %p145 = scmp.ne.s32.totalorder %s130, %s144
    %p146 = scmp.eq.s32.totalorder %s21, 0
    %p147 = por %p145, %p146
    %s149 = sadd.s32 %s148, 1
    %p152 = scmp.eq.s32.totalorder %s15, 1
    %p153 = scmp.ne.s32.totalorder %s148, %s150
    %p154 = scmp.eq.s32.totalorder %s15, 0
    %p155 = por %p153, %p154
    %p156 = scmp.ne.s32.totalorder %s148, %s150
    %p157 = scmp.eq.s32.totalorder %s20, 1
    %p158 = por %p156, %p157
    %p159 = scmp.ne.s32.totalorder %s150, %s151
    %p160 = scmp.eq.s32.totalorder %s20, 0
    %p161 = por %p159, %p160
    %p162 = scmp.ne.s32.totalorder %s150, %s151
    %p163 = scmp.eq.s32.totalorder %s21, 1
    %p164 = por %p162, %p163
    %p166 = scmp.ne.s32.totalorder %s151, %s165
    %p167 = scmp.eq.s32.totalorder %s21, 0
    %p168 = por %p166, %p167
    %s170 = sadd.s32 %s169, 1
    %p173 = scmp.eq.s32.totalorder %s15, 1
    %p174 = scmp.ne.s32.totalorder %s169, %s171
    %p175 = scmp.eq.s32.totalorder %s15, 0
    %p176 = por %p174, %p175
    %p177 = scmp.ne.s32.totalorder %s169, %s171
    %p178 = scmp.eq.s32.totalorder %s20, 1
    %p179 = por %p177, %p178
    %p180 = scmp.ne.s32.totalorder %s171, %s172
    %p181 = scmp.eq.s32.totalorder %s20, 0
    %p182 = por %p180, %p181
    %p183 = scmp.ne.s32.totalorder %s171, %s172
    %p184 = scmp.eq.s32.totalorder %s21, 1
    %p185 = por %p183, %p184
    %p187 = scmp.ne.s32.totalorder %s172, %s186
    %p188 = scmp.eq.s32.totalorder %s21, 0
    %p189 = por %p187, %p188
    %s191 = sadd.s32 %s190, 1
    %p194 = scmp.eq.s32.totalorder %s15, 1
    %p195 = scmp.ne.s32.totalorder %s190, %s192
    %p196 = scmp.eq.s32.totalorder %s15, 0
    %p197 = por %p195, %p196
    %p198 = scmp.ne.s32.totalorder %s190, %s192
    %p199 = scmp.eq.s32.totalorder %s20, 1
    %p200 = por %p198, %p199
    %p201 = scmp.ne.s32.totalorder %s192, %s193
    %p202 = scmp.eq.s32.totalorder %s20, 0
    %p203 = por %p201, %p202
    %p204 = scmp.ne.s32.totalorder %s192, %s193
    %p205 = scmp.eq.s32.totalorder %s21, 1
    %p206 = por %p204, %p205
    %p208 = scmp.ne.s32.totalorder %s193, %s207
    %p209 = scmp.eq.s32.totalorder %s21, 0
    %p210 = por %p208, %p209
    %s212 = sadd.s32 %s211, 1
    %p215 = scmp.eq.s32.totalorder %s15, 1
    %p216 = scmp.ne.s32.totalorder %s211, %s213
    %p217 = scmp.eq.s32.totalorder %s15, 0
    %p218 = por %p216, %p217
    %p219 = scmp.ne.s32.totalorder %s211, %s213
    %p220 = scmp.eq.s32.totalorder %s20, 1
    %p221 = por %p219, %p220
    %p222 = scmp.ne.s32.totalorder %s213, %s214
    %p223 = scmp.eq.s32.totalorder %s20, 0
    %p224 = por %p222, %p223
    %p225 = scmp.ne.s32.totalorder %s213, %s214
    %p226 = scmp.eq.s32.totalorder %s21, 1
    %p227 = por %p225, %p226
    %p229 = scmp.ne.s32.totalorder %s214, %s228
    %p230 = scmp.eq.s32.totalorder %s21, 0
    %p231 = por %p229, %p230
    %s232 = ssub.s32 %s15, %s22
    %p233 = scmp.eq.s32.totalorder %s232, 0
    %s235 = sadd.s32 %s234, 1
    %s236 = scalar_select %p233, %s234, %s235
    %p239 = pneg %p233
    %p240 = scmp.eq.s32.totalorder %s15, 1
    %p241 = por %p239, %p240
    %p242 = scmp.ne.s32.totalorder %s234, %s237
    %p243 = scmp.eq.s32.totalorder %s15, 0
    %p244 = por %p242, %p243
    %p245 = scmp.ne.s32.totalorder %s234, %s237
    %p246 = scmp.eq.s32.totalorder %s20, 1
    %p247 = por %p245, %p246
    %p248 = scmp.ne.s32.totalorder %s237, %s238
    %p249 = scmp.eq.s32.totalorder %s20, 0
    %p250 = por %p248, %p249
    %p251 = scmp.ne.s32.totalorder %s237, %s238
    %p252 = scmp.eq.s32.totalorder %s21, 1
    %p253 = por %p251, %p252
    %p255 = scmp.ne.s32.totalorder %s238, %s254
    %p256 = scmp.eq.s32.totalorder %s21, 0
    %p257 = por %p255, %p256
    %p258 = scmp.le.s32.totalorder 1, %s15
    %p259 = scmp.lt.s32.totalorder %s15, 3
    %p260 = pnand %p258, %p259
    %p261 = pneg %p260
    // Predicated region
    $region9: #{depsep_forward.15} parent=5 // pred_check
      _
    $region10: #{depsep_forward.15} parent=5 // pred_check_branch
      %263 = sbr.rel (%p260) target = $region12
    $region11: #{depsep_forward.15} parent=5 // pred_region
      %s264 = ssub.s32 %s15, 1
      // Predicated region
      $region13: #{depsep_forward.15} parent=11 // pred_check
        %p265 = pneg %p140
      $region14: #{depsep_forward.15} parent=11 // pred_check_branch
        %267 = sbr.rel (%p265) target = $region16
      $region15: #{depsep_forward.15} parent=11 // pred_region
        _
      $region16: #{depsep_forward.15} parent=11 // pred_fallthru
        _
      // Predicated region
      $region17: #{depsep_forward.15} parent=11 // pred_check
        %p268 = pneg %p161
      $region18: #{depsep_forward.15} parent=11 // pred_check_branch
        %270 = sbr.rel (%p268) target = $region20
      $region19: #{depsep_forward.15} parent=11 // pred_region
        _
      $region20: #{depsep_forward.15} parent=11 // pred_fallthru
        _
      // Predicated region
      $region21: #{depsep_forward.15} parent=11 // pred_check
        %p271 = pneg %p182
      $region22: #{depsep_forward.15} parent=11 // pred_check_branch
        %273 = sbr.rel (%p271) target = $region24
      $region23: #{depsep_forward.15} parent=11 // pred_region
        _
      $region24: #{depsep_forward.15} parent=11 // pred_fallthru
        _
      // Predicated region
      $region25: #{depsep_forward.15} parent=11 // pred_check
        %p274 = pneg %p203
      $region26: #{depsep_forward.15} parent=11 // pred_check_branch
        %276 = sbr.rel (%p274) target = $region28
      $region27: #{depsep_forward.15} parent=11 // pred_region
        _
      $region28: #{depsep_forward.15} parent=11 // pred_fallthru
        _
      // Predicated region
      $region29: #{depsep_forward.15} parent=11 // pred_check
        %p277 = pneg %p224
      $region30: #{depsep_forward.15} parent=11 // pred_check_branch
        %279 = sbr.rel (%p277) target = $region32
      $region31: #{depsep_forward.15} parent=11 // pred_region
        _
      $region32: #{depsep_forward.15} parent=11 // pred_fallthru
        _
    $region12: #{depsep_forward.15} parent=5 // pred_fallthru
      _
    %p280 = scmp.lt.s32.totalorder %s15, 2
    // Predicated region
    $region33: #{depsep_forward.15} parent=5 // pred_check
      %p281 = pneg %p280
    $region34: #{depsep_forward.15} parent=5 // pred_check_branch
      %283 = sbr.rel (%p281) target = $region36
    $region35: #{depsep_forward.15} parent=5 // pred_region
      // Predicated region
      $region37: #{depsep_forward.15} parent=35 // pred_check
        %p284 = pneg %p35
      $region38: #{depsep_forward.15} parent=35 // pred_check_branch
        %286 = sbr.rel (%p284) target = $region40
      $region39: #{depsep_forward.15} parent=35 // pred_region
        %s287 = smul.u32 32, %s15
        %p288 = scmp.lt.s32.totalorder %s287, 63
        %s289 = scalar_select %p288, %s287, 63
        %s290 = smul.addr %s289, 4
        %s291 = scalar_lea.vmem %s0, %s290
        %s292 = smul.u32 32, %s15
      $region40: #{depsep_forward.15} parent=35 // pred_fallthru
        _
      // Predicated region
      $region41: #{depsep_forward.15} parent=35 // pred_check
        %p293 = pneg %p61
      $region42: #{depsep_forward.15} parent=35 // pred_check_branch
        %295 = sbr.rel (%p293) target = $region44
      $region43: #{depsep_forward.15} parent=35 // pred_region
        %s296 = smul.u32 32, %s15
        %p297 = scmp.lt.s32.totalorder %s296, 63
        %s298 = scalar_select %p297, %s296, 63
        %s299 = smul.addr %s298, 4
        %s300 = scalar_lea.vmem %s1, %s299
        %s301 = smul.u32 32, %s15
      $region44: #{depsep_forward.15} parent=35 // pred_fallthru
        _
      // Predicated region
      $region45: #{depsep_forward.15} parent=35 // pred_check
        %p302 = pneg %p87
      $region46: #{depsep_forward.15} parent=35 // pred_check_branch
        %304 = sbr.rel (%p302) target = $region48
      $region47: #{depsep_forward.15} parent=35 // pred_region
        %s305 = smul.u32 32, %s15
        %p306 = scmp.lt.s32.totalorder %s305, 63
        %s307 = scalar_select %p306, %s305, 63
        %s308 = smul.addr %s307, 4
        %s309 = scalar_lea.vmem %s2, %s308
        %s310 = smul.u32 32, %s15
      $region48: #{depsep_forward.15} parent=35 // pred_fallthru
        _
      // Predicated region
      $region49: #{depsep_forward.15} parent=35 // pred_check
        %p311 = pneg %p113
      $region50: #{depsep_forward.15} parent=35 // pred_check_branch
        %313 = sbr.rel (%p311) target = $region52
      $region51: #{depsep_forward.15} parent=35 // pred_region
        %s314 = smul.u32 32, %s15
        %p315 = scmp.lt.s32.totalorder %s314, 63
        %s316 = scalar_select %p315, %s314, 63
        %s317 = smul.addr %s316, 4
        %s318 = scalar_lea.vmem %s3, %s317
        %s319 = smul.u32 32, %s15
      $region52: #{depsep_forward.15} parent=35 // pred_fallthru
        _
    $region36: #{depsep_forward.15} parent=5 // pred_fallthru
      _
    %p320 = scmp.le.s32.totalorder 1, %s15
    %p321 = scmp.lt.s32.totalorder %s15, 3
    %p322 = pnand %p320, %p321
    %p323 = pneg %p322
    // Predicated region
    $region53: #{depsep_forward.15} parent=5 // pred_check
      _
    $region54: #{depsep_forward.15} parent=5 // pred_check_branch
      %325 = sbr.rel (%p322) target = $region56
    $region55: #{depsep_forward.15} parent=5 // pred_region
      %s326 = ssub.s32 %s15, 1
      %s327 = smul.u32 32, %s20
      %p328 = scmp.lt.s32.totalorder %s327, 63
      %s329 = scalar_select %p328, %s327, 63
      %s330 = smul.addr %s329, 4
      %s331 = scalar_lea.vmem %s0, %s330
      %p332 = pneg %p41
      %p333 = pneg %p38
      %s334 = smul.u32 32, %s20
      %p335 = scmp.lt.s32.totalorder %s334, 63
      %s336 = scalar_select %p335, %s334, 63
      %s337 = smul.addr %s336, 4
      %s338 = scalar_lea.vmem %s1, %s337
      %p339 = pneg %p67
      %p340 = pneg %p64
      %s341 = smul.u32 32, %s20
      %p342 = scmp.lt.s32.totalorder %s341, 63
      %s343 = scalar_select %p342, %s341, 63
      %s344 = smul.addr %s343, 4
      %s345 = scalar_lea.vmem %s2, %s344
      %p346 = pneg %p93
      %p347 = pneg %p90
      %s348 = smul.u32 32, %s20
      %p349 = scmp.lt.s32.totalorder %s348, 63
      %s350 = scalar_select %p349, %s348, 63
      %s351 = smul.addr %s350, 4
      %s352 = scalar_lea.vmem %s3, %s351
      %p353 = pneg %p119
      %p354 = pneg %p116
      %p355 = pneg %p140
      %p356 = pneg %p137
      %p357 = pneg %p161
      %p358 = pneg %p158
      %p359 = pneg %p182
      %p360 = pneg %p179
      %p361 = pneg %p203
      %p362 = pneg %p200
      %p363 = pneg %p224
      %p364 = pneg %p221
      %p365 = pneg %p250
      %p366 = pneg %p247
      %s367 = smul.u32 32, %s20
      %p368 = scmp.lt.s32.totalorder %s367, 63
      %s369 = scalar_select %p368, %s367, 63
      %s370 = smul.addr %s369, 4
      %s371 = scalar_lea.vmem %s9, %s370
      %s372 = smul.u32 32, %s20
      %p373 = scmp.lt.s32.totalorder %s372, 63
      %s374 = scalar_select %p373, %s372, 63
      %s375 = smul.addr %s374, 4
      %s376 = scalar_lea.vmem %s0, %s375
      %s377 = smul.u32 32, %s20
      %s378 = smul.u32 32, %s20
      %p379 = scmp.lt.s32.totalorder %s378, 63
      %s380 = scalar_select %p379, %s378, 63
      %s381 = smul.addr %s380, 4
      %s382 = scalar_lea.vmem %s1, %s381
      %s383 = smul.u32 32, %s20
      %s384 = smul.u32 32, %s20
      %p385 = scmp.lt.s32.totalorder %s384, 63
      %s386 = scalar_select %p385, %s384, 63
      %s387 = smul.addr %s386, 4
      %s388 = scalar_lea.vmem %s2, %s387
      %s389 = smul.u32 32, %s20
      %s390 = smul.u32 32, %s20
      %p391 = scmp.lt.s32.totalorder %s390, 63
      %s392 = scalar_select %p391, %s390, 63
      %s393 = smul.addr %s392, 4
      %s394 = scalar_lea.vmem %s3, %s393
      %s395 = smul.u32 32, %s20
      %s396 = smul.u32 32, %s20
      %p397 = scmp.lt.s32.totalorder %s396, 63
      %s398 = scalar_select %p397, %s396, 63
      %s399 = smul.addr %s398, 4
      %s400 = scalar_lea.vmem %s9, %s399
      %s401 = smul.u32 32, %s20
      %v403 = vld [vmem:[%s376] sm:$0xf]
      %v404 = vld [vmem:[%s376 + $0x4] sm:$0xf]
      %v405 = vld [vmem:[%s376 + $0x8] sm:$0xf]
      %v406 = vld [vmem:[%s376 + $0xc] sm:$0xf]
      %v407 = vld [vmem:[%s376 + $0x10] sm:$0xf]
      %v408 = vld [vmem:[%s376 + $0x14] sm:$0xf]
      %v409 = vld [vmem:[%s376 + $0x18] sm:$0xf]
      %v410 = vld [vmem:[%s376 + $0x1c] sm:$0xf]
      %v411 = vld [vmem:[%s376 + $0x20] sm:$0xf]
      %v412 = vld [vmem:[%s376 + $0x24] sm:$0xf]
      %v413 = vld [vmem:[%s376 + $0x28] sm:$0xf]
      %v414 = vld [vmem:[%s376 + $0x2c] sm:$0xf]
      %v415 = vld [vmem:[%s376 + $0x30] sm:$0xf]
      %v416 = vld [vmem:[%s376 + $0x34] sm:$0xf]
      %v417 = vld [vmem:[%s376 + $0x38] sm:$0xf]
      %v418 = vld [vmem:[%s376 + $0x3c] sm:$0xf]
      %v419 = vld [vmem:[%s376 + $0x40] sm:$0xf]
      %v420 = vld [vmem:[%s376 + $0x44] sm:$0xf]
      %v421 = vld [vmem:[%s376 + $0x48] sm:$0xf]
      %v422 = vld [vmem:[%s376 + $0x4c] sm:$0xf]
      %v423 = vld [vmem:[%s376 + $0x50] sm:$0xf]
      %v424 = vld [vmem:[%s376 + $0x54] sm:$0xf]
      %v425 = vld [vmem:[%s376 + $0x58] sm:$0xf]
      %v426 = vld [vmem:[%s376 + $0x5c] sm:$0xf]
      %v427 = vld [vmem:[%s376 + $0x60] sm:$0xf]
      %v428 = vld [vmem:[%s376 + $0x64] sm:$0xf]
      %v429 = vld [vmem:[%s376 + $0x68] sm:$0xf]
      %v430 = vld [vmem:[%s376 + $0x6c] sm:$0xf]
      %v431 = vld [vmem:[%s376 + $0x70] sm:$0xf]
      %v432 = vld [vmem:[%s376 + $0x74] sm:$0xf]
      %v433 = vld [vmem:[%s376 + $0x78] sm:$0xf]
      %v434 = vld [vmem:[%s376 + $0x7c] sm:$0xf]
      %v435 = vld [vmem:[%s4] sm:$0xf]
      %v436 = vld [vmem:[%s4 + $0x4] sm:$0xf]
      %v437 = vld [vmem:[%s4 + $0x8] sm:$0xf]
      %v438 = vld [vmem:[%s4 + $0xc] sm:$0xf]
      %v439 = vld [vmem:[%s4 + $0x10] sm:$0xf]
      %v440 = vld [vmem:[%s4 + $0x14] sm:$0xf]
      %v441 = vld [vmem:[%s4 + $0x18] sm:$0xf]
      %v442 = vld [vmem:[%s4 + $0x1c] sm:$0xf]
      %v443 = vld [vmem:[%s382] sm:$0xf]
      %v444 = vld [vmem:[%s382 + $0x4] sm:$0xf]
      %v445 = vld [vmem:[%s382 + $0x8] sm:$0xf]
      %v446 = vld [vmem:[%s382 + $0xc] sm:$0xf]
      %v447 = vld [vmem:[%s382 + $0x10] sm:$0xf]
      %v448 = vld [vmem:[%s382 + $0x14] sm:$0xf]
      %v449 = vld [vmem:[%s382 + $0x18] sm:$0xf]
      %v450 = vld [vmem:[%s382 + $0x1c] sm:$0xf]
      %v451 = vld [vmem:[%s382 + $0x20] sm:$0xf]
      %v452 = vld [vmem:[%s382 + $0x24] sm:$0xf]
      %v453 = vld [vmem:[%s382 + $0x28] sm:$0xf]
      %v454 = vld [vmem:[%s382 + $0x2c] sm:$0xf]
      %v455 = vld [vmem:[%s382 + $0x30] sm:$0xf]
      %v456 = vld [vmem:[%s382 + $0x34] sm:$0xf]
      %v457 = vld [vmem:[%s382 + $0x38] sm:$0xf]
      %v458 = vld [vmem:[%s382 + $0x3c] sm:$0xf]
      %v459 = vld [vmem:[%s382 + $0x40] sm:$0xf]
      %v460 = vld [vmem:[%s382 + $0x44] sm:$0xf]
      %v461 = vld [vmem:[%s382 + $0x48] sm:$0xf]
      %v462 = vld [vmem:[%s382 + $0x4c] sm:$0xf]
      %v463 = vld [vmem:[%s382 + $0x50] sm:$0xf]
      %v464 = vld [vmem:[%s382 + $0x54] sm:$0xf]
      %v465 = vld [vmem:[%s382 + $0x58] sm:$0xf]
      %v466 = vld [vmem:[%s382 + $0x5c] sm:$0xf]
      %v467 = vld [vmem:[%s382 + $0x60] sm:$0xf]
      %v468 = vld [vmem:[%s382 + $0x64] sm:$0xf]
      %v469 = vld [vmem:[%s382 + $0x68] sm:$0xf]
      %v470 = vld [vmem:[%s382 + $0x6c] sm:$0xf]
      %v471 = vld [vmem:[%s382 + $0x70] sm:$0xf]
      %v472 = vld [vmem:[%s382 + $0x74] sm:$0xf]
      %v473 = vld [vmem:[%s382 + $0x78] sm:$0xf]
      %v474 = vld [vmem:[%s382 + $0x7c] sm:$0xf]
      %v475 = vld [vmem:[%s5] sm:$0xf]
      %v476 = vld [vmem:[%s5 + $0x4] sm:$0xf]
      %v477 = vld [vmem:[%s5 + $0x8] sm:$0xf]
      %v478 = vld [vmem:[%s5 + $0xc] sm:$0xf]
      %v511 = vunpack.c.l.b16 %v443
      %v512 = vunpack.c.l.b16 %v444
      %v513 = vunpack.c.l.b16 %v445
      %v514 = vunpack.c.l.b16 %v446
      %v515 = vunpack.c.l.b16 %v447
      %v516 = vunpack.c.l.b16 %v448
      %v517 = vunpack.c.l.b16 %v449
      %v518 = vunpack.c.l.b16 %v450
      %v519 = vunpack.c.l.b16 %v451
      %v520 = vunpack.c.l.b16 %v452
      %v521 = vunpack.c.l.b16 %v453
      %v522 = vunpack.c.l.b16 %v454
      %v523 = vunpack.c.l.b16 %v455
      %v524 = vunpack.c.l.b16 %v456
      %v525 = vunpack.c.l.b16 %v457
      %v526 = vunpack.c.l.b16 %v458
      %v527 = vunpack.c.l.b16 %v459
      %v528 = vunpack.c.l.b16 %v460
      %v529 = vunpack.c.l.b16 %v461
      %v530 = vunpack.c.l.b16 %v462
      %v531 = vunpack.c.l.b16 %v463
      %v532 = vunpack.c.l.b16 %v464
      %v533 = vunpack.c.l.b16 %v465
      %v534 = vunpack.c.l.b16 %v466
      %v535 = vunpack.c.l.b16 %v467
      %v536 = vunpack.c.l.b16 %v468
      %v537 = vunpack.c.l.b16 %v469
      %v538 = vunpack.c.l.b16 %v470
      %v539 = vunpack.c.l.b16 %v471
      %v540 = vunpack.c.l.b16 %v472
      %v541 = vunpack.c.l.b16 %v473
      %v542 = vunpack.c.l.b16 %v474
      %v543 = vpack.c.b16 %v512, %v511
      %v544 = vpack.c.b16 %v514, %v513
      %v545 = vpack.c.b16 %v516, %v515
      %v546 = vpack.c.b16 %v518, %v517
      %v547 = vpack.c.b16 %v520, %v519
      %v548 = vpack.c.b16 %v522, %v521
      %v549 = vpack.c.b16 %v524, %v523
      %v550 = vpack.c.b16 %v526, %v525
      %v551 = vpack.c.b16 %v528, %v527
      %v552 = vpack.c.b16 %v530, %v529
      %v553 = vpack.c.b16 %v532, %v531
      %v554 = vpack.c.b16 %v534, %v533
      %v555 = vpack.c.b16 %v536, %v535
      %v556 = vpack.c.b16 %v538, %v537
      %v557 = vpack.c.b16 %v540, %v539
      %v558 = vpack.c.b16 %v542, %v541
      %v563 = vunpack.c.l.b16 %v475
      %v564 = vunpack.c.l.b16 %v476
      %v565 = vunpack.c.l.b16 %v477
      %v566 = vunpack.c.l.b16 %v478
      %v567 = vpack.c.b16 %v564, %v563
      %v568 = vpack.c.b16 %v566, %v565
      %vm571 = vcmask 261120
      %v573 = vsel %vm571, %v543, 0
      %v576 = vsel %vm571, %v544, 0
      %v579 = vsel %vm571, %v545, 0
      %v582 = vsel %vm571, %v546, 0
      %v585 = vsel %vm571, %v547, 0
      %v588 = vsel %vm571, %v548, 0
      %v591 = vsel %vm571, %v549, 0
      %v594 = vsel %vm571, %v550, 0
      %v597 = vsel %vm571, %v551, 0
      %v600 = vsel %vm571, %v552, 0
      %v603 = vsel %vm571, %v553, 0
      %v606 = vsel %vm571, %v554, 0
      %v609 = vsel %vm571, %v555, 0
      %v612 = vsel %vm571, %v556, 0
      %v615 = vsel %vm571, %v557, 0
      %v618 = vsel %vm571, %v558, 0
      %620 = vmatpush.bf16.msra.mxu0 0
      %621 = vmatpush.bf16.msra.mxu0 0
      %622 = vmatpush.bf16.msra.mxu0 0
      %623 = vmatpush.bf16.msra.mxu0 0
      %624 = vmatpush.bf16.msra.mxu0 0
      %625 = vmatpush.bf16.msra.mxu0 0
      %626 = vmatpush.bf16.msra.mxu0 %v568
      %627 = vmatpush.bf16.msra.mxu0 %v567
      %628 = vmatmul.bf16.gmra.mxu0 %v573
      %v629 = vpop.f32.mrf.mxu0
      %v630 = vadd.f32 0.0, %v629
      %v631 = vpop.f32.mrf.mxu0
      %v632 = vadd.f32 0.0, %v631
      %633 = vmatmul.bf16.gmra.mxu0 %v576
      %v634 = vpop.f32.mrf.mxu0
      %v635 = vadd.f32 0.0, %v634
      %v636 = vpop.f32.mrf.mxu0
      %v637 = vadd.f32 0.0, %v636
      %638 = vmatmul.bf16.gmra.mxu0 %v579
      %v639 = vpop.f32.mrf.mxu0
      %v640 = vadd.f32 0.0, %v639
      %v641 = vpop.f32.mrf.mxu0
      %v642 = vadd.f32 0.0, %v641
      %643 = vmatmul.bf16.gmra.mxu0 %v582
      %v644 = vpop.f32.mrf.mxu0
      %v645 = vadd.f32 0.0, %v644
      %v646 = vpop.f32.mrf.mxu0
      %v647 = vadd.f32 0.0, %v646
      %648 = vmatmul.bf16.gmra.mxu0 %v585
      %v649 = vpop.f32.mrf.mxu0
      %v650 = vadd.f32 0.0, %v649
      %v651 = vpop.f32.mrf.mxu0
      %v652 = vadd.f32 0.0, %v651
      %653 = vmatmul.bf16.gmra.mxu0 %v588
      %v654 = vpop.f32.mrf.mxu0
      %v655 = vadd.f32 0.0, %v654
      %v656 = vpop.f32.mrf.mxu0
      %v657 = vadd.f32 0.0, %v656
      %658 = vmatmul.bf16.gmra.mxu0 %v591
      %v659 = vpop.f32.mrf.mxu0
      %v660 = vadd.f32 0.0, %v659
      %v661 = vpop.f32.mrf.mxu0
      %v662 = vadd.f32 0.0, %v661
      %663 = vmatmul.bf16.gmra.mxu0 %v594
      %v664 = vpop.f32.mrf.mxu0
      %v665 = vadd.f32 0.0, %v664
      %v666 = vpop.f32.mrf.mxu0
      %v667 = vadd.f32 0.0, %v666
      %668 = vmatmul.bf16.gmra.mxu0 %v597
      %v669 = vpop.f32.mrf.mxu0
      %v670 = vadd.f32 0.0, %v669
      %v671 = vpop.f32.mrf.mxu0
      %v672 = vadd.f32 0.0, %v671
      %673 = vmatmul.bf16.gmra.mxu0 %v600
      %v674 = vpop.f32.mrf.mxu0
      %v675 = vadd.f32 0.0, %v674
      %v676 = vpop.f32.mrf.mxu0
      %v677 = vadd.f32 0.0, %v676
      %678 = vmatmul.bf16.gmra.mxu0 %v603
      %v679 = vpop.f32.mrf.mxu0
      %v680 = vadd.f32 0.0, %v679
      %v681 = vpop.f32.mrf.mxu0
      %v682 = vadd.f32 0.0, %v681
      %683 = vmatmul.bf16.gmra.mxu0 %v606
      %v684 = vpop.f32.mrf.mxu0
      %v685 = vadd.f32 0.0, %v684
      %v686 = vpop.f32.mrf.mxu0
      %v687 = vadd.f32 0.0, %v686
      %688 = vmatmul.bf16.gmra.mxu0 %v609
      %v689 = vpop.f32.mrf.mxu0
      %v690 = vadd.f32 0.0, %v689
      %v691 = vpop.f32.mrf.mxu0
      %v692 = vadd.f32 0.0, %v691
      %693 = vmatmul.bf16.gmra.mxu0 %v612
      %v694 = vpop.f32.mrf.mxu0
      %v695 = vadd.f32 0.0, %v694
      %v696 = vpop.f32.mrf.mxu0
      %v697 = vadd.f32 0.0, %v696
      %698 = vmatmul.bf16.gmra.mxu0 %v615
      %v699 = vpop.f32.mrf.mxu0
      %v700 = vadd.f32 0.0, %v699
      %v701 = vpop.f32.mrf.mxu0
      %v702 = vadd.f32 0.0, %v701
      %703 = vmatmul.bf16.gmra.mxu0 %v618
      %v704 = vpop.f32.mrf.mxu0
      %v705 = vadd.f32 0.0, %v704
      %v706 = vpop.f32.mrf.mxu0
      %v707 = vadd.f32 0.0, %v706
      %708 = vdwg.mxu0
      %v741 = vunpack.c.l.b16 %v403
      %v742 = vunpack.c.l.b16 %v404
      %v743 = vunpack.c.l.b16 %v405
      %v744 = vunpack.c.l.b16 %v406
      %v745 = vunpack.c.l.b16 %v407
      %v746 = vunpack.c.l.b16 %v408
      %v747 = vunpack.c.l.b16 %v409
      %v748 = vunpack.c.l.b16 %v410
      %v749 = vunpack.c.l.b16 %v411
      %v750 = vunpack.c.l.b16 %v412
      %v751 = vunpack.c.l.b16 %v413
      %v752 = vunpack.c.l.b16 %v414
      %v753 = vunpack.c.l.b16 %v415
      %v754 = vunpack.c.l.b16 %v416
      %v755 = vunpack.c.l.b16 %v417
      %v756 = vunpack.c.l.b16 %v418
      %v757 = vunpack.c.l.b16 %v419
      %v758 = vunpack.c.l.b16 %v420
      %v759 = vunpack.c.l.b16 %v421
      %v760 = vunpack.c.l.b16 %v422
      %v761 = vunpack.c.l.b16 %v423
      %v762 = vunpack.c.l.b16 %v424
      %v763 = vunpack.c.l.b16 %v425
      %v764 = vunpack.c.l.b16 %v426
      %v765 = vunpack.c.l.b16 %v427
      %v766 = vunpack.c.l.b16 %v428
      %v767 = vunpack.c.l.b16 %v429
      %v768 = vunpack.c.l.b16 %v430
      %v769 = vunpack.c.l.b16 %v431
      %v770 = vunpack.c.l.b16 %v432
      %v771 = vunpack.c.l.b16 %v433
      %v772 = vunpack.c.l.b16 %v434
      %v773 = vpack.c.b16 %v742, %v741
      %v774 = vpack.c.b16 %v744, %v743
      %v775 = vpack.c.b16 %v746, %v745
      %v776 = vpack.c.b16 %v748, %v747
      %v777 = vpack.c.b16 %v750, %v749
      %v778 = vpack.c.b16 %v752, %v751
      %v779 = vpack.c.b16 %v754, %v753
      %v780 = vpack.c.b16 %v756, %v755
      %v781 = vpack.c.b16 %v758, %v757
      %v782 = vpack.c.b16 %v760, %v759
      %v783 = vpack.c.b16 %v762, %v761
      %v784 = vpack.c.b16 %v764, %v763
      %v785 = vpack.c.b16 %v766, %v765
      %v786 = vpack.c.b16 %v768, %v767
      %v787 = vpack.c.b16 %v770, %v769
      %v788 = vpack.c.b16 %v772, %v771
      %v797 = vunpack.c.l.b16 %v435
      %v798 = vunpack.c.l.b16 %v436
      %v799 = vunpack.c.l.b16 %v437
      %v800 = vunpack.c.l.b16 %v438
      %v801 = vunpack.c.l.b16 %v439
      %v802 = vunpack.c.l.b16 %v440
      %v803 = vunpack.c.l.b16 %v441
      %v804 = vunpack.c.l.b16 %v442
      %v805 = vpack.c.b16 %v798, %v797
      %v806 = vpack.c.b16 %v800, %v799
      %v807 = vpack.c.b16 %v802, %v801
      %v808 = vpack.c.b16 %v804, %v803
      %vm813 = vcmask 523264
      %v815 = vsel %vm813, %v773, 0
      %v818 = vsel %vm813, %v774, 0
      %v821 = vsel %vm813, %v775, 0
      %v824 = vsel %vm813, %v776, 0
      %v827 = vsel %vm813, %v777, 0
      %v830 = vsel %vm813, %v778, 0
      %v833 = vsel %vm813, %v779, 0
      %v836 = vsel %vm813, %v780, 0
      %v839 = vsel %vm813, %v781, 0
      %v842 = vsel %vm813, %v782, 0
      %v845 = vsel %vm813, %v783, 0
      %v848 = vsel %vm813, %v784, 0
      %v851 = vsel %vm813, %v785, 0
      %v854 = vsel %vm813, %v786, 0
      %v857 = vsel %vm813, %v787, 0
      %v860 = vsel %vm813, %v788, 0
      %862 = vmatpush.bf16.msra.mxu0 0
      %863 = vmatpush.bf16.msra.mxu0 0
      %864 = vmatpush.bf16.msra.mxu0 0
      %865 = vmatpush.bf16.msra.mxu0 0
      %866 = vmatpush.bf16.msra.mxu0 %v808
      %867 = vmatpush.bf16.msra.mxu0 %v807
      %868 = vmatpush.bf16.msra.mxu0 %v806
      %869 = vmatpush.bf16.msra.mxu0 %v805
      %870 = vmatmul.bf16.gmra.mxu0 %v815
      %v871 = vpop.f32.mrf.mxu0
      %v872 = vadd.f32 %v630, %v871
      %v873 = vpop.f32.mrf.mxu0
      %v874 = vadd.f32 %v632, %v873
      %875 = vmatmul.bf16.gmra.mxu0 %v818
      %v876 = vpop.f32.mrf.mxu0
      %v877 = vadd.f32 %v635, %v876
      %v878 = vpop.f32.mrf.mxu0
      %v879 = vadd.f32 %v637, %v878
      %880 = vmatmul.bf16.gmra.mxu0 %v821
      %v881 = vpop.f32.mrf.mxu0
      %v882 = vadd.f32 %v640, %v881
      %v883 = vpop.f32.mrf.mxu0
      %v884 = vadd.f32 %v642, %v883
      %885 = vmatmul.bf16.gmra.mxu0 %v824
      %v886 = vpop.f32.mrf.mxu0
      %v887 = vadd.f32 %v645, %v886
      %v888 = vpop.f32.mrf.mxu0
      %v889 = vadd.f32 %v647, %v888
      %890 = vmatmul.bf16.gmra.mxu0 %v827
      %v891 = vpop.f32.mrf.mxu0
      %v892 = vadd.f32 %v650, %v891
      %v893 = vpop.f32.mrf.mxu0
      %v894 = vadd.f32 %v652, %v893
      %895 = vmatmul.bf16.gmra.mxu0 %v830
      %v896 = vpop.f32.mrf.mxu0
      %v897 = vadd.f32 %v655, %v896
      %v898 = vpop.f32.mrf.mxu0
      %v899 = vadd.f32 %v657, %v898
      %900 = vmatmul.bf16.gmra.mxu0 %v833
      %v901 = vpop.f32.mrf.mxu0
      %v902 = vadd.f32 %v660, %v901
      %v903 = vpop.f32.mrf.mxu0
      %v904 = vadd.f32 %v662, %v903
      %905 = vmatmul.bf16.gmra.mxu0 %v836
      %v906 = vpop.f32.mrf.mxu0
      %v907 = vadd.f32 %v665, %v906
      %v908 = vpop.f32.mrf.mxu0
      %v909 = vadd.f32 %v667, %v908
      %910 = vmatmul.bf16.gmra.mxu0 %v839
      %v911 = vpop.f32.mrf.mxu0
      %v912 = vadd.f32 %v670, %v911
      %v913 = vpop.f32.mrf.mxu0
      %v914 = vadd.f32 %v672, %v913
      %915 = vmatmul.bf16.gmra.mxu0 %v842
      %v916 = vpop.f32.mrf.mxu0
      %v917 = vadd.f32 %v675, %v916
      %v918 = vpop.f32.mrf.mxu0
      %v919 = vadd.f32 %v677, %v918
      %920 = vmatmul.bf16.gmra.mxu0 %v845
      %v921 = vpop.f32.mrf.mxu0
      %v922 = vadd.f32 %v680, %v921
      %v923 = vpop.f32.mrf.mxu0
      %v924 = vadd.f32 %v682, %v923
      %925 = vmatmul.bf16.gmra.mxu0 %v848
      %v926 = vpop.f32.mrf.mxu0
      %v927 = vadd.f32 %v685, %v926
      %v928 = vpop.f32.mrf.mxu0
      %v929 = vadd.f32 %v687, %v928
      %930 = vmatmul.bf16.gmra.mxu0 %v851
      %v931 = vpop.f32.mrf.mxu0
      %v932 = vadd.f32 %v690, %v931
      %v933 = vpop.f32.mrf.mxu0
      %v934 = vadd.f32 %v692, %v933
      %935 = vmatmul.bf16.gmra.mxu0 %v854
      %v936 = vpop.f32.mrf.mxu0
      %v937 = vadd.f32 %v695, %v936
      %v938 = vpop.f32.mrf.mxu0
      %v939 = vadd.f32 %v697, %v938
      %940 = vmatmul.bf16.gmra.mxu0 %v857
      %v941 = vpop.f32.mrf.mxu0
      %v942 = vadd.f32 %v700, %v941
      %v943 = vpop.f32.mrf.mxu0
      %v944 = vadd.f32 %v702, %v943
      %945 = vmatmul.bf16.gmra.mxu0 %v860
      %v946 = vpop.f32.mrf.mxu0
      %v947 = vadd.f32 %v705, %v946
      %v948 = vpop.f32.mrf.mxu0
      %v949 = vadd.f32 %v707, %v948
      %950 = vdwg.mxu0
      %v951 = vld [vmem:[%s388] sm:$0xf]
      %v952 = vld [vmem:[%s388 + $0x4] sm:$0xf]
      %v953 = vld [vmem:[%s388 + $0x8] sm:$0xf]
      %v954 = vld [vmem:[%s388 + $0xc] sm:$0xf]
      %v955 = vld [vmem:[%s388 + $0x10] sm:$0xf]
      %v956 = vld [vmem:[%s388 + $0x14] sm:$0xf]
      %v957 = vld [vmem:[%s388 + $0x18] sm:$0xf]
      %v958 = vld [vmem:[%s388 + $0x1c] sm:$0xf]
      %v959 = vld [vmem:[%s388 + $0x20] sm:$0xf]
      %v960 = vld [vmem:[%s388 + $0x24] sm:$0xf]
      %v961 = vld [vmem:[%s388 + $0x28] sm:$0xf]
      %v962 = vld [vmem:[%s388 + $0x2c] sm:$0xf]
      %v963 = vld [vmem:[%s388 + $0x30] sm:$0xf]
      %v964 = vld [vmem:[%s388 + $0x34] sm:$0xf]
      %v965 = vld [vmem:[%s388 + $0x38] sm:$0xf]
      %v966 = vld [vmem:[%s388 + $0x3c] sm:$0xf]
      %v967 = vld [vmem:[%s388 + $0x40] sm:$0xf]
      %v968 = vld [vmem:[%s388 + $0x44] sm:$0xf]
      %v969 = vld [vmem:[%s388 + $0x48] sm:$0xf]
      %v970 = vld [vmem:[%s388 + $0x4c] sm:$0xf]
      %v971 = vld [vmem:[%s388 + $0x50] sm:$0xf]
      %v972 = vld [vmem:[%s388 + $0x54] sm:$0xf]
      %v973 = vld [vmem:[%s388 + $0x58] sm:$0xf]
      %v974 = vld [vmem:[%s388 + $0x5c] sm:$0xf]
      %v975 = vld [vmem:[%s388 + $0x60] sm:$0xf]
      %v976 = vld [vmem:[%s388 + $0x64] sm:$0xf]
      %v977 = vld [vmem:[%s388 + $0x68] sm:$0xf]
      %v978 = vld [vmem:[%s388 + $0x6c] sm:$0xf]
      %v979 = vld [vmem:[%s388 + $0x70] sm:$0xf]
      %v980 = vld [vmem:[%s388 + $0x74] sm:$0xf]
      %v981 = vld [vmem:[%s388 + $0x78] sm:$0xf]
      %v982 = vld [vmem:[%s388 + $0x7c] sm:$0xf]
      %v983 = vld [vmem:[%s6] sm:$0xf]
      %v984 = vld [vmem:[%s6 + $0x4] sm:$0xf]
      %v985 = vld [vmem:[%s6 + $0x8] sm:$0xf]
      %v986 = vld [vmem:[%s6 + $0xc] sm:$0xf]
      %v1019 = vunpack.c.l.b16 %v951
      %v1020 = vunpack.c.l.b16 %v952
      %v1021 = vunpack.c.l.b16 %v953
      %v1022 = vunpack.c.l.b16 %v954
      %v1023 = vunpack.c.l.b16 %v955
      %v1024 = vunpack.c.l.b16 %v956
      %v1025 = vunpack.c.l.b16 %v957
      %v1026 = vunpack.c.l.b16 %v958
      %v1027 = vunpack.c.l.b16 %v959
      %v1028 = vunpack.c.l.b16 %v960
      %v1029 = vunpack.c.l.b16 %v961
      %v1030 = vunpack.c.l.b16 %v962
      %v1031 = vunpack.c.l.b16 %v963
      %v1032 = vunpack.c.l.b16 %v964
      %v1033 = vunpack.c.l.b16 %v965
      %v1034 = vunpack.c.l.b16 %v966
      %v1035 = vunpack.c.l.b16 %v967
      %v1036 = vunpack.c.l.b16 %v968
      %v1037 = vunpack.c.l.b16 %v969
      %v1038 = vunpack.c.l.b16 %v970
      %v1039 = vunpack.c.l.b16 %v971
      %v1040 = vunpack.c.l.b16 %v972
      %v1041 = vunpack.c.l.b16 %v973
      %v1042 = vunpack.c.l.b16 %v974
      %v1043 = vunpack.c.l.b16 %v975
      %v1044 = vunpack.c.l.b16 %v976
      %v1045 = vunpack.c.l.b16 %v977
      %v1046 = vunpack.c.l.b16 %v978
      %v1047 = vunpack.c.l.b16 %v979
      %v1048 = vunpack.c.l.b16 %v980
      %v1049 = vunpack.c.l.b16 %v981
      %v1050 = vunpack.c.l.b16 %v982
      %v1051 = vpack.c.b16 %v1020, %v1019
      %v1052 = vpack.c.b16 %v1022, %v1021
      %v1053 = vpack.c.b16 %v1024, %v1023
      %v1054 = vpack.c.b16 %v1026, %v1025
      %v1055 = vpack.c.b16 %v1028, %v1027
      %v1056 = vpack.c.b16 %v1030, %v1029
      %v1057 = vpack.c.b16 %v1032, %v1031
      %v1058 = vpack.c.b16 %v1034, %v1033
      %v1059 = vpack.c.b16 %v1036, %v1035
      %v1060 = vpack.c.b16 %v1038, %v1037
      %v1061 = vpack.c.b16 %v1040, %v1039
      %v1062 = vpack.c.b16 %v1042, %v1041
      %v1063 = vpack.c.b16 %v1044, %v1043
      %v1064 = vpack.c.b16 %v1046, %v1045
      %v1065 = vpack.c.b16 %v1048, %v1047
      %v1066 = vpack.c.b16 %v1050, %v1049
      %v1071 = vunpack.c.l.b16 %v983
      %v1072 = vunpack.c.l.b16 %v984
      %v1073 = vunpack.c.l.b16 %v985
      %v1074 = vunpack.c.l.b16 %v986
      %v1075 = vpack.c.b16 %v1072, %v1071
      %v1076 = vpack.c.b16 %v1074, %v1073
      %v1080 = vsel %vm571, %v1051, 0
      %v1083 = vsel %vm571, %v1052, 0
      %v1086 = vsel %vm571, %v1053, 0
      %v1089 = vsel %vm571, %v1054, 0
      %v1092 = vsel %vm571, %v1055, 0
      %v1095 = vsel %vm571, %v1056, 0
      %v1098 = vsel %vm571, %v1057, 0
      %v1101 = vsel %vm571, %v1058, 0
      %v1104 = vsel %vm571, %v1059, 0
      %v1107 = vsel %vm571, %v1060, 0
      %v1110 = vsel %vm571, %v1061, 0
      %v1113 = vsel %vm571, %v1062, 0
      %v1116 = vsel %vm571, %v1063, 0
      %v1119 = vsel %vm571, %v1064, 0
      %v1122 = vsel %vm571, %v1065, 0
      %v1125 = vsel %vm571, %v1066, 0
      %1127 = vmatpush.bf16.msra.mxu0 0
      %1128 = vmatpush.bf16.msra.mxu0 0
      %1129 = vmatpush.bf16.msra.mxu0 0
      %1130 = vmatpush.bf16.msra.mxu0 0
      %1131 = vmatpush.bf16.msra.mxu0 0
      %1132 = vmatpush.bf16.msra.mxu0 0
      %1133 = vmatpush.bf16.msra.mxu0 %v1076
      %1134 = vmatpush.bf16.msra.mxu0 %v1075
      %1135 = vmatmul.bf16.gmra.mxu0 %v1080
      %v1136 = vpop.f32.mrf.mxu0
      %v1137 = vadd.f32 0.0, %v1136
      %v1138 = vpop.f32.mrf.mxu0
      %v1139 = vadd.f32 0.0, %v1138
      %1140 = vmatmul.bf16.gmra.mxu0 %v1083
      %v1141 = vpop.f32.mrf.mxu0
      %v1142 = vadd.f32 0.0, %v1141
      %v1143 = vpop.f32.mrf.mxu0
      %v1144 = vadd.f32 0.0, %v1143
      %1145 = vmatmul.bf16.gmra.mxu0 %v1086
      %v1146 = vpop.f32.mrf.mxu0
      %v1147 = vadd.f32 0.0, %v1146
      %v1148 = vpop.f32.mrf.mxu0
      %v1149 = vadd.f32 0.0, %v1148
      %1150 = vmatmul.bf16.gmra.mxu0 %v1089
      %v1151 = vpop.f32.mrf.mxu0
      %v1152 = vadd.f32 0.0, %v1151
      %v1153 = vpop.f32.mrf.mxu0
      %v1154 = vadd.f32 0.0, %v1153
      %1155 = vmatmul.bf16.gmra.mxu0 %v1092
      %v1156 = vpop.f32.mrf.mxu0
      %v1157 = vadd.f32 0.0, %v1156
      %v1158 = vpop.f32.mrf.mxu0
      %v1159 = vadd.f32 0.0, %v1158
      %1160 = vmatmul.bf16.gmra.mxu0 %v1095
      %v1161 = vpop.f32.mrf.mxu0
      %v1162 = vadd.f32 0.0, %v1161
      %v1163 = vpop.f32.mrf.mxu0
      %v1164 = vadd.f32 0.0, %v1163
      %1165 = vmatmul.bf16.gmra.mxu0 %v1098
      %v1166 = vpop.f32.mrf.mxu0
      %v1167 = vadd.f32 0.0, %v1166
      %v1168 = vpop.f32.mrf.mxu0
      %v1169 = vadd.f32 0.0, %v1168
      %1170 = vmatmul.bf16.gmra.mxu0 %v1101
      %v1171 = vpop.f32.mrf.mxu0
      %v1172 = vadd.f32 0.0, %v1171
      %v1173 = vpop.f32.mrf.mxu0
      %v1174 = vadd.f32 0.0, %v1173
      %1175 = vmatmul.bf16.gmra.mxu0 %v1104
      %v1176 = vpop.f32.mrf.mxu0
      %v1177 = vadd.f32 0.0, %v1176
      %v1178 = vpop.f32.mrf.mxu0
      %v1179 = vadd.f32 0.0, %v1178
      %1180 = vmatmul.bf16.gmra.mxu0 %v1107
      %v1181 = vpop.f32.mrf.mxu0
      %v1182 = vadd.f32 0.0, %v1181
      %v1183 = vpop.f32.mrf.mxu0
      %v1184 = vadd.f32 0.0, %v1183
      %1185 = vmatmul.bf16.gmra.mxu0 %v1110
      %v1186 = vpop.f32.mrf.mxu0
      %v1187 = vadd.f32 0.0, %v1186
      %v1188 = vpop.f32.mrf.mxu0
      %v1189 = vadd.f32 0.0, %v1188
      %1190 = vmatmul.bf16.gmra.mxu0 %v1113
      %v1191 = vpop.f32.mrf.mxu0
      %v1192 = vadd.f32 0.0, %v1191
      %v1193 = vpop.f32.mrf.mxu0
      %v1194 = vadd.f32 0.0, %v1193
      %1195 = vmatmul.bf16.gmra.mxu0 %v1116
      %v1196 = vpop.f32.mrf.mxu0
      %v1197 = vadd.f32 0.0, %v1196
      %v1198 = vpop.f32.mrf.mxu0
      %v1199 = vadd.f32 0.0, %v1198
      %1200 = vmatmul.bf16.gmra.mxu0 %v1119
      %v1201 = vpop.f32.mrf.mxu0
      %v1202 = vadd.f32 0.0, %v1201
      %v1203 = vpop.f32.mrf.mxu0
      %v1204 = vadd.f32 0.0, %v1203
      %1205 = vmatmul.bf16.gmra.mxu0 %v1122
      %v1206 = vpop.f32.mrf.mxu0
      %v1207 = vadd.f32 0.0, %v1206
      %v1208 = vpop.f32.mrf.mxu0
      %v1209 = vadd.f32 0.0, %v1208
      %1210 = vmatmul.bf16.gmra.mxu0 %v1125
      %v1211 = vpop.f32.mrf.mxu0
      %v1212 = vadd.f32 0.0, %v1211
      %v1213 = vpop.f32.mrf.mxu0
      %v1214 = vadd.f32 0.0, %v1213
      %1215 = vdwg.mxu0
      %v1216 = vadd.f32 %v872, %v1137
      %v1217 = vadd.f32 %v874, %v1139
      %v1218 = vadd.f32 %v877, %v1142
      %v1219 = vadd.f32 %v879, %v1144
      %v1220 = vadd.f32 %v882, %v1147
      %v1221 = vadd.f32 %v884, %v1149
      %v1222 = vadd.f32 %v887, %v1152
      %v1223 = vadd.f32 %v889, %v1154
      %v1224 = vadd.f32 %v892, %v1157
      %v1225 = vadd.f32 %v894, %v1159
      %v1226 = vadd.f32 %v897, %v1162
      %v1227 = vadd.f32 %v899, %v1164
      %v1228 = vadd.f32 %v902, %v1167
      %v1229 = vadd.f32 %v904, %v1169
      %v1230 = vadd.f32 %v907, %v1172
      %v1231 = vadd.f32 %v909, %v1174
      %v1232 = vadd.f32 %v912, %v1177
      %v1233 = vadd.f32 %v914, %v1179
      %v1234 = vadd.f32 %v917, %v1182
      %v1235 = vadd.f32 %v919, %v1184
      %v1236 = vadd.f32 %v922, %v1187
      %v1237 = vadd.f32 %v924, %v1189
      %v1238 = vadd.f32 %v927, %v1192
      %v1239 = vadd.f32 %v929, %v1194
      %v1240 = vadd.f32 %v932, %v1197
      %v1241 = vadd.f32 %v934, %v1199
      %v1242 = vadd.f32 %v937, %v1202
      %v1243 = vadd.f32 %v939, %v1204
      %v1244 = vadd.f32 %v942, %v1207
      %v1245 = vadd.f32 %v944, %v1209
      %v1246 = vadd.f32 %v947, %v1212
      %v1247 = vadd.f32 %v949, %v1214
      %v1248 = vld [vmem:[%s394] sm:$0xf]
      %v1249 = vld [vmem:[%s394 + $0x4] sm:$0xf]
      %v1250 = vld [vmem:[%s394 + $0x8] sm:$0xf]
      %v1251 = vld [vmem:[%s394 + $0xc] sm:$0xf]
      %v1252 = vld [vmem:[%s394 + $0x10] sm:$0xf]
      %v1253 = vld [vmem:[%s394 + $0x14] sm:$0xf]
      %v1254 = vld [vmem:[%s394 + $0x18] sm:$0xf]
      %v1255 = vld [vmem:[%s394 + $0x1c] sm:$0xf]
      %v1256 = vld [vmem:[%s394 + $0x20] sm:$0xf]
      %v1257 = vld [vmem:[%s394 + $0x24] sm:$0xf]
      %v1258 = vld [vmem:[%s394 + $0x28] sm:$0xf]
      %v1259 = vld [vmem:[%s394 + $0x2c] sm:$0xf]
      %v1260 = vld [vmem:[%s394 + $0x30] sm:$0xf]
      %v1261 = vld [vmem:[%s394 + $0x34] sm:$0xf]
      %v1262 = vld [vmem:[%s394 + $0x38] sm:$0xf]
      %v1263 = vld [vmem:[%s394 + $0x3c] sm:$0xf]
      %v1264 = vld [vmem:[%s394 + $0x40] sm:$0xf]
      %v1265 = vld [vmem:[%s394 + $0x44] sm:$0xf]
      %v1266 = vld [vmem:[%s394 + $0x48] sm:$0xf]
      %v1267 = vld [vmem:[%s394 + $0x4c] sm:$0xf]
      %v1268 = vld [vmem:[%s394 + $0x50] sm:$0xf]
      %v1269 = vld [vmem:[%s394 + $0x54] sm:$0xf]
      %v1270 = vld [vmem:[%s394 + $0x58] sm:$0xf]
      %v1271 = vld [vmem:[%s394 + $0x5c] sm:$0xf]
      %v1272 = vld [vmem:[%s394 + $0x60] sm:$0xf]
      %v1273 = vld [vmem:[%s394 + $0x64] sm:$0xf]
      %v1274 = vld [vmem:[%s394 + $0x68] sm:$0xf]
      %v1275 = vld [vmem:[%s394 + $0x6c] sm:$0xf]
      %v1276 = vld [vmem:[%s394 + $0x70] sm:$0xf]
      %v1277 = vld [vmem:[%s394 + $0x74] sm:$0xf]
      %v1278 = vld [vmem:[%s394 + $0x78] sm:$0xf]
      %v1279 = vld [vmem:[%s394 + $0x7c] sm:$0xf]
      %v1280 = vld [vmem:[%s7] sm:$0xf]
      %v1281 = vld [vmem:[%s7 + $0x4] sm:$0xf]
      %v1282 = vld [vmem:[%s7 + $0x8] sm:$0xf]
      %v1283 = vld [vmem:[%s7 + $0xc] sm:$0xf]
      %v1316 = vunpack.c.l.b16 %v1248
      %v1317 = vunpack.c.l.b16 %v1249
      %v1318 = vunpack.c.l.b16 %v1250
      %v1319 = vunpack.c.l.b16 %v1251
      %v1320 = vunpack.c.l.b16 %v1252
      %v1321 = vunpack.c.l.b16 %v1253
      %v1322 = vunpack.c.l.b16 %v1254
      %v1323 = vunpack.c.l.b16 %v1255
      %v1324 = vunpack.c.l.b16 %v1256
      %v1325 = vunpack.c.l.b16 %v1257
      %v1326 = vunpack.c.l.b16 %v1258
      %v1327 = vunpack.c.l.b16 %v1259
      %v1328 = vunpack.c.l.b16 %v1260
      %v1329 = vunpack.c.l.b16 %v1261
      %v1330 = vunpack.c.l.b16 %v1262
      %v1331 = vunpack.c.l.b16 %v1263
      %v1332 = vunpack.c.l.b16 %v1264
      %v1333 = vunpack.c.l.b16 %v1265
      %v1334 = vunpack.c.l.b16 %v1266
      %v1335 = vunpack.c.l.b16 %v1267
      %v1336 = vunpack.c.l.b16 %v1268
      %v1337 = vunpack.c.l.b16 %v1269
      %v1338 = vunpack.c.l.b16 %v1270
      %v1339 = vunpack.c.l.b16 %v1271
      %v1340 = vunpack.c.l.b16 %v1272
      %v1341 = vunpack.c.l.b16 %v1273
      %v1342 = vunpack.c.l.b16 %v1274
      %v1343 = vunpack.c.l.b16 %v1275
      %v1344 = vunpack.c.l.b16 %v1276
      %v1345 = vunpack.c.l.b16 %v1277
      %v1346 = vunpack.c.l.b16 %v1278
      %v1347 = vunpack.c.l.b16 %v1279
      %v1348 = vpack.c.b16 %v1317, %v1316
      %v1349 = vpack.c.b16 %v1319, %v1318
      %v1350 = vpack.c.b16 %v1321, %v1320
      %v1351 = vpack.c.b16 %v1323, %v1322
      %v1352 = vpack.c.b16 %v1325, %v1324
      %v1353 = vpack.c.b16 %v1327, %v1326
      %v1354 = vpack.c.b16 %v1329, %v1328
      %v1355 = vpack.c.b16 %v1331, %v1330
      %v1356 = vpack.c.b16 %v1333, %v1332
      %v1357 = vpack.c.b16 %v1335, %v1334
      %v1358 = vpack.c.b16 %v1337, %v1336
      %v1359 = vpack.c.b16 %v1339, %v1338
      %v1360 = vpack.c.b16 %v1341, %v1340
      %v1361 = vpack.c.b16 %v1343, %v1342
      %v1362 = vpack.c.b16 %v1345, %v1344
      %v1363 = vpack.c.b16 %v1347, %v1346
      %v1368 = vunpack.c.l.b16 %v1280
      %v1369 = vunpack.c.l.b16 %v1281
      %v1370 = vunpack.c.l.b16 %v1282
      %v1371 = vunpack.c.l.b16 %v1283
      %v1372 = vpack.c.b16 %v1369, %v1368
      %v1373 = vpack.c.b16 %v1371, %v1370
      %v1377 = vsel %vm571, %v1348, 0
      %v1380 = vsel %vm571, %v1349, 0
      %v1383 = vsel %vm571, %v1350, 0
      %v1386 = vsel %vm571, %v1351, 0
      %v1389 = vsel %vm571, %v1352, 0
      %v1392 = vsel %vm571, %v1353, 0
      %v1395 = vsel %vm571, %v1354, 0
      %v1398 = vsel %vm571, %v1355, 0
      %v1401 = vsel %vm571, %v1356, 0
      %v1404 = vsel %vm571, %v1357, 0
      %v1407 = vsel %vm571, %v1358, 0
      %v1410 = vsel %vm571, %v1359, 0
      %v1413 = vsel %vm571, %v1360, 0
      %v1416 = vsel %vm571, %v1361, 0
      %v1419 = vsel %vm571, %v1362, 0
      %v1422 = vsel %vm571, %v1363, 0
      %1424 = vmatpush.bf16.msra.mxu0 0
      %1425 = vmatpush.bf16.msra.mxu0 0
      %1426 = vmatpush.bf16.msra.mxu0 0
      %1427 = vmatpush.bf16.msra.mxu0 0
      %1428 = vmatpush.bf16.msra.mxu0 0
      %1429 = vmatpush.bf16.msra.mxu0 0
      %1430 = vmatpush.bf16.msra.mxu0 %v1373
      %1431 = vmatpush.bf16.msra.mxu0 %v1372
      %1432 = vmatmul.bf16.gmra.mxu0 %v1377
      %v1433 = vpop.f32.mrf.mxu0
      %v1434 = vadd.f32 0.0, %v1433
      %v1435 = vpop.f32.mrf.mxu0
      %v1436 = vadd.f32 0.0, %v1435
      %1437 = vmatmul.bf16.gmra.mxu0 %v1380
      %v1438 = vpop.f32.mrf.mxu0
      %v1439 = vadd.f32 0.0, %v1438
      %v1440 = vpop.f32.mrf.mxu0
      %v1441 = vadd.f32 0.0, %v1440
      %1442 = vmatmul.bf16.gmra.mxu0 %v1383
      %v1443 = vpop.f32.mrf.mxu0
      %v1444 = vadd.f32 0.0, %v1443
      %v1445 = vpop.f32.mrf.mxu0
      %v1446 = vadd.f32 0.0, %v1445
      %1447 = vmatmul.bf16.gmra.mxu0 %v1386
      %v1448 = vpop.f32.mrf.mxu0
      %v1449 = vadd.f32 0.0, %v1448
      %v1450 = vpop.f32.mrf.mxu0
      %v1451 = vadd.f32 0.0, %v1450
      %1452 = vmatmul.bf16.gmra.mxu0 %v1389
      %v1453 = vpop.f32.mrf.mxu0
      %v1454 = vadd.f32 0.0, %v1453
      %v1455 = vpop.f32.mrf.mxu0
      %v1456 = vadd.f32 0.0, %v1455
      %1457 = vmatmul.bf16.gmra.mxu0 %v1392
      %v1458 = vpop.f32.mrf.mxu0
      %v1459 = vadd.f32 0.0, %v1458
      %v1460 = vpop.f32.mrf.mxu0
      %v1461 = vadd.f32 0.0, %v1460
      %1462 = vmatmul.bf16.gmra.mxu0 %v1395
      %v1463 = vpop.f32.mrf.mxu0
      %v1464 = vadd.f32 0.0, %v1463
      %v1465 = vpop.f32.mrf.mxu0
      %v1466 = vadd.f32 0.0, %v1465
      %1467 = vmatmul.bf16.gmra.mxu0 %v1398
      %v1468 = vpop.f32.mrf.mxu0
      %v1469 = vadd.f32 0.0, %v1468
      %v1470 = vpop.f32.mrf.mxu0
      %v1471 = vadd.f32 0.0, %v1470
      %1472 = vmatmul.bf16.gmra.mxu0 %v1401
      %v1473 = vpop.f32.mrf.mxu0
      %v1474 = vadd.f32 0.0, %v1473
      %v1475 = vpop.f32.mrf.mxu0
      %v1476 = vadd.f32 0.0, %v1475
      %1477 = vmatmul.bf16.gmra.mxu0 %v1404
      %v1478 = vpop.f32.mrf.mxu0
      %v1479 = vadd.f32 0.0, %v1478
      %v1480 = vpop.f32.mrf.mxu0
      %v1481 = vadd.f32 0.0, %v1480
      %1482 = vmatmul.bf16.gmra.mxu0 %v1407
      %v1483 = vpop.f32.mrf.mxu0
      %v1484 = vadd.f32 0.0, %v1483
      %v1485 = vpop.f32.mrf.mxu0
      %v1486 = vadd.f32 0.0, %v1485
      %1487 = vmatmul.bf16.gmra.mxu0 %v1410
      %v1488 = vpop.f32.mrf.mxu0
      %v1489 = vadd.f32 0.0, %v1488
      %v1490 = vpop.f32.mrf.mxu0
      %v1491 = vadd.f32 0.0, %v1490
      %1492 = vmatmul.bf16.gmra.mxu0 %v1413
      %v1493 = vpop.f32.mrf.mxu0
      %v1494 = vadd.f32 0.0, %v1493
      %v1495 = vpop.f32.mrf.mxu0
      %v1496 = vadd.f32 0.0, %v1495
      %1497 = vmatmul.bf16.gmra.mxu0 %v1416
      %v1498 = vpop.f32.mrf.mxu0
      %v1499 = vadd.f32 0.0, %v1498
      %v1500 = vpop.f32.mrf.mxu0
      %v1501 = vadd.f32 0.0, %v1500
      %1502 = vmatmul.bf16.gmra.mxu0 %v1419
      %v1503 = vpop.f32.mrf.mxu0
      %v1504 = vadd.f32 0.0, %v1503
      %v1505 = vpop.f32.mrf.mxu0
      %v1506 = vadd.f32 0.0, %v1505
      %1507 = vmatmul.bf16.gmra.mxu0 %v1422
      %v1508 = vpop.f32.mrf.mxu0
      %v1509 = vadd.f32 0.0, %v1508
      %v1510 = vpop.f32.mrf.mxu0
      %v1511 = vadd.f32 0.0, %v1510
      %1512 = vdwg.mxu0
      %v1513 = vadd.f32 %v1216, %v1434
      %v1514 = vadd.f32 %v1217, %v1436
      %v1515 = vadd.f32 %v1218, %v1439
      %v1516 = vadd.f32 %v1219, %v1441
      %v1517 = vadd.f32 %v1220, %v1444
      %v1518 = vadd.f32 %v1221, %v1446
      %v1519 = vadd.f32 %v1222, %v1449
      %v1520 = vadd.f32 %v1223, %v1451
      %v1521 = vadd.f32 %v1224, %v1454
      %v1522 = vadd.f32 %v1225, %v1456
      %v1523 = vadd.f32 %v1226, %v1459
      %v1524 = vadd.f32 %v1227, %v1461
      %v1525 = vadd.f32 %v1228, %v1464
      %v1526 = vadd.f32 %v1229, %v1466
      %v1527 = vadd.f32 %v1230, %v1469
      %v1528 = vadd.f32 %v1231, %v1471
      %v1529 = vadd.f32 %v1232, %v1474
      %v1530 = vadd.f32 %v1233, %v1476
      %v1531 = vadd.f32 %v1234, %v1479
      %v1532 = vadd.f32 %v1235, %v1481
      %v1533 = vadd.f32 %v1236, %v1484
      %v1534 = vadd.f32 %v1237, %v1486
      %v1535 = vadd.f32 %v1238, %v1489
      %v1536 = vadd.f32 %v1239, %v1491
      %v1537 = vadd.f32 %v1240, %v1494
      %v1538 = vadd.f32 %v1241, %v1496
      %v1539 = vadd.f32 %v1242, %v1499
      %v1540 = vadd.f32 %v1243, %v1501
      %v1541 = vadd.f32 %v1244, %v1504
      %v1542 = vadd.f32 %v1245, %v1506
      %v1543 = vadd.f32 %v1246, %v1509
      %v1544 = vadd.f32 %v1247, %v1511
      %v1545 = vld [vmem:[%s8] sm:$0x1]
      %v1547 = vperm.slane %v1545, 0
      %v1549 = vadd.f32 %v1513, %v1547
      %v1550 = vadd.f32 %v1514, %v1547
      %v1551 = vadd.f32 %v1515, %v1547
      %v1552 = vadd.f32 %v1516, %v1547
      %v1553 = vadd.f32 %v1517, %v1547
      %v1554 = vadd.f32 %v1518, %v1547
      %v1555 = vadd.f32 %v1519, %v1547
      %v1556 = vadd.f32 %v1520, %v1547
      %v1557 = vadd.f32 %v1521, %v1547
      %v1558 = vadd.f32 %v1522, %v1547
      %v1559 = vadd.f32 %v1523, %v1547
      %v1560 = vadd.f32 %v1524, %v1547
      %v1561 = vadd.f32 %v1525, %v1547
      %v1562 = vadd.f32 %v1526, %v1547
      %v1563 = vadd.f32 %v1527, %v1547
      %v1564 = vadd.f32 %v1528, %v1547
      %v1565 = vadd.f32 %v1529, %v1547
      %v1566 = vadd.f32 %v1530, %v1547
      %v1567 = vadd.f32 %v1531, %v1547
      %v1568 = vadd.f32 %v1532, %v1547
      %v1569 = vadd.f32 %v1533, %v1547
      %v1570 = vadd.f32 %v1534, %v1547
      %v1571 = vadd.f32 %v1535, %v1547
      %v1572 = vadd.f32 %v1536, %v1547
      %v1573 = vadd.f32 %v1537, %v1547
      %v1574 = vadd.f32 %v1538, %v1547
      %v1575 = vadd.f32 %v1539, %v1547
      %v1576 = vadd.f32 %v1540, %v1547
      %v1577 = vadd.f32 %v1541, %v1547
      %v1578 = vadd.f32 %v1542, %v1547
      %v1579 = vadd.f32 %v1543, %v1547
      %v1580 = vadd.f32 %v1544, %v1547
      %v1581 = vpack.c.bf16 %v1549, %v1549
      %v1582 = vpack.c.bf16 %v1550, %v1550
      %v1583 = vpack.c.bf16 %v1551, %v1551
      %v1584 = vpack.c.bf16 %v1552, %v1552
      %v1585 = vpack.c.bf16 %v1553, %v1553
      %v1586 = vpack.c.bf16 %v1554, %v1554
      %v1587 = vpack.c.bf16 %v1555, %v1555
      %v1588 = vpack.c.bf16 %v1556, %v1556
      %v1589 = vpack.c.bf16 %v1557, %v1557
      %v1590 = vpack.c.bf16 %v1558, %v1558
      %v1591 = vpack.c.bf16 %v1559, %v1559
      %v1592 = vpack.c.bf16 %v1560, %v1560
      %v1593 = vpack.c.bf16 %v1561, %v1561
      %v1594 = vpack.c.bf16 %v1562, %v1562
      %v1595 = vpack.c.bf16 %v1563, %v1563
      %v1596 = vpack.c.bf16 %v1564, %v1564
      %v1597 = vpack.c.bf16 %v1565, %v1565
      %v1598 = vpack.c.bf16 %v1566, %v1566
      %v1599 = vpack.c.bf16 %v1567, %v1567
      %v1600 = vpack.c.bf16 %v1568, %v1568
      %v1601 = vpack.c.bf16 %v1569, %v1569
      %v1602 = vpack.c.bf16 %v1570, %v1570
      %v1603 = vpack.c.bf16 %v1571, %v1571
      %v1604 = vpack.c.bf16 %v1572, %v1572
      %v1605 = vpack.c.bf16 %v1573, %v1573
      %v1606 = vpack.c.bf16 %v1574, %v1574
      %v1607 = vpack.c.bf16 %v1575, %v1575
      %v1608 = vpack.c.bf16 %v1576, %v1576
      %v1609 = vpack.c.bf16 %v1577, %v1577
      %v1610 = vpack.c.bf16 %v1578, %v1578
      %v1611 = vpack.c.bf16 %v1579, %v1579
      %v1612 = vpack.c.bf16 %v1580, %v1580
      %vm1613 = vcmask 519168
      %1614 = vst.msk [vmem:[%s400] sm:$0xf] %vm1613, %v1581
      %1615 = vst.msk [vmem:[%s400 + $0x4] sm:$0xf] %vm1613, %v1582
      %1616 = vst.msk [vmem:[%s400 + $0x8] sm:$0xf] %vm1613, %v1583
      %1617 = vst.msk [vmem:[%s400 + $0xc] sm:$0xf] %vm1613, %v1584
      %1618 = vst.msk [vmem:[%s400 + $0x10] sm:$0xf] %vm1613, %v1585
      %1619 = vst.msk [vmem:[%s400 + $0x14] sm:$0xf] %vm1613, %v1586
      %1620 = vst.msk [vmem:[%s400 + $0x18] sm:$0xf] %vm1613, %v1587
      %1621 = vst.msk [vmem:[%s400 + $0x1c] sm:$0xf] %vm1613, %v1588
      %1622 = vst.msk [vmem:[%s400 + $0x20] sm:$0xf] %vm1613, %v1589
      %1623 = vst.msk [vmem:[%s400 + $0x24] sm:$0xf] %vm1613, %v1590
      %1624 = vst.msk [vmem:[%s400 + $0x28] sm:$0xf] %vm1613, %v1591
      %1625 = vst.msk [vmem:[%s400 + $0x2c] sm:$0xf] %vm1613, %v1592
      %1626 = vst.msk [vmem:[%s400 + $0x30] sm:$0xf] %vm1613, %v1593
      %1627 = vst.msk [vmem:[%s400 + $0x34] sm:$0xf] %vm1613, %v1594
      %1628 = vst.msk [vmem:[%s400 + $0x38] sm:$0xf] %vm1613, %v1595
      %1629 = vst.msk [vmem:[%s400 + $0x3c] sm:$0xf] %vm1613, %v1596
      %1630 = vst.msk [vmem:[%s400 + $0x40] sm:$0xf] %vm1613, %v1597
      %1631 = vst.msk [vmem:[%s400 + $0x44] sm:$0xf] %vm1613, %v1598
      %1632 = vst.msk [vmem:[%s400 + $0x48] sm:$0xf] %vm1613, %v1599
      %1633 = vst.msk [vmem:[%s400 + $0x4c] sm:$0xf] %vm1613, %v1600
      %1634 = vst.msk [vmem:[%s400 + $0x50] sm:$0xf] %vm1613, %v1601
      %1635 = vst.msk [vmem:[%s400 + $0x54] sm:$0xf] %vm1613, %v1602
      %1636 = vst.msk [vmem:[%s400 + $0x58] sm:$0xf] %vm1613, %v1603
      %1637 = vst.msk [vmem:[%s400 + $0x5c] sm:$0xf] %vm1613, %v1604
      %1638 = vst.msk [vmem:[%s400 + $0x60] sm:$0xf] %vm1613, %v1605
      %1639 = vst.msk [vmem:[%s400 + $0x64] sm:$0xf] %vm1613, %v1606
      %1640 = vst.msk [vmem:[%s400 + $0x68] sm:$0xf] %vm1613, %v1607
      %1641 = vst.msk [vmem:[%s400 + $0x6c] sm:$0xf] %vm1613, %v1608
      %1642 = vst.msk [vmem:[%s400 + $0x70] sm:$0xf] %vm1613, %v1609
      %1643 = vst.msk [vmem:[%s400 + $0x74] sm:$0xf] %vm1613, %v1610
      %1644 = vst.msk [vmem:[%s400 + $0x78] sm:$0xf] %vm1613, %v1611
      %1645 = vst.msk [vmem:[%s400 + $0x7c] sm:$0xf] %vm1613, %v1612
      %s1646 = smul.u32 32, %s20
      %p1647 = scmp.lt.s32.totalorder %s1646, 63
      %s1648 = scalar_select %p1647, %s1646, 63
      %s1649 = smul.addr %s1648, 4
      %s1650 = scalar_lea.vmem %s9, %s1649
      // Predicated region
      $region57: #{depsep_forward.15} parent=55 // pred_check
        %p1651 = pneg %p247
      $region58: #{depsep_forward.15} parent=55 // pred_check_branch
        %1653 = sbr.rel (%p1651) target = $region60
      $region59: #{depsep_forward.15} parent=55 // pred_region
        %s1654 = smul.u32 32, %s20
      $region60: #{depsep_forward.15} parent=55 // pred_fallthru
        _
    $region56: #{depsep_forward.15} parent=5 // pred_fallthru
      _
    %p1655 = scmp.le.s32.totalorder 2, %s15
    // Predicated region
    $region61: #{depsep_forward.15} parent=5 // pred_check
      %p1656 = pneg %p1655
    $region62: #{depsep_forward.15} parent=5 // pred_check_branch
      %1658 = sbr.rel (%p1656) target = $region64
    $region63: #{depsep_forward.15} parent=5 // pred_region
      %s1659 = ssub.s32 %s15, 2
      // Predicated region
      $region65: #{depsep_forward.15} parent=63 // pred_check
        %p1660 = pneg %p253
      $region66: #{depsep_forward.15} parent=63 // pred_check_branch
        %1662 = sbr.rel (%p1660) target = $region68
      $region67: #{depsep_forward.15} parent=63 // pred_region
        %s1663 = smul.u32 32, %s21
        %p1664 = scmp.lt.s32.totalorder %s1663, 63
        %s1665 = scalar_select %p1664, %s1663, 63
        %s1666 = smul.addr %s1665, 4
        %s1667 = scalar_lea.vmem %s9, %s1666
      $region68: #{depsep_forward.15} parent=63 // pred_fallthru
        _
    $region64: #{depsep_forward.15} parent=5 // pred_fallthru
      _
  $region6: #{depsep_forward.15} parent=0 // loop_footer
    %s19 = sadd.s32 1, %s15
  $region7: #{depsep_forward.15} parent=0 // loop_footer_branch
    %14 = sbr.rel target = $region3
  $region8: #{depsep_forward.15} parent=0 // loop_exit
    _

// kernel: depsep_forward.16
$region0: #{depsep_forward.16}
  #allocation0 [shape = 'u32[]', space=smem, size = 0x4, offset = 0x4, fixed_abs, tag = 'smem constant byte address 0x4 - core index']
  #allocation1 [shape = 'u32[72,128]{1,0:T(1,128)}', space=vmem, size = 0x9000, scoped, tag = 'internal scratch']
  %s0 = inlined_call_operand.vmem [shape: bf16[2,9,8,8,64], index: 0, kind: input, shape index: {}]
  %s1 = inlined_call_operand.vmem [shape: f32[9,64], index: 1, kind: input, shape index: {}]
  %s2 = inlined_call_operand.vmem [shape: f32[1,1,64], index: 2, kind: input, shape index: {}]
  %s3 = inlined_call_operand.vmem [shape: bf16[2,8,8,64], index: 3, kind: output, shape index: {}]
  %s4 = sld [smem:[#allocation0]]
  $region45: #{depsep_forward.16} parent=0
    _
  %s6 = ssub.s32 1, %s4
  %s7 = scalar_select 0, %s6, %s4
  loop: start=0, step=1, limit=4
  $region2: #{depsep_forward.16} parent=0 // loop_pre_header
    _
  $region3: #{depsep_forward.16} parent=0 // loop_header
    %s9 = sphi 0, %s13
    %p10 = scmp.ge.s32.totalorder %s9, 4
    %s16 = sphi 0, %s28
    %s17 = sphi 0, %s24
    %s18 = sphi 0, %s16
    %s19 = sphi 0, %s17
    %s20 = sphi 0, %s18
    %s21 = sphi 0, %s19
    %s33 = sphi 0, %s35
    %s36 = sphi 0, %s33
    %s37 = sphi 0, %s36
    %s53 = sphi 0, %s37
    %s57 = sphi 0, %s57
    %s59 = sphi 0, %s57
    %s60 = sphi 0, %s59
    %s74 = sphi 0, %s60
    %s78 = sphi 0, %s78
    %s80 = sphi 0, %s78
    %s81 = sphi 0, %s80
    %s95 = sphi 0, %s81
    %s103 = sphi 0, %s105
    %s106 = sphi 0, %s103
    %s107 = sphi 0, %s106
    %s123 = sphi 0, %s107
  $region4: #{depsep_forward.16} parent=0 // loop_header_branch
    %12 = sbr.rel (%p10) target = $region8
  $region5: #{depsep_forward.16} parent=0 // loop_body
    %s14 = ssub.s32 %s9, 1
    %s15 = ssub.s32 %s9, 2
    %s22 = sadd.s32 1, %s17
    %p23 = scmp.ge.s32.totalorder %s22, 1
    %s24 = scalar_select %p23, 0, %s22
    %s25 = sadd.s32 1, %s16
    %s26 = scalar_select %p23, %s25, %s16
    %p27 = scmp.ge.s32.totalorder %s26, 2
    %s28 = scalar_select %p27, 0, %s26
    %s29 = ssub.s32 %s16, %s28
    %s30 = ssub.s32 %s17, %s24
    %s31 = sor.u32 %s29, %s30
    %p32 = scmp.eq.s32.totalorder %s31, 0
    %s34 = sadd.s32 %s33, 1
    %s35 = scalar_select %p32, %s33, %s34
    %p38 = pneg %p32
    %p39 = scmp.eq.s32.totalorder %s9, 1
    %p40 = por %p38, %p39
    %p41 = scmp.ne.s32.totalorder %s33, %s36
    %p42 = scmp.eq.s32.totalorder %s9, 0
    %p43 = por %p41, %p42
    %p44 = scmp.ne.s32.totalorder %s33, %s36
    %p45 = scmp.eq.s32.totalorder %s14, 1
    %p46 = por %p44, %p45
    %p47 = scmp.ne.s32.totalorder %s36, %s37
    %p48 = scmp.eq.s32.totalorder %s14, 0
    %p49 = por %p47, %p48
    %p50 = scmp.ne.s32.totalorder %s36, %s37
    %p51 = scmp.eq.s32.totalorder %s15, 1
    %p52 = por %p50, %p51
    %p54 = scmp.ne.s32.totalorder %s37, %s53
    %p55 = scmp.eq.s32.totalorder %s15, 0
    %p56 = por %p54, %p55
    %s58 = sadd.s32 %s57, 1
    %p61 = scmp.eq.s32.totalorder %s9, 1
    %p62 = scmp.ne.s32.totalorder %s57, %s59
    %p63 = scmp.eq.s32.totalorder %s9, 0
    %p64 = por %p62, %p63
    %p65 = scmp.ne.s32.totalorder %s57, %s59
    %p66 = scmp.eq.s32.totalorder %s14, 1
    %p67 = por %p65, %p66
    %p68 = scmp.ne.s32.totalorder %s59, %s60
    %p69 = scmp.eq.s32.totalorder %s14, 0
    %p70 = por %p68, %p69
    %p71 = scmp.ne.s32.totalorder %s59, %s60
    %p72 = scmp.eq.s32.totalorder %s15, 1
    %p73 = por %p71, %p72
    %p75 = scmp.ne.s32.totalorder %s60, %s74
    %p76 = scmp.eq.s32.totalorder %s15, 0
    %p77 = por %p75, %p76
    %s79 = sadd.s32 %s78, 1
    %p82 = scmp.eq.s32.totalorder %s9, 1
    %p83 = scmp.ne.s32.totalorder %s78, %s80
    %p84 = scmp.eq.s32.totalorder %s9, 0
    %p85 = por %p83, %p84
    %p86 = scmp.ne.s32.totalorder %s78, %s80
    %p87 = scmp.eq.s32.totalorder %s14, 1
    %p88 = por %p86, %p87
    %p89 = scmp.ne.s32.totalorder %s80, %s81
    %p90 = scmp.eq.s32.totalorder %s14, 0
    %p91 = por %p89, %p90
    %p92 = scmp.ne.s32.totalorder %s80, %s81
    %p93 = scmp.eq.s32.totalorder %s15, 1
    %p94 = por %p92, %p93
    %p96 = scmp.ne.s32.totalorder %s81, %s95
    %p97 = scmp.eq.s32.totalorder %s15, 0
    %p98 = por %p96, %p97
    %s99 = ssub.s32 %s16, %s28
    %s100 = ssub.s32 %s17, %s24
    %s101 = sor.u32 %s99, %s100
    %p102 = scmp.eq.s32.totalorder %s101, 0
    %s104 = sadd.s32 %s103, 1
    %s105 = scalar_select %p102, %s103, %s104
    %p108 = pneg %p102
    %p109 = scmp.eq.s32.totalorder %s9, 1
    %p110 = por %p108, %p109
    %p111 = scmp.ne.s32.totalorder %s103, %s106
    %p112 = scmp.eq.s32.totalorder %s9, 0
    %p113 = por %p111, %p112
    %p114 = scmp.ne.s32.totalorder %s103, %s106
    %p115 = scmp.eq.s32.totalorder %s14, 1
    %p116 = por %p114, %p115
    %p117 = scmp.ne.s32.totalorder %s106, %s107
    %p118 = scmp.eq.s32.totalorder %s14, 0
    %p119 = por %p117, %p118
    %p120 = scmp.ne.s32.totalorder %s106, %s107
    %p121 = scmp.eq.s32.totalorder %s15, 1
    %p122 = por %p120, %p121
    %p124 = scmp.ne.s32.totalorder %s107, %s123
    %p125 = scmp.eq.s32.totalorder %s15, 0
    %p126 = por %p124, %p125
    %p127 = scmp.le.s32.totalorder 1, %s9
    %p128 = scmp.lt.s32.totalorder %s9, 3
    %p129 = pnand %p127, %p128
    %p130 = pneg %p129
    // Predicated region
    $region9: #{depsep_forward.16} parent=5 // pred_check
      _
    $region10: #{depsep_forward.16} parent=5 // pred_check_branch
      %132 = sbr.rel (%p129) target = $region12
    $region11: #{depsep_forward.16} parent=5 // pred_region
      %s133 = ssub.s32 %s9, 1
      // Predicated region
      $region13: #{depsep_forward.16} parent=11 // pred_check
        %p134 = pneg %p70
      $region14: #{depsep_forward.16} parent=11 // pred_check_branch
        %136 = sbr.rel (%p134) target = $region16
      $region15: #{depsep_forward.16} parent=11 // pred_region
        _
      $region16: #{depsep_forward.16} parent=11 // pred_fallthru
        _
      // Predicated region
      $region17: #{depsep_forward.16} parent=11 // pred_check
        %p137 = pneg %p91
      $region18: #{depsep_forward.16} parent=11 // pred_check_branch
        %139 = sbr.rel (%p137) target = $region20
      $region19: #{depsep_forward.16} parent=11 // pred_region
        _
      $region20: #{depsep_forward.16} parent=11 // pred_fallthru
        _
    $region12: #{depsep_forward.16} parent=5 // pred_fallthru
      _
    %p140 = scmp.lt.s32.totalorder %s9, 2
    // Predicated region
    $region21: #{depsep_forward.16} parent=5 // pred_check
      %p141 = pneg %p140
    $region22: #{depsep_forward.16} parent=5 // pred_check_branch
      %143 = sbr.rel (%p141) target = $region24
    $region23: #{depsep_forward.16} parent=5 // pred_region
      // Predicated region
      $region25: #{depsep_forward.16} parent=23 // pred_check
        %p144 = pneg %p43
      $region26: #{depsep_forward.16} parent=23 // pred_check_branch
        %146 = sbr.rel (%p144) target = $region28
      $region27: #{depsep_forward.16} parent=23 // pred_region
        %s147 = smul.u32 8, %s17
        %p148 = scmp.lt.s32.totalorder %s16, 1
        %s149 = scalar_select %p148, %s16, 1
        %p150 = scmp.lt.s32.totalorder %s147, 7
        %s151 = scalar_select %p150, %s147, 7
        %s152 = smul.addr %s149, 72
        %s153 = sadd.s32 %s151, %s152
        %s154 = smul.addr %s153, 4
        %s155 = scalar_lea.vmem %s0, %s154
        %s156 = smul.u32 8, %s17
      $region28: #{depsep_forward.16} parent=23 // pred_fallthru
        _
    $region24: #{depsep_forward.16} parent=5 // pred_fallthru
      _
    %p157 = scmp.le.s32.totalorder 1, %s9
    %p158 = scmp.lt.s32.totalorder %s9, 3
    %p159 = pnand %p157, %p158
    %p160 = pneg %p159
    // Predicated region
    $region29: #{depsep_forward.16} parent=5 // pred_check
      _
    $region30: #{depsep_forward.16} parent=5 // pred_check_branch
      %162 = sbr.rel (%p159) target = $region32
    $region31: #{depsep_forward.16} parent=5 // pred_region
      %s163 = ssub.s32 %s9, 1
      %s164 = smul.u32 8, %s19
      %p165 = scmp.lt.s32.totalorder %s18, 1
      %s166 = scalar_select %p165, %s18, 1
      %p167 = scmp.lt.s32.totalorder %s164, 7
      %s168 = scalar_select %p167, %s164, 7
      %s169 = smul.addr %s166, 72
      %s170 = sadd.s32 %s168, %s169
      %s171 = smul.addr %s170, 4
      %s172 = scalar_lea.vmem %s0, %s171
      %p173 = pneg %p49
      %p174 = pneg %p46
      %p175 = pneg %p70
      %p176 = pneg %p67
      %p177 = pneg %p91
      %p178 = pneg %p88
      %p179 = pneg %p119
      %p180 = pneg %p116
      %s181 = smul.u32 8, %s19
      %p182 = scmp.lt.s32.totalorder %s18, 1
      %s183 = scalar_select %p182, %s18, 1
      %p184 = scmp.lt.s32.totalorder %s181, 7
      %s185 = scalar_select %p184, %s181, 7
      %s186 = smul.addr %s183, 8
      %s187 = sadd.s32 %s185, %s186
      %s188 = smul.addr %s187, 4
      %s189 = scalar_lea.vmem %s3, %s188
      %s190 = smul.u32 8, %s19
      %p191 = scmp.lt.s32.totalorder %s18, 1
      %s192 = scalar_select %p191, %s18, 1
      %p193 = scmp.lt.s32.totalorder %s190, 7
      %s194 = scalar_select %p193, %s190, 7
      %s195 = smul.addr %s192, 72
      %s196 = sadd.s32 %s194, %s195
      %s197 = smul.addr %s196, 4
      %s198 = scalar_lea.vmem %s0, %s197
      %s199 = smul.u32 8, %s19
      %s200 = smul.u32 8, %s19
      %p201 = scmp.lt.s32.totalorder %s18, 1
      %s202 = scalar_select %p201, %s18, 1
      %p203 = scmp.lt.s32.totalorder %s200, 7
      %s204 = scalar_select %p203, %s200, 7
      %s205 = smul.addr %s202, 8
      %s206 = sadd.s32 %s204, %s205
      %s207 = smul.addr %s206, 4
      %s208 = scalar_lea.vmem %s3, %s207
      %s209 = smul.u32 8, %s19
      %v210 = vld [vmem:[%s1] sm:$0xff]
      %v211 = vld [vmem:[%s1 + $0x8] sm:$0x1]
      %v212 = vld [vmem:[%s198] sm:$0xf]
      %v213 = vld [vmem:[%s198 + $0x4] sm:$0xf]
      %v214 = vld [vmem:[%s198 + $0x8] sm:$0xf]
      %v215 = vld [vmem:[%s198 + $0xc] sm:$0xf]
      %v216 = vld [vmem:[%s198 + $0x10] sm:$0xf]
      %v217 = vld [vmem:[%s198 + $0x14] sm:$0xf]
      %v218 = vld [vmem:[%s198 + $0x18] sm:$0xf]
      %v219 = vld [vmem:[%s198 + $0x1c] sm:$0xf]
      %v220 = vunpack.c.l.bf16 %v212
      %v221 = vunpack.c.l.bf16 %v213
      %v222 = vunpack.c.l.bf16 %v214
      %v223 = vunpack.c.l.bf16 %v215
      %v224 = vunpack.c.l.bf16 %v216
      %v225 = vunpack.c.l.bf16 %v217
      %v226 = vunpack.c.l.bf16 %v218
      %v227 = vunpack.c.l.bf16 %v219
      %v228 = vperm.slane %v210, 0
      %v229 = vmul.f32 %v220, %v228
      %v230 = vmul.f32 %v221, %v228
      %v231 = vmul.f32 %v222, %v228
      %v232 = vmul.f32 %v223, %v228
      %v233 = vmul.f32 %v224, %v228
      %v234 = vmul.f32 %v225, %v228
      %v235 = vmul.f32 %v226, %v228
      %v236 = vmul.f32 %v227, %v228
      %v237 = vadd.f32 %v229, 0.0
      %v238 = vadd.f32 %v230, 0.0
      %v239 = vadd.f32 %v231, 0.0
      %v240 = vadd.f32 %v232, 0.0
      %v241 = vadd.f32 %v233, 0.0
      %v242 = vadd.f32 %v234, 0.0
      %v243 = vadd.f32 %v235, 0.0
      %v244 = vadd.f32 %v236, 0.0
      %s245 = scalar_lea.vmem %s198, 32
      %v246 = vld [vmem:[%s245] sm:$0xf]
      %v247 = vld [vmem:[%s245 + $0x4] sm:$0xf]
      %v248 = vld [vmem:[%s245 + $0x8] sm:$0xf]
      %v249 = vld [vmem:[%s245 + $0xc] sm:$0xf]
      %v250 = vld [vmem:[%s245 + $0x10] sm:$0xf]
      %v251 = vld [vmem:[%s245 + $0x14] sm:$0xf]
      %v252 = vld [vmem:[%s245 + $0x18] sm:$0xf]
      %v253 = vld [vmem:[%s245 + $0x1c] sm:$0xf]
      %v254 = vunpack.c.l.bf16 %v246
      %v255 = vunpack.c.l.bf16 %v247
      %v256 = vunpack.c.l.bf16 %v248
      %v257 = vunpack.c.l.bf16 %v249
      %v258 = vunpack.c.l.bf16 %v250
      %v259 = vunpack.c.l.bf16 %v251
      %v260 = vunpack.c.l.bf16 %v252
      %v261 = vunpack.c.l.bf16 %v253
      %v262 = vperm.slane %v210, 1
      %v263 = vmul.f32 %v254, %v262
      %v264 = vmul.f32 %v255, %v262
      %v265 = vmul.f32 %v256, %v262
      %v266 = vmul.f32 %v257, %v262
      %v267 = vmul.f32 %v258, %v262
      %v268 = vmul.f32 %v259, %v262
      %v269 = vmul.f32 %v260, %v262
      %v270 = vmul.f32 %v261, %v262
      %v271 = vadd.f32 %v237, %v263
      %v272 = vadd.f32 %v238, %v264
      %v273 = vadd.f32 %v239, %v265
      %v274 = vadd.f32 %v240, %v266
      %v275 = vadd.f32 %v241, %v267
      %v276 = vadd.f32 %v242, %v268
      %v277 = vadd.f32 %v243, %v269
      %v278 = vadd.f32 %v244, %v270
      %s279 = scalar_lea.vmem %s198, 64
      %v280 = vld [vmem:[%s279] sm:$0xf]
      %v281 = vld [vmem:[%s279 + $0x4] sm:$0xf]
      %v282 = vld [vmem:[%s279 + $0x8] sm:$0xf]
      %v283 = vld [vmem:[%s279 + $0xc] sm:$0xf]
      %v284 = vld [vmem:[%s279 + $0x10] sm:$0xf]
      %v285 = vld [vmem:[%s279 + $0x14] sm:$0xf]
      %v286 = vld [vmem:[%s279 + $0x18] sm:$0xf]
      %v287 = vld [vmem:[%s279 + $0x1c] sm:$0xf]
      %v288 = vunpack.c.l.bf16 %v280
      %v289 = vunpack.c.l.bf16 %v281
      %v290 = vunpack.c.l.bf16 %v282
      %v291 = vunpack.c.l.bf16 %v283
      %v292 = vunpack.c.l.bf16 %v284
      %v293 = vunpack.c.l.bf16 %v285
      %v294 = vunpack.c.l.bf16 %v286
      %v295 = vunpack.c.l.bf16 %v287
      %v296 = vperm.slane %v210, 2
      %v297 = vmul.f32 %v288, %v296
      %v298 = vmul.f32 %v289, %v296
      %v299 = vmul.f32 %v290, %v296
      %v300 = vmul.f32 %v291, %v296
      %v301 = vmul.f32 %v292, %v296
      %v302 = vmul.f32 %v293, %v296
      %v303 = vmul.f32 %v294, %v296
      %v304 = vmul.f32 %v295, %v296
      %v305 = vadd.f32 %v271, %v297
      %v306 = vadd.f32 %v272, %v298
      %v307 = vadd.f32 %v273, %v299
      %v308 = vadd.f32 %v274, %v300
      %v309 = vadd.f32 %v275, %v301
      %v310 = vadd.f32 %v276, %v302
      %v311 = vadd.f32 %v277, %v303
      %v312 = vadd.f32 %v278, %v304
      %s313 = scalar_lea.vmem %s198, 96
      %v314 = vld [vmem:[%s313] sm:$0xf]
      %v315 = vld [vmem:[%s313 + $0x4] sm:$0xf]
      %v316 = vld [vmem:[%s313 + $0x8] sm:$0xf]
      %v317 = vld [vmem:[%s313 + $0xc] sm:$0xf]
      %v318 = vld [vmem:[%s313 + $0x10] sm:$0xf]
      %v319 = vld [vmem:[%s313 + $0x14] sm:$0xf]
      %v320 = vld [vmem:[%s313 + $0x18] sm:$0xf]
      %v321 = vld [vmem:[%s313 + $0x1c] sm:$0xf]
      %v322 = vunpack.c.l.bf16 %v314
      %v323 = vunpack.c.l.bf16 %v315
      %v324 = vunpack.c.l.bf16 %v316
      %v325 = vunpack.c.l.bf16 %v317
      %v326 = vunpack.c.l.bf16 %v318
      %v327 = vunpack.c.l.bf16 %v319
      %v328 = vunpack.c.l.bf16 %v320
      %v329 = vunpack.c.l.bf16 %v321
      %v330 = vperm.slane %v210, 3
      %v331 = vmul.f32 %v322, %v330
      %v332 = vmul.f32 %v323, %v330
      %v333 = vmul.f32 %v324, %v330
      %v334 = vmul.f32 %v325, %v330
      %v335 = vmul.f32 %v326, %v330
      %v336 = vmul.f32 %v327, %v330
      %v337 = vmul.f32 %v328, %v330
      %v338 = vmul.f32 %v329, %v330
      %v339 = vadd.f32 %v305, %v331
      %v340 = vadd.f32 %v306, %v332
      %v341 = vadd.f32 %v307, %v333
      %v342 = vadd.f32 %v308, %v334
      %v343 = vadd.f32 %v309, %v335
      %v344 = vadd.f32 %v310, %v336
      %v345 = vadd.f32 %v311, %v337
      %v346 = vadd.f32 %v312, %v338
      %s347 = scalar_lea.vmem %s198, 128
      %v348 = vld [vmem:[%s347] sm:$0xf]
      %v349 = vld [vmem:[%s347 + $0x4] sm:$0xf]
      %v350 = vld [vmem:[%s347 + $0x8] sm:$0xf]
      %v351 = vld [vmem:[%s347 + $0xc] sm:$0xf]
      %v352 = vld [vmem:[%s347 + $0x10] sm:$0xf]
      %v353 = vld [vmem:[%s347 + $0x14] sm:$0xf]
      %v354 = vld [vmem:[%s347 + $0x18] sm:$0xf]
      %v355 = vld [vmem:[%s347 + $0x1c] sm:$0xf]
      %v356 = vunpack.c.l.bf16 %v348
      %v357 = vunpack.c.l.bf16 %v349
      %v358 = vunpack.c.l.bf16 %v350
      %v359 = vunpack.c.l.bf16 %v351
      %v360 = vunpack.c.l.bf16 %v352
      %v361 = vunpack.c.l.bf16 %v353
      %v362 = vunpack.c.l.bf16 %v354
      %v363 = vunpack.c.l.bf16 %v355
      %v364 = vperm.slane %v210, 4
      %v365 = vmul.f32 %v356, %v364
      %v366 = vmul.f32 %v357, %v364
      %v367 = vmul.f32 %v358, %v364
      %v368 = vmul.f32 %v359, %v364
      %v369 = vmul.f32 %v360, %v364
      %v370 = vmul.f32 %v361, %v364
      %v371 = vmul.f32 %v362, %v364
      %v372 = vmul.f32 %v363, %v364
      %v373 = vadd.f32 %v339, %v365
      %v374 = vadd.f32 %v340, %v366
      %v375 = vadd.f32 %v341, %v367
      %v376 = vadd.f32 %v342, %v368
      %v377 = vadd.f32 %v343, %v369
      %v378 = vadd.f32 %v344, %v370
      %v379 = vadd.f32 %v345, %v371
      %v380 = vadd.f32 %v346, %v372
      %s381 = scalar_lea.vmem %s198, 160
      %v382 = vld [vmem:[%s381] sm:$0xf]
      %v383 = vld [vmem:[%s381 + $0x4] sm:$0xf]
      %v384 = vld [vmem:[%s381 + $0x8] sm:$0xf]
      %v385 = vld [vmem:[%s381 + $0xc] sm:$0xf]
      %v386 = vld [vmem:[%s381 + $0x10] sm:$0xf]
      %v387 = vld [vmem:[%s381 + $0x14] sm:$0xf]
      %v388 = vld [vmem:[%s381 + $0x18] sm:$0xf]
      %v389 = vld [vmem:[%s381 + $0x1c] sm:$0xf]
      %v390 = vunpack.c.l.bf16 %v382
      %v391 = vunpack.c.l.bf16 %v383
      %v392 = vunpack.c.l.bf16 %v384
      %v393 = vunpack.c.l.bf16 %v385
      %v394 = vunpack.c.l.bf16 %v386
      %v395 = vunpack.c.l.bf16 %v387
      %v396 = vunpack.c.l.bf16 %v388
      %v397 = vunpack.c.l.bf16 %v389
      %v398 = vperm.slane %v210, 5
      %v399 = vmul.f32 %v390, %v398
      %v400 = vmul.f32 %v391, %v398
      %v401 = vmul.f32 %v392, %v398
      %v402 = vmul.f32 %v393, %v398
      %v403 = vmul.f32 %v394, %v398
      %v404 = vmul.f32 %v395, %v398
      %v405 = vmul.f32 %v396, %v398
      %v406 = vmul.f32 %v397, %v398
      %v407 = vadd.f32 %v373, %v399
      %v408 = vadd.f32 %v374, %v400
      %v409 = vadd.f32 %v375, %v401
      %v410 = vadd.f32 %v376, %v402
      %v411 = vadd.f32 %v377, %v403
      %v412 = vadd.f32 %v378, %v404
      %v413 = vadd.f32 %v379, %v405
      %v414 = vadd.f32 %v380, %v406
      %s415 = scalar_lea.vmem %s198, 192
      %v416 = vld [vmem:[%s415] sm:$0xf]
      %v417 = vld [vmem:[%s415 + $0x4] sm:$0xf]
      %v418 = vld [vmem:[%s415 + $0x8] sm:$0xf]
      %v419 = vld [vmem:[%s415 + $0xc] sm:$0xf]
      %v420 = vld [vmem:[%s415 + $0x10] sm:$0xf]
      %v421 = vld [vmem:[%s415 + $0x14] sm:$0xf]
      %v422 = vld [vmem:[%s415 + $0x18] sm:$0xf]
      %v423 = vld [vmem:[%s415 + $0x1c] sm:$0xf]
      %v424 = vunpack.c.l.bf16 %v416
      %v425 = vunpack.c.l.bf16 %v417
      %v426 = vunpack.c.l.bf16 %v418
      %v427 = vunpack.c.l.bf16 %v419
      %v428 = vunpack.c.l.bf16 %v420
      %v429 = vunpack.c.l.bf16 %v421
      %v430 = vunpack.c.l.bf16 %v422
      %v431 = vunpack.c.l.bf16 %v423
      %v432 = vperm.slane %v210, 6
      %v433 = vmul.f32 %v424, %v432
      %v434 = vmul.f32 %v425, %v432
      %v435 = vmul.f32 %v426, %v432
      %v436 = vmul.f32 %v427, %v432
      %v437 = vmul.f32 %v428, %v432
      %v438 = vmul.f32 %v429, %v432
      %v439 = vmul.f32 %v430, %v432
      %v440 = vmul.f32 %v431, %v432
      %v441 = vadd.f32 %v407, %v433
      %v442 = vadd.f32 %v408, %v434
      %v443 = vadd.f32 %v409, %v435
      %v444 = vadd.f32 %v410, %v436
      %v445 = vadd.f32 %v411, %v437
      %v446 = vadd.f32 %v412, %v438
      %v447 = vadd.f32 %v413, %v439
      %v448 = vadd.f32 %v414, %v440
      %s449 = scalar_lea.vmem %s198, 224
      %v450 = vld [vmem:[%s449] sm:$0xf]
      %v451 = vld [vmem:[%s449 + $0x4] sm:$0xf]
      %v452 = vld [vmem:[%s449 + $0x8] sm:$0xf]
      %v453 = vld [vmem:[%s449 + $0xc] sm:$0xf]
      %v454 = vld [vmem:[%s449 + $0x10] sm:$0xf]
      %v455 = vld [vmem:[%s449 + $0x14] sm:$0xf]
      %v456 = vld [vmem:[%s449 + $0x18] sm:$0xf]
      %v457 = vld [vmem:[%s449 + $0x1c] sm:$0xf]
      %v458 = vunpack.c.l.bf16 %v450
      %v459 = vunpack.c.l.bf16 %v451
      %v460 = vunpack.c.l.bf16 %v452
      %v461 = vunpack.c.l.bf16 %v453
      %v462 = vunpack.c.l.bf16 %v454
      %v463 = vunpack.c.l.bf16 %v455
      %v464 = vunpack.c.l.bf16 %v456
      %v465 = vunpack.c.l.bf16 %v457
      %v466 = vperm.slane %v210, 7
      %v467 = vmul.f32 %v458, %v466
      %v468 = vmul.f32 %v459, %v466
      %v469 = vmul.f32 %v460, %v466
      %v470 = vmul.f32 %v461, %v466
      %v471 = vmul.f32 %v462, %v466
      %v472 = vmul.f32 %v463, %v466
      %v473 = vmul.f32 %v464, %v466
      %v474 = vmul.f32 %v465, %v466
      %v475 = vadd.f32 %v441, %v467
      %v476 = vadd.f32 %v442, %v468
      %v477 = vadd.f32 %v443, %v469
      %v478 = vadd.f32 %v444, %v470
      %v479 = vadd.f32 %v445, %v471
      %v480 = vadd.f32 %v446, %v472
      %v481 = vadd.f32 %v447, %v473
      %v482 = vadd.f32 %v448, %v474
      %s483 = scalar_lea.vmem %s198, 256
      %v484 = vld [vmem:[%s483] sm:$0xf]
      %v485 = vld [vmem:[%s483 + $0x4] sm:$0xf]
      %v486 = vld [vmem:[%s483 + $0x8] sm:$0xf]
      %v487 = vld [vmem:[%s483 + $0xc] sm:$0xf]
      %v488 = vld [vmem:[%s483 + $0x10] sm:$0xf]
      %v489 = vld [vmem:[%s483 + $0x14] sm:$0xf]
      %v490 = vld [vmem:[%s483 + $0x18] sm:$0xf]
      %v491 = vld [vmem:[%s483 + $0x1c] sm:$0xf]
      %v492 = vunpack.c.l.bf16 %v484
      %v493 = vunpack.c.l.bf16 %v485
      %v494 = vunpack.c.l.bf16 %v486
      %v495 = vunpack.c.l.bf16 %v487
      %v496 = vunpack.c.l.bf16 %v488
      %v497 = vunpack.c.l.bf16 %v489
      %v498 = vunpack.c.l.bf16 %v490
      %v499 = vunpack.c.l.bf16 %v491
      %v500 = vperm.slane %v211, 0
      %v501 = vmul.f32 %v492, %v500
      %v502 = vmul.f32 %v493, %v500
      %v503 = vmul.f32 %v494, %v500
      %v504 = vmul.f32 %v495, %v500
      %v505 = vmul.f32 %v496, %v500
      %v506 = vmul.f32 %v497, %v500
      %v507 = vmul.f32 %v498, %v500
      %v508 = vmul.f32 %v499, %v500
      %v509 = vadd.f32 %v475, %v501
      %v510 = vadd.f32 %v476, %v502
      %v511 = vadd.f32 %v477, %v503
      %v512 = vadd.f32 %v478, %v504
      %v513 = vadd.f32 %v479, %v505
      %v514 = vadd.f32 %v480, %v506
      %v515 = vadd.f32 %v481, %v507
      %v516 = vadd.f32 %v482, %v508
      %v517 = vld [vmem:[%s2] sm:$0x1]
      %v519 = vperm.slane %v517, 0
      %v521 = vadd.f32 %v509, %v519
      %v522 = vadd.f32 %v510, %v519
      %v523 = vadd.f32 %v511, %v519
      %v524 = vadd.f32 %v512, %v519
      %v525 = vadd.f32 %v513, %v519
      %v526 = vadd.f32 %v514, %v519
      %v527 = vadd.f32 %v515, %v519
      %v528 = vadd.f32 %v516, %v519
      %v529 = vmax.f32 %v521, 0.0
      %v530 = vmax.f32 %v522, 0.0
      %v531 = vmax.f32 %v523, 0.0
      %v532 = vmax.f32 %v524, 0.0
      %v533 = vmax.f32 %v525, 0.0
      %v534 = vmax.f32 %v526, 0.0
      %v535 = vmax.f32 %v527, 0.0
      %v536 = vmax.f32 %v528, 0.0
      %v537 = vpack.c.bf16 %v529, %v529
      %v538 = vpack.c.bf16 %v530, %v530
      %v539 = vpack.c.bf16 %v531, %v531
      %v540 = vpack.c.bf16 %v532, %v532
      %v541 = vpack.c.bf16 %v533, %v533
      %v542 = vpack.c.bf16 %v534, %v534
      %v543 = vpack.c.bf16 %v535, %v535
      %v544 = vpack.c.bf16 %v536, %v536
      %vm545 = vcmask 519168
      %546 = vst.msk [vmem:[%s208] sm:$0xf] %vm545, %v537
      %547 = vst.msk [vmem:[%s208 + $0x4] sm:$0xf] %vm545, %v538
      %548 = vst.msk [vmem:[%s208 + $0x8] sm:$0xf] %vm545, %v539
      %549 = vst.msk [vmem:[%s208 + $0xc] sm:$0xf] %vm545, %v540
      %550 = vst.msk [vmem:[%s208 + $0x10] sm:$0xf] %vm545, %v541
      %551 = vst.msk [vmem:[%s208 + $0x14] sm:$0xf] %vm545, %v542
      %552 = vst.msk [vmem:[%s208 + $0x18] sm:$0xf] %vm545, %v543
      %553 = vst.msk [vmem:[%s208 + $0x1c] sm:$0xf] %vm545, %v544
      %s554 = smul.u32 8, %s19
      %p555 = scmp.lt.s32.totalorder %s18, 1
      %s556 = scalar_select %p555, %s18, 1
      %p557 = scmp.lt.s32.totalorder %s554, 7
      %s558 = scalar_select %p557, %s554, 7
      %s559 = smul.addr %s556, 8
      %s560 = sadd.s32 %s558, %s559
      %s561 = smul.addr %s560, 4
      %s562 = scalar_lea.vmem %s3, %s561
      // Predicated region
      $region33: #{depsep_forward.16} parent=31 // pred_check
        %p563 = pneg %p116
      $region34: #{depsep_forward.16} parent=31 // pred_check_branch
        %565 = sbr.rel (%p563) target = $region36
      $region35: #{depsep_forward.16} parent=31 // pred_region
        %s566 = smul.u32 8, %s19
      $region36: #{depsep_forward.16} parent=31 // pred_fallthru
        _
    $region32: #{depsep_forward.16} parent=5 // pred_fallthru
      _
    %p567 = scmp.le.s32.totalorder 2, %s9
    // Predicated region
    $region37: #{depsep_forward.16} parent=5 // pred_check
      %p568 = pneg %p567
    $region38: #{depsep_forward.16} parent=5 // pred_check_branch
      %570 = sbr.rel (%p568) target = $region40
    $region39: #{depsep_forward.16} parent=5 // pred_region
      %s571 = ssub.s32 %s9, 2
      // Predicated region
      $region41: #{depsep_forward.16} parent=39 // pred_check
        %p572 = pneg %p122
      $region42: #{depsep_forward.16} parent=39 // pred_check_branch
        %574 = sbr.rel (%p572) target = $region44
      $region43: #{depsep_forward.16} parent=39 // pred_region
        %s575 = smul.u32 8, %s21
        %p576 = scmp.lt.s32.totalorder %s20, 1
        %s577 = scalar_select %p576, %s20, 1
        %p578 = scmp.lt.s32.totalorder %s575, 7
        %s579 = scalar_select %p578, %s575, 7
        %s580 = smul.addr %s577, 8
        %s581 = sadd.s32 %s579, %s580
        %s582 = smul.addr %s581, 4
        %s583 = scalar_lea.vmem %s3, %s582
      $region44: #{depsep_forward.16} parent=39 // pred_fallthru
        _
    $region40: #{depsep_forward.16} parent=5 // pred_fallthru
      _
  $region6: #{depsep_forward.16} parent=0 // loop_footer
    %s13 = sadd.s32 1, %s9
  $region7: #{depsep_forward.16} parent=0 // loop_footer_branch
    %8 = sbr.rel target = $region3
  $region8: #{depsep_forward.16} parent=0 // loop_exit
    _

// kernel: depsep_forward.17
$region0: #{depsep_forward.17}
  #allocation0 [shape = 'u32[]', space=smem, size = 0x4, offset = 0x4, fixed_abs, tag = 'smem constant byte address 0x4 - core index']
  #allocation1 [shape = 'u32[72,128]{1,0:T(1,128)}', space=vmem, size = 0x9000, scoped, tag = 'internal scratch']
  %s0 = inlined_call_operand.vmem [shape: bf16[2,9,64,64], index: 0, kind: input, shape index: {}]
  %s1 = inlined_call_operand.vmem [shape: bf16[9,64,64], index: 1, kind: input, shape index: {}]
  %s2 = inlined_call_operand.vmem [shape: f32[1,64], index: 2, kind: input, shape index: {}]
  %s3 = inlined_call_operand.vmem [shape: bf16[2,64,64], index: 3, kind: input, shape index: {}]
  %s4 = inlined_call_operand.hbm [shape: f32[2,64,64], index: 4, kind: output, shape index: {}]
  %s5 = sld [smem:[#allocation0]]
  $region49: #{depsep_forward.17} parent=0
    _
  %s7 = ssub.s32 1, %s5
  %s8 = scalar_select 0, %s7, %s5
  $region1: #{depsep_forward.17} parent=0
    #allocation2 [shape = 'u8[65536]{0}', space=vmem, size = 0x10000, scoped, tag = 'output window, operand 0']
    #allocation3 [shape = 's32[2]{0}', space=sflag, size = 0x8, scoped, tag = 'scoped memory for depsep_forward.17']
    %9 = vsyncpa [#allocation3], 0
    %s10 = scalar_lea.sflag [#allocation3], 1
    %11 = vsyncpa %s10, 0
    loop: start=0, step=1, limit=4
    $region2: #{depsep_forward.17} parent=1 // loop_pre_header
      _
    $region3: #{depsep_forward.17} parent=1 // loop_header
      %s13 = sphi 0, %s17
      %p14 = scmp.ge.s32.totalorder %s13, 4
      %s20 = sphi 0, %s32
      %s21 = sphi 0, %s28
      %s22 = sphi 0, %s20
      %s23 = sphi 0, %s21
      %s24 = sphi 0, %s22
      %s25 = sphi 0, %s23
      %s37 = sphi 0, %s39
      %s40 = sphi 0, %s37
      %s41 = sphi 0, %s40
      %s57 = sphi 0, %s41
      %s61 = sphi 0, %s61
      %s63 = sphi 0, %s61
      %s64 = sphi 0, %s63
      %s78 = sphi 0, %s64
      %s82 = sphi 0, %s82
      %s84 = sphi 0, %s82
      %s85 = sphi 0, %s84
      %s99 = sphi 0, %s85
      %s107 = sphi 0, %s109
      %s110 = sphi 0, %s107
      %s111 = sphi 0, %s110
      %s127 = sphi 0, %s111
      %s135 = sphi 0, %s137
      %s138 = sphi 0, %s135
      %s139 = sphi 0, %s138
      %s155 = sphi 0, %s139
    $region4: #{depsep_forward.17} parent=1 // loop_header_branch
      %16 = sbr.rel (%p14) target = $region8
    $region5: #{depsep_forward.17} parent=1 // loop_body
      %s18 = ssub.s32 %s13, 1
      %s19 = ssub.s32 %s13, 2
      %s26 = sadd.s32 1, %s21
      %p27 = scmp.ge.s32.totalorder %s26, 1
      %s28 = scalar_select %p27, 0, %s26
      %s29 = sadd.s32 1, %s20
      %s30 = scalar_select %p27, %s29, %s20
      %p31 = scmp.ge.s32.totalorder %s30, 2
      %s32 = scalar_select %p31, 0, %s30
      %s33 = ssub.s32 %s20, %s32
      %s34 = ssub.s32 %s21, %s28
      %s35 = sor.u32 %s33, %s34
      %p36 = scmp.eq.s32.totalorder %s35, 0
      %s38 = sadd.s32 %s37, 1
      %s39 = scalar_select %p36, %s37, %s38
      %p42 = pneg %p36
      %p43 = scmp.eq.s32.totalorder %s13, 1
      %p44 = por %p42, %p43
      %p45 = scmp.ne.s32.totalorder %s37, %s40
      %p46 = scmp.eq.s32.totalorder %s13, 0
      %p47 = por %p45, %p46
      %p48 = scmp.ne.s32.totalorder %s37, %s40
      %p49 = scmp.eq.s32.totalorder %s18, 1
      %p50 = por %p48, %p49
      %p51 = scmp.ne.s32.totalorder %s40, %s41
      %p52 = scmp.eq.s32.totalorder %s18, 0
      %p53 = por %p51, %p52
      %p54 = scmp.ne.s32.totalorder %s40, %s41
      %p55 = scmp.eq.s32.totalorder %s19, 1
      %p56 = por %p54, %p55
      %p58 = scmp.ne.s32.totalorder %s41, %s57
      %p59 = scmp.eq.s32.totalorder %s19, 0
      %p60 = por %p58, %p59
      %s62 = sadd.s32 %s61, 1
      %p65 = scmp.eq.s32.totalorder %s13, 1
      %p66 = scmp.ne.s32.totalorder %s61, %s63
      %p67 = scmp.eq.s32.totalorder %s13, 0
      %p68 = por %p66, %p67
      %p69 = scmp.ne.s32.totalorder %s61, %s63
      %p70 = scmp.eq.s32.totalorder %s18, 1
      %p71 = por %p69, %p70
      %p72 = scmp.ne.s32.totalorder %s63, %s64
      %p73 = scmp.eq.s32.totalorder %s18, 0
      %p74 = por %p72, %p73
      %p75 = scmp.ne.s32.totalorder %s63, %s64
      %p76 = scmp.eq.s32.totalorder %s19, 1
      %p77 = por %p75, %p76
      %p79 = scmp.ne.s32.totalorder %s64, %s78
      %p80 = scmp.eq.s32.totalorder %s19, 0
      %p81 = por %p79, %p80
      %s83 = sadd.s32 %s82, 1
      %p86 = scmp.eq.s32.totalorder %s13, 1
      %p87 = scmp.ne.s32.totalorder %s82, %s84
      %p88 = scmp.eq.s32.totalorder %s13, 0
      %p89 = por %p87, %p88
      %p90 = scmp.ne.s32.totalorder %s82, %s84
      %p91 = scmp.eq.s32.totalorder %s18, 1
      %p92 = por %p90, %p91
      %p93 = scmp.ne.s32.totalorder %s84, %s85
      %p94 = scmp.eq.s32.totalorder %s18, 0
      %p95 = por %p93, %p94
      %p96 = scmp.ne.s32.totalorder %s84, %s85
      %p97 = scmp.eq.s32.totalorder %s19, 1
      %p98 = por %p96, %p97
      %p100 = scmp.ne.s32.totalorder %s85, %s99
      %p101 = scmp.eq.s32.totalorder %s19, 0
      %p102 = por %p100, %p101
      %s103 = ssub.s32 %s20, %s32
      %s104 = ssub.s32 %s21, %s28
      %s105 = sor.u32 %s103, %s104
      %p106 = scmp.eq.s32.totalorder %s105, 0
      %s108 = sadd.s32 %s107, 1
      %s109 = scalar_select %p106, %s107, %s108
      %p112 = pneg %p106
      %p113 = scmp.eq.s32.totalorder %s13, 1
      %p114 = por %p112, %p113
      %p115 = scmp.ne.s32.totalorder %s107, %s110
      %p116 = scmp.eq.s32.totalorder %s13, 0
      %p117 = por %p115, %p116
      %p118 = scmp.ne.s32.totalorder %s107, %s110
      %p119 = scmp.eq.s32.totalorder %s18, 1
      %p120 = por %p118, %p119
      %p121 = scmp.ne.s32.totalorder %s110, %s111
      %p122 = scmp.eq.s32.totalorder %s18, 0
      %p123 = por %p121, %p122
      %p124 = scmp.ne.s32.totalorder %s110, %s111
      %p125 = scmp.eq.s32.totalorder %s19, 1
      %p126 = por %p124, %p125
      %p128 = scmp.ne.s32.totalorder %s111, %s127
      %p129 = scmp.eq.s32.totalorder %s19, 0
      %p130 = por %p128, %p129
      %s131 = ssub.s32 %s20, %s32
      %s132 = ssub.s32 %s21, %s28
      %s133 = sor.u32 %s131, %s132
      %p134 = scmp.eq.s32.totalorder %s133, 0
      %s136 = sadd.s32 %s135, 1
      %s137 = scalar_select %p134, %s135, %s136
      %p140 = pneg %p134
      %p141 = scmp.eq.s32.totalorder %s13, 1
      %p142 = por %p140, %p141
      %p143 = scmp.ne.s32.totalorder %s135, %s138
      %p144 = scmp.eq.s32.totalorder %s13, 0
      %p145 = por %p143, %p144
      %p146 = scmp.ne.s32.totalorder %s135, %s138
      %p147 = scmp.eq.s32.totalorder %s18, 1
      %p148 = por %p146, %p147
      %p149 = scmp.ne.s32.totalorder %s138, %s139
      %p150 = scmp.eq.s32.totalorder %s18, 0
      %p151 = por %p149, %p150
      %p152 = scmp.ne.s32.totalorder %s138, %s139
      %p153 = scmp.eq.s32.totalorder %s19, 1
      %p154 = por %p152, %p153
      %p156 = scmp.ne.s32.totalorder %s139, %s155
      %p157 = scmp.eq.s32.totalorder %s19, 0
      %p158 = por %p156, %p157
      %p159 = scmp.le.s32.totalorder 1, %s13
      %p160 = scmp.lt.s32.totalorder %s13, 3
      %p161 = pnand %p159, %p160
      %p162 = pneg %p161
      // Predicated region
      $region9: #{depsep_forward.17} parent=5 // pred_check
        _
      $region10: #{depsep_forward.17} parent=5 // pred_check_branch
        %164 = sbr.rel (%p161) target = $region12
      $region11: #{depsep_forward.17} parent=5 // pred_region
        %s165 = ssub.s32 %s13, 1
        // Predicated region
        $region13: #{depsep_forward.17} parent=11 // pred_check
          %p166 = pneg %p74
        $region14: #{depsep_forward.17} parent=11 // pred_check_branch
          %168 = sbr.rel (%p166) target = $region16
        $region15: #{depsep_forward.17} parent=11 // pred_region
          _
        $region16: #{depsep_forward.17} parent=11 // pred_fallthru
          _
        // Predicated region
        $region17: #{depsep_forward.17} parent=11 // pred_check
          %p169 = pneg %p95
        $region18: #{depsep_forward.17} parent=11 // pred_check_branch
          %171 = sbr.rel (%p169) target = $region20
        $region19: #{depsep_forward.17} parent=11 // pred_region
          _
        $region20: #{depsep_forward.17} parent=11 // pred_fallthru
          _
      $region12: #{depsep_forward.17} parent=5 // pred_fallthru
        _
      %p172 = scmp.lt.s32.totalorder %s13, 2
      // Predicated region
      $region21: #{depsep_forward.17} parent=5 // pred_check
        %p173 = pneg %p172
      $region22: #{depsep_forward.17} parent=5 // pred_check_branch
        %175 = sbr.rel (%p173) target = $region24
      $region23: #{depsep_forward.17} parent=5 // pred_region
        // Predicated region
        $region25: #{depsep_forward.17} parent=23 // pred_check
          %p176 = pneg %p47
        $region26: #{depsep_forward.17} parent=23 // pred_check_branch
          %178 = sbr.rel (%p176) target = $region28
        $region27: #{depsep_forward.17} parent=23 // pred_region
          %s179 = smul.u32 8, %s21
          %p180 = scmp.lt.s32.totalorder %s20, 1
          %s181 = scalar_select %p180, %s20, 1
          %p182 = scmp.lt.s32.totalorder %s179, 7
          %s183 = scalar_select %p182, %s179, 7
          %s184 = smul.addr %s181, 72
          %s185 = sadd.s32 %s183, %s184
          %s186 = smul.addr %s185, 4
          %s187 = scalar_lea.vmem %s0, %s186
          %s188 = smul.u32 8, %s21
        $region28: #{depsep_forward.17} parent=23 // pred_fallthru
          _
        // Predicated region
        $region29: #{depsep_forward.17} parent=23 // pred_check
          %p189 = pneg %p117
        $region30: #{depsep_forward.17} parent=23 // pred_check_branch
          %191 = sbr.rel (%p189) target = $region32
        $region31: #{depsep_forward.17} parent=23 // pred_region
          %s192 = smul.u32 8, %s21
          %p193 = scmp.lt.s32.totalorder %s20, 1
          %s194 = scalar_select %p193, %s20, 1
          %p195 = scmp.lt.s32.totalorder %s192, 7
          %s196 = scalar_select %p195, %s192, 7
          %s197 = smul.addr %s194, 8
          %s198 = sadd.s32 %s196, %s197
          %s199 = smul.addr %s198, 4
          %s200 = scalar_lea.vmem %s3, %s199
          %s201 = smul.u32 8, %s21
        $region32: #{depsep_forward.17} parent=23 // pred_fallthru
          _
      $region24: #{depsep_forward.17} parent=5 // pred_fallthru
        _
      %p202 = scmp.le.s32.totalorder 1, %s13
      %p203 = scmp.lt.s32.totalorder %s13, 3
      %p204 = pnand %p202, %p203
      %p205 = pneg %p204
      // Predicated region
      $region33: #{depsep_forward.17} parent=5 // pred_check
        _
      $region34: #{depsep_forward.17} parent=5 // pred_check_branch
        %207 = sbr.rel (%p204) target = $region36
      $region35: #{depsep_forward.17} parent=5 // pred_region
        %s208 = ssub.s32 %s13, 1
        %s209 = smul.u32 8, %s23
        %p210 = scmp.lt.s32.totalorder %s22, 1
        %s211 = scalar_select %p210, %s22, 1
        %p212 = scmp.lt.s32.totalorder %s209, 7
        %s213 = scalar_select %p212, %s209, 7
        %s214 = smul.addr %s211, 72
        %s215 = sadd.s32 %s213, %s214
        %s216 = smul.addr %s215, 4
        %s217 = scalar_lea.vmem %s0, %s216
        %p218 = pneg %p53
        %p219 = pneg %p50
        %p220 = pneg %p74
        %p221 = pneg %p71
        %p222 = pneg %p95
        %p223 = pneg %p92
        %s224 = smul.u32 8, %s23
        %p225 = scmp.lt.s32.totalorder %s22, 1
        %s226 = scalar_select %p225, %s22, 1
        %p227 = scmp.lt.s32.totalorder %s224, 7
        %s228 = scalar_select %p227, %s224, 7
        %s229 = smul.addr %s226, 8
        %s230 = sadd.s32 %s228, %s229
        %s231 = smul.addr %s230, 4
        %s232 = scalar_lea.vmem %s3, %s231
        %p233 = pneg %p123
        %p234 = pneg %p120
        %p235 = pneg %p151
        %p236 = pneg %p148
        %s237 = sand.u32 %s138, 1
        %s238 = scalar_lea.sflag [#allocation3], %s237
        %s239 = sand.u32 %s138, 1
        %s240 = smul.addr %s239, 64
        %s241 = scalar_lea.vmem [#allocation2], %s240
        %s242 = smul.u32 8, %s23
        %p243 = scmp.lt.s32.totalorder %s22, 1
        %s244 = scalar_select %p243, %s22, 1
        %p245 = scmp.lt.s32.totalorder %s242, 7
        %s246 = scalar_select %p245, %s242, 7
        %s247 = smul.addr %s244, 72
        %s248 = sadd.s32 %s246, %s247
        %s249 = smul.addr %s248, 4
        %s250 = scalar_lea.vmem %s0, %s249
        %s251 = smul.u32 8, %s23
        %s252 = smul.u32 8, %s23
        %p253 = scmp.lt.s32.totalorder %s22, 1
        %s254 = scalar_select %p253, %s22, 1
        %p255 = scmp.lt.s32.totalorder %s252, 7
        %s256 = scalar_select %p255, %s252, 7
        %s257 = smul.addr %s254, 8
        %s258 = sadd.s32 %s256, %s257
        %s259 = smul.addr %s258, 4
        %s260 = scalar_lea.vmem %s3, %s259
        %s261 = smul.u32 8, %s23
        %s262 = smul.u32 8, %s23
        %v264 = vld [vmem:[%s250] sm:$0xf]
        %v265 = vld [vmem:[%s250 + $0x4] sm:$0xf]
        %v266 = vld [vmem:[%s250 + $0x8] sm:$0xf]
        %v267 = vld [vmem:[%s250 + $0xc] sm:$0xf]
        %v268 = vld [vmem:[%s250 + $0x10] sm:$0xf]
        %v269 = vld [vmem:[%s250 + $0x14] sm:$0xf]
        %v270 = vld [vmem:[%s250 + $0x18] sm:$0xf]
        %v271 = vld [vmem:[%s250 + $0x1c] sm:$0xf]
        %v272 = vld [vmem:[%s1] sm:$0xf]
        %v273 = vld [vmem:[%s1 + $0x4] sm:$0xf]
        %v274 = vld [vmem:[%s1 + $0x8] sm:$0xf]
        %v275 = vld [vmem:[%s1 + $0xc] sm:$0xf]
        %v276 = vld [vmem:[%s1 + $0x10] sm:$0xf]
        %v277 = vld [vmem:[%s1 + $0x14] sm:$0xf]
        %v278 = vld [vmem:[%s1 + $0x18] sm:$0xf]
        %v279 = vld [vmem:[%s1 + $0x1c] sm:$0xf]
        %s280 = scalar_lea.vmem %s250, 32
        %v281 = vld [vmem:[%s280] sm:$0xf]
        %v282 = vld [vmem:[%s280 + $0x4] sm:$0xf]
        %v283 = vld [vmem:[%s280 + $0x8] sm:$0xf]
        %v284 = vld [vmem:[%s280 + $0xc] sm:$0xf]
        %v285 = vld [vmem:[%s280 + $0x10] sm:$0xf]
        %v286 = vld [vmem:[%s280 + $0x14] sm:$0xf]
        %v287 = vld [vmem:[%s280 + $0x18] sm:$0xf]
        %v288 = vld [vmem:[%s280 + $0x1c] sm:$0xf]
        %s289 = scalar_lea.vmem %s1, 32
        %v290 = vld [vmem:[%s289] sm:$0xf]
        %v291 = vld [vmem:[%s289 + $0x4] sm:$0xf]
        %v292 = vld [vmem:[%s289 + $0x8] sm:$0xf]
        %v293 = vld [vmem:[%s289 + $0xc] sm:$0xf]
        %v294 = vld [vmem:[%s289 + $0x10] sm:$0xf]
        %v295 = vld [vmem:[%s289 + $0x14] sm:$0xf]
        %v296 = vld [vmem:[%s289 + $0x18] sm:$0xf]
        %v297 = vld [vmem:[%s289 + $0x1c] sm:$0xf]
        %v306 = vunpack.c.l.b16 %v281
        %v307 = vunpack.c.l.b16 %v282
        %v308 = vunpack.c.l.b16 %v283
        %v309 = vunpack.c.l.b16 %v284
        %v310 = vunpack.c.l.b16 %v285
        %v311 = vunpack.c.l.b16 %v286
        %v312 = vunpack.c.l.b16 %v287
        %v313 = vunpack.c.l.b16 %v288
        %v314 = vpack.c.b16 %v307, %v306
        %v315 = vpack.c.b16 %v309, %v308
        %v316 = vpack.c.b16 %v311, %v310
        %v317 = vpack.c.b16 %v313, %v312
        %v326 = vunpack.c.l.b16 %v290
        %v327 = vunpack.c.l.b16 %v291
        %v328 = vunpack.c.l.b16 %v292
        %v329 = vunpack.c.l.b16 %v293
        %v330 = vunpack.c.l.b16 %v294
        %v331 = vunpack.c.l.b16 %v295
        %v332 = vunpack.c.l.b16 %v296
        %v333 = vunpack.c.l.b16 %v297
        %v334 = vpack.c.b16 %v327, %v326
        %v335 = vpack.c.b16 %v329, %v328
        %v336 = vpack.c.b16 %v331, %v330
        %v337 = vpack.c.b16 %v333, %v332
        %vm342 = vcmask 523264
        %v344 = vsel %vm342, %v314, 0
        %v347 = vsel %vm342, %v315, 0
        %v350 = vsel %vm342, %v316, 0
        %v353 = vsel %vm342, %v317, 0
        %355 = vmatpush.bf16.msra.mxu0 0
        %356 = vmatpush.bf16.msra.mxu0 0
        %357 = vmatpush.bf16.msra.mxu0 0
        %358 = vmatpush.bf16.msra.mxu0 0
        %359 = vmatpush.bf16.msra.mxu0 %v337
        %360 = vmatpush.bf16.msra.mxu0 %v336
        %361 = vmatpush.bf16.msra.mxu0 %v335
        %362 = vmatpush.bf16.msra.mxu0 %v334
        %363 = vmatmul.bf16.gmra.mxu0 %v344
        %v364 = vpop.f32.mrf.mxu0
        %v365 = vadd.f32 0.0, %v364
        %v366 = vpop.f32.mrf.mxu0
        %v367 = vadd.f32 0.0, %v366
        %368 = vmatmul.bf16.gmra.mxu0 %v347
        %v369 = vpop.f32.mrf.mxu0
        %v370 = vadd.f32 0.0, %v369
        %v371 = vpop.f32.mrf.mxu0
        %v372 = vadd.f32 0.0, %v371
        %373 = vmatmul.bf16.gmra.mxu0 %v350
        %v374 = vpop.f32.mrf.mxu0
        %v375 = vadd.f32 0.0, %v374
        %v376 = vpop.f32.mrf.mxu0
        %v377 = vadd.f32 0.0, %v376
        %378 = vmatmul.bf16.gmra.mxu0 %v353
        %v379 = vpop.f32.mrf.mxu0
        %v380 = vadd.f32 0.0, %v379
        %v381 = vpop.f32.mrf.mxu0
        %v382 = vadd.f32 0.0, %v381
        %383 = vdwg.mxu0
        %v392 = vunpack.c.l.b16 %v264
        %v393 = vunpack.c.l.b16 %v265
        %v394 = vunpack.c.l.b16 %v266
        %v395 = vunpack.c.l.b16 %v267
        %v396 = vunpack.c.l.b16 %v268
        %v397 = vunpack.c.l.b16 %v269
        %v398 = vunpack.c.l.b16 %v270
        %v399 = vunpack.c.l.b16 %v271
        %v400 = vpack.c.b16 %v393, %v392
        %v401 = vpack.c.b16 %v395, %v394
        %v402 = vpack.c.b16 %v397, %v396
        %v403 = vpack.c.b16 %v399, %v398
        %v412 = vunpack.c.l.b16 %v272
        %v413 = vunpack.c.l.b16 %v273
        %v414 = vunpack.c.l.b16 %v274
        %v415 = vunpack.c.l.b16 %v275
        %v416 = vunpack.c.l.b16 %v276
        %v417 = vunpack.c.l.b16 %v277
        %v418 = vunpack.c.l.b16 %v278
        %v419 = vunpack.c.l.b16 %v279
        %v420 = vpack.c.b16 %v413, %v412
        %v421 = vpack.c.b16 %v415, %v414
        %v422 = vpack.c.b16 %v417, %v416
        %v423 = vpack.c.b16 %v419, %v418
        %v429 = vsel %vm342, %v400, 0
        %v432 = vsel %vm342, %v401, 0
        %v435 = vsel %vm342, %v402, 0
        %v438 = vsel %vm342, %v403, 0
        %440 = vmatpush.bf16.msra.mxu0 0
        %441 = vmatpush.bf16.msra.mxu0 0
        %442 = vmatpush.bf16.msra.mxu0 0
        %443 = vmatpush.bf16.msra.mxu0 0
        %444 = vmatpush.bf16.msra.mxu0 %v423
        %445 = vmatpush.bf16.msra.mxu0 %v422
        %446 = vmatpush.bf16.msra.mxu0 %v421
        %447 = vmatpush.bf16.msra.mxu0 %v420
        %448 = vmatmul.bf16.gmra.mxu0 %v429
        %v449 = vpop.f32.mrf.mxu0
        %v450 = vadd.f32 %v365, %v449
        %v451 = vpop.f32.mrf.mxu0
        %v452 = vadd.f32 %v367, %v451
        %453 = vmatmul.bf16.gmra.mxu0 %v432
        %v454 = vpop.f32.mrf.mxu0
        %v455 = vadd.f32 %v370, %v454
        %v456 = vpop.f32.mrf.mxu0
        %v457 = vadd.f32 %v372, %v456
        %458 = vmatmul.bf16.gmra.mxu0 %v435
        %v459 = vpop.f32.mrf.mxu0
        %v460 = vadd.f32 %v375, %v459
        %v461 = vpop.f32.mrf.mxu0
        %v462 = vadd.f32 %v377, %v461
        %463 = vmatmul.bf16.gmra.mxu0 %v438
        %v464 = vpop.f32.mrf.mxu0
        %v465 = vadd.f32 %v380, %v464
        %v466 = vpop.f32.mrf.mxu0
        %v467 = vadd.f32 %v382, %v466
        %468 = vdwg.mxu0
        %s469 = scalar_lea.vmem %s250, 64
        %v470 = vld [vmem:[%s469] sm:$0xf]
        %v471 = vld [vmem:[%s469 + $0x4] sm:$0xf]
        %v472 = vld [vmem:[%s469 + $0x8] sm:$0xf]
        %v473 = vld [vmem:[%s469 + $0xc] sm:$0xf]
        %v474 = vld [vmem:[%s469 + $0x10] sm:$0xf]
        %v475 = vld [vmem:[%s469 + $0x14] sm:$0xf]
        %v476 = vld [vmem:[%s469 + $0x18] sm:$0xf]
        %v477 = vld [vmem:[%s469 + $0x1c] sm:$0xf]
        %s478 = scalar_lea.vmem %s1, 64
        %v479 = vld [vmem:[%s478] sm:$0xf]
        %v480 = vld [vmem:[%s478 + $0x4] sm:$0xf]
        %v481 = vld [vmem:[%s478 + $0x8] sm:$0xf]
        %v482 = vld [vmem:[%s478 + $0xc] sm:$0xf]
        %v483 = vld [vmem:[%s478 + $0x10] sm:$0xf]
        %v484 = vld [vmem:[%s478 + $0x14] sm:$0xf]
        %v485 = vld [vmem:[%s478 + $0x18] sm:$0xf]
        %v486 = vld [vmem:[%s478 + $0x1c] sm:$0xf]
        %v495 = vunpack.c.l.b16 %v470
        %v496 = vunpack.c.l.b16 %v471
        %v497 = vunpack.c.l.b16 %v472
        %v498 = vunpack.c.l.b16 %v473
        %v499 = vunpack.c.l.b16 %v474
        %v500 = vunpack.c.l.b16 %v475
        %v501 = vunpack.c.l.b16 %v476
        %v502 = vunpack.c.l.b16 %v477
        %v503 = vpack.c.b16 %v496, %v495
        %v504 = vpack.c.b16 %v498, %v497
        %v505 = vpack.c.b16 %v500, %v499
        %v506 = vpack.c.b16 %v502, %v501
        %v515 = vunpack.c.l.b16 %v479
        %v516 = vunpack.c.l.b16 %v480
        %v517 = vunpack.c.l.b16 %v481
        %v518 = vunpack.c.l.b16 %v482
        %v519 = vunpack.c.l.b16 %v483
        %v520 = vunpack.c.l.b16 %v484
        %v521 = vunpack.c.l.b16 %v485
        %v522 = vunpack.c.l.b16 %v486
        %v523 = vpack.c.b16 %v516, %v515
        %v524 = vpack.c.b16 %v518, %v517
        %v525 = vpack.c.b16 %v520, %v519
        %v526 = vpack.c.b16 %v522, %v521
        %v532 = vsel %vm342, %v503, 0
        %v535 = vsel %vm342, %v504, 0
        %v538 = vsel %vm342, %v505, 0
        %v541 = vsel %vm342, %v506, 0
        %543 = vmatpush.bf16.msra.mxu0 0
        %544 = vmatpush.bf16.msra.mxu0 0
        %545 = vmatpush.bf16.msra.mxu0 0
        %546 = vmatpush.bf16.msra.mxu0 0
        %547 = vmatpush.bf16.msra.mxu0 %v526
        %548 = vmatpush.bf16.msra.mxu0 %v525
        %549 = vmatpush.bf16.msra.mxu0 %v524
        %550 = vmatpush.bf16.msra.mxu0 %v523
        %551 = vmatmul.bf16.gmra.mxu0 %v532
        %v552 = vpop.f32.mrf.mxu0
        %v553 = vadd.f32 0.0, %v552
        %v554 = vpop.f32.mrf.mxu0
        %v555 = vadd.f32 0.0, %v554
        %556 = vmatmul.bf16.gmra.mxu0 %v535
        %v557 = vpop.f32.mrf.mxu0
        %v558 = vadd.f32 0.0, %v557
        %v559 = vpop.f32.mrf.mxu0
        %v560 = vadd.f32 0.0, %v559
        %561 = vmatmul.bf16.gmra.mxu0 %v538
        %v562 = vpop.f32.mrf.mxu0
        %v563 = vadd.f32 0.0, %v562
        %v564 = vpop.f32.mrf.mxu0
        %v565 = vadd.f32 0.0, %v564
        %566 = vmatmul.bf16.gmra.mxu0 %v541
        %v567 = vpop.f32.mrf.mxu0
        %v568 = vadd.f32 0.0, %v567
        %v569 = vpop.f32.mrf.mxu0
        %v570 = vadd.f32 0.0, %v569
        %571 = vdwg.mxu0
        %v572 = vadd.f32 %v450, %v553
        %v573 = vadd.f32 %v452, %v555
        %v574 = vadd.f32 %v455, %v558
        %v575 = vadd.f32 %v457, %v560
        %v576 = vadd.f32 %v460, %v563
        %v577 = vadd.f32 %v462, %v565
        %v578 = vadd.f32 %v465, %v568
        %v579 = vadd.f32 %v467, %v570
        %s580 = scalar_lea.vmem %s250, 96
        %v581 = vld [vmem:[%s580] sm:$0xf]
        %v582 = vld [vmem:[%s580 + $0x4] sm:$0xf]
        %v583 = vld [vmem:[%s580 + $0x8] sm:$0xf]
        %v584 = vld [vmem:[%s580 + $0xc] sm:$0xf]
        %v585 = vld [vmem:[%s580 + $0x10] sm:$0xf]
        %v586 = vld [vmem:[%s580 + $0x14] sm:$0xf]
        %v587 = vld [vmem:[%s580 + $0x18] sm:$0xf]
        %v588 = vld [vmem:[%s580 + $0x1c] sm:$0xf]
        %s589 = scalar_lea.vmem %s1, 96
        %v590 = vld [vmem:[%s589] sm:$0xf]
        %v591 = vld [vmem:[%s589 + $0x4] sm:$0xf]
        %v592 = vld [vmem:[%s589 + $0x8] sm:$0xf]
        %v593 = vld [vmem:[%s589 + $0xc] sm:$0xf]
        %v594 = vld [vmem:[%s589 + $0x10] sm:$0xf]
        %v595 = vld [vmem:[%s589 + $0x14] sm:$0xf]
        %v596 = vld [vmem:[%s589 + $0x18] sm:$0xf]
        %v597 = vld [vmem:[%s589 + $0x1c] sm:$0xf]
        %v606 = vunpack.c.l.b16 %v581
        %v607 = vunpack.c.l.b16 %v582
        %v608 = vunpack.c.l.b16 %v583
        %v609 = vunpack.c.l.b16 %v584
        %v610 = vunpack.c.l.b16 %v585
        %v611 = vunpack.c.l.b16 %v586
        %v612 = vunpack.c.l.b16 %v587
        %v613 = vunpack.c.l.b16 %v588
        %v614 = vpack.c.b16 %v607, %v606
        %v615 = vpack.c.b16 %v609, %v608
        %v616 = vpack.c.b16 %v611, %v610
        %v617 = vpack.c.b16 %v613, %v612
        %v626 = vunpack.c.l.b16 %v590
        %v627 = vunpack.c.l.b16 %v591
        %v628 = vunpack.c.l.b16 %v592
        %v629 = vunpack.c.l.b16 %v593
        %v630 = vunpack.c.l.b16 %v594
        %v631 = vunpack.c.l.b16 %v595
        %v632 = vunpack.c.l.b16 %v596
        %v633 = vunpack.c.l.b16 %v597
        %v634 = vpack.c.b16 %v627, %v626
        %v635 = vpack.c.b16 %v629, %v628
        %v636 = vpack.c.b16 %v631, %v630
        %v637 = vpack.c.b16 %v633, %v632
        %v643 = vsel %vm342, %v614, 0
        %v646 = vsel %vm342, %v615, 0
        %v649 = vsel %vm342, %v616, 0
        %v652 = vsel %vm342, %v617, 0
        %654 = vmatpush.bf16.msra.mxu0 0
        %655 = vmatpush.bf16.msra.mxu0 0
        %656 = vmatpush.bf16.msra.mxu0 0
        %657 = vmatpush.bf16.msra.mxu0 0
        %658 = vmatpush.bf16.msra.mxu0 %v637
        %659 = vmatpush.bf16.msra.mxu0 %v636
        %660 = vmatpush.bf16.msra.mxu0 %v635
        %661 = vmatpush.bf16.msra.mxu0 %v634
        %662 = vmatmul.bf16.gmra.mxu0 %v643
        %v663 = vpop.f32.mrf.mxu0
        %v664 = vadd.f32 0.0, %v663
        %v665 = vpop.f32.mrf.mxu0
        %v666 = vadd.f32 0.0, %v665
        %667 = vmatmul.bf16.gmra.mxu0 %v646
        %v668 = vpop.f32.mrf.mxu0
        %v669 = vadd.f32 0.0, %v668
        %v670 = vpop.f32.mrf.mxu0
        %v671 = vadd.f32 0.0, %v670
        %672 = vmatmul.bf16.gmra.mxu0 %v649
        %v673 = vpop.f32.mrf.mxu0
        %v674 = vadd.f32 0.0, %v673
        %v675 = vpop.f32.mrf.mxu0
        %v676 = vadd.f32 0.0, %v675
        %677 = vmatmul.bf16.gmra.mxu0 %v652
        %v678 = vpop.f32.mrf.mxu0
        %v679 = vadd.f32 0.0, %v678
        %v680 = vpop.f32.mrf.mxu0
        %v681 = vadd.f32 0.0, %v680
        %682 = vdwg.mxu0
        %v683 = vadd.f32 %v572, %v664
        %v684 = vadd.f32 %v573, %v666
        %v685 = vadd.f32 %v574, %v669
        %v686 = vadd.f32 %v575, %v671
        %v687 = vadd.f32 %v576, %v674
        %v688 = vadd.f32 %v577, %v676
        %v689 = vadd.f32 %v578, %v679
        %v690 = vadd.f32 %v579, %v681
        %s691 = scalar_lea.vmem %s250, 128
        %v692 = vld [vmem:[%s691] sm:$0xf]
        %v693 = vld [vmem:[%s691 + $0x4] sm:$0xf]
        %v694 = vld [vmem:[%s691 + $0x8] sm:$0xf]
        %v695 = vld [vmem:[%s691 + $0xc] sm:$0xf]
        %v696 = vld [vmem:[%s691 + $0x10] sm:$0xf]
        %v697 = vld [vmem:[%s691 + $0x14] sm:$0xf]
        %v698 = vld [vmem:[%s691 + $0x18] sm:$0xf]
        %v699 = vld [vmem:[%s691 + $0x1c] sm:$0xf]
        %s700 = scalar_lea.vmem %s1, 128
        %v701 = vld [vmem:[%s700] sm:$0xf]
        %v702 = vld [vmem:[%s700 + $0x4] sm:$0xf]
        %v703 = vld [vmem:[%s700 + $0x8] sm:$0xf]
        %v704 = vld [vmem:[%s700 + $0xc] sm:$0xf]
        %v705 = vld [vmem:[%s700 + $0x10] sm:$0xf]
        %v706 = vld [vmem:[%s700 + $0x14] sm:$0xf]
        %v707 = vld [vmem:[%s700 + $0x18] sm:$0xf]
        %v708 = vld [vmem:[%s700 + $0x1c] sm:$0xf]
        %v717 = vunpack.c.l.b16 %v692
        %v718 = vunpack.c.l.b16 %v693
        %v719 = vunpack.c.l.b16 %v694
        %v720 = vunpack.c.l.b16 %v695
        %v721 = vunpack.c.l.b16 %v696
        %v722 = vunpack.c.l.b16 %v697
        %v723 = vunpack.c.l.b16 %v698
        %v724 = vunpack.c.l.b16 %v699
        %v725 = vpack.c.b16 %v718, %v717
        %v726 = vpack.c.b16 %v720, %v719
        %v727 = vpack.c.b16 %v722, %v721
        %v728 = vpack.c.b16 %v724, %v723
        %v737 = vunpack.c.l.b16 %v701
        %v738 = vunpack.c.l.b16 %v702
        %v739 = vunpack.c.l.b16 %v703
        %v740 = vunpack.c.l.b16 %v704
        %v741 = vunpack.c.l.b16 %v705
        %v742 = vunpack.c.l.b16 %v706
        %v743 = vunpack.c.l.b16 %v707
        %v744 = vunpack.c.l.b16 %v708
        %v745 = vpack.c.b16 %v738, %v737
        %v746 = vpack.c.b16 %v740, %v739
        %v747 = vpack.c.b16 %v742, %v741
        %v748 = vpack.c.b16 %v744, %v743
        %v754 = vsel %vm342, %v725, 0
        %v757 = vsel %vm342, %v726, 0
        %v760 = vsel %vm342, %v727, 0
        %v763 = vsel %vm342, %v728, 0
        %765 = vmatpush.bf16.msra.mxu0 0
        %766 = vmatpush.bf16.msra.mxu0 0
        %767 = vmatpush.bf16.msra.mxu0 0
        %768 = vmatpush.bf16.msra.mxu0 0
        %769 = vmatpush.bf16.msra.mxu0 %v748
        %770 = vmatpush.bf16.msra.mxu0 %v747
        %771 = vmatpush.bf16.msra.mxu0 %v746
        %772 = vmatpush.bf16.msra.mxu0 %v745
        %773 = vmatmul.bf16.gmra.mxu0 %v754
        %v774 = vpop.f32.mrf.mxu0
        %v775 = vadd.f32 0.0, %v774
        %v776 = vpop.f32.mrf.mxu0
        %v777 = vadd.f32 0.0, %v776
        %778 = vmatmul.bf16.gmra.mxu0 %v757
        %v779 = vpop.f32.mrf.mxu0
        %v780 = vadd.f32 0.0, %v779
        %v781 = vpop.f32.mrf.mxu0
        %v782 = vadd.f32 0.0, %v781
        %783 = vmatmul.bf16.gmra.mxu0 %v760
        %v784 = vpop.f32.mrf.mxu0
        %v785 = vadd.f32 0.0, %v784
        %v786 = vpop.f32.mrf.mxu0
        %v787 = vadd.f32 0.0, %v786
        %788 = vmatmul.bf16.gmra.mxu0 %v763
        %v789 = vpop.f32.mrf.mxu0
        %v790 = vadd.f32 0.0, %v789
        %v791 = vpop.f32.mrf.mxu0
        %v792 = vadd.f32 0.0, %v791
        %793 = vdwg.mxu0
        %v794 = vadd.f32 %v683, %v775
        %v795 = vadd.f32 %v684, %v777
        %v796 = vadd.f32 %v685, %v780
        %v797 = vadd.f32 %v686, %v782
        %v798 = vadd.f32 %v687, %v785
        %v799 = vadd.f32 %v688, %v787
        %v800 = vadd.f32 %v689, %v790
        %v801 = vadd.f32 %v690, %v792
        %s802 = scalar_lea.vmem %s250, 160
        %v803 = vld [vmem:[%s802] sm:$0xf]
        %v804 = vld [vmem:[%s802 + $0x4] sm:$0xf]
        %v805 = vld [vmem:[%s802 + $0x8] sm:$0xf]
        %v806 = vld [vmem:[%s802 + $0xc] sm:$0xf]
        %v807 = vld [vmem:[%s802 + $0x10] sm:$0xf]
        %v808 = vld [vmem:[%s802 + $0x14] sm:$0xf]
        %v809 = vld [vmem:[%s802 + $0x18] sm:$0xf]
        %v810 = vld [vmem:[%s802 + $0x1c] sm:$0xf]
        %s811 = scalar_lea.vmem %s1, 160
        %v812 = vld [vmem:[%s811] sm:$0xf]
        %v813 = vld [vmem:[%s811 + $0x4] sm:$0xf]
        %v814 = vld [vmem:[%s811 + $0x8] sm:$0xf]
        %v815 = vld [vmem:[%s811 + $0xc] sm:$0xf]
        %v816 = vld [vmem:[%s811 + $0x10] sm:$0xf]
        %v817 = vld [vmem:[%s811 + $0x14] sm:$0xf]
        %v818 = vld [vmem:[%s811 + $0x18] sm:$0xf]
        %v819 = vld [vmem:[%s811 + $0x1c] sm:$0xf]
        %v828 = vunpack.c.l.b16 %v803
        %v829 = vunpack.c.l.b16 %v804
        %v830 = vunpack.c.l.b16 %v805
        %v831 = vunpack.c.l.b16 %v806
        %v832 = vunpack.c.l.b16 %v807
        %v833 = vunpack.c.l.b16 %v808
        %v834 = vunpack.c.l.b16 %v809
        %v835 = vunpack.c.l.b16 %v810
        %v836 = vpack.c.b16 %v829, %v828
        %v837 = vpack.c.b16 %v831, %v830
        %v838 = vpack.c.b16 %v833, %v832
        %v839 = vpack.c.b16 %v835, %v834
        %v848 = vunpack.c.l.b16 %v812
        %v849 = vunpack.c.l.b16 %v813
        %v850 = vunpack.c.l.b16 %v814
        %v851 = vunpack.c.l.b16 %v815
        %v852 = vunpack.c.l.b16 %v816
        %v853 = vunpack.c.l.b16 %v817
        %v854 = vunpack.c.l.b16 %v818
        %v855 = vunpack.c.l.b16 %v819
        %v856 = vpack.c.b16 %v849, %v848
        %v857 = vpack.c.b16 %v851, %v850
        %v858 = vpack.c.b16 %v853, %v852
        %v859 = vpack.c.b16 %v855, %v854
        %v865 = vsel %vm342, %v836, 0
        %v868 = vsel %vm342, %v837, 0
        %v871 = vsel %vm342, %v838, 0
        %v874 = vsel %vm342, %v839, 0
        %876 = vmatpush.bf16.msra.mxu0 0
        %877 = vmatpush.bf16.msra.mxu0 0
        %878 = vmatpush.bf16.msra.mxu0 0
        %879 = vmatpush.bf16.msra.mxu0 0
        %880 = vmatpush.bf16.msra.mxu0 %v859
        %881 = vmatpush.bf16.msra.mxu0 %v858
        %882 = vmatpush.bf16.msra.mxu0 %v857
        %883 = vmatpush.bf16.msra.mxu0 %v856
        %884 = vmatmul.bf16.gmra.mxu0 %v865
        %v885 = vpop.f32.mrf.mxu0
        %v886 = vadd.f32 0.0, %v885
        %v887 = vpop.f32.mrf.mxu0
        %v888 = vadd.f32 0.0, %v887
        %889 = vmatmul.bf16.gmra.mxu0 %v868
        %v890 = vpop.f32.mrf.mxu0
        %v891 = vadd.f32 0.0, %v890
        %v892 = vpop.f32.mrf.mxu0
        %v893 = vadd.f32 0.0, %v892
        %894 = vmatmul.bf16.gmra.mxu0 %v871
        %v895 = vpop.f32.mrf.mxu0
        %v896 = vadd.f32 0.0, %v895
        %v897 = vpop.f32.mrf.mxu0
        %v898 = vadd.f32 0.0, %v897
        %899 = vmatmul.bf16.gmra.mxu0 %v874
        %v900 = vpop.f32.mrf.mxu0
        %v901 = vadd.f32 0.0, %v900
        %v902 = vpop.f32.mrf.mxu0
        %v903 = vadd.f32 0.0, %v902
        %904 = vdwg.mxu0
        %v905 = vadd.f32 %v794, %v886
        %v906 = vadd.f32 %v795, %v888
        %v907 = vadd.f32 %v796, %v891
        %v908 = vadd.f32 %v797, %v893
        %v909 = vadd.f32 %v798, %v896
        %v910 = vadd.f32 %v799, %v898
        %v911 = vadd.f32 %v800, %v901
        %v912 = vadd.f32 %v801, %v903
        %s913 = scalar_lea.vmem %s250, 192
        %v914 = vld [vmem:[%s913] sm:$0xf]
        %v915 = vld [vmem:[%s913 + $0x4] sm:$0xf]
        %v916 = vld [vmem:[%s913 + $0x8] sm:$0xf]
        %v917 = vld [vmem:[%s913 + $0xc] sm:$0xf]
        %v918 = vld [vmem:[%s913 + $0x10] sm:$0xf]
        %v919 = vld [vmem:[%s913 + $0x14] sm:$0xf]
        %v920 = vld [vmem:[%s913 + $0x18] sm:$0xf]
        %v921 = vld [vmem:[%s913 + $0x1c] sm:$0xf]
        %s922 = scalar_lea.vmem %s1, 192
        %v923 = vld [vmem:[%s922] sm:$0xf]
        %v924 = vld [vmem:[%s922 + $0x4] sm:$0xf]
        %v925 = vld [vmem:[%s922 + $0x8] sm:$0xf]
        %v926 = vld [vmem:[%s922 + $0xc] sm:$0xf]
        %v927 = vld [vmem:[%s922 + $0x10] sm:$0xf]
        %v928 = vld [vmem:[%s922 + $0x14] sm:$0xf]
        %v929 = vld [vmem:[%s922 + $0x18] sm:$0xf]
        %v930 = vld [vmem:[%s922 + $0x1c] sm:$0xf]
        %v939 = vunpack.c.l.b16 %v914
        %v940 = vunpack.c.l.b16 %v915
        %v941 = vunpack.c.l.b16 %v916
        %v942 = vunpack.c.l.b16 %v917
        %v943 = vunpack.c.l.b16 %v918
        %v944 = vunpack.c.l.b16 %v919
        %v945 = vunpack.c.l.b16 %v920
        %v946 = vunpack.c.l.b16 %v921
        %v947 = vpack.c.b16 %v940, %v939
        %v948 = vpack.c.b16 %v942, %v941
        %v949 = vpack.c.b16 %v944, %v943
        %v950 = vpack.c.b16 %v946, %v945
        %v959 = vunpack.c.l.b16 %v923
        %v960 = vunpack.c.l.b16 %v924
        %v961 = vunpack.c.l.b16 %v925
        %v962 = vunpack.c.l.b16 %v926
        %v963 = vunpack.c.l.b16 %v927
        %v964 = vunpack.c.l.b16 %v928
        %v965 = vunpack.c.l.b16 %v929
        %v966 = vunpack.c.l.b16 %v930
        %v967 = vpack.c.b16 %v960, %v959
        %v968 = vpack.c.b16 %v962, %v961
        %v969 = vpack.c.b16 %v964, %v963
        %v970 = vpack.c.b16 %v966, %v965
        %v976 = vsel %vm342, %v947, 0
        %v979 = vsel %vm342, %v948, 0
        %v982 = vsel %vm342, %v949, 0
        %v985 = vsel %vm342, %v950, 0
        %987 = vmatpush.bf16.msra.mxu0 0
        %988 = vmatpush.bf16.msra.mxu0 0
        %989 = vmatpush.bf16.msra.mxu0 0
        %990 = vmatpush.bf16.msra.mxu0 0
        %991 = vmatpush.bf16.msra.mxu0 %v970
        %992 = vmatpush.bf16.msra.mxu0 %v969
        %993 = vmatpush.bf16.msra.mxu0 %v968
        %994 = vmatpush.bf16.msra.mxu0 %v967
        %995 = vmatmul.bf16.gmra.mxu0 %v976
        %v996 = vpop.f32.mrf.mxu0
        %v997 = vadd.f32 0.0, %v996
        %v998 = vpop.f32.mrf.mxu0
        %v999 = vadd.f32 0.0, %v998
        %1000 = vmatmul.bf16.gmra.mxu0 %v979
        %v1001 = vpop.f32.mrf.mxu0
        %v1002 = vadd.f32 0.0, %v1001
        %v1003 = vpop.f32.mrf.mxu0
        %v1004 = vadd.f32 0.0, %v1003
        %1005 = vmatmul.bf16.gmra.mxu0 %v982
        %v1006 = vpop.f32.mrf.mxu0
        %v1007 = vadd.f32 0.0, %v1006
        %v1008 = vpop.f32.mrf.mxu0
        %v1009 = vadd.f32 0.0, %v1008
        %1010 = vmatmul.bf16.gmra.mxu0 %v985
        %v1011 = vpop.f32.mrf.mxu0
        %v1012 = vadd.f32 0.0, %v1011
        %v1013 = vpop.f32.mrf.mxu0
        %v1014 = vadd.f32 0.0, %v1013
        %1015 = vdwg.mxu0
        %v1016 = vadd.f32 %v905, %v997
        %v1017 = vadd.f32 %v906, %v999
        %v1018 = vadd.f32 %v907, %v1002
        %v1019 = vadd.f32 %v908, %v1004
        %v1020 = vadd.f32 %v909, %v1007
        %v1021 = vadd.f32 %v910, %v1009
        %v1022 = vadd.f32 %v911, %v1012
        %v1023 = vadd.f32 %v912, %v1014
        %s1024 = scalar_lea.vmem %s250, 224
        %v1025 = vld [vmem:[%s1024] sm:$0xf]
        %v1026 = vld [vmem:[%s1024 + $0x4] sm:$0xf]
        %v1027 = vld [vmem:[%s1024 + $0x8] sm:$0xf]
        %v1028 = vld [vmem:[%s1024 + $0xc] sm:$0xf]
        %v1029 = vld [vmem:[%s1024 + $0x10] sm:$0xf]
        %v1030 = vld [vmem:[%s1024 + $0x14] sm:$0xf]
        %v1031 = vld [vmem:[%s1024 + $0x18] sm:$0xf]
        %v1032 = vld [vmem:[%s1024 + $0x1c] sm:$0xf]
        %s1033 = scalar_lea.vmem %s1, 224
        %v1034 = vld [vmem:[%s1033] sm:$0xf]
        %v1035 = vld [vmem:[%s1033 + $0x4] sm:$0xf]
        %v1036 = vld [vmem:[%s1033 + $0x8] sm:$0xf]
        %v1037 = vld [vmem:[%s1033 + $0xc] sm:$0xf]
        %v1038 = vld [vmem:[%s1033 + $0x10] sm:$0xf]
        %v1039 = vld [vmem:[%s1033 + $0x14] sm:$0xf]
        %v1040 = vld [vmem:[%s1033 + $0x18] sm:$0xf]
        %v1041 = vld [vmem:[%s1033 + $0x1c] sm:$0xf]
        %v1050 = vunpack.c.l.b16 %v1025
        %v1051 = vunpack.c.l.b16 %v1026
        %v1052 = vunpack.c.l.b16 %v1027
        %v1053 = vunpack.c.l.b16 %v1028
        %v1054 = vunpack.c.l.b16 %v1029
        %v1055 = vunpack.c.l.b16 %v1030
        %v1056 = vunpack.c.l.b16 %v1031
        %v1057 = vunpack.c.l.b16 %v1032
        %v1058 = vpack.c.b16 %v1051, %v1050
        %v1059 = vpack.c.b16 %v1053, %v1052
        %v1060 = vpack.c.b16 %v1055, %v1054
        %v1061 = vpack.c.b16 %v1057, %v1056
        %v1070 = vunpack.c.l.b16 %v1034
        %v1071 = vunpack.c.l.b16 %v1035
        %v1072 = vunpack.c.l.b16 %v1036
        %v1073 = vunpack.c.l.b16 %v1037
        %v1074 = vunpack.c.l.b16 %v1038
        %v1075 = vunpack.c.l.b16 %v1039
        %v1076 = vunpack.c.l.b16 %v1040
        %v1077 = vunpack.c.l.b16 %v1041
        %v1078 = vpack.c.b16 %v1071, %v1070
        %v1079 = vpack.c.b16 %v1073, %v1072
        %v1080 = vpack.c.b16 %v1075, %v1074
        %v1081 = vpack.c.b16 %v1077, %v1076
        %v1087 = vsel %vm342, %v1058, 0
        %v1090 = vsel %vm342, %v1059, 0
        %v1093 = vsel %vm342, %v1060, 0
        %v1096 = vsel %vm342, %v1061, 0
        %1098 = vmatpush.bf16.msra.mxu0 0
        %1099 = vmatpush.bf16.msra.mxu0 0
        %1100 = vmatpush.bf16.msra.mxu0 0
        %1101 = vmatpush.bf16.msra.mxu0 0
        %1102 = vmatpush.bf16.msra.mxu0 %v1081
        %1103 = vmatpush.bf16.msra.mxu0 %v1080
        %1104 = vmatpush.bf16.msra.mxu0 %v1079
        %1105 = vmatpush.bf16.msra.mxu0 %v1078
        %1106 = vmatmul.bf16.gmra.mxu0 %v1087
        %v1107 = vpop.f32.mrf.mxu0
        %v1108 = vadd.f32 0.0, %v1107
        %v1109 = vpop.f32.mrf.mxu0
        %v1110 = vadd.f32 0.0, %v1109
        %1111 = vmatmul.bf16.gmra.mxu0 %v1090
        %v1112 = vpop.f32.mrf.mxu0
        %v1113 = vadd.f32 0.0, %v1112
        %v1114 = vpop.f32.mrf.mxu0
        %v1115 = vadd.f32 0.0, %v1114
        %1116 = vmatmul.bf16.gmra.mxu0 %v1093
        %v1117 = vpop.f32.mrf.mxu0
        %v1118 = vadd.f32 0.0, %v1117
        %v1119 = vpop.f32.mrf.mxu0
        %v1120 = vadd.f32 0.0, %v1119
        %1121 = vmatmul.bf16.gmra.mxu0 %v1096
        %v1122 = vpop.f32.mrf.mxu0
        %v1123 = vadd.f32 0.0, %v1122
        %v1124 = vpop.f32.mrf.mxu0
        %v1125 = vadd.f32 0.0, %v1124
        %1126 = vdwg.mxu0
        %v1127 = vadd.f32 %v1016, %v1108
        %v1128 = vadd.f32 %v1017, %v1110
        %v1129 = vadd.f32 %v1018, %v1113
        %v1130 = vadd.f32 %v1019, %v1115
        %v1131 = vadd.f32 %v1020, %v1118
        %v1132 = vadd.f32 %v1021, %v1120
        %v1133 = vadd.f32 %v1022, %v1123
        %v1134 = vadd.f32 %v1023, %v1125
        %s1135 = scalar_lea.vmem %s250, 256
        %v1136 = vld [vmem:[%s1135] sm:$0xf]
        %v1137 = vld [vmem:[%s1135 + $0x4] sm:$0xf]
        %v1138 = vld [vmem:[%s1135 + $0x8] sm:$0xf]
        %v1139 = vld [vmem:[%s1135 + $0xc] sm:$0xf]
        %v1140 = vld [vmem:[%s1135 + $0x10] sm:$0xf]
        %v1141 = vld [vmem:[%s1135 + $0x14] sm:$0xf]
        %v1142 = vld [vmem:[%s1135 + $0x18] sm:$0xf]
        %v1143 = vld [vmem:[%s1135 + $0x1c] sm:$0xf]
        %s1144 = scalar_lea.vmem %s1, 256
        %v1145 = vld [vmem:[%s1144] sm:$0xf]
        %v1146 = vld [vmem:[%s1144 + $0x4] sm:$0xf]
        %v1147 = vld [vmem:[%s1144 + $0x8] sm:$0xf]
        %v1148 = vld [vmem:[%s1144 + $0xc] sm:$0xf]
        %v1149 = vld [vmem:[%s1144 + $0x10] sm:$0xf]
        %v1150 = vld [vmem:[%s1144 + $0x14] sm:$0xf]
        %v1151 = vld [vmem:[%s1144 + $0x18] sm:$0xf]
        %v1152 = vld [vmem:[%s1144 + $0x1c] sm:$0xf]
        %v1161 = vunpack.c.l.b16 %v1136
        %v1162 = vunpack.c.l.b16 %v1137
        %v1163 = vunpack.c.l.b16 %v1138
        %v1164 = vunpack.c.l.b16 %v1139
        %v1165 = vunpack.c.l.b16 %v1140
        %v1166 = vunpack.c.l.b16 %v1141
        %v1167 = vunpack.c.l.b16 %v1142
        %v1168 = vunpack.c.l.b16 %v1143
        %v1169 = vpack.c.b16 %v1162, %v1161
        %v1170 = vpack.c.b16 %v1164, %v1163
        %v1171 = vpack.c.b16 %v1166, %v1165
        %v1172 = vpack.c.b16 %v1168, %v1167
        %v1181 = vunpack.c.l.b16 %v1145
        %v1182 = vunpack.c.l.b16 %v1146
        %v1183 = vunpack.c.l.b16 %v1147
        %v1184 = vunpack.c.l.b16 %v1148
        %v1185 = vunpack.c.l.b16 %v1149
        %v1186 = vunpack.c.l.b16 %v1150
        %v1187 = vunpack.c.l.b16 %v1151
        %v1188 = vunpack.c.l.b16 %v1152
        %v1189 = vpack.c.b16 %v1182, %v1181
        %v1190 = vpack.c.b16 %v1184, %v1183
        %v1191 = vpack.c.b16 %v1186, %v1185
        %v1192 = vpack.c.b16 %v1188, %v1187
        %v1198 = vsel %vm342, %v1169, 0
        %v1201 = vsel %vm342, %v1170, 0
        %v1204 = vsel %vm342, %v1171, 0
        %v1207 = vsel %vm342, %v1172, 0
        %1209 = vmatpush.bf16.msra.mxu0 0
        %1210 = vmatpush.bf16.msra.mxu0 0
        %1211 = vmatpush.bf16.msra.mxu0 0
        %1212 = vmatpush.bf16.msra.mxu0 0
        %1213 = vmatpush.bf16.msra.mxu0 %v1192
        %1214 = vmatpush.bf16.msra.mxu0 %v1191
        %1215 = vmatpush.bf16.msra.mxu0 %v1190
        %1216 = vmatpush.bf16.msra.mxu0 %v1189
        %1217 = vmatmul.bf16.gmra.mxu0 %v1198
        %v1218 = vpop.f32.mrf.mxu0
        %v1219 = vadd.f32 0.0, %v1218
        %v1220 = vpop.f32.mrf.mxu0
        %v1221 = vadd.f32 0.0, %v1220
        %1222 = vmatmul.bf16.gmra.mxu0 %v1201
        %v1223 = vpop.f32.mrf.mxu0
        %v1224 = vadd.f32 0.0, %v1223
        %v1225 = vpop.f32.mrf.mxu0
        %v1226 = vadd.f32 0.0, %v1225
        %1227 = vmatmul.bf16.gmra.mxu0 %v1204
        %v1228 = vpop.f32.mrf.mxu0
        %v1229 = vadd.f32 0.0, %v1228
        %v1230 = vpop.f32.mrf.mxu0
        %v1231 = vadd.f32 0.0, %v1230
        %1232 = vmatmul.bf16.gmra.mxu0 %v1207
        %v1233 = vpop.f32.mrf.mxu0
        %v1234 = vadd.f32 0.0, %v1233
        %v1235 = vpop.f32.mrf.mxu0
        %v1236 = vadd.f32 0.0, %v1235
        %1237 = vdwg.mxu0
        %v1238 = vadd.f32 %v1127, %v1219
        %v1239 = vadd.f32 %v1128, %v1221
        %v1240 = vadd.f32 %v1129, %v1224
        %v1241 = vadd.f32 %v1130, %v1226
        %v1242 = vadd.f32 %v1131, %v1229
        %v1243 = vadd.f32 %v1132, %v1231
        %v1244 = vadd.f32 %v1133, %v1234
        %v1245 = vadd.f32 %v1134, %v1236
        %v1246 = vld [vmem:[%s2] sm:$0x1]
        %v1248 = vperm.slane %v1246, 0
        %v1250 = vadd.f32 %v1238, %v1248
        %v1251 = vadd.f32 %v1239, %v1248
        %v1252 = vadd.f32 %v1240, %v1248
        %v1253 = vadd.f32 %v1241, %v1248
        %v1254 = vadd.f32 %v1242, %v1248
        %v1255 = vadd.f32 %v1243, %v1248
        %v1256 = vadd.f32 %v1244, %v1248
        %v1257 = vadd.f32 %v1245, %v1248
        %v1258 = vld [vmem:[%s260] sm:$0xf]
        %v1259 = vld [vmem:[%s260 + $0x4] sm:$0xf]
        %v1260 = vld [vmem:[%s260 + $0x8] sm:$0xf]
        %v1261 = vld [vmem:[%s260 + $0xc] sm:$0xf]
        %v1262 = vld [vmem:[%s260 + $0x10] sm:$0xf]
        %v1263 = vld [vmem:[%s260 + $0x14] sm:$0xf]
        %v1264 = vld [vmem:[%s260 + $0x18] sm:$0xf]
        %v1265 = vld [vmem:[%s260 + $0x1c] sm:$0xf]
        %v1266 = vunpack.c.l.bf16 %v1258
        %v1267 = vunpack.c.l.bf16 %v1259
        %v1268 = vunpack.c.l.bf16 %v1260
        %v1269 = vunpack.c.l.bf16 %v1261
        %v1270 = vunpack.c.l.bf16 %v1262
        %v1271 = vunpack.c.l.bf16 %v1263
        %v1272 = vunpack.c.l.bf16 %v1264
        %v1273 = vunpack.c.l.bf16 %v1265
        %v1274 = vadd.f32 %v1250, %v1266
        %v1275 = vadd.f32 %v1251, %v1267
        %v1276 = vadd.f32 %v1252, %v1268
        %v1277 = vadd.f32 %v1253, %v1269
        %v1278 = vadd.f32 %v1254, %v1270
        %v1279 = vadd.f32 %v1255, %v1271
        %v1280 = vadd.f32 %v1256, %v1272
        %v1281 = vadd.f32 %v1257, %v1273
        %1282 = vst.msk [vmem:[%s241] sm:$0xff] %vm342, %v1274
        %1283 = vst.msk [vmem:[%s241 + $0x8] sm:$0xff] %vm342, %v1275
        %1284 = vst.msk [vmem:[%s241 + $0x10] sm:$0xff] %vm342, %v1276
        %1285 = vst.msk [vmem:[%s241 + $0x18] sm:$0xff] %vm342, %v1277
        %1286 = vst.msk [vmem:[%s241 + $0x20] sm:$0xff] %vm342, %v1278
        %1287 = vst.msk [vmem:[%s241 + $0x28] sm:$0xff] %vm342, %v1279
        %1288 = vst.msk [vmem:[%s241 + $0x30] sm:$0xff] %vm342, %v1280
        %1289 = vst.msk [vmem:[%s241 + $0x38] sm:$0xff] %vm342, %v1281
        %s1290 = sand.u32 %s138, 1
        %s1291 = scalar_lea.sflag [#allocation3], %s1290
        %s1292 = sand.u32 %s138, 1
        %s1293 = smul.addr %s1292, 64
        %s1294 = scalar_lea.vmem [#allocation2], %s1293
        // Predicated region
        $region37: #{depsep_forward.17} parent=35 // pred_check
          %p1295 = pneg %p148
        $region38: #{depsep_forward.17} parent=35 // pred_check_branch
          %1297 = sbr.rel (%p1295) target = $region40
        $region39: #{depsep_forward.17} parent=35 // pred_region
          %s1298 = smul.u32 8, %s23
          %1300 = vsyncadd %s1291, 0
          %s1301 = smul.addr %s22, 8
          %s1302 = sadd.s32 %s1298, %s1301
          %s1303 = smul.addr %s1302, 8
          %s1304 = scalar_lea.hbm %s4, %s1303
          %s1305 = sshll.u32 %s1294, 4
          %s1306 = int_to_ptr.vmem [resolvable:$true] %s1305
          %s1307 = sshll.u32 %s1304, 4
          %s1308 = int_to_ptr.hbm [resolvable:$true] %s1307
          %1313 = dma.vmem_to_hbm [thread:$0]  %s1306, 1024, %s1308, %s1291, 128, 128, 8
        $region40: #{depsep_forward.17} parent=35 // pred_fallthru
          _
      $region36: #{depsep_forward.17} parent=5 // pred_fallthru
        _
      %p1314 = scmp.le.s32.totalorder 2, %s13
      // Predicated region
      $region41: #{depsep_forward.17} parent=5 // pred_check
        %p1315 = pneg %p1314
      $region42: #{depsep_forward.17} parent=5 // pred_check_branch
        %1317 = sbr.rel (%p1315) target = $region44
      $region43: #{depsep_forward.17} parent=5 // pred_region
        %s1318 = ssub.s32 %s13, 2
        // Predicated region
        $region45: #{depsep_forward.17} parent=43 // pred_check
          %p1319 = pneg %p154
        $region46: #{depsep_forward.17} parent=43 // pred_check_branch
          %1321 = sbr.rel (%p1319) target = $region48
        $region47: #{depsep_forward.17} parent=43 // pred_region
          %s1322 = sand.u32 %s139, 1
          %s1323 = scalar_lea.sflag [#allocation3], %s1322
          %s1324 = sand.u32 %s139, 1
          %s1325 = smul.addr %s1324, 64
          %s1326 = scalar_lea.vmem [#allocation2], %s1325
          %1328 = dma.done %s1323, 1024
        $region48: #{depsep_forward.17} parent=43 // pred_fallthru
          _
      $region44: #{depsep_forward.17} parent=5 // pred_fallthru
        _
    $region6: #{depsep_forward.17} parent=1 // loop_footer
      %s17 = sadd.s32 1, %s13
    $region7: #{depsep_forward.17} parent=1 // loop_footer_branch
      %12 = sbr.rel target = $region3
    $region8: #{depsep_forward.17} parent=1 // loop_exit
      _
    %1329 = vsyncpa [#allocation3], 1
    %s1330 = scalar_lea.sflag [#allocation3], 1
    %1331 = vsyncpa %s1330, 1

</llo_original>
